<compile_context>
chip_gen: v7x
topology: tpu7x:2x2x1
jax: 0.10.0
libtpu: 0.0.40
codegen_flags: <defaults>
</compile_context>

<pallas_src>
import functools

import jax
import jax.numpy as jnp
from jax.experimental import pallas as pl
from jax.experimental.pallas import tpu as pltpu

EPS = 1e-3


def _bn_kernel(x_ref, g_ref, b_ref, o_ref, *, n_reduce):
    # x_ref: (TILE_C, L) block -- channels on sublanes, N*H*W on lanes.
    x = x_ref[...].astype(jnp.float32)
    inv_n = 1.0 / n_reduce

    # Defensive lane mask: the logical lane width (L = N*H*W) is not a
    # multiple of 128, so physical vreg lanes past it are padding.  jnp
    # reductions over the logical shape are already masked by Mosaic; this
    # makes the masking explicit and rides in spare VALU slots.
    lane = jax.lax.broadcasted_iota(jnp.int32, x.shape, 1)
    valid = lane < n_reduce

    s1 = jnp.sum(jnp.where(valid, x, 0.0), axis=-1, keepdims=True)   # (TILE_C, 1)
    mean = s1 * inv_n
    # Centered (two-pass) variance on the VMEM-resident tile: avoids
    # E[x^2] - mean^2 cancellation.  Biased variance, as PyTorch BatchNorm
    # uses for normalization in training mode.
    d = jnp.where(valid, x - mean, 0.0)
    var = jnp.sum(d * d, axis=-1, keepdims=True) * inv_n
    inv = jax.lax.rsqrt(var + EPS)

    # Hoisted affine: O(C) work here, only mul+add per element below.
    scale = g_ref[...].astype(jnp.float32) * inv                     # (TILE_C, 1)
    shift = b_ref[...].astype(jnp.float32) - mean * scale

    o_ref[...] = (x * scale + shift).astype(o_ref.dtype)


def _default_num_tiles(c):
    """Two channel tiles only on dual-TensorCore chips (v7x); else one."""
    try:
        kind = jax.devices()[0].device_kind.lower()
    except Exception:
        kind = ""
    n = 2 if "v7" in kind else 1
    if c % n != 0 or (c // n) % 8 != 0:
        n = 1
    return n


def batchnorm2d_train(x_nchw, gamma, beta, *, num_tiles=None):
    """BatchNorm2d forward in training mode (batch statistics), NCHW in/out."""
    N, C, H, W = x_nchw.shape
    L = N * H * W
    if num_tiles is None:
        num_tiles = _default_num_tiles(C)
    if C % num_tiles != 0 or (C // num_tiles) % 8 != 0:
        num_tiles = 1
    tile_c = C // num_tiles

    # (N, C, H, W) -> (C, N*H*W).  For N == 1 (the module's case) this is a
    # pure zero-copy reshape; for N > 1 it is a single transpose.
    x2d = jnp.transpose(x_nchw.reshape(N, C, H * W), (1, 0, 2)).reshape(C, L)

    g2d = gamma.reshape(C, 1).astype(jnp.float32)
    b2d = beta.reshape(C, 1).astype(jnp.float32)

    out2d = pl.pallas_call(
        functools.partial(_bn_kernel, n_reduce=L),
        out_shape=jax.ShapeDtypeStruct((C, L), x_nchw.dtype),
        grid_spec=pltpu.PrefetchScalarGridSpec(
            num_scalar_prefetch=0,
            grid=(num_tiles,),
            in_specs=[
                pl.BlockSpec((tile_c, L), lambda i: (i, 0)),
                pl.BlockSpec((tile_c, 1), lambda i: (i, 0)),
                pl.BlockSpec((tile_c, 1), lambda i: (i, 0)),
            ],
            out_specs=pl.BlockSpec((tile_c, L), lambda i: (i, 0)),
        ),
        compiler_params=pltpu.CompilerParams(
            dimension_semantics=("parallel",)
        ),
    )(x2d, g2d, b2d)

    # (C, N*H*W) -> (N, C, H, W); zero-copy for N == 1.
    out = jnp.transpose(out2d.reshape(C, N, H * W), (1, 0, 2))
    return out.reshape(N, C, H, W)


if __name__ == "__main__":
    key = jax.random.PRNGKey(0)
    kx, kg, kb = jax.random.split(key, 3)

    # Shapes of the module: x768 = randn([1, 3072, 7, 7])
    N, C, H, W = 1, 3072, 7, 7
    x = jax.random.normal(kx, (N, C, H, W), dtype=jnp.float32)
    # PyTorch default affine params are ones/zeros; use random values to
    # exercise the affine path.
    gamma = 1.0 + 0.1 * jax.random.normal(kg, (C,), dtype=jnp.float32)
    beta = 0.1 * jax.random.normal(kb, (C,), dtype=jnp.float32)

    out = jax.block_until_ready(batchnorm2d_train(x, gamma, beta))

    # Reference check (plain JAX, training-mode batch norm, centered variance).
    mean = jnp.mean(x, axis=(0, 2, 3), keepdims=True)
    var = jnp.mean(jnp.square(x - mean), axis=(0, 2, 3), keepdims=True)
    ref = (x - mean) * jax.lax.rsqrt(var + EPS) * gamma.reshape(1, C, 1, 1) \
        + beta.reshape(1, C, 1, 1)
    assert out.shape == (N, C, H, W)
    assert jnp.allclose(out, ref, atol=1e-4, rtol=1e-4)

    # TODO(synk): running_mean/running_var updates (track_running_stats) are a
    # training-time side effect that does not affect this forward output; not
    # implemented.
    print("KERNEL_OK")
</pallas_src>

<mosaic_0001>
module attributes {stable_mosaic.version = 11 : i64} {
  func.func @_bn_kernel(%arg0: i32, %arg1: memref<3072x49xf32, #tpu.memory_space<vmem>>, %arg2: memref<3072x1xf32, #tpu.memory_space<vmem>>, %arg3: memref<3072x1xf32, #tpu.memory_space<vmem>>, %arg4: memref<3072x49xf32, #tpu.memory_space<vmem>>) attributes {dimension_semantics = [#tpu.dimension_semantics<parallel>], iteration_bounds = array<i64: 1>, scalar_prefetch = 0 : i64, scratch_operands = 0 : i64, tpu.core_type = #tpu.core_type<tc>, window_params = [{transform_indices = @transform_0, window_bounds = array<i64: 3072, 49>}, {transform_indices = @transform_1, window_bounds = array<i64: 3072, 1>}, {transform_indices = @transform_2, window_bounds = array<i64: 3072, 1>}, {transform_indices = @transform_3, window_bounds = array<i64: 3072, 49>}]} {
    %c0 = arith.constant 0 : index
    %c0_0 = arith.constant 0 : index
    %0 = vector.load %arg1[%c0, %c0_0] : memref<3072x49xf32, #tpu.memory_space<vmem>>, vector<3072x49xf32>
    %1 = tpu.iota {dimensions = array<i32: 1>} : vector<3072x49xi32>
    %c49_i32 = arith.constant 49 : i32
    %2 = vector.broadcast %c49_i32 : i32 to vector<3072x49xi32>
    %3 = arith.cmpi slt, %1, %2 : vector<3072x49xi32>
    %cst = arith.constant 0.000000e+00 : f32
    %4 = vector.broadcast %cst : f32 to vector<3072x49xf32>
    %5 = arith.select %3, %0, %4 : vector<3072x49xi1>, vector<3072x49xf32>
    %cst_1 = arith.constant dense<0.000000e+00> : vector<3072xf32>
    %6 = vector.multi_reduction <add>, %5, %cst_1 [1] : vector<3072x49xf32> to vector<3072xf32>
    %7 = vector.shape_cast %6 : vector<3072xf32> to vector<3072x1xf32>
    %cst_2 = arith.constant 0.0204081628 : f32
    %8 = vector.broadcast %cst_2 : f32 to vector<3072x1xf32>
    %9 = arith.mulf %7, %8 : vector<3072x1xf32>
    %10 = vector.broadcast %9 : vector<3072x1xf32> to vector<3072x49xf32>
    %11 = arith.subf %0, %10 : vector<3072x49xf32>
    %cst_3 = arith.constant 0.000000e+00 : f32
    %12 = vector.broadcast %cst_3 : f32 to vector<3072x49xf32>
    %13 = arith.select %3, %11, %12 : vector<3072x49xi1>, vector<3072x49xf32>
    %14 = arith.mulf %13, %13 : vector<3072x49xf32>
    %cst_4 = arith.constant dense<0.000000e+00> : vector<3072xf32>
    %15 = vector.multi_reduction <add>, %14, %cst_4 [1] : vector<3072x49xf32> to vector<3072xf32>
    %16 = vector.shape_cast %15 : vector<3072xf32> to vector<3072x1xf32>
    %cst_5 = arith.constant 0.0204081628 : f32
    %17 = vector.broadcast %cst_5 : f32 to vector<3072x1xf32>
    %18 = arith.mulf %16, %17 : vector<3072x1xf32>
    %cst_6 = arith.constant 1.000000e-03 : f32
    %19 = vector.broadcast %cst_6 : f32 to vector<3072x1xf32>
    %20 = arith.addf %18, %19 : vector<3072x1xf32>
    %21 = math.rsqrt %20 : vector<3072x1xf32>
    %c0_7 = arith.constant 0 : index
    %c0_8 = arith.constant 0 : index
    %22 = vector.load %arg2[%c0_7, %c0_8] : memref<3072x1xf32, #tpu.memory_space<vmem>>, vector<3072x1xf32>
    %23 = arith.mulf %22, %21 : vector<3072x1xf32>
    %c0_9 = arith.constant 0 : index
    %c0_10 = arith.constant 0 : index
    %24 = vector.load %arg3[%c0_9, %c0_10] : memref<3072x1xf32, #tpu.memory_space<vmem>>, vector<3072x1xf32>
    %25 = arith.mulf %9, %23 : vector<3072x1xf32>
    %26 = arith.subf %24, %25 : vector<3072x1xf32>
    %27 = vector.broadcast %23 : vector<3072x1xf32> to vector<3072x49xf32>
    %28 = arith.mulf %0, %27 : vector<3072x49xf32>
    %29 = vector.broadcast %26 : vector<3072x1xf32> to vector<3072x49xf32>
    %30 = arith.addf %28, %29 : vector<3072x49xf32>
    %c0_11 = arith.constant 0 : index
    %c0_12 = arith.constant 0 : index
    %31 = vector.load %arg4[%c0_11, %c0_12] : memref<3072x49xf32, #tpu.memory_space<vmem>>, vector<3072x49xf32>
    tpu.vector_store %arg4[%c0_11, %c0_12], %30 {strides = array<i32>} : memref<3072x49xf32, #tpu.memory_space<vmem>>, vector<3072x49xf32>,
    return
  }
  func.func @transform_0(%arg0: i32) -> (i32, i32) {
    %c0_i32 = arith.constant 0 : i32
    %c0_i32_0 = arith.constant 0 : i32
    return %arg0, %c0_i32 : i32, i32
  }
  func.func @transform_1(%arg0: i32) -> (i32, i32) {
    %c0_i32 = arith.constant 0 : i32
    %c0_i32_0 = arith.constant 0 : i32
    return %arg0, %c0_i32 : i32, i32
  }
  func.func @transform_2(%arg0: i32) -> (i32, i32) {
    %c0_i32 = arith.constant 0 : i32
    %c0_i32_0 = arith.constant 0 : i32
    return %arg0, %c0_i32 : i32, i32
  }
  func.func @transform_3(%arg0: i32) -> (i32, i32) {
    %c0_i32 = arith.constant 0 : i32
    %c0_i32_0 = arith.constant 0 : i32
    return %arg0, %c0_i32 : i32, i32
  }
}

</mosaic_0001>

<llo_original>
// kernel: tpu_custom_call.1
$region0: #{tpu_custom_call.1}
  #allocation0 [shape = 'u32[]', space=smem, size = 0x4, offset = 0x4, fixed_abs, tag = 'smem constant byte address 0x4 - core index']
  #allocation1 [shape = 'u32[144,128]{1,0:T(1,128)}', space=vmem, size = 0x12000, scoped, tag = 'internal scratch']
  %s0 = inlined_call_operand.vmem [shape: f32[3072,49], index: 0, kind: input, shape index: {}]
  %s1 = inlined_call_operand.vmem [shape: f32[3072,1], index: 1, kind: input, shape index: {}]
  %s2 = inlined_call_operand.vmem [shape: f32[3072,1], index: 2, kind: input, shape index: {}]
  %s3 = inlined_call_operand.vmem [shape: f32[3072,49], index: 3, kind: output, shape index: {}]
  %s4 = sld [smem:[#allocation0]]
  $region22: #{tpu_custom_call.1} parent=0
    _
  %s6 = ssub.s32 1, %s4
  %s7 = scalar_select 0, %s6, %s4
  // Predicated region
  $region2: #{tpu_custom_call.1} parent=0 // pred_check
    _
  $region3: #{tpu_custom_call.1} parent=0 // pred_check_branch
    %9 = sbr.rel (0) target = $region5
  $region4: #{tpu_custom_call.1} parent=0 // pred_region
    _
  $region5: #{tpu_custom_call.1} parent=0 // pred_fallthru
    _
  // Predicated region
  $region6: #{tpu_custom_call.1} parent=0 // pred_check
    _
  $region7: #{tpu_custom_call.1} parent=0 // pred_check_branch
    %11 = sbr.rel (0) target = $region9
  $region8: #{tpu_custom_call.1} parent=0 // pred_region
    _
  $region9: #{tpu_custom_call.1} parent=0 // pred_fallthru
    _
  // Predicated region
  $region10: #{tpu_custom_call.1} parent=0 // pred_check
    _
  $region11: #{tpu_custom_call.1} parent=0 // pred_check_branch
    %13 = sbr.rel (0) target = $region13
  $region12: #{tpu_custom_call.1} parent=0 // pred_region
    _
  $region13: #{tpu_custom_call.1} parent=0 // pred_fallthru
    _
  %v14 = vld [vmem:[%s0] sm:$0xff]
  %v15 = vld [vmem:[%s0 + $0x8] sm:$0xff]
  %v16 = vld [vmem:[%s0 + $0x10] sm:$0xff]
  %v17 = vld [vmem:[%s0 + $0x18] sm:$0xff]
  %v18 = vld [vmem:[%s0 + $0x20] sm:$0xff]
  %v19 = vld [vmem:[%s0 + $0x28] sm:$0xff]
  %v20 = vld [vmem:[%s0 + $0x30] sm:$0xff]
  %v21 = vld [vmem:[%s0 + $0x38] sm:$0xff]
  %v22 = vld [vmem:[%s0 + $0x40] sm:$0xff]
  %v23 = vld [vmem:[%s0 + $0x48] sm:$0xff]
  %v24 = vld [vmem:[%s0 + $0x50] sm:$0xff]
  %v25 = vld [vmem:[%s0 + $0x58] sm:$0xff]
  %v26 = vld [vmem:[%s0 + $0x60] sm:$0xff]
  %v27 = vld [vmem:[%s0 + $0x68] sm:$0xff]
  %v28 = vld [vmem:[%s0 + $0x70] sm:$0xff]
  %v29 = vld [vmem:[%s0 + $0x78] sm:$0xff]
  %v30 = vld [vmem:[%s0 + $0x80] sm:$0xff]
  %v31 = vld [vmem:[%s0 + $0x88] sm:$0xff]
  %v32 = vld [vmem:[%s0 + $0x90] sm:$0xff]
  %v33 = vld [vmem:[%s0 + $0x98] sm:$0xff]
  %v34 = vld [vmem:[%s0 + $0xa0] sm:$0xff]
  %v35 = vld [vmem:[%s0 + $0xa8] sm:$0xff]
  %v36 = vld [vmem:[%s0 + $0xb0] sm:$0xff]
  %v37 = vld [vmem:[%s0 + $0xb8] sm:$0xff]
  %v38 = vld [vmem:[%s0 + $0xc0] sm:$0xff]
  %v39 = vld [vmem:[%s0 + $0xc8] sm:$0xff]
  %v40 = vld [vmem:[%s0 + $0xd0] sm:$0xff]
  %v41 = vld [vmem:[%s0 + $0xd8] sm:$0xff]
  %v42 = vld [vmem:[%s0 + $0xe0] sm:$0xff]
  %v43 = vld [vmem:[%s0 + $0xe8] sm:$0xff]
  %v44 = vld [vmem:[%s0 + $0xf0] sm:$0xff]
  %v45 = vld [vmem:[%s0 + $0xf8] sm:$0xff]
  %v46 = vld [vmem:[%s0 + $0x100] sm:$0xff]
  %v47 = vld [vmem:[%s0 + $0x108] sm:$0xff]
  %v48 = vld [vmem:[%s0 + $0x110] sm:$0xff]
  %v49 = vld [vmem:[%s0 + $0x118] sm:$0xff]
  %v50 = vld [vmem:[%s0 + $0x120] sm:$0xff]
  %v51 = vld [vmem:[%s0 + $0x128] sm:$0xff]
  %v52 = vld [vmem:[%s0 + $0x130] sm:$0xff]
  %v53 = vld [vmem:[%s0 + $0x138] sm:$0xff]
  %v54 = vld [vmem:[%s0 + $0x140] sm:$0xff]
  %v55 = vld [vmem:[%s0 + $0x148] sm:$0xff]
  %v56 = vld [vmem:[%s0 + $0x150] sm:$0xff]
  %v57 = vld [vmem:[%s0 + $0x158] sm:$0xff]
  %v58 = vld [vmem:[%s0 + $0x160] sm:$0xff]
  %v59 = vld [vmem:[%s0 + $0x168] sm:$0xff]
  %v60 = vld [vmem:[%s0 + $0x170] sm:$0xff]
  %v61 = vld [vmem:[%s0 + $0x178] sm:$0xff]
  %v62 = vld [vmem:[%s0 + $0x180] sm:$0xff]
  %v63 = vld [vmem:[%s0 + $0x188] sm:$0xff]
  %v64 = vld [vmem:[%s0 + $0x190] sm:$0xff]
  %v65 = vld [vmem:[%s0 + $0x198] sm:$0xff]
  %v66 = vld [vmem:[%s0 + $0x1a0] sm:$0xff]
  %v67 = vld [vmem:[%s0 + $0x1a8] sm:$0xff]
  %v68 = vld [vmem:[%s0 + $0x1b0] sm:$0xff]
  %v69 = vld [vmem:[%s0 + $0x1b8] sm:$0xff]
  %v70 = vld [vmem:[%s0 + $0x1c0] sm:$0xff]
  %v71 = vld [vmem:[%s0 + $0x1c8] sm:$0xff]
  %v72 = vld [vmem:[%s0 + $0x1d0] sm:$0xff]
  %v73 = vld [vmem:[%s0 + $0x1d8] sm:$0xff]
  %v74 = vld [vmem:[%s0 + $0x1e0] sm:$0xff]
  %v75 = vld [vmem:[%s0 + $0x1e8] sm:$0xff]
  %v76 = vld [vmem:[%s0 + $0x1f0] sm:$0xff]
  %v77 = vld [vmem:[%s0 + $0x1f8] sm:$0xff]
  %v78 = vld [vmem:[%s0 + $0x200] sm:$0xff]
  %v79 = vld [vmem:[%s0 + $0x208] sm:$0xff]
  %v80 = vld [vmem:[%s0 + $0x210] sm:$0xff]
  %v81 = vld [vmem:[%s0 + $0x218] sm:$0xff]
  %v82 = vld [vmem:[%s0 + $0x220] sm:$0xff]
  %v83 = vld [vmem:[%s0 + $0x228] sm:$0xff]
  %v84 = vld [vmem:[%s0 + $0x230] sm:$0xff]
  %v85 = vld [vmem:[%s0 + $0x238] sm:$0xff]
  %v86 = vld [vmem:[%s0 + $0x240] sm:$0xff]
  %v87 = vld [vmem:[%s0 + $0x248] sm:$0xff]
  %v88 = vld [vmem:[%s0 + $0x250] sm:$0xff]
  %v89 = vld [vmem:[%s0 + $0x258] sm:$0xff]
  %v90 = vld [vmem:[%s0 + $0x260] sm:$0xff]
  %v91 = vld [vmem:[%s0 + $0x268] sm:$0xff]
  %v92 = vld [vmem:[%s0 + $0x270] sm:$0xff]
  %v93 = vld [vmem:[%s0 + $0x278] sm:$0xff]
  %v94 = vld [vmem:[%s0 + $0x280] sm:$0xff]
  %v95 = vld [vmem:[%s0 + $0x288] sm:$0xff]
  %v96 = vld [vmem:[%s0 + $0x290] sm:$0xff]
  %v97 = vld [vmem:[%s0 + $0x298] sm:$0xff]
  %v98 = vld [vmem:[%s0 + $0x2a0] sm:$0xff]
  %v99 = vld [vmem:[%s0 + $0x2a8] sm:$0xff]
  %v100 = vld [vmem:[%s0 + $0x2b0] sm:$0xff]
  %v101 = vld [vmem:[%s0 + $0x2b8] sm:$0xff]
  %v102 = vld [vmem:[%s0 + $0x2c0] sm:$0xff]
  %v103 = vld [vmem:[%s0 + $0x2c8] sm:$0xff]
  %v104 = vld [vmem:[%s0 + $0x2d0] sm:$0xff]
  %v105 = vld [vmem:[%s0 + $0x2d8] sm:$0xff]
  %v106 = vld [vmem:[%s0 + $0x2e0] sm:$0xff]
  %v107 = vld [vmem:[%s0 + $0x2e8] sm:$0xff]
  %v108 = vld [vmem:[%s0 + $0x2f0] sm:$0xff]
  %v109 = vld [vmem:[%s0 + $0x2f8] sm:$0xff]
  %v110 = vld [vmem:[%s0 + $0x300] sm:$0xff]
  %v111 = vld [vmem:[%s0 + $0x308] sm:$0xff]
  %v112 = vld [vmem:[%s0 + $0x310] sm:$0xff]
  %v113 = vld [vmem:[%s0 + $0x318] sm:$0xff]
  %v114 = vld [vmem:[%s0 + $0x320] sm:$0xff]
  %v115 = vld [vmem:[%s0 + $0x328] sm:$0xff]
  %v116 = vld [vmem:[%s0 + $0x330] sm:$0xff]
  %v117 = vld [vmem:[%s0 + $0x338] sm:$0xff]
  %v118 = vld [vmem:[%s0 + $0x340] sm:$0xff]
  %v119 = vld [vmem:[%s0 + $0x348] sm:$0xff]
  %v120 = vld [vmem:[%s0 + $0x350] sm:$0xff]
  %v121 = vld [vmem:[%s0 + $0x358] sm:$0xff]
  %v122 = vld [vmem:[%s0 + $0x360] sm:$0xff]
  %v123 = vld [vmem:[%s0 + $0x368] sm:$0xff]
  %v124 = vld [vmem:[%s0 + $0x370] sm:$0xff]
  %v125 = vld [vmem:[%s0 + $0x378] sm:$0xff]
  %v126 = vld [vmem:[%s0 + $0x380] sm:$0xff]
  %v127 = vld [vmem:[%s0 + $0x388] sm:$0xff]
  %v128 = vld [vmem:[%s0 + $0x390] sm:$0xff]
  %v129 = vld [vmem:[%s0 + $0x398] sm:$0xff]
  %v130 = vld [vmem:[%s0 + $0x3a0] sm:$0xff]
  %v131 = vld [vmem:[%s0 + $0x3a8] sm:$0xff]
  %v132 = vld [vmem:[%s0 + $0x3b0] sm:$0xff]
  %v133 = vld [vmem:[%s0 + $0x3b8] sm:$0xff]
  %v134 = vld [vmem:[%s0 + $0x3c0] sm:$0xff]
  %v135 = vld [vmem:[%s0 + $0x3c8] sm:$0xff]
  %v136 = vld [vmem:[%s0 + $0x3d0] sm:$0xff]
  %v137 = vld [vmem:[%s0 + $0x3d8] sm:$0xff]
  %v138 = vld [vmem:[%s0 + $0x3e0] sm:$0xff]
  %v139 = vld [vmem:[%s0 + $0x3e8] sm:$0xff]
  %v140 = vld [vmem:[%s0 + $0x3f0] sm:$0xff]
  %v141 = vld [vmem:[%s0 + $0x3f8] sm:$0xff]
  %v142 = vld [vmem:[%s0 + $0x400] sm:$0xff]
  %v143 = vld [vmem:[%s0 + $0x408] sm:$0xff]
  %v144 = vld [vmem:[%s0 + $0x410] sm:$0xff]
  %v145 = vld [vmem:[%s0 + $0x418] sm:$0xff]
  %v146 = vld [vmem:[%s0 + $0x420] sm:$0xff]
  %v147 = vld [vmem:[%s0 + $0x428] sm:$0xff]
  %v148 = vld [vmem:[%s0 + $0x430] sm:$0xff]
  %v149 = vld [vmem:[%s0 + $0x438] sm:$0xff]
  %v150 = vld [vmem:[%s0 + $0x440] sm:$0xff]
  %v151 = vld [vmem:[%s0 + $0x448] sm:$0xff]
  %v152 = vld [vmem:[%s0 + $0x450] sm:$0xff]
  %v153 = vld [vmem:[%s0 + $0x458] sm:$0xff]
  %v154 = vld [vmem:[%s0 + $0x460] sm:$0xff]
  %v155 = vld [vmem:[%s0 + $0x468] sm:$0xff]
  %v156 = vld [vmem:[%s0 + $0x470] sm:$0xff]
  %v157 = vld [vmem:[%s0 + $0x478] sm:$0xff]
  %v158 = vld [vmem:[%s0 + $0x480] sm:$0xff]
  %v159 = vld [vmem:[%s0 + $0x488] sm:$0xff]
  %v160 = vld [vmem:[%s0 + $0x490] sm:$0xff]
  %v161 = vld [vmem:[%s0 + $0x498] sm:$0xff]
  %v162 = vld [vmem:[%s0 + $0x4a0] sm:$0xff]
  %v163 = vld [vmem:[%s0 + $0x4a8] sm:$0xff]
  %v164 = vld [vmem:[%s0 + $0x4b0] sm:$0xff]
  %v165 = vld [vmem:[%s0 + $0x4b8] sm:$0xff]
  %v166 = vld [vmem:[%s0 + $0x4c0] sm:$0xff]
  %v167 = vld [vmem:[%s0 + $0x4c8] sm:$0xff]
  %v168 = vld [vmem:[%s0 + $0x4d0] sm:$0xff]
  %v169 = vld [vmem:[%s0 + $0x4d8] sm:$0xff]
  %v170 = vld [vmem:[%s0 + $0x4e0] sm:$0xff]
  %v171 = vld [vmem:[%s0 + $0x4e8] sm:$0xff]
  %v172 = vld [vmem:[%s0 + $0x4f0] sm:$0xff]
  %v173 = vld [vmem:[%s0 + $0x4f8] sm:$0xff]
  %v174 = vld [vmem:[%s0 + $0x500] sm:$0xff]
  %v175 = vld [vmem:[%s0 + $0x508] sm:$0xff]
  %v176 = vld [vmem:[%s0 + $0x510] sm:$0xff]
  %v177 = vld [vmem:[%s0 + $0x518] sm:$0xff]
  %v178 = vld [vmem:[%s0 + $0x520] sm:$0xff]
  %v179 = vld [vmem:[%s0 + $0x528] sm:$0xff]
  %v180 = vld [vmem:[%s0 + $0x530] sm:$0xff]
  %v181 = vld [vmem:[%s0 + $0x538] sm:$0xff]
  %v182 = vld [vmem:[%s0 + $0x540] sm:$0xff]
  %v183 = vld [vmem:[%s0 + $0x548] sm:$0xff]
  %v184 = vld [vmem:[%s0 + $0x550] sm:$0xff]
  %v185 = vld [vmem:[%s0 + $0x558] sm:$0xff]
  %v186 = vld [vmem:[%s0 + $0x560] sm:$0xff]
  %v187 = vld [vmem:[%s0 + $0x568] sm:$0xff]
  %v188 = vld [vmem:[%s0 + $0x570] sm:$0xff]
  %v189 = vld [vmem:[%s0 + $0x578] sm:$0xff]
  %v190 = vld [vmem:[%s0 + $0x580] sm:$0xff]
  %v191 = vld [vmem:[%s0 + $0x588] sm:$0xff]
  %v192 = vld [vmem:[%s0 + $0x590] sm:$0xff]
  %v193 = vld [vmem:[%s0 + $0x598] sm:$0xff]
  %v194 = vld [vmem:[%s0 + $0x5a0] sm:$0xff]
  %v195 = vld [vmem:[%s0 + $0x5a8] sm:$0xff]
  %v196 = vld [vmem:[%s0 + $0x5b0] sm:$0xff]
  %v197 = vld [vmem:[%s0 + $0x5b8] sm:$0xff]
  %v198 = vld [vmem:[%s0 + $0x5c0] sm:$0xff]
  %v199 = vld [vmem:[%s0 + $0x5c8] sm:$0xff]
  %v200 = vld [vmem:[%s0 + $0x5d0] sm:$0xff]
  %v201 = vld [vmem:[%s0 + $0x5d8] sm:$0xff]
  %v202 = vld [vmem:[%s0 + $0x5e0] sm:$0xff]
  %v203 = vld [vmem:[%s0 + $0x5e8] sm:$0xff]
  %v204 = vld [vmem:[%s0 + $0x5f0] sm:$0xff]
  %v205 = vld [vmem:[%s0 + $0x5f8] sm:$0xff]
  %v206 = vld [vmem:[%s0 + $0x600] sm:$0xff]
  %v207 = vld [vmem:[%s0 + $0x608] sm:$0xff]
  %v208 = vld [vmem:[%s0 + $0x610] sm:$0xff]
  %v209 = vld [vmem:[%s0 + $0x618] sm:$0xff]
  %v210 = vld [vmem:[%s0 + $0x620] sm:$0xff]
  %v211 = vld [vmem:[%s0 + $0x628] sm:$0xff]
  %v212 = vld [vmem:[%s0 + $0x630] sm:$0xff]
  %v213 = vld [vmem:[%s0 + $0x638] sm:$0xff]
  %v214 = vld [vmem:[%s0 + $0x640] sm:$0xff]
  %v215 = vld [vmem:[%s0 + $0x648] sm:$0xff]
  %v216 = vld [vmem:[%s0 + $0x650] sm:$0xff]
  %v217 = vld [vmem:[%s0 + $0x658] sm:$0xff]
  %v218 = vld [vmem:[%s0 + $0x660] sm:$0xff]
  %v219 = vld [vmem:[%s0 + $0x668] sm:$0xff]
  %v220 = vld [vmem:[%s0 + $0x670] sm:$0xff]
  %v221 = vld [vmem:[%s0 + $0x678] sm:$0xff]
  %v222 = vld [vmem:[%s0 + $0x680] sm:$0xff]
  %v223 = vld [vmem:[%s0 + $0x688] sm:$0xff]
  %v224 = vld [vmem:[%s0 + $0x690] sm:$0xff]
  %v225 = vld [vmem:[%s0 + $0x698] sm:$0xff]
  %v226 = vld [vmem:[%s0 + $0x6a0] sm:$0xff]
  %v227 = vld [vmem:[%s0 + $0x6a8] sm:$0xff]
  %v228 = vld [vmem:[%s0 + $0x6b0] sm:$0xff]
  %v229 = vld [vmem:[%s0 + $0x6b8] sm:$0xff]
  %v230 = vld [vmem:[%s0 + $0x6c0] sm:$0xff]
  %v231 = vld [vmem:[%s0 + $0x6c8] sm:$0xff]
  %v232 = vld [vmem:[%s0 + $0x6d0] sm:$0xff]
  %v233 = vld [vmem:[%s0 + $0x6d8] sm:$0xff]
  %v234 = vld [vmem:[%s0 + $0x6e0] sm:$0xff]
  %v235 = vld [vmem:[%s0 + $0x6e8] sm:$0xff]
  %v236 = vld [vmem:[%s0 + $0x6f0] sm:$0xff]
  %v237 = vld [vmem:[%s0 + $0x6f8] sm:$0xff]
  %v238 = vld [vmem:[%s0 + $0x700] sm:$0xff]
  %v239 = vld [vmem:[%s0 + $0x708] sm:$0xff]
  %v240 = vld [vmem:[%s0 + $0x710] sm:$0xff]
  %v241 = vld [vmem:[%s0 + $0x718] sm:$0xff]
  %v242 = vld [vmem:[%s0 + $0x720] sm:$0xff]
  %v243 = vld [vmem:[%s0 + $0x728] sm:$0xff]
  %v244 = vld [vmem:[%s0 + $0x730] sm:$0xff]
  %v245 = vld [vmem:[%s0 + $0x738] sm:$0xff]
  %v246 = vld [vmem:[%s0 + $0x740] sm:$0xff]
  %v247 = vld [vmem:[%s0 + $0x748] sm:$0xff]
  %v248 = vld [vmem:[%s0 + $0x750] sm:$0xff]
  %v249 = vld [vmem:[%s0 + $0x758] sm:$0xff]
  %v250 = vld [vmem:[%s0 + $0x760] sm:$0xff]
  %v251 = vld [vmem:[%s0 + $0x768] sm:$0xff]
  %v252 = vld [vmem:[%s0 + $0x770] sm:$0xff]
  %v253 = vld [vmem:[%s0 + $0x778] sm:$0xff]
  %v254 = vld [vmem:[%s0 + $0x780] sm:$0xff]
  %v255 = vld [vmem:[%s0 + $0x788] sm:$0xff]
  %v256 = vld [vmem:[%s0 + $0x790] sm:$0xff]
  %v257 = vld [vmem:[%s0 + $0x798] sm:$0xff]
  %v258 = vld [vmem:[%s0 + $0x7a0] sm:$0xff]
  %v259 = vld [vmem:[%s0 + $0x7a8] sm:$0xff]
  %v260 = vld [vmem:[%s0 + $0x7b0] sm:$0xff]
  %v261 = vld [vmem:[%s0 + $0x7b8] sm:$0xff]
  %v262 = vld [vmem:[%s0 + $0x7c0] sm:$0xff]
  %v263 = vld [vmem:[%s0 + $0x7c8] sm:$0xff]
  %v264 = vld [vmem:[%s0 + $0x7d0] sm:$0xff]
  %v265 = vld [vmem:[%s0 + $0x7d8] sm:$0xff]
  %v266 = vld [vmem:[%s0 + $0x7e0] sm:$0xff]
  %v267 = vld [vmem:[%s0 + $0x7e8] sm:$0xff]
  %v268 = vld [vmem:[%s0 + $0x7f0] sm:$0xff]
  %v269 = vld [vmem:[%s0 + $0x7f8] sm:$0xff]
  %v270 = vld [vmem:[%s0 + $0x800] sm:$0xff]
  %v271 = vld [vmem:[%s0 + $0x808] sm:$0xff]
  %v272 = vld [vmem:[%s0 + $0x810] sm:$0xff]
  %v273 = vld [vmem:[%s0 + $0x818] sm:$0xff]
  %v274 = vld [vmem:[%s0 + $0x820] sm:$0xff]
  %v275 = vld [vmem:[%s0 + $0x828] sm:$0xff]
  %v276 = vld [vmem:[%s0 + $0x830] sm:$0xff]
  %v277 = vld [vmem:[%s0 + $0x838] sm:$0xff]
  %v278 = vld [vmem:[%s0 + $0x840] sm:$0xff]
  %v279 = vld [vmem:[%s0 + $0x848] sm:$0xff]
  %v280 = vld [vmem:[%s0 + $0x850] sm:$0xff]
  %v281 = vld [vmem:[%s0 + $0x858] sm:$0xff]
  %v282 = vld [vmem:[%s0 + $0x860] sm:$0xff]
  %v283 = vld [vmem:[%s0 + $0x868] sm:$0xff]
  %v284 = vld [vmem:[%s0 + $0x870] sm:$0xff]
  %v285 = vld [vmem:[%s0 + $0x878] sm:$0xff]
  %v286 = vld [vmem:[%s0 + $0x880] sm:$0xff]
  %v287 = vld [vmem:[%s0 + $0x888] sm:$0xff]
  %v288 = vld [vmem:[%s0 + $0x890] sm:$0xff]
  %v289 = vld [vmem:[%s0 + $0x898] sm:$0xff]
  %v290 = vld [vmem:[%s0 + $0x8a0] sm:$0xff]
  %v291 = vld [vmem:[%s0 + $0x8a8] sm:$0xff]
  %v292 = vld [vmem:[%s0 + $0x8b0] sm:$0xff]
  %v293 = vld [vmem:[%s0 + $0x8b8] sm:$0xff]
  %v294 = vld [vmem:[%s0 + $0x8c0] sm:$0xff]
  %v295 = vld [vmem:[%s0 + $0x8c8] sm:$0xff]
  %v296 = vld [vmem:[%s0 + $0x8d0] sm:$0xff]
  %v297 = vld [vmem:[%s0 + $0x8d8] sm:$0xff]
  %v298 = vld [vmem:[%s0 + $0x8e0] sm:$0xff]
  %v299 = vld [vmem:[%s0 + $0x8e8] sm:$0xff]
  %v300 = vld [vmem:[%s0 + $0x8f0] sm:$0xff]
  %v301 = vld [vmem:[%s0 + $0x8f8] sm:$0xff]
  %v302 = vld [vmem:[%s0 + $0x900] sm:$0xff]
  %v303 = vld [vmem:[%s0 + $0x908] sm:$0xff]
  %v304 = vld [vmem:[%s0 + $0x910] sm:$0xff]
  %v305 = vld [vmem:[%s0 + $0x918] sm:$0xff]
  %v306 = vld [vmem:[%s0 + $0x920] sm:$0xff]
  %v307 = vld [vmem:[%s0 + $0x928] sm:$0xff]
  %v308 = vld [vmem:[%s0 + $0x930] sm:$0xff]
  %v309 = vld [vmem:[%s0 + $0x938] sm:$0xff]
  %v310 = vld [vmem:[%s0 + $0x940] sm:$0xff]
  %v311 = vld [vmem:[%s0 + $0x948] sm:$0xff]
  %v312 = vld [vmem:[%s0 + $0x950] sm:$0xff]
  %v313 = vld [vmem:[%s0 + $0x958] sm:$0xff]
  %v314 = vld [vmem:[%s0 + $0x960] sm:$0xff]
  %v315 = vld [vmem:[%s0 + $0x968] sm:$0xff]
  %v316 = vld [vmem:[%s0 + $0x970] sm:$0xff]
  %v317 = vld [vmem:[%s0 + $0x978] sm:$0xff]
  %v318 = vld [vmem:[%s0 + $0x980] sm:$0xff]
  %v319 = vld [vmem:[%s0 + $0x988] sm:$0xff]
  %v320 = vld [vmem:[%s0 + $0x990] sm:$0xff]
  %v321 = vld [vmem:[%s0 + $0x998] sm:$0xff]
  %v322 = vld [vmem:[%s0 + $0x9a0] sm:$0xff]
  %v323 = vld [vmem:[%s0 + $0x9a8] sm:$0xff]
  %v324 = vld [vmem:[%s0 + $0x9b0] sm:$0xff]
  %v325 = vld [vmem:[%s0 + $0x9b8] sm:$0xff]
  %v326 = vld [vmem:[%s0 + $0x9c0] sm:$0xff]
  %v327 = vld [vmem:[%s0 + $0x9c8] sm:$0xff]
  %v328 = vld [vmem:[%s0 + $0x9d0] sm:$0xff]
  %v329 = vld [vmem:[%s0 + $0x9d8] sm:$0xff]
  %v330 = vld [vmem:[%s0 + $0x9e0] sm:$0xff]
  %v331 = vld [vmem:[%s0 + $0x9e8] sm:$0xff]
  %v332 = vld [vmem:[%s0 + $0x9f0] sm:$0xff]
  %v333 = vld [vmem:[%s0 + $0x9f8] sm:$0xff]
  %v334 = vld [vmem:[%s0 + $0xa00] sm:$0xff]
  %v335 = vld [vmem:[%s0 + $0xa08] sm:$0xff]
  %v336 = vld [vmem:[%s0 + $0xa10] sm:$0xff]
  %v337 = vld [vmem:[%s0 + $0xa18] sm:$0xff]
  %v338 = vld [vmem:[%s0 + $0xa20] sm:$0xff]
  %v339 = vld [vmem:[%s0 + $0xa28] sm:$0xff]
  %v340 = vld [vmem:[%s0 + $0xa30] sm:$0xff]
  %v341 = vld [vmem:[%s0 + $0xa38] sm:$0xff]
  %v342 = vld [vmem:[%s0 + $0xa40] sm:$0xff]
  %v343 = vld [vmem:[%s0 + $0xa48] sm:$0xff]
  %v344 = vld [vmem:[%s0 + $0xa50] sm:$0xff]
  %v345 = vld [vmem:[%s0 + $0xa58] sm:$0xff]
  %v346 = vld [vmem:[%s0 + $0xa60] sm:$0xff]
  %v347 = vld [vmem:[%s0 + $0xa68] sm:$0xff]
  %v348 = vld [vmem:[%s0 + $0xa70] sm:$0xff]
  %v349 = vld [vmem:[%s0 + $0xa78] sm:$0xff]
  %v350 = vld [vmem:[%s0 + $0xa80] sm:$0xff]
  %v351 = vld [vmem:[%s0 + $0xa88] sm:$0xff]
  %v352 = vld [vmem:[%s0 + $0xa90] sm:$0xff]
  %v353 = vld [vmem:[%s0 + $0xa98] sm:$0xff]
  %v354 = vld [vmem:[%s0 + $0xaa0] sm:$0xff]
  %v355 = vld [vmem:[%s0 + $0xaa8] sm:$0xff]
  %v356 = vld [vmem:[%s0 + $0xab0] sm:$0xff]
  %v357 = vld [vmem:[%s0 + $0xab8] sm:$0xff]
  %v358 = vld [vmem:[%s0 + $0xac0] sm:$0xff]
  %v359 = vld [vmem:[%s0 + $0xac8] sm:$0xff]
  %v360 = vld [vmem:[%s0 + $0xad0] sm:$0xff]
  %v361 = vld [vmem:[%s0 + $0xad8] sm:$0xff]
  %v362 = vld [vmem:[%s0 + $0xae0] sm:$0xff]
  %v363 = vld [vmem:[%s0 + $0xae8] sm:$0xff]
  %v364 = vld [vmem:[%s0 + $0xaf0] sm:$0xff]
  %v365 = vld [vmem:[%s0 + $0xaf8] sm:$0xff]
  %v366 = vld [vmem:[%s0 + $0xb00] sm:$0xff]
  %v367 = vld [vmem:[%s0 + $0xb08] sm:$0xff]
  %v368 = vld [vmem:[%s0 + $0xb10] sm:$0xff]
  %v369 = vld [vmem:[%s0 + $0xb18] sm:$0xff]
  %v370 = vld [vmem:[%s0 + $0xb20] sm:$0xff]
  %v371 = vld [vmem:[%s0 + $0xb28] sm:$0xff]
  %v372 = vld [vmem:[%s0 + $0xb30] sm:$0xff]
  %v373 = vld [vmem:[%s0 + $0xb38] sm:$0xff]
  %v374 = vld [vmem:[%s0 + $0xb40] sm:$0xff]
  %v375 = vld [vmem:[%s0 + $0xb48] sm:$0xff]
  %v376 = vld [vmem:[%s0 + $0xb50] sm:$0xff]
  %v377 = vld [vmem:[%s0 + $0xb58] sm:$0xff]
  %v378 = vld [vmem:[%s0 + $0xb60] sm:$0xff]
  %v379 = vld [vmem:[%s0 + $0xb68] sm:$0xff]
  %v380 = vld [vmem:[%s0 + $0xb70] sm:$0xff]
  %v381 = vld [vmem:[%s0 + $0xb78] sm:$0xff]
  %v382 = vld [vmem:[%s0 + $0xb80] sm:$0xff]
  %v383 = vld [vmem:[%s0 + $0xb88] sm:$0xff]
  %v384 = vld [vmem:[%s0 + $0xb90] sm:$0xff]
  %v385 = vld [vmem:[%s0 + $0xb98] sm:$0xff]
  %v386 = vld [vmem:[%s0 + $0xba0] sm:$0xff]
  %v387 = vld [vmem:[%s0 + $0xba8] sm:$0xff]
  %v388 = vld [vmem:[%s0 + $0xbb0] sm:$0xff]
  %v389 = vld [vmem:[%s0 + $0xbb8] sm:$0xff]
  %v390 = vld [vmem:[%s0 + $0xbc0] sm:$0xff]
  %v391 = vld [vmem:[%s0 + $0xbc8] sm:$0xff]
  %v392 = vld [vmem:[%s0 + $0xbd0] sm:$0xff]
  %v393 = vld [vmem:[%s0 + $0xbd8] sm:$0xff]
  %v394 = vld [vmem:[%s0 + $0xbe0] sm:$0xff]
  %v395 = vld [vmem:[%s0 + $0xbe8] sm:$0xff]
  %v396 = vld [vmem:[%s0 + $0xbf0] sm:$0xff]
  %v397 = vld [vmem:[%s0 + $0xbf8] sm:$0xff]
  %v398 = vlaneseq
  %v399 = vand.u32 %v398, 127
  %vm400 = vcmp.lt.s32.totalorder %v399, 49
  %v401 = vsel %vm400, %v14, 0.0
  %v402 = vsel %vm400, %v15, 0.0
  %v403 = vsel %vm400, %v16, 0.0
  %v404 = vsel %vm400, %v17, 0.0
  %v405 = vsel %vm400, %v18, 0.0
  %v406 = vsel %vm400, %v19, 0.0
  %v407 = vsel %vm400, %v20, 0.0
  %v408 = vsel %vm400, %v21, 0.0
  %v409 = vsel %vm400, %v22, 0.0
  %v410 = vsel %vm400, %v23, 0.0
  %v411 = vsel %vm400, %v24, 0.0
  %v412 = vsel %vm400, %v25, 0.0
  %v413 = vsel %vm400, %v26, 0.0
  %v414 = vsel %vm400, %v27, 0.0
  %v415 = vsel %vm400, %v28, 0.0
  %v416 = vsel %vm400, %v29, 0.0
  %v417 = vsel %vm400, %v30, 0.0
  %v418 = vsel %vm400, %v31, 0.0
  %v419 = vsel %vm400, %v32, 0.0
  %v420 = vsel %vm400, %v33, 0.0
  %v421 = vsel %vm400, %v34, 0.0
  %v422 = vsel %vm400, %v35, 0.0
  %v423 = vsel %vm400, %v36, 0.0
  %v424 = vsel %vm400, %v37, 0.0
  %v425 = vsel %vm400, %v38, 0.0
  %v426 = vsel %vm400, %v39, 0.0
  %v427 = vsel %vm400, %v40, 0.0
  %v428 = vsel %vm400, %v41, 0.0
  %v429 = vsel %vm400, %v42, 0.0
  %v430 = vsel %vm400, %v43, 0.0
  %v431 = vsel %vm400, %v44, 0.0
  %v432 = vsel %vm400, %v45, 0.0
  %v433 = vsel %vm400, %v46, 0.0
  %v434 = vsel %vm400, %v47, 0.0
  %v435 = vsel %vm400, %v48, 0.0
  %v436 = vsel %vm400, %v49, 0.0
  %v437 = vsel %vm400, %v50, 0.0
  %v438 = vsel %vm400, %v51, 0.0
  %v439 = vsel %vm400, %v52, 0.0
  %v440 = vsel %vm400, %v53, 0.0
  %v441 = vsel %vm400, %v54, 0.0
  %v442 = vsel %vm400, %v55, 0.0
  %v443 = vsel %vm400, %v56, 0.0
  %v444 = vsel %vm400, %v57, 0.0
  %v445 = vsel %vm400, %v58, 0.0
  %v446 = vsel %vm400, %v59, 0.0
  %v447 = vsel %vm400, %v60, 0.0
  %v448 = vsel %vm400, %v61, 0.0
  %v449 = vsel %vm400, %v62, 0.0
  %v450 = vsel %vm400, %v63, 0.0
  %v451 = vsel %vm400, %v64, 0.0
  %v452 = vsel %vm400, %v65, 0.0
  %v453 = vsel %vm400, %v66, 0.0
  %v454 = vsel %vm400, %v67, 0.0
  %v455 = vsel %vm400, %v68, 0.0
  %v456 = vsel %vm400, %v69, 0.0
  %v457 = vsel %vm400, %v70, 0.0
  %v458 = vsel %vm400, %v71, 0.0
  %v459 = vsel %vm400, %v72, 0.0
  %v460 = vsel %vm400, %v73, 0.0
  %v461 = vsel %vm400, %v74, 0.0
  %v462 = vsel %vm400, %v75, 0.0
  %v463 = vsel %vm400, %v76, 0.0
  %v464 = vsel %vm400, %v77, 0.0
  %v465 = vsel %vm400, %v78, 0.0
  %v466 = vsel %vm400, %v79, 0.0
  %v467 = vsel %vm400, %v80, 0.0
  %v468 = vsel %vm400, %v81, 0.0
  %v469 = vsel %vm400, %v82, 0.0
  %v470 = vsel %vm400, %v83, 0.0
  %v471 = vsel %vm400, %v84, 0.0
  %v472 = vsel %vm400, %v85, 0.0
  %v473 = vsel %vm400, %v86, 0.0
  %v474 = vsel %vm400, %v87, 0.0
  %v475 = vsel %vm400, %v88, 0.0
  %v476 = vsel %vm400, %v89, 0.0
  %v477 = vsel %vm400, %v90, 0.0
  %v478 = vsel %vm400, %v91, 0.0
  %v479 = vsel %vm400, %v92, 0.0
  %v480 = vsel %vm400, %v93, 0.0
  %v481 = vsel %vm400, %v94, 0.0
  %v482 = vsel %vm400, %v95, 0.0
  %v483 = vsel %vm400, %v96, 0.0
  %v484 = vsel %vm400, %v97, 0.0
  %v485 = vsel %vm400, %v98, 0.0
  %v486 = vsel %vm400, %v99, 0.0
  %v487 = vsel %vm400, %v100, 0.0
  %v488 = vsel %vm400, %v101, 0.0
  %v489 = vsel %vm400, %v102, 0.0
  %v490 = vsel %vm400, %v103, 0.0
  %v491 = vsel %vm400, %v104, 0.0
  %v492 = vsel %vm400, %v105, 0.0
  %v493 = vsel %vm400, %v106, 0.0
  %v494 = vsel %vm400, %v107, 0.0
  %v495 = vsel %vm400, %v108, 0.0
  %v496 = vsel %vm400, %v109, 0.0
  %v497 = vsel %vm400, %v110, 0.0
  %v498 = vsel %vm400, %v111, 0.0
  %v499 = vsel %vm400, %v112, 0.0
  %v500 = vsel %vm400, %v113, 0.0
  %v501 = vsel %vm400, %v114, 0.0
  %v502 = vsel %vm400, %v115, 0.0
  %v503 = vsel %vm400, %v116, 0.0
  %v504 = vsel %vm400, %v117, 0.0
  %v505 = vsel %vm400, %v118, 0.0
  %v506 = vsel %vm400, %v119, 0.0
  %v507 = vsel %vm400, %v120, 0.0
  %v508 = vsel %vm400, %v121, 0.0
  %v509 = vsel %vm400, %v122, 0.0
  %v510 = vsel %vm400, %v123, 0.0
  %v511 = vsel %vm400, %v124, 0.0
  %v512 = vsel %vm400, %v125, 0.0
  %v513 = vsel %vm400, %v126, 0.0
  %v514 = vsel %vm400, %v127, 0.0
  %v515 = vsel %vm400, %v128, 0.0
  %v516 = vsel %vm400, %v129, 0.0
  %v517 = vsel %vm400, %v130, 0.0
  %v518 = vsel %vm400, %v131, 0.0
  %v519 = vsel %vm400, %v132, 0.0
  %v520 = vsel %vm400, %v133, 0.0
  %v521 = vsel %vm400, %v134, 0.0
  %v522 = vsel %vm400, %v135, 0.0
  %v523 = vsel %vm400, %v136, 0.0
  %v524 = vsel %vm400, %v137, 0.0
  %v525 = vsel %vm400, %v138, 0.0
  %v526 = vsel %vm400, %v139, 0.0
  %v527 = vsel %vm400, %v140, 0.0
  %v528 = vsel %vm400, %v141, 0.0
  %v529 = vsel %vm400, %v142, 0.0
  %v530 = vsel %vm400, %v143, 0.0
  %v531 = vsel %vm400, %v144, 0.0
  %v532 = vsel %vm400, %v145, 0.0
  %v533 = vsel %vm400, %v146, 0.0
  %v534 = vsel %vm400, %v147, 0.0
  %v535 = vsel %vm400, %v148, 0.0
  %v536 = vsel %vm400, %v149, 0.0
  %v537 = vsel %vm400, %v150, 0.0
  %v538 = vsel %vm400, %v151, 0.0
  %v539 = vsel %vm400, %v152, 0.0
  %v540 = vsel %vm400, %v153, 0.0
  %v541 = vsel %vm400, %v154, 0.0
  %v542 = vsel %vm400, %v155, 0.0
  %v543 = vsel %vm400, %v156, 0.0
  %v544 = vsel %vm400, %v157, 0.0
  %v545 = vsel %vm400, %v158, 0.0
  %v546 = vsel %vm400, %v159, 0.0
  %v547 = vsel %vm400, %v160, 0.0
  %v548 = vsel %vm400, %v161, 0.0
  %v549 = vsel %vm400, %v162, 0.0
  %v550 = vsel %vm400, %v163, 0.0
  %v551 = vsel %vm400, %v164, 0.0
  %v552 = vsel %vm400, %v165, 0.0
  %v553 = vsel %vm400, %v166, 0.0
  %v554 = vsel %vm400, %v167, 0.0
  %v555 = vsel %vm400, %v168, 0.0
  %v556 = vsel %vm400, %v169, 0.0
  %v557 = vsel %vm400, %v170, 0.0
  %v558 = vsel %vm400, %v171, 0.0
  %v559 = vsel %vm400, %v172, 0.0
  %v560 = vsel %vm400, %v173, 0.0
  %v561 = vsel %vm400, %v174, 0.0
  %v562 = vsel %vm400, %v175, 0.0
  %v563 = vsel %vm400, %v176, 0.0
  %v564 = vsel %vm400, %v177, 0.0
  %v565 = vsel %vm400, %v178, 0.0
  %v566 = vsel %vm400, %v179, 0.0
  %v567 = vsel %vm400, %v180, 0.0
  %v568 = vsel %vm400, %v181, 0.0
  %v569 = vsel %vm400, %v182, 0.0
  %v570 = vsel %vm400, %v183, 0.0
  %v571 = vsel %vm400, %v184, 0.0
  %v572 = vsel %vm400, %v185, 0.0
  %v573 = vsel %vm400, %v186, 0.0
  %v574 = vsel %vm400, %v187, 0.0
  %v575 = vsel %vm400, %v188, 0.0
  %v576 = vsel %vm400, %v189, 0.0
  %v577 = vsel %vm400, %v190, 0.0
  %v578 = vsel %vm400, %v191, 0.0
  %v579 = vsel %vm400, %v192, 0.0
  %v580 = vsel %vm400, %v193, 0.0
  %v581 = vsel %vm400, %v194, 0.0
  %v582 = vsel %vm400, %v195, 0.0
  %v583 = vsel %vm400, %v196, 0.0
  %v584 = vsel %vm400, %v197, 0.0
  %v585 = vsel %vm400, %v198, 0.0
  %v586 = vsel %vm400, %v199, 0.0
  %v587 = vsel %vm400, %v200, 0.0
  %v588 = vsel %vm400, %v201, 0.0
  %v589 = vsel %vm400, %v202, 0.0
  %v590 = vsel %vm400, %v203, 0.0
  %v591 = vsel %vm400, %v204, 0.0
  %v592 = vsel %vm400, %v205, 0.0
  %v593 = vsel %vm400, %v206, 0.0
  %v594 = vsel %vm400, %v207, 0.0
  %v595 = vsel %vm400, %v208, 0.0
  %v596 = vsel %vm400, %v209, 0.0
  %v597 = vsel %vm400, %v210, 0.0
  %v598 = vsel %vm400, %v211, 0.0
  %v599 = vsel %vm400, %v212, 0.0
  %v600 = vsel %vm400, %v213, 0.0
  %v601 = vsel %vm400, %v214, 0.0
  %v602 = vsel %vm400, %v215, 0.0
  %v603 = vsel %vm400, %v216, 0.0
  %v604 = vsel %vm400, %v217, 0.0
  %v605 = vsel %vm400, %v218, 0.0
  %v606 = vsel %vm400, %v219, 0.0
  %v607 = vsel %vm400, %v220, 0.0
  %v608 = vsel %vm400, %v221, 0.0
  %v609 = vsel %vm400, %v222, 0.0
  %v610 = vsel %vm400, %v223, 0.0
  %v611 = vsel %vm400, %v224, 0.0
  %v612 = vsel %vm400, %v225, 0.0
  %v613 = vsel %vm400, %v226, 0.0
  %v614 = vsel %vm400, %v227, 0.0
  %v615 = vsel %vm400, %v228, 0.0
  %v616 = vsel %vm400, %v229, 0.0
  %v617 = vsel %vm400, %v230, 0.0
  %v618 = vsel %vm400, %v231, 0.0
  %v619 = vsel %vm400, %v232, 0.0
  %v620 = vsel %vm400, %v233, 0.0
  %v621 = vsel %vm400, %v234, 0.0
  %v622 = vsel %vm400, %v235, 0.0
  %v623 = vsel %vm400, %v236, 0.0
  %v624 = vsel %vm400, %v237, 0.0
  %v625 = vsel %vm400, %v238, 0.0
  %v626 = vsel %vm400, %v239, 0.0
  %v627 = vsel %vm400, %v240, 0.0
  %v628 = vsel %vm400, %v241, 0.0
  %v629 = vsel %vm400, %v242, 0.0
  %v630 = vsel %vm400, %v243, 0.0
  %v631 = vsel %vm400, %v244, 0.0
  %v632 = vsel %vm400, %v245, 0.0
  %v633 = vsel %vm400, %v246, 0.0
  %v634 = vsel %vm400, %v247, 0.0
  %v635 = vsel %vm400, %v248, 0.0
  %v636 = vsel %vm400, %v249, 0.0
  %v637 = vsel %vm400, %v250, 0.0
  %v638 = vsel %vm400, %v251, 0.0
  %v639 = vsel %vm400, %v252, 0.0
  %v640 = vsel %vm400, %v253, 0.0
  %v641 = vsel %vm400, %v254, 0.0
  %v642 = vsel %vm400, %v255, 0.0
  %v643 = vsel %vm400, %v256, 0.0
  %v644 = vsel %vm400, %v257, 0.0
  %v645 = vsel %vm400, %v258, 0.0
  %v646 = vsel %vm400, %v259, 0.0
  %v647 = vsel %vm400, %v260, 0.0
  %v648 = vsel %vm400, %v261, 0.0
  %v649 = vsel %vm400, %v262, 0.0
  %v650 = vsel %vm400, %v263, 0.0
  %v651 = vsel %vm400, %v264, 0.0
  %v652 = vsel %vm400, %v265, 0.0
  %v653 = vsel %vm400, %v266, 0.0
  %v654 = vsel %vm400, %v267, 0.0
  %v655 = vsel %vm400, %v268, 0.0
  %v656 = vsel %vm400, %v269, 0.0
  %v657 = vsel %vm400, %v270, 0.0
  %v658 = vsel %vm400, %v271, 0.0
  %v659 = vsel %vm400, %v272, 0.0
  %v660 = vsel %vm400, %v273, 0.0
  %v661 = vsel %vm400, %v274, 0.0
  %v662 = vsel %vm400, %v275, 0.0
  %v663 = vsel %vm400, %v276, 0.0
  %v664 = vsel %vm400, %v277, 0.0
  %v665 = vsel %vm400, %v278, 0.0
  %v666 = vsel %vm400, %v279, 0.0
  %v667 = vsel %vm400, %v280, 0.0
  %v668 = vsel %vm400, %v281, 0.0
  %v669 = vsel %vm400, %v282, 0.0
  %v670 = vsel %vm400, %v283, 0.0
  %v671 = vsel %vm400, %v284, 0.0
  %v672 = vsel %vm400, %v285, 0.0
  %v673 = vsel %vm400, %v286, 0.0
  %v674 = vsel %vm400, %v287, 0.0
  %v675 = vsel %vm400, %v288, 0.0
  %v676 = vsel %vm400, %v289, 0.0
  %v677 = vsel %vm400, %v290, 0.0
  %v678 = vsel %vm400, %v291, 0.0
  %v679 = vsel %vm400, %v292, 0.0
  %v680 = vsel %vm400, %v293, 0.0
  %v681 = vsel %vm400, %v294, 0.0
  %v682 = vsel %vm400, %v295, 0.0
  %v683 = vsel %vm400, %v296, 0.0
  %v684 = vsel %vm400, %v297, 0.0
  %v685 = vsel %vm400, %v298, 0.0
  %v686 = vsel %vm400, %v299, 0.0
  %v687 = vsel %vm400, %v300, 0.0
  %v688 = vsel %vm400, %v301, 0.0
  %v689 = vsel %vm400, %v302, 0.0
  %v690 = vsel %vm400, %v303, 0.0
  %v691 = vsel %vm400, %v304, 0.0
  %v692 = vsel %vm400, %v305, 0.0
  %v693 = vsel %vm400, %v306, 0.0
  %v694 = vsel %vm400, %v307, 0.0
  %v695 = vsel %vm400, %v308, 0.0
  %v696 = vsel %vm400, %v309, 0.0
  %v697 = vsel %vm400, %v310, 0.0
  %v698 = vsel %vm400, %v311, 0.0
  %v699 = vsel %vm400, %v312, 0.0
  %v700 = vsel %vm400, %v313, 0.0
  %v701 = vsel %vm400, %v314, 0.0
  %v702 = vsel %vm400, %v315, 0.0
  %v703 = vsel %vm400, %v316, 0.0
  %v704 = vsel %vm400, %v317, 0.0
  %v705 = vsel %vm400, %v318, 0.0
  %v706 = vsel %vm400, %v319, 0.0
  %v707 = vsel %vm400, %v320, 0.0
  %v708 = vsel %vm400, %v321, 0.0
  %v709 = vsel %vm400, %v322, 0.0
  %v710 = vsel %vm400, %v323, 0.0
  %v711 = vsel %vm400, %v324, 0.0
  %v712 = vsel %vm400, %v325, 0.0
  %v713 = vsel %vm400, %v326, 0.0
  %v714 = vsel %vm400, %v327, 0.0
  %v715 = vsel %vm400, %v328, 0.0
  %v716 = vsel %vm400, %v329, 0.0
  %v717 = vsel %vm400, %v330, 0.0
  %v718 = vsel %vm400, %v331, 0.0
  %v719 = vsel %vm400, %v332, 0.0
  %v720 = vsel %vm400, %v333, 0.0
  %v721 = vsel %vm400, %v334, 0.0
  %v722 = vsel %vm400, %v335, 0.0
  %v723 = vsel %vm400, %v336, 0.0
  %v724 = vsel %vm400, %v337, 0.0
  %v725 = vsel %vm400, %v338, 0.0
  %v726 = vsel %vm400, %v339, 0.0
  %v727 = vsel %vm400, %v340, 0.0
  %v728 = vsel %vm400, %v341, 0.0
  %v729 = vsel %vm400, %v342, 0.0
  %v730 = vsel %vm400, %v343, 0.0
  %v731 = vsel %vm400, %v344, 0.0
  %v732 = vsel %vm400, %v345, 0.0
  %v733 = vsel %vm400, %v346, 0.0
  %v734 = vsel %vm400, %v347, 0.0
  %v735 = vsel %vm400, %v348, 0.0
  %v736 = vsel %vm400, %v349, 0.0
  %v737 = vsel %vm400, %v350, 0.0
  %v738 = vsel %vm400, %v351, 0.0
  %v739 = vsel %vm400, %v352, 0.0
  %v740 = vsel %vm400, %v353, 0.0
  %v741 = vsel %vm400, %v354, 0.0
  %v742 = vsel %vm400, %v355, 0.0
  %v743 = vsel %vm400, %v356, 0.0
  %v744 = vsel %vm400, %v357, 0.0
  %v745 = vsel %vm400, %v358, 0.0
  %v746 = vsel %vm400, %v359, 0.0
  %v747 = vsel %vm400, %v360, 0.0
  %v748 = vsel %vm400, %v361, 0.0
  %v749 = vsel %vm400, %v362, 0.0
  %v750 = vsel %vm400, %v363, 0.0
  %v751 = vsel %vm400, %v364, 0.0
  %v752 = vsel %vm400, %v365, 0.0
  %v753 = vsel %vm400, %v366, 0.0
  %v754 = vsel %vm400, %v367, 0.0
  %v755 = vsel %vm400, %v368, 0.0
  %v756 = vsel %vm400, %v369, 0.0
  %v757 = vsel %vm400, %v370, 0.0
  %v758 = vsel %vm400, %v371, 0.0
  %v759 = vsel %vm400, %v372, 0.0
  %v760 = vsel %vm400, %v373, 0.0
  %v761 = vsel %vm400, %v374, 0.0
  %v762 = vsel %vm400, %v375, 0.0
  %v763 = vsel %vm400, %v376, 0.0
  %v764 = vsel %vm400, %v377, 0.0
  %v765 = vsel %vm400, %v378, 0.0
  %v766 = vsel %vm400, %v379, 0.0
  %v767 = vsel %vm400, %v380, 0.0
  %v768 = vsel %vm400, %v381, 0.0
  %v769 = vsel %vm400, %v382, 0.0
  %v770 = vsel %vm400, %v383, 0.0
  %v771 = vsel %vm400, %v384, 0.0
  %v772 = vsel %vm400, %v385, 0.0
  %v773 = vsel %vm400, %v386, 0.0
  %v774 = vsel %vm400, %v387, 0.0
  %v775 = vsel %vm400, %v388, 0.0
  %v776 = vsel %vm400, %v389, 0.0
  %v777 = vsel %vm400, %v390, 0.0
  %v778 = vsel %vm400, %v391, 0.0
  %v779 = vsel %vm400, %v392, 0.0
  %v780 = vsel %vm400, %v393, 0.0
  %v781 = vsel %vm400, %v394, 0.0
  %v782 = vsel %vm400, %v395, 0.0
  %v783 = vsel %vm400, %v396, 0.0
  %v784 = vsel %vm400, %v397, 0.0
  %vm785 = vcmask 400384
  %v786 = vsel %vm785, %v401, 0.0
  %787 = vadd.xlane.f32.xlu0 %v786
  %v788 = vpop.xlane.xlu0 %787
  %v789 = vsel %vm785, %v402, 0.0
  %790 = vadd.xlane.f32.xlu0 %v789
  %v791 = vpop.xlane.xlu0 %790
  %v792 = vsel %vm785, %v403, 0.0
  %793 = vadd.xlane.f32.xlu0 %v792
  %v794 = vpop.xlane.xlu0 %793
  %v795 = vsel %vm785, %v404, 0.0
  %796 = vadd.xlane.f32.xlu0 %v795
  %v797 = vpop.xlane.xlu0 %796
  %v798 = vsel %vm785, %v405, 0.0
  %799 = vadd.xlane.f32.xlu0 %v798
  %v800 = vpop.xlane.xlu0 %799
  %v801 = vsel %vm785, %v406, 0.0
  %802 = vadd.xlane.f32.xlu0 %v801
  %v803 = vpop.xlane.xlu0 %802
  %v804 = vsel %vm785, %v407, 0.0
  %805 = vadd.xlane.f32.xlu0 %v804
  %v806 = vpop.xlane.xlu0 %805
  %v807 = vsel %vm785, %v408, 0.0
  %808 = vadd.xlane.f32.xlu0 %v807
  %v809 = vpop.xlane.xlu0 %808
  %v810 = vsel %vm785, %v409, 0.0
  %811 = vadd.xlane.f32.xlu0 %v810
  %v812 = vpop.xlane.xlu0 %811
  %v813 = vsel %vm785, %v410, 0.0
  %814 = vadd.xlane.f32.xlu0 %v813
  %v815 = vpop.xlane.xlu0 %814
  %v816 = vsel %vm785, %v411, 0.0
  %817 = vadd.xlane.f32.xlu0 %v816
  %v818 = vpop.xlane.xlu0 %817
  %v819 = vsel %vm785, %v412, 0.0
  %820 = vadd.xlane.f32.xlu0 %v819
  %v821 = vpop.xlane.xlu0 %820
  %v822 = vsel %vm785, %v413, 0.0
  %823 = vadd.xlane.f32.xlu0 %v822
  %v824 = vpop.xlane.xlu0 %823
  %v825 = vsel %vm785, %v414, 0.0
  %826 = vadd.xlane.f32.xlu0 %v825
  %v827 = vpop.xlane.xlu0 %826
  %v828 = vsel %vm785, %v415, 0.0
  %829 = vadd.xlane.f32.xlu0 %v828
  %v830 = vpop.xlane.xlu0 %829
  %v831 = vsel %vm785, %v416, 0.0
  %832 = vadd.xlane.f32.xlu0 %v831
  %v833 = vpop.xlane.xlu0 %832
  %v834 = vsel %vm785, %v417, 0.0
  %835 = vadd.xlane.f32.xlu0 %v834
  %v836 = vpop.xlane.xlu0 %835
  %v837 = vsel %vm785, %v418, 0.0
  %838 = vadd.xlane.f32.xlu0 %v837
  %v839 = vpop.xlane.xlu0 %838
  %v840 = vsel %vm785, %v419, 0.0
  %841 = vadd.xlane.f32.xlu0 %v840
  %v842 = vpop.xlane.xlu0 %841
  %v843 = vsel %vm785, %v420, 0.0
  %844 = vadd.xlane.f32.xlu0 %v843
  %v845 = vpop.xlane.xlu0 %844
  %v846 = vsel %vm785, %v421, 0.0
  %847 = vadd.xlane.f32.xlu0 %v846
  %v848 = vpop.xlane.xlu0 %847
  %v849 = vsel %vm785, %v422, 0.0
  %850 = vadd.xlane.f32.xlu0 %v849
  %v851 = vpop.xlane.xlu0 %850
  %v852 = vsel %vm785, %v423, 0.0
  %853 = vadd.xlane.f32.xlu0 %v852
  %v854 = vpop.xlane.xlu0 %853
  %v855 = vsel %vm785, %v424, 0.0
  %856 = vadd.xlane.f32.xlu0 %v855
  %v857 = vpop.xlane.xlu0 %856
  %v858 = vsel %vm785, %v425, 0.0
  %859 = vadd.xlane.f32.xlu0 %v858
  %v860 = vpop.xlane.xlu0 %859
  %v861 = vsel %vm785, %v426, 0.0
  %862 = vadd.xlane.f32.xlu0 %v861
  %v863 = vpop.xlane.xlu0 %862
  %v864 = vsel %vm785, %v427, 0.0
  %865 = vadd.xlane.f32.xlu0 %v864
  %v866 = vpop.xlane.xlu0 %865
  %v867 = vsel %vm785, %v428, 0.0
  %868 = vadd.xlane.f32.xlu0 %v867
  %v869 = vpop.xlane.xlu0 %868
  %v870 = vsel %vm785, %v429, 0.0
  %871 = vadd.xlane.f32.xlu0 %v870
  %v872 = vpop.xlane.xlu0 %871
  %v873 = vsel %vm785, %v430, 0.0
  %874 = vadd.xlane.f32.xlu0 %v873
  %v875 = vpop.xlane.xlu0 %874
  %v876 = vsel %vm785, %v431, 0.0
  %877 = vadd.xlane.f32.xlu0 %v876
  %v878 = vpop.xlane.xlu0 %877
  %v879 = vsel %vm785, %v432, 0.0
  %880 = vadd.xlane.f32.xlu0 %v879
  %v881 = vpop.xlane.xlu0 %880
  %v882 = vsel %vm785, %v433, 0.0
  %883 = vadd.xlane.f32.xlu0 %v882
  %v884 = vpop.xlane.xlu0 %883
  %v885 = vsel %vm785, %v434, 0.0
  %886 = vadd.xlane.f32.xlu0 %v885
  %v887 = vpop.xlane.xlu0 %886
  %v888 = vsel %vm785, %v435, 0.0
  %889 = vadd.xlane.f32.xlu0 %v888
  %v890 = vpop.xlane.xlu0 %889
  %v891 = vsel %vm785, %v436, 0.0
  %892 = vadd.xlane.f32.xlu0 %v891
  %v893 = vpop.xlane.xlu0 %892
  %v894 = vsel %vm785, %v437, 0.0
  %895 = vadd.xlane.f32.xlu0 %v894
  %v896 = vpop.xlane.xlu0 %895
  %v897 = vsel %vm785, %v438, 0.0
  %898 = vadd.xlane.f32.xlu0 %v897
  %v899 = vpop.xlane.xlu0 %898
  %v900 = vsel %vm785, %v439, 0.0
  %901 = vadd.xlane.f32.xlu0 %v900
  %v902 = vpop.xlane.xlu0 %901
  %v903 = vsel %vm785, %v440, 0.0
  %904 = vadd.xlane.f32.xlu0 %v903
  %v905 = vpop.xlane.xlu0 %904
  %v906 = vsel %vm785, %v441, 0.0
  %907 = vadd.xlane.f32.xlu0 %v906
  %v908 = vpop.xlane.xlu0 %907
  %v909 = vsel %vm785, %v442, 0.0
  %910 = vadd.xlane.f32.xlu0 %v909
  %v911 = vpop.xlane.xlu0 %910
  %v912 = vsel %vm785, %v443, 0.0
  %913 = vadd.xlane.f32.xlu0 %v912
  %v914 = vpop.xlane.xlu0 %913
  %v915 = vsel %vm785, %v444, 0.0
  %916 = vadd.xlane.f32.xlu0 %v915
  %v917 = vpop.xlane.xlu0 %916
  %v918 = vsel %vm785, %v445, 0.0
  %919 = vadd.xlane.f32.xlu0 %v918
  %v920 = vpop.xlane.xlu0 %919
  %v921 = vsel %vm785, %v446, 0.0
  %922 = vadd.xlane.f32.xlu0 %v921
  %v923 = vpop.xlane.xlu0 %922
  %v924 = vsel %vm785, %v447, 0.0
  %925 = vadd.xlane.f32.xlu0 %v924
  %v926 = vpop.xlane.xlu0 %925
  %v927 = vsel %vm785, %v448, 0.0
  %928 = vadd.xlane.f32.xlu0 %v927
  %v929 = vpop.xlane.xlu0 %928
  %v930 = vsel %vm785, %v449, 0.0
  %931 = vadd.xlane.f32.xlu0 %v930
  %v932 = vpop.xlane.xlu0 %931
  %v933 = vsel %vm785, %v450, 0.0
  %934 = vadd.xlane.f32.xlu0 %v933
  %v935 = vpop.xlane.xlu0 %934
  %v936 = vsel %vm785, %v451, 0.0
  %937 = vadd.xlane.f32.xlu0 %v936
  %v938 = vpop.xlane.xlu0 %937
  %v939 = vsel %vm785, %v452, 0.0
  %940 = vadd.xlane.f32.xlu0 %v939
  %v941 = vpop.xlane.xlu0 %940
  %v942 = vsel %vm785, %v453, 0.0
  %943 = vadd.xlane.f32.xlu0 %v942
  %v944 = vpop.xlane.xlu0 %943
  %v945 = vsel %vm785, %v454, 0.0
  %946 = vadd.xlane.f32.xlu0 %v945
  %v947 = vpop.xlane.xlu0 %946
  %v948 = vsel %vm785, %v455, 0.0
  %949 = vadd.xlane.f32.xlu0 %v948
  %v950 = vpop.xlane.xlu0 %949
  %v951 = vsel %vm785, %v456, 0.0
  %952 = vadd.xlane.f32.xlu0 %v951
  %v953 = vpop.xlane.xlu0 %952
  %v954 = vsel %vm785, %v457, 0.0
  %955 = vadd.xlane.f32.xlu0 %v954
  %v956 = vpop.xlane.xlu0 %955
  %v957 = vsel %vm785, %v458, 0.0
  %958 = vadd.xlane.f32.xlu0 %v957
  %v959 = vpop.xlane.xlu0 %958
  %v960 = vsel %vm785, %v459, 0.0
  %961 = vadd.xlane.f32.xlu0 %v960
  %v962 = vpop.xlane.xlu0 %961
  %v963 = vsel %vm785, %v460, 0.0
  %964 = vadd.xlane.f32.xlu0 %v963
  %v965 = vpop.xlane.xlu0 %964
  %v966 = vsel %vm785, %v461, 0.0
  %967 = vadd.xlane.f32.xlu0 %v966
  %v968 = vpop.xlane.xlu0 %967
  %v969 = vsel %vm785, %v462, 0.0
  %970 = vadd.xlane.f32.xlu0 %v969
  %v971 = vpop.xlane.xlu0 %970
  %v972 = vsel %vm785, %v463, 0.0
  %973 = vadd.xlane.f32.xlu0 %v972
  %v974 = vpop.xlane.xlu0 %973
  %v975 = vsel %vm785, %v464, 0.0
  %976 = vadd.xlane.f32.xlu0 %v975
  %v977 = vpop.xlane.xlu0 %976
  %v978 = vsel %vm785, %v465, 0.0
  %979 = vadd.xlane.f32.xlu0 %v978
  %v980 = vpop.xlane.xlu0 %979
  %v981 = vsel %vm785, %v466, 0.0
  %982 = vadd.xlane.f32.xlu0 %v981
  %v983 = vpop.xlane.xlu0 %982
  %v984 = vsel %vm785, %v467, 0.0
  %985 = vadd.xlane.f32.xlu0 %v984
  %v986 = vpop.xlane.xlu0 %985
  %v987 = vsel %vm785, %v468, 0.0
  %988 = vadd.xlane.f32.xlu0 %v987
  %v989 = vpop.xlane.xlu0 %988
  %v990 = vsel %vm785, %v469, 0.0
  %991 = vadd.xlane.f32.xlu0 %v990
  %v992 = vpop.xlane.xlu0 %991
  %v993 = vsel %vm785, %v470, 0.0
  %994 = vadd.xlane.f32.xlu0 %v993
  %v995 = vpop.xlane.xlu0 %994
  %v996 = vsel %vm785, %v471, 0.0
  %997 = vadd.xlane.f32.xlu0 %v996
  %v998 = vpop.xlane.xlu0 %997
  %v999 = vsel %vm785, %v472, 0.0
  %1000 = vadd.xlane.f32.xlu0 %v999
  %v1001 = vpop.xlane.xlu0 %1000
  %v1002 = vsel %vm785, %v473, 0.0
  %1003 = vadd.xlane.f32.xlu0 %v1002
  %v1004 = vpop.xlane.xlu0 %1003
  %v1005 = vsel %vm785, %v474, 0.0
  %1006 = vadd.xlane.f32.xlu0 %v1005
  %v1007 = vpop.xlane.xlu0 %1006
  %v1008 = vsel %vm785, %v475, 0.0
  %1009 = vadd.xlane.f32.xlu0 %v1008
  %v1010 = vpop.xlane.xlu0 %1009
  %v1011 = vsel %vm785, %v476, 0.0
  %1012 = vadd.xlane.f32.xlu0 %v1011
  %v1013 = vpop.xlane.xlu0 %1012
  %v1014 = vsel %vm785, %v477, 0.0
  %1015 = vadd.xlane.f32.xlu0 %v1014
  %v1016 = vpop.xlane.xlu0 %1015
  %v1017 = vsel %vm785, %v478, 0.0
  %1018 = vadd.xlane.f32.xlu0 %v1017
  %v1019 = vpop.xlane.xlu0 %1018
  %v1020 = vsel %vm785, %v479, 0.0
  %1021 = vadd.xlane.f32.xlu0 %v1020
  %v1022 = vpop.xlane.xlu0 %1021
  %v1023 = vsel %vm785, %v480, 0.0
  %1024 = vadd.xlane.f32.xlu0 %v1023
  %v1025 = vpop.xlane.xlu0 %1024
  %v1026 = vsel %vm785, %v481, 0.0
  %1027 = vadd.xlane.f32.xlu0 %v1026
  %v1028 = vpop.xlane.xlu0 %1027
  %v1029 = vsel %vm785, %v482, 0.0
  %1030 = vadd.xlane.f32.xlu0 %v1029
  %v1031 = vpop.xlane.xlu0 %1030
  %v1032 = vsel %vm785, %v483, 0.0
  %1033 = vadd.xlane.f32.xlu0 %v1032
  %v1034 = vpop.xlane.xlu0 %1033
  %v1035 = vsel %vm785, %v484, 0.0
  %1036 = vadd.xlane.f32.xlu0 %v1035
  %v1037 = vpop.xlane.xlu0 %1036
  %v1038 = vsel %vm785, %v485, 0.0
  %1039 = vadd.xlane.f32.xlu0 %v1038
  %v1040 = vpop.xlane.xlu0 %1039
  %v1041 = vsel %vm785, %v486, 0.0
  %1042 = vadd.xlane.f32.xlu0 %v1041
  %v1043 = vpop.xlane.xlu0 %1042
  %v1044 = vsel %vm785, %v487, 0.0
  %1045 = vadd.xlane.f32.xlu0 %v1044
  %v1046 = vpop.xlane.xlu0 %1045
  %v1047 = vsel %vm785, %v488, 0.0
  %1048 = vadd.xlane.f32.xlu0 %v1047
  %v1049 = vpop.xlane.xlu0 %1048
  %v1050 = vsel %vm785, %v489, 0.0
  %1051 = vadd.xlane.f32.xlu0 %v1050
  %v1052 = vpop.xlane.xlu0 %1051
  %v1053 = vsel %vm785, %v490, 0.0
  %1054 = vadd.xlane.f32.xlu0 %v1053
  %v1055 = vpop.xlane.xlu0 %1054
  %v1056 = vsel %vm785, %v491, 0.0
  %1057 = vadd.xlane.f32.xlu0 %v1056
  %v1058 = vpop.xlane.xlu0 %1057
  %v1059 = vsel %vm785, %v492, 0.0
  %1060 = vadd.xlane.f32.xlu0 %v1059
  %v1061 = vpop.xlane.xlu0 %1060
  %v1062 = vsel %vm785, %v493, 0.0
  %1063 = vadd.xlane.f32.xlu0 %v1062
  %v1064 = vpop.xlane.xlu0 %1063
  %v1065 = vsel %vm785, %v494, 0.0
  %1066 = vadd.xlane.f32.xlu0 %v1065
  %v1067 = vpop.xlane.xlu0 %1066
  %v1068 = vsel %vm785, %v495, 0.0
  %1069 = vadd.xlane.f32.xlu0 %v1068
  %v1070 = vpop.xlane.xlu0 %1069
  %v1071 = vsel %vm785, %v496, 0.0
  %1072 = vadd.xlane.f32.xlu0 %v1071
  %v1073 = vpop.xlane.xlu0 %1072
  %v1074 = vsel %vm785, %v497, 0.0
  %1075 = vadd.xlane.f32.xlu0 %v1074
  %v1076 = vpop.xlane.xlu0 %1075
  %v1077 = vsel %vm785, %v498, 0.0
  %1078 = vadd.xlane.f32.xlu0 %v1077
  %v1079 = vpop.xlane.xlu0 %1078
  %v1080 = vsel %vm785, %v499, 0.0
  %1081 = vadd.xlane.f32.xlu0 %v1080
  %v1082 = vpop.xlane.xlu0 %1081
  %v1083 = vsel %vm785, %v500, 0.0
  %1084 = vadd.xlane.f32.xlu0 %v1083
  %v1085 = vpop.xlane.xlu0 %1084
  %v1086 = vsel %vm785, %v501, 0.0
  %1087 = vadd.xlane.f32.xlu0 %v1086
  %v1088 = vpop.xlane.xlu0 %1087
  %v1089 = vsel %vm785, %v502, 0.0
  %1090 = vadd.xlane.f32.xlu0 %v1089
  %v1091 = vpop.xlane.xlu0 %1090
  %v1092 = vsel %vm785, %v503, 0.0
  %1093 = vadd.xlane.f32.xlu0 %v1092
  %v1094 = vpop.xlane.xlu0 %1093
  %v1095 = vsel %vm785, %v504, 0.0
  %1096 = vadd.xlane.f32.xlu0 %v1095
  %v1097 = vpop.xlane.xlu0 %1096
  %v1098 = vsel %vm785, %v505, 0.0
  %1099 = vadd.xlane.f32.xlu0 %v1098
  %v1100 = vpop.xlane.xlu0 %1099
  %v1101 = vsel %vm785, %v506, 0.0
  %1102 = vadd.xlane.f32.xlu0 %v1101
  %v1103 = vpop.xlane.xlu0 %1102
  %v1104 = vsel %vm785, %v507, 0.0
  %1105 = vadd.xlane.f32.xlu0 %v1104
  %v1106 = vpop.xlane.xlu0 %1105
  %v1107 = vsel %vm785, %v508, 0.0
  %1108 = vadd.xlane.f32.xlu0 %v1107
  %v1109 = vpop.xlane.xlu0 %1108
  %v1110 = vsel %vm785, %v509, 0.0
  %1111 = vadd.xlane.f32.xlu0 %v1110
  %v1112 = vpop.xlane.xlu0 %1111
  %v1113 = vsel %vm785, %v510, 0.0
  %1114 = vadd.xlane.f32.xlu0 %v1113
  %v1115 = vpop.xlane.xlu0 %1114
  %v1116 = vsel %vm785, %v511, 0.0
  %1117 = vadd.xlane.f32.xlu0 %v1116
  %v1118 = vpop.xlane.xlu0 %1117
  %v1119 = vsel %vm785, %v512, 0.0
  %1120 = vadd.xlane.f32.xlu0 %v1119
  %v1121 = vpop.xlane.xlu0 %1120
  %v1122 = vsel %vm785, %v513, 0.0
  %1123 = vadd.xlane.f32.xlu0 %v1122
  %v1124 = vpop.xlane.xlu0 %1123
  %v1125 = vsel %vm785, %v514, 0.0
  %1126 = vadd.xlane.f32.xlu0 %v1125
  %v1127 = vpop.xlane.xlu0 %1126
  %v1128 = vsel %vm785, %v515, 0.0
  %1129 = vadd.xlane.f32.xlu0 %v1128
  %v1130 = vpop.xlane.xlu0 %1129
  %v1131 = vsel %vm785, %v516, 0.0
  %1132 = vadd.xlane.f32.xlu0 %v1131
  %v1133 = vpop.xlane.xlu0 %1132
  %v1134 = vsel %vm785, %v517, 0.0
  %1135 = vadd.xlane.f32.xlu0 %v1134
  %v1136 = vpop.xlane.xlu0 %1135
  %v1137 = vsel %vm785, %v518, 0.0
  %1138 = vadd.xlane.f32.xlu0 %v1137
  %v1139 = vpop.xlane.xlu0 %1138
  %v1140 = vsel %vm785, %v519, 0.0
  %1141 = vadd.xlane.f32.xlu0 %v1140
  %v1142 = vpop.xlane.xlu0 %1141
  %v1143 = vsel %vm785, %v520, 0.0
  %1144 = vadd.xlane.f32.xlu0 %v1143
  %v1145 = vpop.xlane.xlu0 %1144
  %v1146 = vsel %vm785, %v521, 0.0
  %1147 = vadd.xlane.f32.xlu0 %v1146
  %v1148 = vpop.xlane.xlu0 %1147
  %v1149 = vsel %vm785, %v522, 0.0
  %1150 = vadd.xlane.f32.xlu0 %v1149
  %v1151 = vpop.xlane.xlu0 %1150
  %v1152 = vsel %vm785, %v523, 0.0
  %1153 = vadd.xlane.f32.xlu0 %v1152
  %v1154 = vpop.xlane.xlu0 %1153
  %v1155 = vsel %vm785, %v524, 0.0
  %1156 = vadd.xlane.f32.xlu0 %v1155
  %v1157 = vpop.xlane.xlu0 %1156
  %v1158 = vsel %vm785, %v525, 0.0
  %1159 = vadd.xlane.f32.xlu0 %v1158
  %v1160 = vpop.xlane.xlu0 %1159
  %v1161 = vsel %vm785, %v526, 0.0
  %1162 = vadd.xlane.f32.xlu0 %v1161
  %v1163 = vpop.xlane.xlu0 %1162
  %v1164 = vsel %vm785, %v527, 0.0
  %1165 = vadd.xlane.f32.xlu0 %v1164
  %v1166 = vpop.xlane.xlu0 %1165
  %v1167 = vsel %vm785, %v528, 0.0
  %1168 = vadd.xlane.f32.xlu0 %v1167
  %v1169 = vpop.xlane.xlu0 %1168
  %v1170 = vsel %vm785, %v529, 0.0
  %1171 = vadd.xlane.f32.xlu0 %v1170
  %v1172 = vpop.xlane.xlu0 %1171
  %v1173 = vsel %vm785, %v530, 0.0
  %1174 = vadd.xlane.f32.xlu0 %v1173
  %v1175 = vpop.xlane.xlu0 %1174
  %v1176 = vsel %vm785, %v531, 0.0
  %1177 = vadd.xlane.f32.xlu0 %v1176
  %v1178 = vpop.xlane.xlu0 %1177
  %v1179 = vsel %vm785, %v532, 0.0
  %1180 = vadd.xlane.f32.xlu0 %v1179
  %v1181 = vpop.xlane.xlu0 %1180
  %v1182 = vsel %vm785, %v533, 0.0
  %1183 = vadd.xlane.f32.xlu0 %v1182
  %v1184 = vpop.xlane.xlu0 %1183
  %v1185 = vsel %vm785, %v534, 0.0
  %1186 = vadd.xlane.f32.xlu0 %v1185
  %v1187 = vpop.xlane.xlu0 %1186
  %v1188 = vsel %vm785, %v535, 0.0
  %1189 = vadd.xlane.f32.xlu0 %v1188
  %v1190 = vpop.xlane.xlu0 %1189
  %v1191 = vsel %vm785, %v536, 0.0
  %1192 = vadd.xlane.f32.xlu0 %v1191
  %v1193 = vpop.xlane.xlu0 %1192
  %v1194 = vsel %vm785, %v537, 0.0
  %1195 = vadd.xlane.f32.xlu0 %v1194
  %v1196 = vpop.xlane.xlu0 %1195
  %v1197 = vsel %vm785, %v538, 0.0
  %1198 = vadd.xlane.f32.xlu0 %v1197
  %v1199 = vpop.xlane.xlu0 %1198
  %v1200 = vsel %vm785, %v539, 0.0
  %1201 = vadd.xlane.f32.xlu0 %v1200
  %v1202 = vpop.xlane.xlu0 %1201
  %v1203 = vsel %vm785, %v540, 0.0
  %1204 = vadd.xlane.f32.xlu0 %v1203
  %v1205 = vpop.xlane.xlu0 %1204
  %v1206 = vsel %vm785, %v541, 0.0
  %1207 = vadd.xlane.f32.xlu0 %v1206
  %v1208 = vpop.xlane.xlu0 %1207
  %v1209 = vsel %vm785, %v542, 0.0
  %1210 = vadd.xlane.f32.xlu0 %v1209
  %v1211 = vpop.xlane.xlu0 %1210
  %v1212 = vsel %vm785, %v543, 0.0
  %1213 = vadd.xlane.f32.xlu0 %v1212
  %v1214 = vpop.xlane.xlu0 %1213
  %v1215 = vsel %vm785, %v544, 0.0
  %1216 = vadd.xlane.f32.xlu0 %v1215
  %v1217 = vpop.xlane.xlu0 %1216
  %v1218 = vsel %vm785, %v545, 0.0
  %1219 = vadd.xlane.f32.xlu0 %v1218
  %v1220 = vpop.xlane.xlu0 %1219
  %v1221 = vsel %vm785, %v546, 0.0
  %1222 = vadd.xlane.f32.xlu0 %v1221
  %v1223 = vpop.xlane.xlu0 %1222
  %v1224 = vsel %vm785, %v547, 0.0
  %1225 = vadd.xlane.f32.xlu0 %v1224
  %v1226 = vpop.xlane.xlu0 %1225
  %v1227 = vsel %vm785, %v548, 0.0
  %1228 = vadd.xlane.f32.xlu0 %v1227
  %v1229 = vpop.xlane.xlu0 %1228
  %v1230 = vsel %vm785, %v549, 0.0
  %1231 = vadd.xlane.f32.xlu0 %v1230
  %v1232 = vpop.xlane.xlu0 %1231
  %v1233 = vsel %vm785, %v550, 0.0
  %1234 = vadd.xlane.f32.xlu0 %v1233
  %v1235 = vpop.xlane.xlu0 %1234
  %v1236 = vsel %vm785, %v551, 0.0
  %1237 = vadd.xlane.f32.xlu0 %v1236
  %v1238 = vpop.xlane.xlu0 %1237
  %v1239 = vsel %vm785, %v552, 0.0
  %1240 = vadd.xlane.f32.xlu0 %v1239
  %v1241 = vpop.xlane.xlu0 %1240
  %v1242 = vsel %vm785, %v553, 0.0
  %1243 = vadd.xlane.f32.xlu0 %v1242
  %v1244 = vpop.xlane.xlu0 %1243
  %v1245 = vsel %vm785, %v554, 0.0
  %1246 = vadd.xlane.f32.xlu0 %v1245
  %v1247 = vpop.xlane.xlu0 %1246
  %v1248 = vsel %vm785, %v555, 0.0
  %1249 = vadd.xlane.f32.xlu0 %v1248
  %v1250 = vpop.xlane.xlu0 %1249
  %v1251 = vsel %vm785, %v556, 0.0
  %1252 = vadd.xlane.f32.xlu0 %v1251
  %v1253 = vpop.xlane.xlu0 %1252
  %v1254 = vsel %vm785, %v557, 0.0
  %1255 = vadd.xlane.f32.xlu0 %v1254
  %v1256 = vpop.xlane.xlu0 %1255
  %v1257 = vsel %vm785, %v558, 0.0
  %1258 = vadd.xlane.f32.xlu0 %v1257
  %v1259 = vpop.xlane.xlu0 %1258
  %v1260 = vsel %vm785, %v559, 0.0
  %1261 = vadd.xlane.f32.xlu0 %v1260
  %v1262 = vpop.xlane.xlu0 %1261
  %v1263 = vsel %vm785, %v560, 0.0
  %1264 = vadd.xlane.f32.xlu0 %v1263
  %v1265 = vpop.xlane.xlu0 %1264
  %v1266 = vsel %vm785, %v561, 0.0
  %1267 = vadd.xlane.f32.xlu0 %v1266
  %v1268 = vpop.xlane.xlu0 %1267
  %v1269 = vsel %vm785, %v562, 0.0
  %1270 = vadd.xlane.f32.xlu0 %v1269
  %v1271 = vpop.xlane.xlu0 %1270
  %v1272 = vsel %vm785, %v563, 0.0
  %1273 = vadd.xlane.f32.xlu0 %v1272
  %v1274 = vpop.xlane.xlu0 %1273
  %v1275 = vsel %vm785, %v564, 0.0
  %1276 = vadd.xlane.f32.xlu0 %v1275
  %v1277 = vpop.xlane.xlu0 %1276
  %v1278 = vsel %vm785, %v565, 0.0
  %1279 = vadd.xlane.f32.xlu0 %v1278
  %v1280 = vpop.xlane.xlu0 %1279
  %v1281 = vsel %vm785, %v566, 0.0
  %1282 = vadd.xlane.f32.xlu0 %v1281
  %v1283 = vpop.xlane.xlu0 %1282
  %v1284 = vsel %vm785, %v567, 0.0
  %1285 = vadd.xlane.f32.xlu0 %v1284
  %v1286 = vpop.xlane.xlu0 %1285
  %v1287 = vsel %vm785, %v568, 0.0
  %1288 = vadd.xlane.f32.xlu0 %v1287
  %v1289 = vpop.xlane.xlu0 %1288
  %v1290 = vsel %vm785, %v569, 0.0
  %1291 = vadd.xlane.f32.xlu0 %v1290
  %v1292 = vpop.xlane.xlu0 %1291
  %v1293 = vsel %vm785, %v570, 0.0
  %1294 = vadd.xlane.f32.xlu0 %v1293
  %v1295 = vpop.xlane.xlu0 %1294
  %v1296 = vsel %vm785, %v571, 0.0
  %1297 = vadd.xlane.f32.xlu0 %v1296
  %v1298 = vpop.xlane.xlu0 %1297
  %v1299 = vsel %vm785, %v572, 0.0
  %1300 = vadd.xlane.f32.xlu0 %v1299
  %v1301 = vpop.xlane.xlu0 %1300
  %v1302 = vsel %vm785, %v573, 0.0
  %1303 = vadd.xlane.f32.xlu0 %v1302
  %v1304 = vpop.xlane.xlu0 %1303
  %v1305 = vsel %vm785, %v574, 0.0
  %1306 = vadd.xlane.f32.xlu0 %v1305
  %v1307 = vpop.xlane.xlu0 %1306
  %v1308 = vsel %vm785, %v575, 0.0
  %1309 = vadd.xlane.f32.xlu0 %v1308
  %v1310 = vpop.xlane.xlu0 %1309
  %v1311 = vsel %vm785, %v576, 0.0
  %1312 = vadd.xlane.f32.xlu0 %v1311
  %v1313 = vpop.xlane.xlu0 %1312
  %v1314 = vsel %vm785, %v577, 0.0
  %1315 = vadd.xlane.f32.xlu0 %v1314
  %v1316 = vpop.xlane.xlu0 %1315
  %v1317 = vsel %vm785, %v578, 0.0
  %1318 = vadd.xlane.f32.xlu0 %v1317
  %v1319 = vpop.xlane.xlu0 %1318
  %v1320 = vsel %vm785, %v579, 0.0
  %1321 = vadd.xlane.f32.xlu0 %v1320
  %v1322 = vpop.xlane.xlu0 %1321
  %v1323 = vsel %vm785, %v580, 0.0
  %1324 = vadd.xlane.f32.xlu0 %v1323
  %v1325 = vpop.xlane.xlu0 %1324
  %v1326 = vsel %vm785, %v581, 0.0
  %1327 = vadd.xlane.f32.xlu0 %v1326
  %v1328 = vpop.xlane.xlu0 %1327
  %v1329 = vsel %vm785, %v582, 0.0
  %1330 = vadd.xlane.f32.xlu0 %v1329
  %v1331 = vpop.xlane.xlu0 %1330
  %v1332 = vsel %vm785, %v583, 0.0
  %1333 = vadd.xlane.f32.xlu0 %v1332
  %v1334 = vpop.xlane.xlu0 %1333
  %v1335 = vsel %vm785, %v584, 0.0
  %1336 = vadd.xlane.f32.xlu0 %v1335
  %v1337 = vpop.xlane.xlu0 %1336
  %v1338 = vsel %vm785, %v585, 0.0
  %1339 = vadd.xlane.f32.xlu0 %v1338
  %v1340 = vpop.xlane.xlu0 %1339
  %v1341 = vsel %vm785, %v586, 0.0
  %1342 = vadd.xlane.f32.xlu0 %v1341
  %v1343 = vpop.xlane.xlu0 %1342
  %v1344 = vsel %vm785, %v587, 0.0
  %1345 = vadd.xlane.f32.xlu0 %v1344
  %v1346 = vpop.xlane.xlu0 %1345
  %v1347 = vsel %vm785, %v588, 0.0
  %1348 = vadd.xlane.f32.xlu0 %v1347
  %v1349 = vpop.xlane.xlu0 %1348
  %v1350 = vsel %vm785, %v589, 0.0
  %1351 = vadd.xlane.f32.xlu0 %v1350
  %v1352 = vpop.xlane.xlu0 %1351
  %v1353 = vsel %vm785, %v590, 0.0
  %1354 = vadd.xlane.f32.xlu0 %v1353
  %v1355 = vpop.xlane.xlu0 %1354
  %v1356 = vsel %vm785, %v591, 0.0
  %1357 = vadd.xlane.f32.xlu0 %v1356
  %v1358 = vpop.xlane.xlu0 %1357
  %v1359 = vsel %vm785, %v592, 0.0
  %1360 = vadd.xlane.f32.xlu0 %v1359
  %v1361 = vpop.xlane.xlu0 %1360
  %v1362 = vsel %vm785, %v593, 0.0
  %1363 = vadd.xlane.f32.xlu0 %v1362
  %v1364 = vpop.xlane.xlu0 %1363
  %v1365 = vsel %vm785, %v594, 0.0
  %1366 = vadd.xlane.f32.xlu0 %v1365
  %v1367 = vpop.xlane.xlu0 %1366
  %v1368 = vsel %vm785, %v595, 0.0
  %1369 = vadd.xlane.f32.xlu0 %v1368
  %v1370 = vpop.xlane.xlu0 %1369
  %v1371 = vsel %vm785, %v596, 0.0
  %1372 = vadd.xlane.f32.xlu0 %v1371
  %v1373 = vpop.xlane.xlu0 %1372
  %v1374 = vsel %vm785, %v597, 0.0
  %1375 = vadd.xlane.f32.xlu0 %v1374
  %v1376 = vpop.xlane.xlu0 %1375
  %v1377 = vsel %vm785, %v598, 0.0
  %1378 = vadd.xlane.f32.xlu0 %v1377
  %v1379 = vpop.xlane.xlu0 %1378
  %v1380 = vsel %vm785, %v599, 0.0
  %1381 = vadd.xlane.f32.xlu0 %v1380
  %v1382 = vpop.xlane.xlu0 %1381
  %v1383 = vsel %vm785, %v600, 0.0
  %1384 = vadd.xlane.f32.xlu0 %v1383
  %v1385 = vpop.xlane.xlu0 %1384
  %v1386 = vsel %vm785, %v601, 0.0
  %1387 = vadd.xlane.f32.xlu0 %v1386
  %v1388 = vpop.xlane.xlu0 %1387
  %v1389 = vsel %vm785, %v602, 0.0
  %1390 = vadd.xlane.f32.xlu0 %v1389
  %v1391 = vpop.xlane.xlu0 %1390
  %v1392 = vsel %vm785, %v603, 0.0
  %1393 = vadd.xlane.f32.xlu0 %v1392
  %v1394 = vpop.xlane.xlu0 %1393
  %v1395 = vsel %vm785, %v604, 0.0
  %1396 = vadd.xlane.f32.xlu0 %v1395
  %v1397 = vpop.xlane.xlu0 %1396
  %v1398 = vsel %vm785, %v605, 0.0
  %1399 = vadd.xlane.f32.xlu0 %v1398
  %v1400 = vpop.xlane.xlu0 %1399
  %v1401 = vsel %vm785, %v606, 0.0
  %1402 = vadd.xlane.f32.xlu0 %v1401
  %v1403 = vpop.xlane.xlu0 %1402
  %v1404 = vsel %vm785, %v607, 0.0
  %1405 = vadd.xlane.f32.xlu0 %v1404
  %v1406 = vpop.xlane.xlu0 %1405
  %v1407 = vsel %vm785, %v608, 0.0
  %1408 = vadd.xlane.f32.xlu0 %v1407
  %v1409 = vpop.xlane.xlu0 %1408
  %v1410 = vsel %vm785, %v609, 0.0
  %1411 = vadd.xlane.f32.xlu0 %v1410
  %v1412 = vpop.xlane.xlu0 %1411
  %v1413 = vsel %vm785, %v610, 0.0
  %1414 = vadd.xlane.f32.xlu0 %v1413
  %v1415 = vpop.xlane.xlu0 %1414
  %v1416 = vsel %vm785, %v611, 0.0
  %1417 = vadd.xlane.f32.xlu0 %v1416
  %v1418 = vpop.xlane.xlu0 %1417
  %v1419 = vsel %vm785, %v612, 0.0
  %1420 = vadd.xlane.f32.xlu0 %v1419
  %v1421 = vpop.xlane.xlu0 %1420
  %v1422 = vsel %vm785, %v613, 0.0
  %1423 = vadd.xlane.f32.xlu0 %v1422
  %v1424 = vpop.xlane.xlu0 %1423
  %v1425 = vsel %vm785, %v614, 0.0
  %1426 = vadd.xlane.f32.xlu0 %v1425
  %v1427 = vpop.xlane.xlu0 %1426
  %v1428 = vsel %vm785, %v615, 0.0
  %1429 = vadd.xlane.f32.xlu0 %v1428
  %v1430 = vpop.xlane.xlu0 %1429
  %v1431 = vsel %vm785, %v616, 0.0
  %1432 = vadd.xlane.f32.xlu0 %v1431
  %v1433 = vpop.xlane.xlu0 %1432
  %v1434 = vsel %vm785, %v617, 0.0
  %1435 = vadd.xlane.f32.xlu0 %v1434
  %v1436 = vpop.xlane.xlu0 %1435
  %v1437 = vsel %vm785, %v618, 0.0
  %1438 = vadd.xlane.f32.xlu0 %v1437
  %v1439 = vpop.xlane.xlu0 %1438
  %v1440 = vsel %vm785, %v619, 0.0
  %1441 = vadd.xlane.f32.xlu0 %v1440
  %v1442 = vpop.xlane.xlu0 %1441
  %v1443 = vsel %vm785, %v620, 0.0
  %1444 = vadd.xlane.f32.xlu0 %v1443
  %v1445 = vpop.xlane.xlu0 %1444
  %v1446 = vsel %vm785, %v621, 0.0
  %1447 = vadd.xlane.f32.xlu0 %v1446
  %v1448 = vpop.xlane.xlu0 %1447
  %v1449 = vsel %vm785, %v622, 0.0
  %1450 = vadd.xlane.f32.xlu0 %v1449
  %v1451 = vpop.xlane.xlu0 %1450
  %v1452 = vsel %vm785, %v623, 0.0
  %1453 = vadd.xlane.f32.xlu0 %v1452
  %v1454 = vpop.xlane.xlu0 %1453
  %v1455 = vsel %vm785, %v624, 0.0
  %1456 = vadd.xlane.f32.xlu0 %v1455
  %v1457 = vpop.xlane.xlu0 %1456
  %v1458 = vsel %vm785, %v625, 0.0
  %1459 = vadd.xlane.f32.xlu0 %v1458
  %v1460 = vpop.xlane.xlu0 %1459
  %v1461 = vsel %vm785, %v626, 0.0
  %1462 = vadd.xlane.f32.xlu0 %v1461
  %v1463 = vpop.xlane.xlu0 %1462
  %v1464 = vsel %vm785, %v627, 0.0
  %1465 = vadd.xlane.f32.xlu0 %v1464
  %v1466 = vpop.xlane.xlu0 %1465
  %v1467 = vsel %vm785, %v628, 0.0
  %1468 = vadd.xlane.f32.xlu0 %v1467
  %v1469 = vpop.xlane.xlu0 %1468
  %v1470 = vsel %vm785, %v629, 0.0
  %1471 = vadd.xlane.f32.xlu0 %v1470
  %v1472 = vpop.xlane.xlu0 %1471
  %v1473 = vsel %vm785, %v630, 0.0
  %1474 = vadd.xlane.f32.xlu0 %v1473
  %v1475 = vpop.xlane.xlu0 %1474
  %v1476 = vsel %vm785, %v631, 0.0
  %1477 = vadd.xlane.f32.xlu0 %v1476
  %v1478 = vpop.xlane.xlu0 %1477
  %v1479 = vsel %vm785, %v632, 0.0
  %1480 = vadd.xlane.f32.xlu0 %v1479
  %v1481 = vpop.xlane.xlu0 %1480
  %v1482 = vsel %vm785, %v633, 0.0
  %1483 = vadd.xlane.f32.xlu0 %v1482
  %v1484 = vpop.xlane.xlu0 %1483
  %v1485 = vsel %vm785, %v634, 0.0
  %1486 = vadd.xlane.f32.xlu0 %v1485
  %v1487 = vpop.xlane.xlu0 %1486
  %v1488 = vsel %vm785, %v635, 0.0
  %1489 = vadd.xlane.f32.xlu0 %v1488
  %v1490 = vpop.xlane.xlu0 %1489
  %v1491 = vsel %vm785, %v636, 0.0
  %1492 = vadd.xlane.f32.xlu0 %v1491
  %v1493 = vpop.xlane.xlu0 %1492
  %v1494 = vsel %vm785, %v637, 0.0
  %1495 = vadd.xlane.f32.xlu0 %v1494
  %v1496 = vpop.xlane.xlu0 %1495
  %v1497 = vsel %vm785, %v638, 0.0
  %1498 = vadd.xlane.f32.xlu0 %v1497
  %v1499 = vpop.xlane.xlu0 %1498
  %v1500 = vsel %vm785, %v639, 0.0
  %1501 = vadd.xlane.f32.xlu0 %v1500
  %v1502 = vpop.xlane.xlu0 %1501
  %v1503 = vsel %vm785, %v640, 0.0
  %1504 = vadd.xlane.f32.xlu0 %v1503
  %v1505 = vpop.xlane.xlu0 %1504
  %v1506 = vsel %vm785, %v641, 0.0
  %1507 = vadd.xlane.f32.xlu0 %v1506
  %v1508 = vpop.xlane.xlu0 %1507
  %v1509 = vsel %vm785, %v642, 0.0
  %1510 = vadd.xlane.f32.xlu0 %v1509
  %v1511 = vpop.xlane.xlu0 %1510
  %v1512 = vsel %vm785, %v643, 0.0
  %1513 = vadd.xlane.f32.xlu0 %v1512
  %v1514 = vpop.xlane.xlu0 %1513
  %v1515 = vsel %vm785, %v644, 0.0
  %1516 = vadd.xlane.f32.xlu0 %v1515
  %v1517 = vpop.xlane.xlu0 %1516
  %v1518 = vsel %vm785, %v645, 0.0
  %1519 = vadd.xlane.f32.xlu0 %v1518
  %v1520 = vpop.xlane.xlu0 %1519
  %v1521 = vsel %vm785, %v646, 0.0
  %1522 = vadd.xlane.f32.xlu0 %v1521
  %v1523 = vpop.xlane.xlu0 %1522
  %v1524 = vsel %vm785, %v647, 0.0
  %1525 = vadd.xlane.f32.xlu0 %v1524
  %v1526 = vpop.xlane.xlu0 %1525
  %v1527 = vsel %vm785, %v648, 0.0
  %1528 = vadd.xlane.f32.xlu0 %v1527
  %v1529 = vpop.xlane.xlu0 %1528
  %v1530 = vsel %vm785, %v649, 0.0
  %1531 = vadd.xlane.f32.xlu0 %v1530
  %v1532 = vpop.xlane.xlu0 %1531
  %v1533 = vsel %vm785, %v650, 0.0
  %1534 = vadd.xlane.f32.xlu0 %v1533
  %v1535 = vpop.xlane.xlu0 %1534
  %v1536 = vsel %vm785, %v651, 0.0
  %1537 = vadd.xlane.f32.xlu0 %v1536
  %v1538 = vpop.xlane.xlu0 %1537
  %v1539 = vsel %vm785, %v652, 0.0
  %1540 = vadd.xlane.f32.xlu0 %v1539
  %v1541 = vpop.xlane.xlu0 %1540
  %v1542 = vsel %vm785, %v653, 0.0
  %1543 = vadd.xlane.f32.xlu0 %v1542
  %v1544 = vpop.xlane.xlu0 %1543
  %v1545 = vsel %vm785, %v654, 0.0
  %1546 = vadd.xlane.f32.xlu0 %v1545
  %v1547 = vpop.xlane.xlu0 %1546
  %v1548 = vsel %vm785, %v655, 0.0
  %1549 = vadd.xlane.f32.xlu0 %v1548
  %v1550 = vpop.xlane.xlu0 %1549
  %v1551 = vsel %vm785, %v656, 0.0
  %1552 = vadd.xlane.f32.xlu0 %v1551
  %v1553 = vpop.xlane.xlu0 %1552
  %v1554 = vsel %vm785, %v657, 0.0
  %1555 = vadd.xlane.f32.xlu0 %v1554
  %v1556 = vpop.xlane.xlu0 %1555
  %v1557 = vsel %vm785, %v658, 0.0
  %1558 = vadd.xlane.f32.xlu0 %v1557
  %v1559 = vpop.xlane.xlu0 %1558
  %v1560 = vsel %vm785, %v659, 0.0
  %1561 = vadd.xlane.f32.xlu0 %v1560
  %v1562 = vpop.xlane.xlu0 %1561
  %v1563 = vsel %vm785, %v660, 0.0
  %1564 = vadd.xlane.f32.xlu0 %v1563
  %v1565 = vpop.xlane.xlu0 %1564
  %v1566 = vsel %vm785, %v661, 0.0
  %1567 = vadd.xlane.f32.xlu0 %v1566
  %v1568 = vpop.xlane.xlu0 %1567
  %v1569 = vsel %vm785, %v662, 0.0
  %1570 = vadd.xlane.f32.xlu0 %v1569
  %v1571 = vpop.xlane.xlu0 %1570
  %v1572 = vsel %vm785, %v663, 0.0
  %1573 = vadd.xlane.f32.xlu0 %v1572
  %v1574 = vpop.xlane.xlu0 %1573
  %v1575 = vsel %vm785, %v664, 0.0
  %1576 = vadd.xlane.f32.xlu0 %v1575
  %v1577 = vpop.xlane.xlu0 %1576
  %v1578 = vsel %vm785, %v665, 0.0
  %1579 = vadd.xlane.f32.xlu0 %v1578
  %v1580 = vpop.xlane.xlu0 %1579
  %v1581 = vsel %vm785, %v666, 0.0
  %1582 = vadd.xlane.f32.xlu0 %v1581
  %v1583 = vpop.xlane.xlu0 %1582
  %v1584 = vsel %vm785, %v667, 0.0
  %1585 = vadd.xlane.f32.xlu0 %v1584
  %v1586 = vpop.xlane.xlu0 %1585
  %v1587 = vsel %vm785, %v668, 0.0
  %1588 = vadd.xlane.f32.xlu0 %v1587
  %v1589 = vpop.xlane.xlu0 %1588
  %v1590 = vsel %vm785, %v669, 0.0
  %1591 = vadd.xlane.f32.xlu0 %v1590
  %v1592 = vpop.xlane.xlu0 %1591
  %v1593 = vsel %vm785, %v670, 0.0
  %1594 = vadd.xlane.f32.xlu0 %v1593
  %v1595 = vpop.xlane.xlu0 %1594
  %v1596 = vsel %vm785, %v671, 0.0
  %1597 = vadd.xlane.f32.xlu0 %v1596
  %v1598 = vpop.xlane.xlu0 %1597
  %v1599 = vsel %vm785, %v672, 0.0
  %1600 = vadd.xlane.f32.xlu0 %v1599
  %v1601 = vpop.xlane.xlu0 %1600
  %v1602 = vsel %vm785, %v673, 0.0
  %1603 = vadd.xlane.f32.xlu0 %v1602
  %v1604 = vpop.xlane.xlu0 %1603
  %v1605 = vsel %vm785, %v674, 0.0
  %1606 = vadd.xlane.f32.xlu0 %v1605
  %v1607 = vpop.xlane.xlu0 %1606
  %v1608 = vsel %vm785, %v675, 0.0
  %1609 = vadd.xlane.f32.xlu0 %v1608
  %v1610 = vpop.xlane.xlu0 %1609
  %v1611 = vsel %vm785, %v676, 0.0
  %1612 = vadd.xlane.f32.xlu0 %v1611
  %v1613 = vpop.xlane.xlu0 %1612
  %v1614 = vsel %vm785, %v677, 0.0
  %1615 = vadd.xlane.f32.xlu0 %v1614
  %v1616 = vpop.xlane.xlu0 %1615
  %v1617 = vsel %vm785, %v678, 0.0
  %1618 = vadd.xlane.f32.xlu0 %v1617
  %v1619 = vpop.xlane.xlu0 %1618
  %v1620 = vsel %vm785, %v679, 0.0
  %1621 = vadd.xlane.f32.xlu0 %v1620
  %v1622 = vpop.xlane.xlu0 %1621
  %v1623 = vsel %vm785, %v680, 0.0
  %1624 = vadd.xlane.f32.xlu0 %v1623
  %v1625 = vpop.xlane.xlu0 %1624
  %v1626 = vsel %vm785, %v681, 0.0
  %1627 = vadd.xlane.f32.xlu0 %v1626
  %v1628 = vpop.xlane.xlu0 %1627
  %v1629 = vsel %vm785, %v682, 0.0
  %1630 = vadd.xlane.f32.xlu0 %v1629
  %v1631 = vpop.xlane.xlu0 %1630
  %v1632 = vsel %vm785, %v683, 0.0
  %1633 = vadd.xlane.f32.xlu0 %v1632
  %v1634 = vpop.xlane.xlu0 %1633
  %v1635 = vsel %vm785, %v684, 0.0
  %1636 = vadd.xlane.f32.xlu0 %v1635
  %v1637 = vpop.xlane.xlu0 %1636
  %v1638 = vsel %vm785, %v685, 0.0
  %1639 = vadd.xlane.f32.xlu0 %v1638
  %v1640 = vpop.xlane.xlu0 %1639
  %v1641 = vsel %vm785, %v686, 0.0
  %1642 = vadd.xlane.f32.xlu0 %v1641
  %v1643 = vpop.xlane.xlu0 %1642
  %v1644 = vsel %vm785, %v687, 0.0
  %1645 = vadd.xlane.f32.xlu0 %v1644
  %v1646 = vpop.xlane.xlu0 %1645
  %v1647 = vsel %vm785, %v688, 0.0
  %1648 = vadd.xlane.f32.xlu0 %v1647
  %v1649 = vpop.xlane.xlu0 %1648
  %v1650 = vsel %vm785, %v689, 0.0
  %1651 = vadd.xlane.f32.xlu0 %v1650
  %v1652 = vpop.xlane.xlu0 %1651
  %v1653 = vsel %vm785, %v690, 0.0
  %1654 = vadd.xlane.f32.xlu0 %v1653
  %v1655 = vpop.xlane.xlu0 %1654
  %v1656 = vsel %vm785, %v691, 0.0
  %1657 = vadd.xlane.f32.xlu0 %v1656
  %v1658 = vpop.xlane.xlu0 %1657
  %v1659 = vsel %vm785, %v692, 0.0
  %1660 = vadd.xlane.f32.xlu0 %v1659
  %v1661 = vpop.xlane.xlu0 %1660
  %v1662 = vsel %vm785, %v693, 0.0
  %1663 = vadd.xlane.f32.xlu0 %v1662
  %v1664 = vpop.xlane.xlu0 %1663
  %v1665 = vsel %vm785, %v694, 0.0
  %1666 = vadd.xlane.f32.xlu0 %v1665
  %v1667 = vpop.xlane.xlu0 %1666
  %v1668 = vsel %vm785, %v695, 0.0
  %1669 = vadd.xlane.f32.xlu0 %v1668
  %v1670 = vpop.xlane.xlu0 %1669
  %v1671 = vsel %vm785, %v696, 0.0
  %1672 = vadd.xlane.f32.xlu0 %v1671
  %v1673 = vpop.xlane.xlu0 %1672
  %v1674 = vsel %vm785, %v697, 0.0
  %1675 = vadd.xlane.f32.xlu0 %v1674
  %v1676 = vpop.xlane.xlu0 %1675
  %v1677 = vsel %vm785, %v698, 0.0
  %1678 = vadd.xlane.f32.xlu0 %v1677
  %v1679 = vpop.xlane.xlu0 %1678
  %v1680 = vsel %vm785, %v699, 0.0
  %1681 = vadd.xlane.f32.xlu0 %v1680
  %v1682 = vpop.xlane.xlu0 %1681
  %v1683 = vsel %vm785, %v700, 0.0
  %1684 = vadd.xlane.f32.xlu0 %v1683
  %v1685 = vpop.xlane.xlu0 %1684
  %v1686 = vsel %vm785, %v701, 0.0
  %1687 = vadd.xlane.f32.xlu0 %v1686
  %v1688 = vpop.xlane.xlu0 %1687
  %v1689 = vsel %vm785, %v702, 0.0
  %1690 = vadd.xlane.f32.xlu0 %v1689
  %v1691 = vpop.xlane.xlu0 %1690
  %v1692 = vsel %vm785, %v703, 0.0
  %1693 = vadd.xlane.f32.xlu0 %v1692
  %v1694 = vpop.xlane.xlu0 %1693
  %v1695 = vsel %vm785, %v704, 0.0
  %1696 = vadd.xlane.f32.xlu0 %v1695
  %v1697 = vpop.xlane.xlu0 %1696
  %v1698 = vsel %vm785, %v705, 0.0
  %1699 = vadd.xlane.f32.xlu0 %v1698
  %v1700 = vpop.xlane.xlu0 %1699
  %v1701 = vsel %vm785, %v706, 0.0
  %1702 = vadd.xlane.f32.xlu0 %v1701
  %v1703 = vpop.xlane.xlu0 %1702
  %v1704 = vsel %vm785, %v707, 0.0
  %1705 = vadd.xlane.f32.xlu0 %v1704
  %v1706 = vpop.xlane.xlu0 %1705
  %v1707 = vsel %vm785, %v708, 0.0
  %1708 = vadd.xlane.f32.xlu0 %v1707
  %v1709 = vpop.xlane.xlu0 %1708
  %v1710 = vsel %vm785, %v709, 0.0
  %1711 = vadd.xlane.f32.xlu0 %v1710
  %v1712 = vpop.xlane.xlu0 %1711
  %v1713 = vsel %vm785, %v710, 0.0
  %1714 = vadd.xlane.f32.xlu0 %v1713
  %v1715 = vpop.xlane.xlu0 %1714
  %v1716 = vsel %vm785, %v711, 0.0
  %1717 = vadd.xlane.f32.xlu0 %v1716
  %v1718 = vpop.xlane.xlu0 %1717
  %v1719 = vsel %vm785, %v712, 0.0
  %1720 = vadd.xlane.f32.xlu0 %v1719
  %v1721 = vpop.xlane.xlu0 %1720
  %v1722 = vsel %vm785, %v713, 0.0
  %1723 = vadd.xlane.f32.xlu0 %v1722
  %v1724 = vpop.xlane.xlu0 %1723
  %v1725 = vsel %vm785, %v714, 0.0
  %1726 = vadd.xlane.f32.xlu0 %v1725
  %v1727 = vpop.xlane.xlu0 %1726
  %v1728 = vsel %vm785, %v715, 0.0
  %1729 = vadd.xlane.f32.xlu0 %v1728
  %v1730 = vpop.xlane.xlu0 %1729
  %v1731 = vsel %vm785, %v716, 0.0
  %1732 = vadd.xlane.f32.xlu0 %v1731
  %v1733 = vpop.xlane.xlu0 %1732
  %v1734 = vsel %vm785, %v717, 0.0
  %1735 = vadd.xlane.f32.xlu0 %v1734
  %v1736 = vpop.xlane.xlu0 %1735
  %v1737 = vsel %vm785, %v718, 0.0
  %1738 = vadd.xlane.f32.xlu0 %v1737
  %v1739 = vpop.xlane.xlu0 %1738
  %v1740 = vsel %vm785, %v719, 0.0
  %1741 = vadd.xlane.f32.xlu0 %v1740
  %v1742 = vpop.xlane.xlu0 %1741
  %v1743 = vsel %vm785, %v720, 0.0
  %1744 = vadd.xlane.f32.xlu0 %v1743
  %v1745 = vpop.xlane.xlu0 %1744
  %v1746 = vsel %vm785, %v721, 0.0
  %1747 = vadd.xlane.f32.xlu0 %v1746
  %v1748 = vpop.xlane.xlu0 %1747
  %v1749 = vsel %vm785, %v722, 0.0
  %1750 = vadd.xlane.f32.xlu0 %v1749
  %v1751 = vpop.xlane.xlu0 %1750
  %v1752 = vsel %vm785, %v723, 0.0
  %1753 = vadd.xlane.f32.xlu0 %v1752
  %v1754 = vpop.xlane.xlu0 %1753
  %v1755 = vsel %vm785, %v724, 0.0
  %1756 = vadd.xlane.f32.xlu0 %v1755
  %v1757 = vpop.xlane.xlu0 %1756
  %v1758 = vsel %vm785, %v725, 0.0
  %1759 = vadd.xlane.f32.xlu0 %v1758
  %v1760 = vpop.xlane.xlu0 %1759
  %v1761 = vsel %vm785, %v726, 0.0
  %1762 = vadd.xlane.f32.xlu0 %v1761
  %v1763 = vpop.xlane.xlu0 %1762
  %v1764 = vsel %vm785, %v727, 0.0
  %1765 = vadd.xlane.f32.xlu0 %v1764
  %v1766 = vpop.xlane.xlu0 %1765
  %v1767 = vsel %vm785, %v728, 0.0
  %1768 = vadd.xlane.f32.xlu0 %v1767
  %v1769 = vpop.xlane.xlu0 %1768
  %v1770 = vsel %vm785, %v729, 0.0
  %1771 = vadd.xlane.f32.xlu0 %v1770
  %v1772 = vpop.xlane.xlu0 %1771
  %v1773 = vsel %vm785, %v730, 0.0
  %1774 = vadd.xlane.f32.xlu0 %v1773
  %v1775 = vpop.xlane.xlu0 %1774
  %v1776 = vsel %vm785, %v731, 0.0
  %1777 = vadd.xlane.f32.xlu0 %v1776
  %v1778 = vpop.xlane.xlu0 %1777
  %v1779 = vsel %vm785, %v732, 0.0
  %1780 = vadd.xlane.f32.xlu0 %v1779
  %v1781 = vpop.xlane.xlu0 %1780
  %v1782 = vsel %vm785, %v733, 0.0
  %1783 = vadd.xlane.f32.xlu0 %v1782
  %v1784 = vpop.xlane.xlu0 %1783
  %v1785 = vsel %vm785, %v734, 0.0
  %1786 = vadd.xlane.f32.xlu0 %v1785
  %v1787 = vpop.xlane.xlu0 %1786
  %v1788 = vsel %vm785, %v735, 0.0
  %1789 = vadd.xlane.f32.xlu0 %v1788
  %v1790 = vpop.xlane.xlu0 %1789
  %v1791 = vsel %vm785, %v736, 0.0
  %1792 = vadd.xlane.f32.xlu0 %v1791
  %v1793 = vpop.xlane.xlu0 %1792
  %v1794 = vsel %vm785, %v737, 0.0
  %1795 = vadd.xlane.f32.xlu0 %v1794
  %v1796 = vpop.xlane.xlu0 %1795
  %v1797 = vsel %vm785, %v738, 0.0
  %1798 = vadd.xlane.f32.xlu0 %v1797
  %v1799 = vpop.xlane.xlu0 %1798
  %v1800 = vsel %vm785, %v739, 0.0
  %1801 = vadd.xlane.f32.xlu0 %v1800
  %v1802 = vpop.xlane.xlu0 %1801
  %v1803 = vsel %vm785, %v740, 0.0
  %1804 = vadd.xlane.f32.xlu0 %v1803
  %v1805 = vpop.xlane.xlu0 %1804
  %v1806 = vsel %vm785, %v741, 0.0
  %1807 = vadd.xlane.f32.xlu0 %v1806
  %v1808 = vpop.xlane.xlu0 %1807
  %v1809 = vsel %vm785, %v742, 0.0
  %1810 = vadd.xlane.f32.xlu0 %v1809
  %v1811 = vpop.xlane.xlu0 %1810
  %v1812 = vsel %vm785, %v743, 0.0
  %1813 = vadd.xlane.f32.xlu0 %v1812
  %v1814 = vpop.xlane.xlu0 %1813
  %v1815 = vsel %vm785, %v744, 0.0
  %1816 = vadd.xlane.f32.xlu0 %v1815
  %v1817 = vpop.xlane.xlu0 %1816
  %v1818 = vsel %vm785, %v745, 0.0
  %1819 = vadd.xlane.f32.xlu0 %v1818
  %v1820 = vpop.xlane.xlu0 %1819
  %v1821 = vsel %vm785, %v746, 0.0
  %1822 = vadd.xlane.f32.xlu0 %v1821
  %v1823 = vpop.xlane.xlu0 %1822
  %v1824 = vsel %vm785, %v747, 0.0
  %1825 = vadd.xlane.f32.xlu0 %v1824
  %v1826 = vpop.xlane.xlu0 %1825
  %v1827 = vsel %vm785, %v748, 0.0
  %1828 = vadd.xlane.f32.xlu0 %v1827
  %v1829 = vpop.xlane.xlu0 %1828
  %v1830 = vsel %vm785, %v749, 0.0
  %1831 = vadd.xlane.f32.xlu0 %v1830
  %v1832 = vpop.xlane.xlu0 %1831
  %v1833 = vsel %vm785, %v750, 0.0
  %1834 = vadd.xlane.f32.xlu0 %v1833
  %v1835 = vpop.xlane.xlu0 %1834
  %v1836 = vsel %vm785, %v751, 0.0
  %1837 = vadd.xlane.f32.xlu0 %v1836
  %v1838 = vpop.xlane.xlu0 %1837
  %v1839 = vsel %vm785, %v752, 0.0
  %1840 = vadd.xlane.f32.xlu0 %v1839
  %v1841 = vpop.xlane.xlu0 %1840
  %v1842 = vsel %vm785, %v753, 0.0
  %1843 = vadd.xlane.f32.xlu0 %v1842
  %v1844 = vpop.xlane.xlu0 %1843
  %v1845 = vsel %vm785, %v754, 0.0
  %1846 = vadd.xlane.f32.xlu0 %v1845
  %v1847 = vpop.xlane.xlu0 %1846
  %v1848 = vsel %vm785, %v755, 0.0
  %1849 = vadd.xlane.f32.xlu0 %v1848
  %v1850 = vpop.xlane.xlu0 %1849
  %v1851 = vsel %vm785, %v756, 0.0
  %1852 = vadd.xlane.f32.xlu0 %v1851
  %v1853 = vpop.xlane.xlu0 %1852
  %v1854 = vsel %vm785, %v757, 0.0
  %1855 = vadd.xlane.f32.xlu0 %v1854
  %v1856 = vpop.xlane.xlu0 %1855
  %v1857 = vsel %vm785, %v758, 0.0
  %1858 = vadd.xlane.f32.xlu0 %v1857
  %v1859 = vpop.xlane.xlu0 %1858
  %v1860 = vsel %vm785, %v759, 0.0
  %1861 = vadd.xlane.f32.xlu0 %v1860
  %v1862 = vpop.xlane.xlu0 %1861
  %v1863 = vsel %vm785, %v760, 0.0
  %1864 = vadd.xlane.f32.xlu0 %v1863
  %v1865 = vpop.xlane.xlu0 %1864
  %v1866 = vsel %vm785, %v761, 0.0
  %1867 = vadd.xlane.f32.xlu0 %v1866
  %v1868 = vpop.xlane.xlu0 %1867
  %v1869 = vsel %vm785, %v762, 0.0
  %1870 = vadd.xlane.f32.xlu0 %v1869
  %v1871 = vpop.xlane.xlu0 %1870
  %v1872 = vsel %vm785, %v763, 0.0
  %1873 = vadd.xlane.f32.xlu0 %v1872
  %v1874 = vpop.xlane.xlu0 %1873
  %v1875 = vsel %vm785, %v764, 0.0
  %1876 = vadd.xlane.f32.xlu0 %v1875
  %v1877 = vpop.xlane.xlu0 %1876
  %v1878 = vsel %vm785, %v765, 0.0
  %1879 = vadd.xlane.f32.xlu0 %v1878
  %v1880 = vpop.xlane.xlu0 %1879
  %v1881 = vsel %vm785, %v766, 0.0
  %1882 = vadd.xlane.f32.xlu0 %v1881
  %v1883 = vpop.xlane.xlu0 %1882
  %v1884 = vsel %vm785, %v767, 0.0
  %1885 = vadd.xlane.f32.xlu0 %v1884
  %v1886 = vpop.xlane.xlu0 %1885
  %v1887 = vsel %vm785, %v768, 0.0
  %1888 = vadd.xlane.f32.xlu0 %v1887
  %v1889 = vpop.xlane.xlu0 %1888
  %v1890 = vsel %vm785, %v769, 0.0
  %1891 = vadd.xlane.f32.xlu0 %v1890
  %v1892 = vpop.xlane.xlu0 %1891
  %v1893 = vsel %vm785, %v770, 0.0
  %1894 = vadd.xlane.f32.xlu0 %v1893
  %v1895 = vpop.xlane.xlu0 %1894
  %v1896 = vsel %vm785, %v771, 0.0
  %1897 = vadd.xlane.f32.xlu0 %v1896
  %v1898 = vpop.xlane.xlu0 %1897
  %v1899 = vsel %vm785, %v772, 0.0
  %1900 = vadd.xlane.f32.xlu0 %v1899
  %v1901 = vpop.xlane.xlu0 %1900
  %v1902 = vsel %vm785, %v773, 0.0
  %1903 = vadd.xlane.f32.xlu0 %v1902
  %v1904 = vpop.xlane.xlu0 %1903
  %v1905 = vsel %vm785, %v774, 0.0
  %1906 = vadd.xlane.f32.xlu0 %v1905
  %v1907 = vpop.xlane.xlu0 %1906
  %v1908 = vsel %vm785, %v775, 0.0
  %1909 = vadd.xlane.f32.xlu0 %v1908
  %v1910 = vpop.xlane.xlu0 %1909
  %v1911 = vsel %vm785, %v776, 0.0
  %1912 = vadd.xlane.f32.xlu0 %v1911
  %v1913 = vpop.xlane.xlu0 %1912
  %v1914 = vsel %vm785, %v777, 0.0
  %1915 = vadd.xlane.f32.xlu0 %v1914
  %v1916 = vpop.xlane.xlu0 %1915
  %v1917 = vsel %vm785, %v778, 0.0
  %1918 = vadd.xlane.f32.xlu0 %v1917
  %v1919 = vpop.xlane.xlu0 %1918
  %v1920 = vsel %vm785, %v779, 0.0
  %1921 = vadd.xlane.f32.xlu0 %v1920
  %v1922 = vpop.xlane.xlu0 %1921
  %v1923 = vsel %vm785, %v780, 0.0
  %1924 = vadd.xlane.f32.xlu0 %v1923
  %v1925 = vpop.xlane.xlu0 %1924
  %v1926 = vsel %vm785, %v781, 0.0
  %1927 = vadd.xlane.f32.xlu0 %v1926
  %v1928 = vpop.xlane.xlu0 %1927
  %v1929 = vsel %vm785, %v782, 0.0
  %1930 = vadd.xlane.f32.xlu0 %v1929
  %v1931 = vpop.xlane.xlu0 %1930
  %v1932 = vsel %vm785, %v783, 0.0
  %1933 = vadd.xlane.f32.xlu0 %v1932
  %v1934 = vpop.xlane.xlu0 %1933
  %v1935 = vsel %vm785, %v784, 0.0
  %1936 = vadd.xlane.f32.xlu0 %v1935
  %v1937 = vpop.xlane.xlu0 %1936
  %v1938 = vmul.f32 %v788, 0.020408163
  %v1939 = vmul.f32 %v791, 0.020408163
  %v1940 = vmul.f32 %v794, 0.020408163
  %v1941 = vmul.f32 %v797, 0.020408163
  %v1942 = vmul.f32 %v800, 0.020408163
  %v1943 = vmul.f32 %v803, 0.020408163
  %v1944 = vmul.f32 %v806, 0.020408163
  %v1945 = vmul.f32 %v809, 0.020408163
  %v1946 = vmul.f32 %v812, 0.020408163
  %v1947 = vmul.f32 %v815, 0.020408163
  %v1948 = vmul.f32 %v818, 0.020408163
  %v1949 = vmul.f32 %v821, 0.020408163
  %v1950 = vmul.f32 %v824, 0.020408163
  %v1951 = vmul.f32 %v827, 0.020408163
  %v1952 = vmul.f32 %v830, 0.020408163
  %v1953 = vmul.f32 %v833, 0.020408163
  %v1954 = vmul.f32 %v836, 0.020408163
  %v1955 = vmul.f32 %v839, 0.020408163
  %v1956 = vmul.f32 %v842, 0.020408163
  %v1957 = vmul.f32 %v845, 0.020408163
  %v1958 = vmul.f32 %v848, 0.020408163
  %v1959 = vmul.f32 %v851, 0.020408163
  %v1960 = vmul.f32 %v854, 0.020408163
  %v1961 = vmul.f32 %v857, 0.020408163
  %v1962 = vmul.f32 %v860, 0.020408163
  %v1963 = vmul.f32 %v863, 0.020408163
  %v1964 = vmul.f32 %v866, 0.020408163
  %v1965 = vmul.f32 %v869, 0.020408163
  %v1966 = vmul.f32 %v872, 0.020408163
  %v1967 = vmul.f32 %v875, 0.020408163
  %v1968 = vmul.f32 %v878, 0.020408163
  %v1969 = vmul.f32 %v881, 0.020408163
  %v1970 = vmul.f32 %v884, 0.020408163
  %v1971 = vmul.f32 %v887, 0.020408163
  %v1972 = vmul.f32 %v890, 0.020408163
  %v1973 = vmul.f32 %v893, 0.020408163
  %v1974 = vmul.f32 %v896, 0.020408163
  %v1975 = vmul.f32 %v899, 0.020408163
  %v1976 = vmul.f32 %v902, 0.020408163
  %v1977 = vmul.f32 %v905, 0.020408163
  %v1978 = vmul.f32 %v908, 0.020408163
  %v1979 = vmul.f32 %v911, 0.020408163
  %v1980 = vmul.f32 %v914, 0.020408163
  %v1981 = vmul.f32 %v917, 0.020408163
  %v1982 = vmul.f32 %v920, 0.020408163
  %v1983 = vmul.f32 %v923, 0.020408163
  %v1984 = vmul.f32 %v926, 0.020408163
  %v1985 = vmul.f32 %v929, 0.020408163
  %v1986 = vmul.f32 %v932, 0.020408163
  %v1987 = vmul.f32 %v935, 0.020408163
  %v1988 = vmul.f32 %v938, 0.020408163
  %v1989 = vmul.f32 %v941, 0.020408163
  %v1990 = vmul.f32 %v944, 0.020408163
  %v1991 = vmul.f32 %v947, 0.020408163
  %v1992 = vmul.f32 %v950, 0.020408163
  %v1993 = vmul.f32 %v953, 0.020408163
  %v1994 = vmul.f32 %v956, 0.020408163
  %v1995 = vmul.f32 %v959, 0.020408163
  %v1996 = vmul.f32 %v962, 0.020408163
  %v1997 = vmul.f32 %v965, 0.020408163
  %v1998 = vmul.f32 %v968, 0.020408163
  %v1999 = vmul.f32 %v971, 0.020408163
  %v2000 = vmul.f32 %v974, 0.020408163
  %v2001 = vmul.f32 %v977, 0.020408163
  %v2002 = vmul.f32 %v980, 0.020408163
  %v2003 = vmul.f32 %v983, 0.020408163
  %v2004 = vmul.f32 %v986, 0.020408163
  %v2005 = vmul.f32 %v989, 0.020408163
  %v2006 = vmul.f32 %v992, 0.020408163
  %v2007 = vmul.f32 %v995, 0.020408163
  %v2008 = vmul.f32 %v998, 0.020408163
  %v2009 = vmul.f32 %v1001, 0.020408163
  %v2010 = vmul.f32 %v1004, 0.020408163
  %v2011 = vmul.f32 %v1007, 0.020408163
  %v2012 = vmul.f32 %v1010, 0.020408163
  %v2013 = vmul.f32 %v1013, 0.020408163
  %v2014 = vmul.f32 %v1016, 0.020408163
  %v2015 = vmul.f32 %v1019, 0.020408163
  %v2016 = vmul.f32 %v1022, 0.020408163
  %v2017 = vmul.f32 %v1025, 0.020408163
  %v2018 = vmul.f32 %v1028, 0.020408163
  %v2019 = vmul.f32 %v1031, 0.020408163
  %v2020 = vmul.f32 %v1034, 0.020408163
  %v2021 = vmul.f32 %v1037, 0.020408163
  %v2022 = vmul.f32 %v1040, 0.020408163
  %v2023 = vmul.f32 %v1043, 0.020408163
  %v2024 = vmul.f32 %v1046, 0.020408163
  %v2025 = vmul.f32 %v1049, 0.020408163
  %v2026 = vmul.f32 %v1052, 0.020408163
  %v2027 = vmul.f32 %v1055, 0.020408163
  %v2028 = vmul.f32 %v1058, 0.020408163
  %v2029 = vmul.f32 %v1061, 0.020408163
  %v2030 = vmul.f32 %v1064, 0.020408163
  %v2031 = vmul.f32 %v1067, 0.020408163
  %v2032 = vmul.f32 %v1070, 0.020408163
  %v2033 = vmul.f32 %v1073, 0.020408163
  %v2034 = vmul.f32 %v1076, 0.020408163
  %v2035 = vmul.f32 %v1079, 0.020408163
  %v2036 = vmul.f32 %v1082, 0.020408163
  %v2037 = vmul.f32 %v1085, 0.020408163
  %v2038 = vmul.f32 %v1088, 0.020408163
  %v2039 = vmul.f32 %v1091, 0.020408163
  %v2040 = vmul.f32 %v1094, 0.020408163
  %v2041 = vmul.f32 %v1097, 0.020408163
  %v2042 = vmul.f32 %v1100, 0.020408163
  %v2043 = vmul.f32 %v1103, 0.020408163
  %v2044 = vmul.f32 %v1106, 0.020408163
  %v2045 = vmul.f32 %v1109, 0.020408163
  %v2046 = vmul.f32 %v1112, 0.020408163
  %v2047 = vmul.f32 %v1115, 0.020408163
  %v2048 = vmul.f32 %v1118, 0.020408163
  %v2049 = vmul.f32 %v1121, 0.020408163
  %v2050 = vmul.f32 %v1124, 0.020408163
  %v2051 = vmul.f32 %v1127, 0.020408163
  %v2052 = vmul.f32 %v1130, 0.020408163
  %v2053 = vmul.f32 %v1133, 0.020408163
  %v2054 = vmul.f32 %v1136, 0.020408163
  %v2055 = vmul.f32 %v1139, 0.020408163
  %v2056 = vmul.f32 %v1142, 0.020408163
  %v2057 = vmul.f32 %v1145, 0.020408163
  %v2058 = vmul.f32 %v1148, 0.020408163
  %v2059 = vmul.f32 %v1151, 0.020408163
  %v2060 = vmul.f32 %v1154, 0.020408163
  %v2061 = vmul.f32 %v1157, 0.020408163
  %v2062 = vmul.f32 %v1160, 0.020408163
  %v2063 = vmul.f32 %v1163, 0.020408163
  %v2064 = vmul.f32 %v1166, 0.020408163
  %v2065 = vmul.f32 %v1169, 0.020408163
  %v2066 = vmul.f32 %v1172, 0.020408163
  %v2067 = vmul.f32 %v1175, 0.020408163
  %v2068 = vmul.f32 %v1178, 0.020408163
  %v2069 = vmul.f32 %v1181, 0.020408163
  %v2070 = vmul.f32 %v1184, 0.020408163
  %v2071 = vmul.f32 %v1187, 0.020408163
  %v2072 = vmul.f32 %v1190, 0.020408163
  %v2073 = vmul.f32 %v1193, 0.020408163
  %v2074 = vmul.f32 %v1196, 0.020408163
  %v2075 = vmul.f32 %v1199, 0.020408163
  %v2076 = vmul.f32 %v1202, 0.020408163
  %v2077 = vmul.f32 %v1205, 0.020408163
  %v2078 = vmul.f32 %v1208, 0.020408163
  %v2079 = vmul.f32 %v1211, 0.020408163
  %v2080 = vmul.f32 %v1214, 0.020408163
  %v2081 = vmul.f32 %v1217, 0.020408163
  %v2082 = vmul.f32 %v1220, 0.020408163
  %v2083 = vmul.f32 %v1223, 0.020408163
  %v2084 = vmul.f32 %v1226, 0.020408163
  %v2085 = vmul.f32 %v1229, 0.020408163
  %v2086 = vmul.f32 %v1232, 0.020408163
  %v2087 = vmul.f32 %v1235, 0.020408163
  %v2088 = vmul.f32 %v1238, 0.020408163
  %v2089 = vmul.f32 %v1241, 0.020408163
  %v2090 = vmul.f32 %v1244, 0.020408163
  %v2091 = vmul.f32 %v1247, 0.020408163
  %v2092 = vmul.f32 %v1250, 0.020408163
  %v2093 = vmul.f32 %v1253, 0.020408163
  %v2094 = vmul.f32 %v1256, 0.020408163
  %v2095 = vmul.f32 %v1259, 0.020408163
  %v2096 = vmul.f32 %v1262, 0.020408163
  %v2097 = vmul.f32 %v1265, 0.020408163
  %v2098 = vmul.f32 %v1268, 0.020408163
  %v2099 = vmul.f32 %v1271, 0.020408163
  %v2100 = vmul.f32 %v1274, 0.020408163
  %v2101 = vmul.f32 %v1277, 0.020408163
  %v2102 = vmul.f32 %v1280, 0.020408163
  %v2103 = vmul.f32 %v1283, 0.020408163
  %v2104 = vmul.f32 %v1286, 0.020408163
  %v2105 = vmul.f32 %v1289, 0.020408163
  %v2106 = vmul.f32 %v1292, 0.020408163
  %v2107 = vmul.f32 %v1295, 0.020408163
  %v2108 = vmul.f32 %v1298, 0.020408163
  %v2109 = vmul.f32 %v1301, 0.020408163
  %v2110 = vmul.f32 %v1304, 0.020408163
  %v2111 = vmul.f32 %v1307, 0.020408163
  %v2112 = vmul.f32 %v1310, 0.020408163
  %v2113 = vmul.f32 %v1313, 0.020408163
  %v2114 = vmul.f32 %v1316, 0.020408163
  %v2115 = vmul.f32 %v1319, 0.020408163
  %v2116 = vmul.f32 %v1322, 0.020408163
  %v2117 = vmul.f32 %v1325, 0.020408163
  %v2118 = vmul.f32 %v1328, 0.020408163
  %v2119 = vmul.f32 %v1331, 0.020408163
  %v2120 = vmul.f32 %v1334, 0.020408163
  %v2121 = vmul.f32 %v1337, 0.020408163
  %v2122 = vmul.f32 %v1340, 0.020408163
  %v2123 = vmul.f32 %v1343, 0.020408163
  %v2124 = vmul.f32 %v1346, 0.020408163
  %v2125 = vmul.f32 %v1349, 0.020408163
  %v2126 = vmul.f32 %v1352, 0.020408163
  %v2127 = vmul.f32 %v1355, 0.020408163
  %v2128 = vmul.f32 %v1358, 0.020408163
  %v2129 = vmul.f32 %v1361, 0.020408163
  %v2130 = vmul.f32 %v1364, 0.020408163
  %v2131 = vmul.f32 %v1367, 0.020408163
  %v2132 = vmul.f32 %v1370, 0.020408163
  %v2133 = vmul.f32 %v1373, 0.020408163
  %v2134 = vmul.f32 %v1376, 0.020408163
  %v2135 = vmul.f32 %v1379, 0.020408163
  %v2136 = vmul.f32 %v1382, 0.020408163
  %v2137 = vmul.f32 %v1385, 0.020408163
  %v2138 = vmul.f32 %v1388, 0.020408163
  %v2139 = vmul.f32 %v1391, 0.020408163
  %v2140 = vmul.f32 %v1394, 0.020408163
  %v2141 = vmul.f32 %v1397, 0.020408163
  %v2142 = vmul.f32 %v1400, 0.020408163
  %v2143 = vmul.f32 %v1403, 0.020408163
  %v2144 = vmul.f32 %v1406, 0.020408163
  %v2145 = vmul.f32 %v1409, 0.020408163
  %v2146 = vmul.f32 %v1412, 0.020408163
  %v2147 = vmul.f32 %v1415, 0.020408163
  %v2148 = vmul.f32 %v1418, 0.020408163
  %v2149 = vmul.f32 %v1421, 0.020408163
  %v2150 = vmul.f32 %v1424, 0.020408163
  %v2151 = vmul.f32 %v1427, 0.020408163
  %v2152 = vmul.f32 %v1430, 0.020408163
  %v2153 = vmul.f32 %v1433, 0.020408163
  %v2154 = vmul.f32 %v1436, 0.020408163
  %v2155 = vmul.f32 %v1439, 0.020408163
  %v2156 = vmul.f32 %v1442, 0.020408163
  %v2157 = vmul.f32 %v1445, 0.020408163
  %v2158 = vmul.f32 %v1448, 0.020408163
  %v2159 = vmul.f32 %v1451, 0.020408163
  %v2160 = vmul.f32 %v1454, 0.020408163
  %v2161 = vmul.f32 %v1457, 0.020408163
  %v2162 = vmul.f32 %v1460, 0.020408163
  %v2163 = vmul.f32 %v1463, 0.020408163
  %v2164 = vmul.f32 %v1466, 0.020408163
  %v2165 = vmul.f32 %v1469, 0.020408163
  %v2166 = vmul.f32 %v1472, 0.020408163
  %v2167 = vmul.f32 %v1475, 0.020408163
  %v2168 = vmul.f32 %v1478, 0.020408163
  %v2169 = vmul.f32 %v1481, 0.020408163
  %v2170 = vmul.f32 %v1484, 0.020408163
  %v2171 = vmul.f32 %v1487, 0.020408163
  %v2172 = vmul.f32 %v1490, 0.020408163
  %v2173 = vmul.f32 %v1493, 0.020408163
  %v2174 = vmul.f32 %v1496, 0.020408163
  %v2175 = vmul.f32 %v1499, 0.020408163
  %v2176 = vmul.f32 %v1502, 0.020408163
  %v2177 = vmul.f32 %v1505, 0.020408163
  %v2178 = vmul.f32 %v1508, 0.020408163
  %v2179 = vmul.f32 %v1511, 0.020408163
  %v2180 = vmul.f32 %v1514, 0.020408163
  %v2181 = vmul.f32 %v1517, 0.020408163
  %v2182 = vmul.f32 %v1520, 0.020408163
  %v2183 = vmul.f32 %v1523, 0.020408163
  %v2184 = vmul.f32 %v1526, 0.020408163
  %v2185 = vmul.f32 %v1529, 0.020408163
  %v2186 = vmul.f32 %v1532, 0.020408163
  %v2187 = vmul.f32 %v1535, 0.020408163
  %v2188 = vmul.f32 %v1538, 0.020408163
  %v2189 = vmul.f32 %v1541, 0.020408163
  %v2190 = vmul.f32 %v1544, 0.020408163
  %v2191 = vmul.f32 %v1547, 0.020408163
  %v2192 = vmul.f32 %v1550, 0.020408163
  %v2193 = vmul.f32 %v1553, 0.020408163
  %v2194 = vmul.f32 %v1556, 0.020408163
  %v2195 = vmul.f32 %v1559, 0.020408163
  %v2196 = vmul.f32 %v1562, 0.020408163
  %v2197 = vmul.f32 %v1565, 0.020408163
  %v2198 = vmul.f32 %v1568, 0.020408163
  %v2199 = vmul.f32 %v1571, 0.020408163
  %v2200 = vmul.f32 %v1574, 0.020408163
  %v2201 = vmul.f32 %v1577, 0.020408163
  %v2202 = vmul.f32 %v1580, 0.020408163
  %v2203 = vmul.f32 %v1583, 0.020408163
  %v2204 = vmul.f32 %v1586, 0.020408163
  %v2205 = vmul.f32 %v1589, 0.020408163
  %v2206 = vmul.f32 %v1592, 0.020408163
  %v2207 = vmul.f32 %v1595, 0.020408163
  %v2208 = vmul.f32 %v1598, 0.020408163
  %v2209 = vmul.f32 %v1601, 0.020408163
  %v2210 = vmul.f32 %v1604, 0.020408163
  %v2211 = vmul.f32 %v1607, 0.020408163
  %v2212 = vmul.f32 %v1610, 0.020408163
  %v2213 = vmul.f32 %v1613, 0.020408163
  %v2214 = vmul.f32 %v1616, 0.020408163
  %v2215 = vmul.f32 %v1619, 0.020408163
  %v2216 = vmul.f32 %v1622, 0.020408163
  %v2217 = vmul.f32 %v1625, 0.020408163
  %v2218 = vmul.f32 %v1628, 0.020408163
  %v2219 = vmul.f32 %v1631, 0.020408163
  %v2220 = vmul.f32 %v1634, 0.020408163
  %v2221 = vmul.f32 %v1637, 0.020408163
  %v2222 = vmul.f32 %v1640, 0.020408163
  %v2223 = vmul.f32 %v1643, 0.020408163
  %v2224 = vmul.f32 %v1646, 0.020408163
  %v2225 = vmul.f32 %v1649, 0.020408163
  %v2226 = vmul.f32 %v1652, 0.020408163
  %v2227 = vmul.f32 %v1655, 0.020408163
  %v2228 = vmul.f32 %v1658, 0.020408163
  %v2229 = vmul.f32 %v1661, 0.020408163
  %v2230 = vmul.f32 %v1664, 0.020408163
  %v2231 = vmul.f32 %v1667, 0.020408163
  %v2232 = vmul.f32 %v1670, 0.020408163
  %v2233 = vmul.f32 %v1673, 0.020408163
  %v2234 = vmul.f32 %v1676, 0.020408163
  %v2235 = vmul.f32 %v1679, 0.020408163
  %v2236 = vmul.f32 %v1682, 0.020408163
  %v2237 = vmul.f32 %v1685, 0.020408163
  %v2238 = vmul.f32 %v1688, 0.020408163
  %v2239 = vmul.f32 %v1691, 0.020408163
  %v2240 = vmul.f32 %v1694, 0.020408163
  %v2241 = vmul.f32 %v1697, 0.020408163
  %v2242 = vmul.f32 %v1700, 0.020408163
  %v2243 = vmul.f32 %v1703, 0.020408163
  %v2244 = vmul.f32 %v1706, 0.020408163
  %v2245 = vmul.f32 %v1709, 0.020408163
  %v2246 = vmul.f32 %v1712, 0.020408163
  %v2247 = vmul.f32 %v1715, 0.020408163
  %v2248 = vmul.f32 %v1718, 0.020408163
  %v2249 = vmul.f32 %v1721, 0.020408163
  %v2250 = vmul.f32 %v1724, 0.020408163
  %v2251 = vmul.f32 %v1727, 0.020408163
  %v2252 = vmul.f32 %v1730, 0.020408163
  %v2253 = vmul.f32 %v1733, 0.020408163
  %v2254 = vmul.f32 %v1736, 0.020408163
  %v2255 = vmul.f32 %v1739, 0.020408163
  %v2256 = vmul.f32 %v1742, 0.020408163
  %v2257 = vmul.f32 %v1745, 0.020408163
  %v2258 = vmul.f32 %v1748, 0.020408163
  %v2259 = vmul.f32 %v1751, 0.020408163
  %v2260 = vmul.f32 %v1754, 0.020408163
  %v2261 = vmul.f32 %v1757, 0.020408163
  %v2262 = vmul.f32 %v1760, 0.020408163
  %v2263 = vmul.f32 %v1763, 0.020408163
  %v2264 = vmul.f32 %v1766, 0.020408163
  %v2265 = vmul.f32 %v1769, 0.020408163
  %v2266 = vmul.f32 %v1772, 0.020408163
  %v2267 = vmul.f32 %v1775, 0.020408163
  %v2268 = vmul.f32 %v1778, 0.020408163
  %v2269 = vmul.f32 %v1781, 0.020408163
  %v2270 = vmul.f32 %v1784, 0.020408163
  %v2271 = vmul.f32 %v1787, 0.020408163
  %v2272 = vmul.f32 %v1790, 0.020408163
  %v2273 = vmul.f32 %v1793, 0.020408163
  %v2274 = vmul.f32 %v1796, 0.020408163
  %v2275 = vmul.f32 %v1799, 0.020408163
  %v2276 = vmul.f32 %v1802, 0.020408163
  %v2277 = vmul.f32 %v1805, 0.020408163
  %v2278 = vmul.f32 %v1808, 0.020408163
  %v2279 = vmul.f32 %v1811, 0.020408163
  %v2280 = vmul.f32 %v1814, 0.020408163
  %v2281 = vmul.f32 %v1817, 0.020408163
  %v2282 = vmul.f32 %v1820, 0.020408163
  %v2283 = vmul.f32 %v1823, 0.020408163
  %v2284 = vmul.f32 %v1826, 0.020408163
  %v2285 = vmul.f32 %v1829, 0.020408163
  %v2286 = vmul.f32 %v1832, 0.020408163
  %v2287 = vmul.f32 %v1835, 0.020408163
  %v2288 = vmul.f32 %v1838, 0.020408163
  %v2289 = vmul.f32 %v1841, 0.020408163
  %v2290 = vmul.f32 %v1844, 0.020408163
  %v2291 = vmul.f32 %v1847, 0.020408163
  %v2292 = vmul.f32 %v1850, 0.020408163
  %v2293 = vmul.f32 %v1853, 0.020408163
  %v2294 = vmul.f32 %v1856, 0.020408163
  %v2295 = vmul.f32 %v1859, 0.020408163
  %v2296 = vmul.f32 %v1862, 0.020408163
  %v2297 = vmul.f32 %v1865, 0.020408163
  %v2298 = vmul.f32 %v1868, 0.020408163
  %v2299 = vmul.f32 %v1871, 0.020408163
  %v2300 = vmul.f32 %v1874, 0.020408163
  %v2301 = vmul.f32 %v1877, 0.020408163
  %v2302 = vmul.f32 %v1880, 0.020408163
  %v2303 = vmul.f32 %v1883, 0.020408163
  %v2304 = vmul.f32 %v1886, 0.020408163
  %v2305 = vmul.f32 %v1889, 0.020408163
  %v2306 = vmul.f32 %v1892, 0.020408163
  %v2307 = vmul.f32 %v1895, 0.020408163
  %v2308 = vmul.f32 %v1898, 0.020408163
  %v2309 = vmul.f32 %v1901, 0.020408163
  %v2310 = vmul.f32 %v1904, 0.020408163
  %v2311 = vmul.f32 %v1907, 0.020408163
  %v2312 = vmul.f32 %v1910, 0.020408163
  %v2313 = vmul.f32 %v1913, 0.020408163
  %v2314 = vmul.f32 %v1916, 0.020408163
  %v2315 = vmul.f32 %v1919, 0.020408163
  %v2316 = vmul.f32 %v1922, 0.020408163
  %v2317 = vmul.f32 %v1925, 0.020408163
  %v2318 = vmul.f32 %v1928, 0.020408163
  %v2319 = vmul.f32 %v1931, 0.020408163
  %v2320 = vmul.f32 %v1934, 0.020408163
  %v2321 = vmul.f32 %v1937, 0.020408163
  %v2322 = vsub.f32 %v14, %v1938
  %v2323 = vsub.f32 %v15, %v1939
  %v2324 = vsub.f32 %v16, %v1940
  %v2325 = vsub.f32 %v17, %v1941
  %v2326 = vsub.f32 %v18, %v1942
  %v2327 = vsub.f32 %v19, %v1943
  %v2328 = vsub.f32 %v20, %v1944
  %v2329 = vsub.f32 %v21, %v1945
  %v2330 = vsub.f32 %v22, %v1946
  %v2331 = vsub.f32 %v23, %v1947
  %v2332 = vsub.f32 %v24, %v1948
  %v2333 = vsub.f32 %v25, %v1949
  %v2334 = vsub.f32 %v26, %v1950
  %v2335 = vsub.f32 %v27, %v1951
  %v2336 = vsub.f32 %v28, %v1952
  %v2337 = vsub.f32 %v29, %v1953
  %v2338 = vsub.f32 %v30, %v1954
  %v2339 = vsub.f32 %v31, %v1955
  %v2340 = vsub.f32 %v32, %v1956
  %v2341 = vsub.f32 %v33, %v1957
  %v2342 = vsub.f32 %v34, %v1958
  %v2343 = vsub.f32 %v35, %v1959
  %v2344 = vsub.f32 %v36, %v1960
  %v2345 = vsub.f32 %v37, %v1961
  %v2346 = vsub.f32 %v38, %v1962
  %v2347 = vsub.f32 %v39, %v1963
  %v2348 = vsub.f32 %v40, %v1964
  %v2349 = vsub.f32 %v41, %v1965
  %v2350 = vsub.f32 %v42, %v1966
  %v2351 = vsub.f32 %v43, %v1967
  %v2352 = vsub.f32 %v44, %v1968
  %v2353 = vsub.f32 %v45, %v1969
  %v2354 = vsub.f32 %v46, %v1970
  %v2355 = vsub.f32 %v47, %v1971
  %v2356 = vsub.f32 %v48, %v1972
  %v2357 = vsub.f32 %v49, %v1973
  %v2358 = vsub.f32 %v50, %v1974
  %v2359 = vsub.f32 %v51, %v1975
  %v2360 = vsub.f32 %v52, %v1976
  %v2361 = vsub.f32 %v53, %v1977
  %v2362 = vsub.f32 %v54, %v1978
  %v2363 = vsub.f32 %v55, %v1979
  %v2364 = vsub.f32 %v56, %v1980
  %v2365 = vsub.f32 %v57, %v1981
  %v2366 = vsub.f32 %v58, %v1982
  %v2367 = vsub.f32 %v59, %v1983
  %v2368 = vsub.f32 %v60, %v1984
  %v2369 = vsub.f32 %v61, %v1985
  %v2370 = vsub.f32 %v62, %v1986
  %v2371 = vsub.f32 %v63, %v1987
  %v2372 = vsub.f32 %v64, %v1988
  %v2373 = vsub.f32 %v65, %v1989
  %v2374 = vsub.f32 %v66, %v1990
  %v2375 = vsub.f32 %v67, %v1991
  %v2376 = vsub.f32 %v68, %v1992
  %v2377 = vsub.f32 %v69, %v1993
  %v2378 = vsub.f32 %v70, %v1994
  %v2379 = vsub.f32 %v71, %v1995
  %v2380 = vsub.f32 %v72, %v1996
  %v2381 = vsub.f32 %v73, %v1997
  %v2382 = vsub.f32 %v74, %v1998
  %v2383 = vsub.f32 %v75, %v1999
  %v2384 = vsub.f32 %v76, %v2000
  %v2385 = vsub.f32 %v77, %v2001
  %v2386 = vsub.f32 %v78, %v2002
  %v2387 = vsub.f32 %v79, %v2003
  %v2388 = vsub.f32 %v80, %v2004
  %v2389 = vsub.f32 %v81, %v2005
  %v2390 = vsub.f32 %v82, %v2006
  %v2391 = vsub.f32 %v83, %v2007
  %v2392 = vsub.f32 %v84, %v2008
  %v2393 = vsub.f32 %v85, %v2009
  %v2394 = vsub.f32 %v86, %v2010
  %v2395 = vsub.f32 %v87, %v2011
  %v2396 = vsub.f32 %v88, %v2012
  %v2397 = vsub.f32 %v89, %v2013
  %v2398 = vsub.f32 %v90, %v2014
  %v2399 = vsub.f32 %v91, %v2015
  %v2400 = vsub.f32 %v92, %v2016
  %v2401 = vsub.f32 %v93, %v2017
  %v2402 = vsub.f32 %v94, %v2018
  %v2403 = vsub.f32 %v95, %v2019
  %v2404 = vsub.f32 %v96, %v2020
  %v2405 = vsub.f32 %v97, %v2021
  %v2406 = vsub.f32 %v98, %v2022
  %v2407 = vsub.f32 %v99, %v2023
  %v2408 = vsub.f32 %v100, %v2024
  %v2409 = vsub.f32 %v101, %v2025
  %v2410 = vsub.f32 %v102, %v2026
  %v2411 = vsub.f32 %v103, %v2027
  %v2412 = vsub.f32 %v104, %v2028
  %v2413 = vsub.f32 %v105, %v2029
  %v2414 = vsub.f32 %v106, %v2030
  %v2415 = vsub.f32 %v107, %v2031
  %v2416 = vsub.f32 %v108, %v2032
  %v2417 = vsub.f32 %v109, %v2033
  %v2418 = vsub.f32 %v110, %v2034
  %v2419 = vsub.f32 %v111, %v2035
  %v2420 = vsub.f32 %v112, %v2036
  %v2421 = vsub.f32 %v113, %v2037
  %v2422 = vsub.f32 %v114, %v2038
  %v2423 = vsub.f32 %v115, %v2039
  %v2424 = vsub.f32 %v116, %v2040
  %v2425 = vsub.f32 %v117, %v2041
  %v2426 = vsub.f32 %v118, %v2042
  %v2427 = vsub.f32 %v119, %v2043
  %v2428 = vsub.f32 %v120, %v2044
  %v2429 = vsub.f32 %v121, %v2045
  %v2430 = vsub.f32 %v122, %v2046
  %v2431 = vsub.f32 %v123, %v2047
  %v2432 = vsub.f32 %v124, %v2048
  %v2433 = vsub.f32 %v125, %v2049
  %v2434 = vsub.f32 %v126, %v2050
  %v2435 = vsub.f32 %v127, %v2051
  %v2436 = vsub.f32 %v128, %v2052
  %v2437 = vsub.f32 %v129, %v2053
  %v2438 = vsub.f32 %v130, %v2054
  %v2439 = vsub.f32 %v131, %v2055
  %v2440 = vsub.f32 %v132, %v2056
  %v2441 = vsub.f32 %v133, %v2057
  %v2442 = vsub.f32 %v134, %v2058
  %v2443 = vsub.f32 %v135, %v2059
  %v2444 = vsub.f32 %v136, %v2060
  %v2445 = vsub.f32 %v137, %v2061
  %v2446 = vsub.f32 %v138, %v2062
  %v2447 = vsub.f32 %v139, %v2063
  %v2448 = vsub.f32 %v140, %v2064
  %v2449 = vsub.f32 %v141, %v2065
  %v2450 = vsub.f32 %v142, %v2066
  %v2451 = vsub.f32 %v143, %v2067
  %v2452 = vsub.f32 %v144, %v2068
  %v2453 = vsub.f32 %v145, %v2069
  %v2454 = vsub.f32 %v146, %v2070
  %v2455 = vsub.f32 %v147, %v2071
  %v2456 = vsub.f32 %v148, %v2072
  %v2457 = vsub.f32 %v149, %v2073
  %v2458 = vsub.f32 %v150, %v2074
  %v2459 = vsub.f32 %v151, %v2075
  %v2460 = vsub.f32 %v152, %v2076
  %v2461 = vsub.f32 %v153, %v2077
  %v2462 = vsub.f32 %v154, %v2078
  %v2463 = vsub.f32 %v155, %v2079
  %v2464 = vsub.f32 %v156, %v2080
  %v2465 = vsub.f32 %v157, %v2081
  %v2466 = vsub.f32 %v158, %v2082
  %v2467 = vsub.f32 %v159, %v2083
  %v2468 = vsub.f32 %v160, %v2084
  %v2469 = vsub.f32 %v161, %v2085
  %v2470 = vsub.f32 %v162, %v2086
  %v2471 = vsub.f32 %v163, %v2087
  %v2472 = vsub.f32 %v164, %v2088
  %v2473 = vsub.f32 %v165, %v2089
  %v2474 = vsub.f32 %v166, %v2090
  %v2475 = vsub.f32 %v167, %v2091
  %v2476 = vsub.f32 %v168, %v2092
  %v2477 = vsub.f32 %v169, %v2093
  %v2478 = vsub.f32 %v170, %v2094
  %v2479 = vsub.f32 %v171, %v2095
  %v2480 = vsub.f32 %v172, %v2096
  %v2481 = vsub.f32 %v173, %v2097
  %v2482 = vsub.f32 %v174, %v2098
  %v2483 = vsub.f32 %v175, %v2099
  %v2484 = vsub.f32 %v176, %v2100
  %v2485 = vsub.f32 %v177, %v2101
  %v2486 = vsub.f32 %v178, %v2102
  %v2487 = vsub.f32 %v179, %v2103
  %v2488 = vsub.f32 %v180, %v2104
  %v2489 = vsub.f32 %v181, %v2105
  %v2490 = vsub.f32 %v182, %v2106
  %v2491 = vsub.f32 %v183, %v2107
  %v2492 = vsub.f32 %v184, %v2108
  %v2493 = vsub.f32 %v185, %v2109
  %v2494 = vsub.f32 %v186, %v2110
  %v2495 = vsub.f32 %v187, %v2111
  %v2496 = vsub.f32 %v188, %v2112
  %v2497 = vsub.f32 %v189, %v2113
  %v2498 = vsub.f32 %v190, %v2114
  %v2499 = vsub.f32 %v191, %v2115
  %v2500 = vsub.f32 %v192, %v2116
  %v2501 = vsub.f32 %v193, %v2117
  %v2502 = vsub.f32 %v194, %v2118
  %v2503 = vsub.f32 %v195, %v2119
  %v2504 = vsub.f32 %v196, %v2120
  %v2505 = vsub.f32 %v197, %v2121
  %v2506 = vsub.f32 %v198, %v2122
  %v2507 = vsub.f32 %v199, %v2123
  %v2508 = vsub.f32 %v200, %v2124
  %v2509 = vsub.f32 %v201, %v2125
  %v2510 = vsub.f32 %v202, %v2126
  %v2511 = vsub.f32 %v203, %v2127
  %v2512 = vsub.f32 %v204, %v2128
  %v2513 = vsub.f32 %v205, %v2129
  %v2514 = vsub.f32 %v206, %v2130
  %v2515 = vsub.f32 %v207, %v2131
  %v2516 = vsub.f32 %v208, %v2132
  %v2517 = vsub.f32 %v209, %v2133
  %v2518 = vsub.f32 %v210, %v2134
  %v2519 = vsub.f32 %v211, %v2135
  %v2520 = vsub.f32 %v212, %v2136
  %v2521 = vsub.f32 %v213, %v2137
  %v2522 = vsub.f32 %v214, %v2138
  %v2523 = vsub.f32 %v215, %v2139
  %v2524 = vsub.f32 %v216, %v2140
  %v2525 = vsub.f32 %v217, %v2141
  %v2526 = vsub.f32 %v218, %v2142
  %v2527 = vsub.f32 %v219, %v2143
  %v2528 = vsub.f32 %v220, %v2144
  %v2529 = vsub.f32 %v221, %v2145
  %v2530 = vsub.f32 %v222, %v2146
  %v2531 = vsub.f32 %v223, %v2147
  %v2532 = vsub.f32 %v224, %v2148
  %v2533 = vsub.f32 %v225, %v2149
  %v2534 = vsub.f32 %v226, %v2150
  %v2535 = vsub.f32 %v227, %v2151
  %v2536 = vsub.f32 %v228, %v2152
  %v2537 = vsub.f32 %v229, %v2153
  %v2538 = vsub.f32 %v230, %v2154
  %v2539 = vsub.f32 %v231, %v2155
  %v2540 = vsub.f32 %v232, %v2156
  %v2541 = vsub.f32 %v233, %v2157
  %v2542 = vsub.f32 %v234, %v2158
  %v2543 = vsub.f32 %v235, %v2159
  %v2544 = vsub.f32 %v236, %v2160
  %v2545 = vsub.f32 %v237, %v2161
  %v2546 = vsub.f32 %v238, %v2162
  %v2547 = vsub.f32 %v239, %v2163
  %v2548 = vsub.f32 %v240, %v2164
  %v2549 = vsub.f32 %v241, %v2165
  %v2550 = vsub.f32 %v242, %v2166
  %v2551 = vsub.f32 %v243, %v2167
  %v2552 = vsub.f32 %v244, %v2168
  %v2553 = vsub.f32 %v245, %v2169
  %v2554 = vsub.f32 %v246, %v2170
  %v2555 = vsub.f32 %v247, %v2171
  %v2556 = vsub.f32 %v248, %v2172
  %v2557 = vsub.f32 %v249, %v2173
  %v2558 = vsub.f32 %v250, %v2174
  %v2559 = vsub.f32 %v251, %v2175
  %v2560 = vsub.f32 %v252, %v2176
  %v2561 = vsub.f32 %v253, %v2177
  %v2562 = vsub.f32 %v254, %v2178
  %v2563 = vsub.f32 %v255, %v2179
  %v2564 = vsub.f32 %v256, %v2180
  %v2565 = vsub.f32 %v257, %v2181
  %v2566 = vsub.f32 %v258, %v2182
  %v2567 = vsub.f32 %v259, %v2183
  %v2568 = vsub.f32 %v260, %v2184
  %v2569 = vsub.f32 %v261, %v2185
  %v2570 = vsub.f32 %v262, %v2186
  %v2571 = vsub.f32 %v263, %v2187
  %v2572 = vsub.f32 %v264, %v2188
  %v2573 = vsub.f32 %v265, %v2189
  %v2574 = vsub.f32 %v266, %v2190
  %v2575 = vsub.f32 %v267, %v2191
  %v2576 = vsub.f32 %v268, %v2192
  %v2577 = vsub.f32 %v269, %v2193
  %v2578 = vsub.f32 %v270, %v2194
  %v2579 = vsub.f32 %v271, %v2195
  %v2580 = vsub.f32 %v272, %v2196
  %v2581 = vsub.f32 %v273, %v2197
  %v2582 = vsub.f32 %v274, %v2198
  %v2583 = vsub.f32 %v275, %v2199
  %v2584 = vsub.f32 %v276, %v2200
  %v2585 = vsub.f32 %v277, %v2201
  %v2586 = vsub.f32 %v278, %v2202
  %v2587 = vsub.f32 %v279, %v2203
  %v2588 = vsub.f32 %v280, %v2204
  %v2589 = vsub.f32 %v281, %v2205
  %v2590 = vsub.f32 %v282, %v2206
  %v2591 = vsub.f32 %v283, %v2207
  %v2592 = vsub.f32 %v284, %v2208
  %v2593 = vsub.f32 %v285, %v2209
  %v2594 = vsub.f32 %v286, %v2210
  %v2595 = vsub.f32 %v287, %v2211
  %v2596 = vsub.f32 %v288, %v2212
  %v2597 = vsub.f32 %v289, %v2213
  %v2598 = vsub.f32 %v290, %v2214
  %v2599 = vsub.f32 %v291, %v2215
  %v2600 = vsub.f32 %v292, %v2216
  %v2601 = vsub.f32 %v293, %v2217
  %v2602 = vsub.f32 %v294, %v2218
  %v2603 = vsub.f32 %v295, %v2219
  %v2604 = vsub.f32 %v296, %v2220
  %v2605 = vsub.f32 %v297, %v2221
  %v2606 = vsub.f32 %v298, %v2222
  %v2607 = vsub.f32 %v299, %v2223
  %v2608 = vsub.f32 %v300, %v2224
  %v2609 = vsub.f32 %v301, %v2225
  %v2610 = vsub.f32 %v302, %v2226
  %v2611 = vsub.f32 %v303, %v2227
  %v2612 = vsub.f32 %v304, %v2228
  %v2613 = vsub.f32 %v305, %v2229
  %v2614 = vsub.f32 %v306, %v2230
  %v2615 = vsub.f32 %v307, %v2231
  %v2616 = vsub.f32 %v308, %v2232
  %v2617 = vsub.f32 %v309, %v2233
  %v2618 = vsub.f32 %v310, %v2234
  %v2619 = vsub.f32 %v311, %v2235
  %v2620 = vsub.f32 %v312, %v2236
  %v2621 = vsub.f32 %v313, %v2237
  %v2622 = vsub.f32 %v314, %v2238
  %v2623 = vsub.f32 %v315, %v2239
  %v2624 = vsub.f32 %v316, %v2240
  %v2625 = vsub.f32 %v317, %v2241
  %v2626 = vsub.f32 %v318, %v2242
  %v2627 = vsub.f32 %v319, %v2243
  %v2628 = vsub.f32 %v320, %v2244
  %v2629 = vsub.f32 %v321, %v2245
  %v2630 = vsub.f32 %v322, %v2246
  %v2631 = vsub.f32 %v323, %v2247
  %v2632 = vsub.f32 %v324, %v2248
  %v2633 = vsub.f32 %v325, %v2249
  %v2634 = vsub.f32 %v326, %v2250
  %v2635 = vsub.f32 %v327, %v2251
  %v2636 = vsub.f32 %v328, %v2252
  %v2637 = vsub.f32 %v329, %v2253
  %v2638 = vsub.f32 %v330, %v2254
  %v2639 = vsub.f32 %v331, %v2255
  %v2640 = vsub.f32 %v332, %v2256
  %v2641 = vsub.f32 %v333, %v2257
  %v2642 = vsub.f32 %v334, %v2258
  %v2643 = vsub.f32 %v335, %v2259
  %v2644 = vsub.f32 %v336, %v2260
  %v2645 = vsub.f32 %v337, %v2261
  %v2646 = vsub.f32 %v338, %v2262
  %v2647 = vsub.f32 %v339, %v2263
  %v2648 = vsub.f32 %v340, %v2264
  %v2649 = vsub.f32 %v341, %v2265
  %v2650 = vsub.f32 %v342, %v2266
  %v2651 = vsub.f32 %v343, %v2267
  %v2652 = vsub.f32 %v344, %v2268
  %v2653 = vsub.f32 %v345, %v2269
  %v2654 = vsub.f32 %v346, %v2270
  %v2655 = vsub.f32 %v347, %v2271
  %v2656 = vsub.f32 %v348, %v2272
  %v2657 = vsub.f32 %v349, %v2273
  %v2658 = vsub.f32 %v350, %v2274
  %v2659 = vsub.f32 %v351, %v2275
  %v2660 = vsub.f32 %v352, %v2276
  %v2661 = vsub.f32 %v353, %v2277
  %v2662 = vsub.f32 %v354, %v2278
  %v2663 = vsub.f32 %v355, %v2279
  %v2664 = vsub.f32 %v356, %v2280
  %v2665 = vsub.f32 %v357, %v2281
  %v2666 = vsub.f32 %v358, %v2282
  %v2667 = vsub.f32 %v359, %v2283
  %v2668 = vsub.f32 %v360, %v2284
  %v2669 = vsub.f32 %v361, %v2285
  %v2670 = vsub.f32 %v362, %v2286
  %v2671 = vsub.f32 %v363, %v2287
  %v2672 = vsub.f32 %v364, %v2288
  %v2673 = vsub.f32 %v365, %v2289
  %v2674 = vsub.f32 %v366, %v2290
  %v2675 = vsub.f32 %v367, %v2291
  %v2676 = vsub.f32 %v368, %v2292
  %v2677 = vsub.f32 %v369, %v2293
  %v2678 = vsub.f32 %v370, %v2294
  %v2679 = vsub.f32 %v371, %v2295
  %v2680 = vsub.f32 %v372, %v2296
  %v2681 = vsub.f32 %v373, %v2297
  %v2682 = vsub.f32 %v374, %v2298
  %v2683 = vsub.f32 %v375, %v2299
  %v2684 = vsub.f32 %v376, %v2300
  %v2685 = vsub.f32 %v377, %v2301
  %v2686 = vsub.f32 %v378, %v2302
  %v2687 = vsub.f32 %v379, %v2303
  %v2688 = vsub.f32 %v380, %v2304
  %v2689 = vsub.f32 %v381, %v2305
  %v2690 = vsub.f32 %v382, %v2306
  %v2691 = vsub.f32 %v383, %v2307
  %v2692 = vsub.f32 %v384, %v2308
  %v2693 = vsub.f32 %v385, %v2309
  %v2694 = vsub.f32 %v386, %v2310
  %v2695 = vsub.f32 %v387, %v2311
  %v2696 = vsub.f32 %v388, %v2312
  %v2697 = vsub.f32 %v389, %v2313
  %v2698 = vsub.f32 %v390, %v2314
  %v2699 = vsub.f32 %v391, %v2315
  %v2700 = vsub.f32 %v392, %v2316
  %v2701 = vsub.f32 %v393, %v2317
  %v2702 = vsub.f32 %v394, %v2318
  %v2703 = vsub.f32 %v395, %v2319
  %v2704 = vsub.f32 %v396, %v2320
  %v2705 = vsub.f32 %v397, %v2321
  %v2706 = vsel %vm400, %v2322, 0.0
  %v2707 = vsel %vm400, %v2323, 0.0
  %v2708 = vsel %vm400, %v2324, 0.0
  %v2709 = vsel %vm400, %v2325, 0.0
  %v2710 = vsel %vm400, %v2326, 0.0
  %v2711 = vsel %vm400, %v2327, 0.0
  %v2712 = vsel %vm400, %v2328, 0.0
  %v2713 = vsel %vm400, %v2329, 0.0
  %v2714 = vsel %vm400, %v2330, 0.0
  %v2715 = vsel %vm400, %v2331, 0.0
  %v2716 = vsel %vm400, %v2332, 0.0
  %v2717 = vsel %vm400, %v2333, 0.0
  %v2718 = vsel %vm400, %v2334, 0.0
  %v2719 = vsel %vm400, %v2335, 0.0
  %v2720 = vsel %vm400, %v2336, 0.0
  %v2721 = vsel %vm400, %v2337, 0.0
  %v2722 = vsel %vm400, %v2338, 0.0
  %v2723 = vsel %vm400, %v2339, 0.0
  %v2724 = vsel %vm400, %v2340, 0.0
  %v2725 = vsel %vm400, %v2341, 0.0
  %v2726 = vsel %vm400, %v2342, 0.0
  %v2727 = vsel %vm400, %v2343, 0.0
  %v2728 = vsel %vm400, %v2344, 0.0
  %v2729 = vsel %vm400, %v2345, 0.0
  %v2730 = vsel %vm400, %v2346, 0.0
  %v2731 = vsel %vm400, %v2347, 0.0
  %v2732 = vsel %vm400, %v2348, 0.0
  %v2733 = vsel %vm400, %v2349, 0.0
  %v2734 = vsel %vm400, %v2350, 0.0
  %v2735 = vsel %vm400, %v2351, 0.0
  %v2736 = vsel %vm400, %v2352, 0.0
  %v2737 = vsel %vm400, %v2353, 0.0
  %v2738 = vsel %vm400, %v2354, 0.0
  %v2739 = vsel %vm400, %v2355, 0.0
  %v2740 = vsel %vm400, %v2356, 0.0
  %v2741 = vsel %vm400, %v2357, 0.0
  %v2742 = vsel %vm400, %v2358, 0.0
  %v2743 = vsel %vm400, %v2359, 0.0
  %v2744 = vsel %vm400, %v2360, 0.0
  %v2745 = vsel %vm400, %v2361, 0.0
  %v2746 = vsel %vm400, %v2362, 0.0
  %v2747 = vsel %vm400, %v2363, 0.0
  %v2748 = vsel %vm400, %v2364, 0.0
  %v2749 = vsel %vm400, %v2365, 0.0
  %v2750 = vsel %vm400, %v2366, 0.0
  %v2751 = vsel %vm400, %v2367, 0.0
  %v2752 = vsel %vm400, %v2368, 0.0
  %v2753 = vsel %vm400, %v2369, 0.0
  %v2754 = vsel %vm400, %v2370, 0.0
  %v2755 = vsel %vm400, %v2371, 0.0
  %v2756 = vsel %vm400, %v2372, 0.0
  %v2757 = vsel %vm400, %v2373, 0.0
  %v2758 = vsel %vm400, %v2374, 0.0
  %v2759 = vsel %vm400, %v2375, 0.0
  %v2760 = vsel %vm400, %v2376, 0.0
  %v2761 = vsel %vm400, %v2377, 0.0
  %v2762 = vsel %vm400, %v2378, 0.0
  %v2763 = vsel %vm400, %v2379, 0.0
  %v2764 = vsel %vm400, %v2380, 0.0
  %v2765 = vsel %vm400, %v2381, 0.0
  %v2766 = vsel %vm400, %v2382, 0.0
  %v2767 = vsel %vm400, %v2383, 0.0
  %v2768 = vsel %vm400, %v2384, 0.0
  %v2769 = vsel %vm400, %v2385, 0.0
  %v2770 = vsel %vm400, %v2386, 0.0
  %v2771 = vsel %vm400, %v2387, 0.0
  %v2772 = vsel %vm400, %v2388, 0.0
  %v2773 = vsel %vm400, %v2389, 0.0
  %v2774 = vsel %vm400, %v2390, 0.0
  %v2775 = vsel %vm400, %v2391, 0.0
  %v2776 = vsel %vm400, %v2392, 0.0
  %v2777 = vsel %vm400, %v2393, 0.0
  %v2778 = vsel %vm400, %v2394, 0.0
  %v2779 = vsel %vm400, %v2395, 0.0
  %v2780 = vsel %vm400, %v2396, 0.0
  %v2781 = vsel %vm400, %v2397, 0.0
  %v2782 = vsel %vm400, %v2398, 0.0
  %v2783 = vsel %vm400, %v2399, 0.0
  %v2784 = vsel %vm400, %v2400, 0.0
  %v2785 = vsel %vm400, %v2401, 0.0
  %v2786 = vsel %vm400, %v2402, 0.0
  %v2787 = vsel %vm400, %v2403, 0.0
  %v2788 = vsel %vm400, %v2404, 0.0
  %v2789 = vsel %vm400, %v2405, 0.0
  %v2790 = vsel %vm400, %v2406, 0.0
  %v2791 = vsel %vm400, %v2407, 0.0
  %v2792 = vsel %vm400, %v2408, 0.0
  %v2793 = vsel %vm400, %v2409, 0.0
  %v2794 = vsel %vm400, %v2410, 0.0
  %v2795 = vsel %vm400, %v2411, 0.0
  %v2796 = vsel %vm400, %v2412, 0.0
  %v2797 = vsel %vm400, %v2413, 0.0
  %v2798 = vsel %vm400, %v2414, 0.0
  %v2799 = vsel %vm400, %v2415, 0.0
  %v2800 = vsel %vm400, %v2416, 0.0
  %v2801 = vsel %vm400, %v2417, 0.0
  %v2802 = vsel %vm400, %v2418, 0.0
  %v2803 = vsel %vm400, %v2419, 0.0
  %v2804 = vsel %vm400, %v2420, 0.0
  %v2805 = vsel %vm400, %v2421, 0.0
  %v2806 = vsel %vm400, %v2422, 0.0
  %v2807 = vsel %vm400, %v2423, 0.0
  %v2808 = vsel %vm400, %v2424, 0.0
  %v2809 = vsel %vm400, %v2425, 0.0
  %v2810 = vsel %vm400, %v2426, 0.0
  %v2811 = vsel %vm400, %v2427, 0.0
  %v2812 = vsel %vm400, %v2428, 0.0
  %v2813 = vsel %vm400, %v2429, 0.0
  %v2814 = vsel %vm400, %v2430, 0.0
  %v2815 = vsel %vm400, %v2431, 0.0
  %v2816 = vsel %vm400, %v2432, 0.0
  %v2817 = vsel %vm400, %v2433, 0.0
  %v2818 = vsel %vm400, %v2434, 0.0
  %v2819 = vsel %vm400, %v2435, 0.0
  %v2820 = vsel %vm400, %v2436, 0.0
  %v2821 = vsel %vm400, %v2437, 0.0
  %v2822 = vsel %vm400, %v2438, 0.0
  %v2823 = vsel %vm400, %v2439, 0.0
  %v2824 = vsel %vm400, %v2440, 0.0
  %v2825 = vsel %vm400, %v2441, 0.0
  %v2826 = vsel %vm400, %v2442, 0.0
  %v2827 = vsel %vm400, %v2443, 0.0
  %v2828 = vsel %vm400, %v2444, 0.0
  %v2829 = vsel %vm400, %v2445, 0.0
  %v2830 = vsel %vm400, %v2446, 0.0
  %v2831 = vsel %vm400, %v2447, 0.0
  %v2832 = vsel %vm400, %v2448, 0.0
  %v2833 = vsel %vm400, %v2449, 0.0
  %v2834 = vsel %vm400, %v2450, 0.0
  %v2835 = vsel %vm400, %v2451, 0.0
  %v2836 = vsel %vm400, %v2452, 0.0
  %v2837 = vsel %vm400, %v2453, 0.0
  %v2838 = vsel %vm400, %v2454, 0.0
  %v2839 = vsel %vm400, %v2455, 0.0
  %v2840 = vsel %vm400, %v2456, 0.0
  %v2841 = vsel %vm400, %v2457, 0.0
  %v2842 = vsel %vm400, %v2458, 0.0
  %v2843 = vsel %vm400, %v2459, 0.0
  %v2844 = vsel %vm400, %v2460, 0.0
  %v2845 = vsel %vm400, %v2461, 0.0
  %v2846 = vsel %vm400, %v2462, 0.0
  %v2847 = vsel %vm400, %v2463, 0.0
  %v2848 = vsel %vm400, %v2464, 0.0
  %v2849 = vsel %vm400, %v2465, 0.0
  %v2850 = vsel %vm400, %v2466, 0.0
  %v2851 = vsel %vm400, %v2467, 0.0
  %v2852 = vsel %vm400, %v2468, 0.0
  %v2853 = vsel %vm400, %v2469, 0.0
  %v2854 = vsel %vm400, %v2470, 0.0
  %v2855 = vsel %vm400, %v2471, 0.0
  %v2856 = vsel %vm400, %v2472, 0.0
  %v2857 = vsel %vm400, %v2473, 0.0
  %v2858 = vsel %vm400, %v2474, 0.0
  %v2859 = vsel %vm400, %v2475, 0.0
  %v2860 = vsel %vm400, %v2476, 0.0
  %v2861 = vsel %vm400, %v2477, 0.0
  %v2862 = vsel %vm400, %v2478, 0.0
  %v2863 = vsel %vm400, %v2479, 0.0
  %v2864 = vsel %vm400, %v2480, 0.0
  %v2865 = vsel %vm400, %v2481, 0.0
  %v2866 = vsel %vm400, %v2482, 0.0
  %v2867 = vsel %vm400, %v2483, 0.0
  %v2868 = vsel %vm400, %v2484, 0.0
  %v2869 = vsel %vm400, %v2485, 0.0
  %v2870 = vsel %vm400, %v2486, 0.0
  %v2871 = vsel %vm400, %v2487, 0.0
  %v2872 = vsel %vm400, %v2488, 0.0
  %v2873 = vsel %vm400, %v2489, 0.0
  %v2874 = vsel %vm400, %v2490, 0.0
  %v2875 = vsel %vm400, %v2491, 0.0
  %v2876 = vsel %vm400, %v2492, 0.0
  %v2877 = vsel %vm400, %v2493, 0.0
  %v2878 = vsel %vm400, %v2494, 0.0
  %v2879 = vsel %vm400, %v2495, 0.0
  %v2880 = vsel %vm400, %v2496, 0.0
  %v2881 = vsel %vm400, %v2497, 0.0
  %v2882 = vsel %vm400, %v2498, 0.0
  %v2883 = vsel %vm400, %v2499, 0.0
  %v2884 = vsel %vm400, %v2500, 0.0
  %v2885 = vsel %vm400, %v2501, 0.0
  %v2886 = vsel %vm400, %v2502, 0.0
  %v2887 = vsel %vm400, %v2503, 0.0
  %v2888 = vsel %vm400, %v2504, 0.0
  %v2889 = vsel %vm400, %v2505, 0.0
  %v2890 = vsel %vm400, %v2506, 0.0
  %v2891 = vsel %vm400, %v2507, 0.0
  %v2892 = vsel %vm400, %v2508, 0.0
  %v2893 = vsel %vm400, %v2509, 0.0
  %v2894 = vsel %vm400, %v2510, 0.0
  %v2895 = vsel %vm400, %v2511, 0.0
  %v2896 = vsel %vm400, %v2512, 0.0
  %v2897 = vsel %vm400, %v2513, 0.0
  %v2898 = vsel %vm400, %v2514, 0.0
  %v2899 = vsel %vm400, %v2515, 0.0
  %v2900 = vsel %vm400, %v2516, 0.0
  %v2901 = vsel %vm400, %v2517, 0.0
  %v2902 = vsel %vm400, %v2518, 0.0
  %v2903 = vsel %vm400, %v2519, 0.0
  %v2904 = vsel %vm400, %v2520, 0.0
  %v2905 = vsel %vm400, %v2521, 0.0
  %v2906 = vsel %vm400, %v2522, 0.0
  %v2907 = vsel %vm400, %v2523, 0.0
  %v2908 = vsel %vm400, %v2524, 0.0
  %v2909 = vsel %vm400, %v2525, 0.0
  %v2910 = vsel %vm400, %v2526, 0.0
  %v2911 = vsel %vm400, %v2527, 0.0
  %v2912 = vsel %vm400, %v2528, 0.0
  %v2913 = vsel %vm400, %v2529, 0.0
  %v2914 = vsel %vm400, %v2530, 0.0
  %v2915 = vsel %vm400, %v2531, 0.0
  %v2916 = vsel %vm400, %v2532, 0.0
  %v2917 = vsel %vm400, %v2533, 0.0
  %v2918 = vsel %vm400, %v2534, 0.0
  %v2919 = vsel %vm400, %v2535, 0.0
  %v2920 = vsel %vm400, %v2536, 0.0
  %v2921 = vsel %vm400, %v2537, 0.0
  %v2922 = vsel %vm400, %v2538, 0.0
  %v2923 = vsel %vm400, %v2539, 0.0
  %v2924 = vsel %vm400, %v2540, 0.0
  %v2925 = vsel %vm400, %v2541, 0.0
  %v2926 = vsel %vm400, %v2542, 0.0
  %v2927 = vsel %vm400, %v2543, 0.0
  %v2928 = vsel %vm400, %v2544, 0.0
  %v2929 = vsel %vm400, %v2545, 0.0
  %v2930 = vsel %vm400, %v2546, 0.0
  %v2931 = vsel %vm400, %v2547, 0.0
  %v2932 = vsel %vm400, %v2548, 0.0
  %v2933 = vsel %vm400, %v2549, 0.0
  %v2934 = vsel %vm400, %v2550, 0.0
  %v2935 = vsel %vm400, %v2551, 0.0
  %v2936 = vsel %vm400, %v2552, 0.0
  %v2937 = vsel %vm400, %v2553, 0.0
  %v2938 = vsel %vm400, %v2554, 0.0
  %v2939 = vsel %vm400, %v2555, 0.0
  %v2940 = vsel %vm400, %v2556, 0.0
  %v2941 = vsel %vm400, %v2557, 0.0
  %v2942 = vsel %vm400, %v2558, 0.0
  %v2943 = vsel %vm400, %v2559, 0.0
  %v2944 = vsel %vm400, %v2560, 0.0
  %v2945 = vsel %vm400, %v2561, 0.0
  %v2946 = vsel %vm400, %v2562, 0.0
  %v2947 = vsel %vm400, %v2563, 0.0
  %v2948 = vsel %vm400, %v2564, 0.0
  %v2949 = vsel %vm400, %v2565, 0.0
  %v2950 = vsel %vm400, %v2566, 0.0
  %v2951 = vsel %vm400, %v2567, 0.0
  %v2952 = vsel %vm400, %v2568, 0.0
  %v2953 = vsel %vm400, %v2569, 0.0
  %v2954 = vsel %vm400, %v2570, 0.0
  %v2955 = vsel %vm400, %v2571, 0.0
  %v2956 = vsel %vm400, %v2572, 0.0
  %v2957 = vsel %vm400, %v2573, 0.0
  %v2958 = vsel %vm400, %v2574, 0.0
  %v2959 = vsel %vm400, %v2575, 0.0
  %v2960 = vsel %vm400, %v2576, 0.0
  %v2961 = vsel %vm400, %v2577, 0.0
  %v2962 = vsel %vm400, %v2578, 0.0
  %v2963 = vsel %vm400, %v2579, 0.0
  %v2964 = vsel %vm400, %v2580, 0.0
  %v2965 = vsel %vm400, %v2581, 0.0
  %v2966 = vsel %vm400, %v2582, 0.0
  %v2967 = vsel %vm400, %v2583, 0.0
  %v2968 = vsel %vm400, %v2584, 0.0
  %v2969 = vsel %vm400, %v2585, 0.0
  %v2970 = vsel %vm400, %v2586, 0.0
  %v2971 = vsel %vm400, %v2587, 0.0
  %v2972 = vsel %vm400, %v2588, 0.0
  %v2973 = vsel %vm400, %v2589, 0.0
  %v2974 = vsel %vm400, %v2590, 0.0
  %v2975 = vsel %vm400, %v2591, 0.0
  %v2976 = vsel %vm400, %v2592, 0.0
  %v2977 = vsel %vm400, %v2593, 0.0
  %v2978 = vsel %vm400, %v2594, 0.0
  %v2979 = vsel %vm400, %v2595, 0.0
  %v2980 = vsel %vm400, %v2596, 0.0
  %v2981 = vsel %vm400, %v2597, 0.0
  %v2982 = vsel %vm400, %v2598, 0.0
  %v2983 = vsel %vm400, %v2599, 0.0
  %v2984 = vsel %vm400, %v2600, 0.0
  %v2985 = vsel %vm400, %v2601, 0.0
  %v2986 = vsel %vm400, %v2602, 0.0
  %v2987 = vsel %vm400, %v2603, 0.0
  %v2988 = vsel %vm400, %v2604, 0.0
  %v2989 = vsel %vm400, %v2605, 0.0
  %v2990 = vsel %vm400, %v2606, 0.0
  %v2991 = vsel %vm400, %v2607, 0.0
  %v2992 = vsel %vm400, %v2608, 0.0
  %v2993 = vsel %vm400, %v2609, 0.0
  %v2994 = vsel %vm400, %v2610, 0.0
  %v2995 = vsel %vm400, %v2611, 0.0
  %v2996 = vsel %vm400, %v2612, 0.0
  %v2997 = vsel %vm400, %v2613, 0.0
  %v2998 = vsel %vm400, %v2614, 0.0
  %v2999 = vsel %vm400, %v2615, 0.0
  %v3000 = vsel %vm400, %v2616, 0.0
  %v3001 = vsel %vm400, %v2617, 0.0
  %v3002 = vsel %vm400, %v2618, 0.0
  %v3003 = vsel %vm400, %v2619, 0.0
  %v3004 = vsel %vm400, %v2620, 0.0
  %v3005 = vsel %vm400, %v2621, 0.0
  %v3006 = vsel %vm400, %v2622, 0.0
  %v3007 = vsel %vm400, %v2623, 0.0
  %v3008 = vsel %vm400, %v2624, 0.0
  %v3009 = vsel %vm400, %v2625, 0.0
  %v3010 = vsel %vm400, %v2626, 0.0
  %v3011 = vsel %vm400, %v2627, 0.0
  %v3012 = vsel %vm400, %v2628, 0.0
  %v3013 = vsel %vm400, %v2629, 0.0
  %v3014 = vsel %vm400, %v2630, 0.0
  %v3015 = vsel %vm400, %v2631, 0.0
  %v3016 = vsel %vm400, %v2632, 0.0
  %v3017 = vsel %vm400, %v2633, 0.0
  %v3018 = vsel %vm400, %v2634, 0.0
  %v3019 = vsel %vm400, %v2635, 0.0
  %v3020 = vsel %vm400, %v2636, 0.0
  %v3021 = vsel %vm400, %v2637, 0.0
  %v3022 = vsel %vm400, %v2638, 0.0
  %v3023 = vsel %vm400, %v2639, 0.0
  %v3024 = vsel %vm400, %v2640, 0.0
  %v3025 = vsel %vm400, %v2641, 0.0
  %v3026 = vsel %vm400, %v2642, 0.0
  %v3027 = vsel %vm400, %v2643, 0.0
  %v3028 = vsel %vm400, %v2644, 0.0
  %v3029 = vsel %vm400, %v2645, 0.0
  %v3030 = vsel %vm400, %v2646, 0.0
  %v3031 = vsel %vm400, %v2647, 0.0
  %v3032 = vsel %vm400, %v2648, 0.0
  %v3033 = vsel %vm400, %v2649, 0.0
  %v3034 = vsel %vm400, %v2650, 0.0
  %v3035 = vsel %vm400, %v2651, 0.0
  %v3036 = vsel %vm400, %v2652, 0.0
  %v3037 = vsel %vm400, %v2653, 0.0
  %v3038 = vsel %vm400, %v2654, 0.0
  %v3039 = vsel %vm400, %v2655, 0.0
  %v3040 = vsel %vm400, %v2656, 0.0
  %v3041 = vsel %vm400, %v2657, 0.0
  %v3042 = vsel %vm400, %v2658, 0.0
  %v3043 = vsel %vm400, %v2659, 0.0
  %v3044 = vsel %vm400, %v2660, 0.0
  %v3045 = vsel %vm400, %v2661, 0.0
  %v3046 = vsel %vm400, %v2662, 0.0
  %v3047 = vsel %vm400, %v2663, 0.0
  %v3048 = vsel %vm400, %v2664, 0.0
  %v3049 = vsel %vm400, %v2665, 0.0
  %v3050 = vsel %vm400, %v2666, 0.0
  %v3051 = vsel %vm400, %v2667, 0.0
  %v3052 = vsel %vm400, %v2668, 0.0
  %v3053 = vsel %vm400, %v2669, 0.0
  %v3054 = vsel %vm400, %v2670, 0.0
  %v3055 = vsel %vm400, %v2671, 0.0
  %v3056 = vsel %vm400, %v2672, 0.0
  %v3057 = vsel %vm400, %v2673, 0.0
  %v3058 = vsel %vm400, %v2674, 0.0
  %v3059 = vsel %vm400, %v2675, 0.0
  %v3060 = vsel %vm400, %v2676, 0.0
  %v3061 = vsel %vm400, %v2677, 0.0
  %v3062 = vsel %vm400, %v2678, 0.0
  %v3063 = vsel %vm400, %v2679, 0.0
  %v3064 = vsel %vm400, %v2680, 0.0
  %v3065 = vsel %vm400, %v2681, 0.0
  %v3066 = vsel %vm400, %v2682, 0.0
  %v3067 = vsel %vm400, %v2683, 0.0
  %v3068 = vsel %vm400, %v2684, 0.0
  %v3069 = vsel %vm400, %v2685, 0.0
  %v3070 = vsel %vm400, %v2686, 0.0
  %v3071 = vsel %vm400, %v2687, 0.0
  %v3072 = vsel %vm400, %v2688, 0.0
  %v3073 = vsel %vm400, %v2689, 0.0
  %v3074 = vsel %vm400, %v2690, 0.0
  %v3075 = vsel %vm400, %v2691, 0.0
  %v3076 = vsel %vm400, %v2692, 0.0
  %v3077 = vsel %vm400, %v2693, 0.0
  %v3078 = vsel %vm400, %v2694, 0.0
  %v3079 = vsel %vm400, %v2695, 0.0
  %v3080 = vsel %vm400, %v2696, 0.0
  %v3081 = vsel %vm400, %v2697, 0.0
  %v3082 = vsel %vm400, %v2698, 0.0
  %v3083 = vsel %vm400, %v2699, 0.0
  %v3084 = vsel %vm400, %v2700, 0.0
  %v3085 = vsel %vm400, %v2701, 0.0
  %v3086 = vsel %vm400, %v2702, 0.0
  %v3087 = vsel %vm400, %v2703, 0.0
  %v3088 = vsel %vm400, %v2704, 0.0
  %v3089 = vsel %vm400, %v2705, 0.0
  %v3090 = vmul.f32 %v2706, %v2706
  %v3091 = vmul.f32 %v2707, %v2707
  %v3092 = vmul.f32 %v2708, %v2708
  %v3093 = vmul.f32 %v2709, %v2709
  %v3094 = vmul.f32 %v2710, %v2710
  %v3095 = vmul.f32 %v2711, %v2711
  %v3096 = vmul.f32 %v2712, %v2712
  %v3097 = vmul.f32 %v2713, %v2713
  %v3098 = vmul.f32 %v2714, %v2714
  %v3099 = vmul.f32 %v2715, %v2715
  %v3100 = vmul.f32 %v2716, %v2716
  %v3101 = vmul.f32 %v2717, %v2717
  %v3102 = vmul.f32 %v2718, %v2718
  %v3103 = vmul.f32 %v2719, %v2719
  %v3104 = vmul.f32 %v2720, %v2720
  %v3105 = vmul.f32 %v2721, %v2721
  %v3106 = vmul.f32 %v2722, %v2722
  %v3107 = vmul.f32 %v2723, %v2723
  %v3108 = vmul.f32 %v2724, %v2724
  %v3109 = vmul.f32 %v2725, %v2725
  %v3110 = vmul.f32 %v2726, %v2726
  %v3111 = vmul.f32 %v2727, %v2727
  %v3112 = vmul.f32 %v2728, %v2728
  %v3113 = vmul.f32 %v2729, %v2729
  %v3114 = vmul.f32 %v2730, %v2730
  %v3115 = vmul.f32 %v2731, %v2731
  %v3116 = vmul.f32 %v2732, %v2732
  %v3117 = vmul.f32 %v2733, %v2733
  %v3118 = vmul.f32 %v2734, %v2734
  %v3119 = vmul.f32 %v2735, %v2735
  %v3120 = vmul.f32 %v2736, %v2736
  %v3121 = vmul.f32 %v2737, %v2737
  %v3122 = vmul.f32 %v2738, %v2738
  %v3123 = vmul.f32 %v2739, %v2739
  %v3124 = vmul.f32 %v2740, %v2740
  %v3125 = vmul.f32 %v2741, %v2741
  %v3126 = vmul.f32 %v2742, %v2742
  %v3127 = vmul.f32 %v2743, %v2743
  %v3128 = vmul.f32 %v2744, %v2744
  %v3129 = vmul.f32 %v2745, %v2745
  %v3130 = vmul.f32 %v2746, %v2746
  %v3131 = vmul.f32 %v2747, %v2747
  %v3132 = vmul.f32 %v2748, %v2748
  %v3133 = vmul.f32 %v2749, %v2749
  %v3134 = vmul.f32 %v2750, %v2750
  %v3135 = vmul.f32 %v2751, %v2751
  %v3136 = vmul.f32 %v2752, %v2752
  %v3137 = vmul.f32 %v2753, %v2753
  %v3138 = vmul.f32 %v2754, %v2754
  %v3139 = vmul.f32 %v2755, %v2755
  %v3140 = vmul.f32 %v2756, %v2756
  %v3141 = vmul.f32 %v2757, %v2757
  %v3142 = vmul.f32 %v2758, %v2758
  %v3143 = vmul.f32 %v2759, %v2759
  %v3144 = vmul.f32 %v2760, %v2760
  %v3145 = vmul.f32 %v2761, %v2761
  %v3146 = vmul.f32 %v2762, %v2762
  %v3147 = vmul.f32 %v2763, %v2763
  %v3148 = vmul.f32 %v2764, %v2764
  %v3149 = vmul.f32 %v2765, %v2765
  %v3150 = vmul.f32 %v2766, %v2766
  %v3151 = vmul.f32 %v2767, %v2767
  %v3152 = vmul.f32 %v2768, %v2768
  %v3153 = vmul.f32 %v2769, %v2769
  %v3154 = vmul.f32 %v2770, %v2770
  %v3155 = vmul.f32 %v2771, %v2771
  %v3156 = vmul.f32 %v2772, %v2772
  %v3157 = vmul.f32 %v2773, %v2773
  %v3158 = vmul.f32 %v2774, %v2774
  %v3159 = vmul.f32 %v2775, %v2775
  %v3160 = vmul.f32 %v2776, %v2776
  %v3161 = vmul.f32 %v2777, %v2777
  %v3162 = vmul.f32 %v2778, %v2778
  %v3163 = vmul.f32 %v2779, %v2779
  %v3164 = vmul.f32 %v2780, %v2780
  %v3165 = vmul.f32 %v2781, %v2781
  %v3166 = vmul.f32 %v2782, %v2782
  %v3167 = vmul.f32 %v2783, %v2783
  %v3168 = vmul.f32 %v2784, %v2784
  %v3169 = vmul.f32 %v2785, %v2785
  %v3170 = vmul.f32 %v2786, %v2786
  %v3171 = vmul.f32 %v2787, %v2787
  %v3172 = vmul.f32 %v2788, %v2788
  %v3173 = vmul.f32 %v2789, %v2789
  %v3174 = vmul.f32 %v2790, %v2790
  %v3175 = vmul.f32 %v2791, %v2791
  %v3176 = vmul.f32 %v2792, %v2792
  %v3177 = vmul.f32 %v2793, %v2793
  %v3178 = vmul.f32 %v2794, %v2794
  %v3179 = vmul.f32 %v2795, %v2795
  %v3180 = vmul.f32 %v2796, %v2796
  %v3181 = vmul.f32 %v2797, %v2797
  %v3182 = vmul.f32 %v2798, %v2798
  %v3183 = vmul.f32 %v2799, %v2799
  %v3184 = vmul.f32 %v2800, %v2800
  %v3185 = vmul.f32 %v2801, %v2801
  %v3186 = vmul.f32 %v2802, %v2802
  %v3187 = vmul.f32 %v2803, %v2803
  %v3188 = vmul.f32 %v2804, %v2804
  %v3189 = vmul.f32 %v2805, %v2805
  %v3190 = vmul.f32 %v2806, %v2806
  %v3191 = vmul.f32 %v2807, %v2807
  %v3192 = vmul.f32 %v2808, %v2808
  %v3193 = vmul.f32 %v2809, %v2809
  %v3194 = vmul.f32 %v2810, %v2810
  %v3195 = vmul.f32 %v2811, %v2811
  %v3196 = vmul.f32 %v2812, %v2812
  %v3197 = vmul.f32 %v2813, %v2813
  %v3198 = vmul.f32 %v2814, %v2814
  %v3199 = vmul.f32 %v2815, %v2815
  %v3200 = vmul.f32 %v2816, %v2816
  %v3201 = vmul.f32 %v2817, %v2817
  %v3202 = vmul.f32 %v2818, %v2818
  %v3203 = vmul.f32 %v2819, %v2819
  %v3204 = vmul.f32 %v2820, %v2820
  %v3205 = vmul.f32 %v2821, %v2821
  %v3206 = vmul.f32 %v2822, %v2822
  %v3207 = vmul.f32 %v2823, %v2823
  %v3208 = vmul.f32 %v2824, %v2824
  %v3209 = vmul.f32 %v2825, %v2825
  %v3210 = vmul.f32 %v2826, %v2826
  %v3211 = vmul.f32 %v2827, %v2827
  %v3212 = vmul.f32 %v2828, %v2828
  %v3213 = vmul.f32 %v2829, %v2829
  %v3214 = vmul.f32 %v2830, %v2830
  %v3215 = vmul.f32 %v2831, %v2831
  %v3216 = vmul.f32 %v2832, %v2832
  %v3217 = vmul.f32 %v2833, %v2833
  %v3218 = vmul.f32 %v2834, %v2834
  %v3219 = vmul.f32 %v2835, %v2835
  %v3220 = vmul.f32 %v2836, %v2836
  %v3221 = vmul.f32 %v2837, %v2837
  %v3222 = vmul.f32 %v2838, %v2838
  %v3223 = vmul.f32 %v2839, %v2839
  %v3224 = vmul.f32 %v2840, %v2840
  %v3225 = vmul.f32 %v2841, %v2841
  %v3226 = vmul.f32 %v2842, %v2842
  %v3227 = vmul.f32 %v2843, %v2843
  %v3228 = vmul.f32 %v2844, %v2844
  %v3229 = vmul.f32 %v2845, %v2845
  %v3230 = vmul.f32 %v2846, %v2846
  %v3231 = vmul.f32 %v2847, %v2847
  %v3232 = vmul.f32 %v2848, %v2848
  %v3233 = vmul.f32 %v2849, %v2849
  %v3234 = vmul.f32 %v2850, %v2850
  %v3235 = vmul.f32 %v2851, %v2851
  %v3236 = vmul.f32 %v2852, %v2852
  %v3237 = vmul.f32 %v2853, %v2853
  %v3238 = vmul.f32 %v2854, %v2854
  %v3239 = vmul.f32 %v2855, %v2855
  %v3240 = vmul.f32 %v2856, %v2856
  %v3241 = vmul.f32 %v2857, %v2857
  %v3242 = vmul.f32 %v2858, %v2858
  %v3243 = vmul.f32 %v2859, %v2859
  %v3244 = vmul.f32 %v2860, %v2860
  %v3245 = vmul.f32 %v2861, %v2861
  %v3246 = vmul.f32 %v2862, %v2862
  %v3247 = vmul.f32 %v2863, %v2863
  %v3248 = vmul.f32 %v2864, %v2864
  %v3249 = vmul.f32 %v2865, %v2865
  %v3250 = vmul.f32 %v2866, %v2866
  %v3251 = vmul.f32 %v2867, %v2867
  %v3252 = vmul.f32 %v2868, %v2868
  %v3253 = vmul.f32 %v2869, %v2869
  %v3254 = vmul.f32 %v2870, %v2870
  %v3255 = vmul.f32 %v2871, %v2871
  %v3256 = vmul.f32 %v2872, %v2872
  %v3257 = vmul.f32 %v2873, %v2873
  %v3258 = vmul.f32 %v2874, %v2874
  %v3259 = vmul.f32 %v2875, %v2875
  %v3260 = vmul.f32 %v2876, %v2876
  %v3261 = vmul.f32 %v2877, %v2877
  %v3262 = vmul.f32 %v2878, %v2878
  %v3263 = vmul.f32 %v2879, %v2879
  %v3264 = vmul.f32 %v2880, %v2880
  %v3265 = vmul.f32 %v2881, %v2881
  %v3266 = vmul.f32 %v2882, %v2882
  %v3267 = vmul.f32 %v2883, %v2883
  %v3268 = vmul.f32 %v2884, %v2884
  %v3269 = vmul.f32 %v2885, %v2885
  %v3270 = vmul.f32 %v2886, %v2886
  %v3271 = vmul.f32 %v2887, %v2887
  %v3272 = vmul.f32 %v2888, %v2888
  %v3273 = vmul.f32 %v2889, %v2889
  %v3274 = vmul.f32 %v2890, %v2890
  %v3275 = vmul.f32 %v2891, %v2891
  %v3276 = vmul.f32 %v2892, %v2892
  %v3277 = vmul.f32 %v2893, %v2893
  %v3278 = vmul.f32 %v2894, %v2894
  %v3279 = vmul.f32 %v2895, %v2895
  %v3280 = vmul.f32 %v2896, %v2896
  %v3281 = vmul.f32 %v2897, %v2897
  %v3282 = vmul.f32 %v2898, %v2898
  %v3283 = vmul.f32 %v2899, %v2899
  %v3284 = vmul.f32 %v2900, %v2900
  %v3285 = vmul.f32 %v2901, %v2901
  %v3286 = vmul.f32 %v2902, %v2902
  %v3287 = vmul.f32 %v2903, %v2903
  %v3288 = vmul.f32 %v2904, %v2904
  %v3289 = vmul.f32 %v2905, %v2905
  %v3290 = vmul.f32 %v2906, %v2906
  %v3291 = vmul.f32 %v2907, %v2907
  %v3292 = vmul.f32 %v2908, %v2908
  %v3293 = vmul.f32 %v2909, %v2909
  %v3294 = vmul.f32 %v2910, %v2910
  %v3295 = vmul.f32 %v2911, %v2911
  %v3296 = vmul.f32 %v2912, %v2912
  %v3297 = vmul.f32 %v2913, %v2913
  %v3298 = vmul.f32 %v2914, %v2914
  %v3299 = vmul.f32 %v2915, %v2915
  %v3300 = vmul.f32 %v2916, %v2916
  %v3301 = vmul.f32 %v2917, %v2917
  %v3302 = vmul.f32 %v2918, %v2918
  %v3303 = vmul.f32 %v2919, %v2919
  %v3304 = vmul.f32 %v2920, %v2920
  %v3305 = vmul.f32 %v2921, %v2921
  %v3306 = vmul.f32 %v2922, %v2922
  %v3307 = vmul.f32 %v2923, %v2923
  %v3308 = vmul.f32 %v2924, %v2924
  %v3309 = vmul.f32 %v2925, %v2925
  %v3310 = vmul.f32 %v2926, %v2926
  %v3311 = vmul.f32 %v2927, %v2927
  %v3312 = vmul.f32 %v2928, %v2928
  %v3313 = vmul.f32 %v2929, %v2929
  %v3314 = vmul.f32 %v2930, %v2930
  %v3315 = vmul.f32 %v2931, %v2931
  %v3316 = vmul.f32 %v2932, %v2932
  %v3317 = vmul.f32 %v2933, %v2933
  %v3318 = vmul.f32 %v2934, %v2934
  %v3319 = vmul.f32 %v2935, %v2935
  %v3320 = vmul.f32 %v2936, %v2936
  %v3321 = vmul.f32 %v2937, %v2937
  %v3322 = vmul.f32 %v2938, %v2938
  %v3323 = vmul.f32 %v2939, %v2939
  %v3324 = vmul.f32 %v2940, %v2940
  %v3325 = vmul.f32 %v2941, %v2941
  %v3326 = vmul.f32 %v2942, %v2942
  %v3327 = vmul.f32 %v2943, %v2943
  %v3328 = vmul.f32 %v2944, %v2944
  %v3329 = vmul.f32 %v2945, %v2945
  %v3330 = vmul.f32 %v2946, %v2946
  %v3331 = vmul.f32 %v2947, %v2947
  %v3332 = vmul.f32 %v2948, %v2948
  %v3333 = vmul.f32 %v2949, %v2949
  %v3334 = vmul.f32 %v2950, %v2950
  %v3335 = vmul.f32 %v2951, %v2951
  %v3336 = vmul.f32 %v2952, %v2952
  %v3337 = vmul.f32 %v2953, %v2953
  %v3338 = vmul.f32 %v2954, %v2954
  %v3339 = vmul.f32 %v2955, %v2955
  %v3340 = vmul.f32 %v2956, %v2956
  %v3341 = vmul.f32 %v2957, %v2957
  %v3342 = vmul.f32 %v2958, %v2958
  %v3343 = vmul.f32 %v2959, %v2959
  %v3344 = vmul.f32 %v2960, %v2960
  %v3345 = vmul.f32 %v2961, %v2961
  %v3346 = vmul.f32 %v2962, %v2962
  %v3347 = vmul.f32 %v2963, %v2963
  %v3348 = vmul.f32 %v2964, %v2964
  %v3349 = vmul.f32 %v2965, %v2965
  %v3350 = vmul.f32 %v2966, %v2966
  %v3351 = vmul.f32 %v2967, %v2967
  %v3352 = vmul.f32 %v2968, %v2968
  %v3353 = vmul.f32 %v2969, %v2969
  %v3354 = vmul.f32 %v2970, %v2970
  %v3355 = vmul.f32 %v2971, %v2971
  %v3356 = vmul.f32 %v2972, %v2972
  %v3357 = vmul.f32 %v2973, %v2973
  %v3358 = vmul.f32 %v2974, %v2974
  %v3359 = vmul.f32 %v2975, %v2975
  %v3360 = vmul.f32 %v2976, %v2976
  %v3361 = vmul.f32 %v2977, %v2977
  %v3362 = vmul.f32 %v2978, %v2978
  %v3363 = vmul.f32 %v2979, %v2979
  %v3364 = vmul.f32 %v2980, %v2980
  %v3365 = vmul.f32 %v2981, %v2981
  %v3366 = vmul.f32 %v2982, %v2982
  %v3367 = vmul.f32 %v2983, %v2983
  %v3368 = vmul.f32 %v2984, %v2984
  %v3369 = vmul.f32 %v2985, %v2985
  %v3370 = vmul.f32 %v2986, %v2986
  %v3371 = vmul.f32 %v2987, %v2987
  %v3372 = vmul.f32 %v2988, %v2988
  %v3373 = vmul.f32 %v2989, %v2989
  %v3374 = vmul.f32 %v2990, %v2990
  %v3375 = vmul.f32 %v2991, %v2991
  %v3376 = vmul.f32 %v2992, %v2992
  %v3377 = vmul.f32 %v2993, %v2993
  %v3378 = vmul.f32 %v2994, %v2994
  %v3379 = vmul.f32 %v2995, %v2995
  %v3380 = vmul.f32 %v2996, %v2996
  %v3381 = vmul.f32 %v2997, %v2997
  %v3382 = vmul.f32 %v2998, %v2998
  %v3383 = vmul.f32 %v2999, %v2999
  %v3384 = vmul.f32 %v3000, %v3000
  %v3385 = vmul.f32 %v3001, %v3001
  %v3386 = vmul.f32 %v3002, %v3002
  %v3387 = vmul.f32 %v3003, %v3003
  %v3388 = vmul.f32 %v3004, %v3004
  %v3389 = vmul.f32 %v3005, %v3005
  %v3390 = vmul.f32 %v3006, %v3006
  %v3391 = vmul.f32 %v3007, %v3007
  %v3392 = vmul.f32 %v3008, %v3008
  %v3393 = vmul.f32 %v3009, %v3009
  %v3394 = vmul.f32 %v3010, %v3010
  %v3395 = vmul.f32 %v3011, %v3011
  %v3396 = vmul.f32 %v3012, %v3012
  %v3397 = vmul.f32 %v3013, %v3013
  %v3398 = vmul.f32 %v3014, %v3014
  %v3399 = vmul.f32 %v3015, %v3015
  %v3400 = vmul.f32 %v3016, %v3016
  %v3401 = vmul.f32 %v3017, %v3017
  %v3402 = vmul.f32 %v3018, %v3018
  %v3403 = vmul.f32 %v3019, %v3019
  %v3404 = vmul.f32 %v3020, %v3020
  %v3405 = vmul.f32 %v3021, %v3021
  %v3406 = vmul.f32 %v3022, %v3022
  %v3407 = vmul.f32 %v3023, %v3023
  %v3408 = vmul.f32 %v3024, %v3024
  %v3409 = vmul.f32 %v3025, %v3025
  %v3410 = vmul.f32 %v3026, %v3026
  %v3411 = vmul.f32 %v3027, %v3027
  %v3412 = vmul.f32 %v3028, %v3028
  %v3413 = vmul.f32 %v3029, %v3029
  %v3414 = vmul.f32 %v3030, %v3030
  %v3415 = vmul.f32 %v3031, %v3031
  %v3416 = vmul.f32 %v3032, %v3032
  %v3417 = vmul.f32 %v3033, %v3033
  %v3418 = vmul.f32 %v3034, %v3034
  %v3419 = vmul.f32 %v3035, %v3035
  %v3420 = vmul.f32 %v3036, %v3036
  %v3421 = vmul.f32 %v3037, %v3037
  %v3422 = vmul.f32 %v3038, %v3038
  %v3423 = vmul.f32 %v3039, %v3039
  %v3424 = vmul.f32 %v3040, %v3040
  %v3425 = vmul.f32 %v3041, %v3041
  %v3426 = vmul.f32 %v3042, %v3042
  %v3427 = vmul.f32 %v3043, %v3043
  %v3428 = vmul.f32 %v3044, %v3044
  %v3429 = vmul.f32 %v3045, %v3045
  %v3430 = vmul.f32 %v3046, %v3046
  %v3431 = vmul.f32 %v3047, %v3047
  %v3432 = vmul.f32 %v3048, %v3048
  %v3433 = vmul.f32 %v3049, %v3049
  %v3434 = vmul.f32 %v3050, %v3050
  %v3435 = vmul.f32 %v3051, %v3051
  %v3436 = vmul.f32 %v3052, %v3052
  %v3437 = vmul.f32 %v3053, %v3053
  %v3438 = vmul.f32 %v3054, %v3054
  %v3439 = vmul.f32 %v3055, %v3055
  %v3440 = vmul.f32 %v3056, %v3056
  %v3441 = vmul.f32 %v3057, %v3057
  %v3442 = vmul.f32 %v3058, %v3058
  %v3443 = vmul.f32 %v3059, %v3059
  %v3444 = vmul.f32 %v3060, %v3060
  %v3445 = vmul.f32 %v3061, %v3061
  %v3446 = vmul.f32 %v3062, %v3062
  %v3447 = vmul.f32 %v3063, %v3063
  %v3448 = vmul.f32 %v3064, %v3064
  %v3449 = vmul.f32 %v3065, %v3065
  %v3450 = vmul.f32 %v3066, %v3066
  %v3451 = vmul.f32 %v3067, %v3067
  %v3452 = vmul.f32 %v3068, %v3068
  %v3453 = vmul.f32 %v3069, %v3069
  %v3454 = vmul.f32 %v3070, %v3070
  %v3455 = vmul.f32 %v3071, %v3071
  %v3456 = vmul.f32 %v3072, %v3072
  %v3457 = vmul.f32 %v3073, %v3073
  %v3458 = vmul.f32 %v3074, %v3074
  %v3459 = vmul.f32 %v3075, %v3075
  %v3460 = vmul.f32 %v3076, %v3076
  %v3461 = vmul.f32 %v3077, %v3077
  %v3462 = vmul.f32 %v3078, %v3078
  %v3463 = vmul.f32 %v3079, %v3079
  %v3464 = vmul.f32 %v3080, %v3080
  %v3465 = vmul.f32 %v3081, %v3081
  %v3466 = vmul.f32 %v3082, %v3082
  %v3467 = vmul.f32 %v3083, %v3083
  %v3468 = vmul.f32 %v3084, %v3084
  %v3469 = vmul.f32 %v3085, %v3085
  %v3470 = vmul.f32 %v3086, %v3086
  %v3471 = vmul.f32 %v3087, %v3087
  %v3472 = vmul.f32 %v3088, %v3088
  %v3473 = vmul.f32 %v3089, %v3089
  %v3474 = vsel %vm785, %v3090, 0.0
  %3475 = vadd.xlane.f32.xlu0 %v3474
  %v3476 = vpop.xlane.xlu0 %3475
  %v3477 = vsel %vm785, %v3091, 0.0
  %3478 = vadd.xlane.f32.xlu0 %v3477
  %v3479 = vpop.xlane.xlu0 %3478
  %v3480 = vsel %vm785, %v3092, 0.0
  %3481 = vadd.xlane.f32.xlu0 %v3480
  %v3482 = vpop.xlane.xlu0 %3481
  %v3483 = vsel %vm785, %v3093, 0.0
  %3484 = vadd.xlane.f32.xlu0 %v3483
  %v3485 = vpop.xlane.xlu0 %3484
  %v3486 = vsel %vm785, %v3094, 0.0
  %3487 = vadd.xlane.f32.xlu0 %v3486
  %v3488 = vpop.xlane.xlu0 %3487
  %v3489 = vsel %vm785, %v3095, 0.0
  %3490 = vadd.xlane.f32.xlu0 %v3489
  %v3491 = vpop.xlane.xlu0 %3490
  %v3492 = vsel %vm785, %v3096, 0.0
  %3493 = vadd.xlane.f32.xlu0 %v3492
  %v3494 = vpop.xlane.xlu0 %3493
  %v3495 = vsel %vm785, %v3097, 0.0
  %3496 = vadd.xlane.f32.xlu0 %v3495
  %v3497 = vpop.xlane.xlu0 %3496
  %v3498 = vsel %vm785, %v3098, 0.0
  %3499 = vadd.xlane.f32.xlu0 %v3498
  %v3500 = vpop.xlane.xlu0 %3499
  %v3501 = vsel %vm785, %v3099, 0.0
  %3502 = vadd.xlane.f32.xlu0 %v3501
  %v3503 = vpop.xlane.xlu0 %3502
  %v3504 = vsel %vm785, %v3100, 0.0
  %3505 = vadd.xlane.f32.xlu0 %v3504
  %v3506 = vpop.xlane.xlu0 %3505
  %v3507 = vsel %vm785, %v3101, 0.0
  %3508 = vadd.xlane.f32.xlu0 %v3507
  %v3509 = vpop.xlane.xlu0 %3508
  %v3510 = vsel %vm785, %v3102, 0.0
  %3511 = vadd.xlane.f32.xlu0 %v3510
  %v3512 = vpop.xlane.xlu0 %3511
  %v3513 = vsel %vm785, %v3103, 0.0
  %3514 = vadd.xlane.f32.xlu0 %v3513
  %v3515 = vpop.xlane.xlu0 %3514
  %v3516 = vsel %vm785, %v3104, 0.0
  %3517 = vadd.xlane.f32.xlu0 %v3516
  %v3518 = vpop.xlane.xlu0 %3517
  %v3519 = vsel %vm785, %v3105, 0.0
  %3520 = vadd.xlane.f32.xlu0 %v3519
  %v3521 = vpop.xlane.xlu0 %3520
  %v3522 = vsel %vm785, %v3106, 0.0
  %3523 = vadd.xlane.f32.xlu0 %v3522
  %v3524 = vpop.xlane.xlu0 %3523
  %v3525 = vsel %vm785, %v3107, 0.0
  %3526 = vadd.xlane.f32.xlu0 %v3525
  %v3527 = vpop.xlane.xlu0 %3526
  %v3528 = vsel %vm785, %v3108, 0.0
  %3529 = vadd.xlane.f32.xlu0 %v3528
  %v3530 = vpop.xlane.xlu0 %3529
  %v3531 = vsel %vm785, %v3109, 0.0
  %3532 = vadd.xlane.f32.xlu0 %v3531
  %v3533 = vpop.xlane.xlu0 %3532
  %v3534 = vsel %vm785, %v3110, 0.0
  %3535 = vadd.xlane.f32.xlu0 %v3534
  %v3536 = vpop.xlane.xlu0 %3535
  %v3537 = vsel %vm785, %v3111, 0.0
  %3538 = vadd.xlane.f32.xlu0 %v3537
  %v3539 = vpop.xlane.xlu0 %3538
  %v3540 = vsel %vm785, %v3112, 0.0
  %3541 = vadd.xlane.f32.xlu0 %v3540
  %v3542 = vpop.xlane.xlu0 %3541
  %v3543 = vsel %vm785, %v3113, 0.0
  %3544 = vadd.xlane.f32.xlu0 %v3543
  %v3545 = vpop.xlane.xlu0 %3544
  %v3546 = vsel %vm785, %v3114, 0.0
  %3547 = vadd.xlane.f32.xlu0 %v3546
  %v3548 = vpop.xlane.xlu0 %3547
  %v3549 = vsel %vm785, %v3115, 0.0
  %3550 = vadd.xlane.f32.xlu0 %v3549
  %v3551 = vpop.xlane.xlu0 %3550
  %v3552 = vsel %vm785, %v3116, 0.0
  %3553 = vadd.xlane.f32.xlu0 %v3552
  %v3554 = vpop.xlane.xlu0 %3553
  %v3555 = vsel %vm785, %v3117, 0.0
  %3556 = vadd.xlane.f32.xlu0 %v3555
  %v3557 = vpop.xlane.xlu0 %3556
  %v3558 = vsel %vm785, %v3118, 0.0
  %3559 = vadd.xlane.f32.xlu0 %v3558
  %v3560 = vpop.xlane.xlu0 %3559
  %v3561 = vsel %vm785, %v3119, 0.0
  %3562 = vadd.xlane.f32.xlu0 %v3561
  %v3563 = vpop.xlane.xlu0 %3562
  %v3564 = vsel %vm785, %v3120, 0.0
  %3565 = vadd.xlane.f32.xlu0 %v3564
  %v3566 = vpop.xlane.xlu0 %3565
  %v3567 = vsel %vm785, %v3121, 0.0
  %3568 = vadd.xlane.f32.xlu0 %v3567
  %v3569 = vpop.xlane.xlu0 %3568
  %v3570 = vsel %vm785, %v3122, 0.0
  %3571 = vadd.xlane.f32.xlu0 %v3570
  %v3572 = vpop.xlane.xlu0 %3571
  %v3573 = vsel %vm785, %v3123, 0.0
  %3574 = vadd.xlane.f32.xlu0 %v3573
  %v3575 = vpop.xlane.xlu0 %3574
  %v3576 = vsel %vm785, %v3124, 0.0
  %3577 = vadd.xlane.f32.xlu0 %v3576
  %v3578 = vpop.xlane.xlu0 %3577
  %v3579 = vsel %vm785, %v3125, 0.0
  %3580 = vadd.xlane.f32.xlu0 %v3579
  %v3581 = vpop.xlane.xlu0 %3580
  %v3582 = vsel %vm785, %v3126, 0.0
  %3583 = vadd.xlane.f32.xlu0 %v3582
  %v3584 = vpop.xlane.xlu0 %3583
  %v3585 = vsel %vm785, %v3127, 0.0
  %3586 = vadd.xlane.f32.xlu0 %v3585
  %v3587 = vpop.xlane.xlu0 %3586
  %v3588 = vsel %vm785, %v3128, 0.0
  %3589 = vadd.xlane.f32.xlu0 %v3588
  %v3590 = vpop.xlane.xlu0 %3589
  %v3591 = vsel %vm785, %v3129, 0.0
  %3592 = vadd.xlane.f32.xlu0 %v3591
  %v3593 = vpop.xlane.xlu0 %3592
  %v3594 = vsel %vm785, %v3130, 0.0
  %3595 = vadd.xlane.f32.xlu0 %v3594
  %v3596 = vpop.xlane.xlu0 %3595
  %v3597 = vsel %vm785, %v3131, 0.0
  %3598 = vadd.xlane.f32.xlu0 %v3597
  %v3599 = vpop.xlane.xlu0 %3598
  %v3600 = vsel %vm785, %v3132, 0.0
  %3601 = vadd.xlane.f32.xlu0 %v3600
  %v3602 = vpop.xlane.xlu0 %3601
  %v3603 = vsel %vm785, %v3133, 0.0
  %3604 = vadd.xlane.f32.xlu0 %v3603
  %v3605 = vpop.xlane.xlu0 %3604
  %v3606 = vsel %vm785, %v3134, 0.0
  %3607 = vadd.xlane.f32.xlu0 %v3606
  %v3608 = vpop.xlane.xlu0 %3607
  %v3609 = vsel %vm785, %v3135, 0.0
  %3610 = vadd.xlane.f32.xlu0 %v3609
  %v3611 = vpop.xlane.xlu0 %3610
  %v3612 = vsel %vm785, %v3136, 0.0
  %3613 = vadd.xlane.f32.xlu0 %v3612
  %v3614 = vpop.xlane.xlu0 %3613
  %v3615 = vsel %vm785, %v3137, 0.0
  %3616 = vadd.xlane.f32.xlu0 %v3615
  %v3617 = vpop.xlane.xlu0 %3616
  %v3618 = vsel %vm785, %v3138, 0.0
  %3619 = vadd.xlane.f32.xlu0 %v3618
  %v3620 = vpop.xlane.xlu0 %3619
  %v3621 = vsel %vm785, %v3139, 0.0
  %3622 = vadd.xlane.f32.xlu0 %v3621
  %v3623 = vpop.xlane.xlu0 %3622
  %v3624 = vsel %vm785, %v3140, 0.0
  %3625 = vadd.xlane.f32.xlu0 %v3624
  %v3626 = vpop.xlane.xlu0 %3625
  %v3627 = vsel %vm785, %v3141, 0.0
  %3628 = vadd.xlane.f32.xlu0 %v3627
  %v3629 = vpop.xlane.xlu0 %3628
  %v3630 = vsel %vm785, %v3142, 0.0
  %3631 = vadd.xlane.f32.xlu0 %v3630
  %v3632 = vpop.xlane.xlu0 %3631
  %v3633 = vsel %vm785, %v3143, 0.0
  %3634 = vadd.xlane.f32.xlu0 %v3633
  %v3635 = vpop.xlane.xlu0 %3634
  %v3636 = vsel %vm785, %v3144, 0.0
  %3637 = vadd.xlane.f32.xlu0 %v3636
  %v3638 = vpop.xlane.xlu0 %3637
  %v3639 = vsel %vm785, %v3145, 0.0
  %3640 = vadd.xlane.f32.xlu0 %v3639
  %v3641 = vpop.xlane.xlu0 %3640
  %v3642 = vsel %vm785, %v3146, 0.0
  %3643 = vadd.xlane.f32.xlu0 %v3642
  %v3644 = vpop.xlane.xlu0 %3643
  %v3645 = vsel %vm785, %v3147, 0.0
  %3646 = vadd.xlane.f32.xlu0 %v3645
  %v3647 = vpop.xlane.xlu0 %3646
  %v3648 = vsel %vm785, %v3148, 0.0
  %3649 = vadd.xlane.f32.xlu0 %v3648
  %v3650 = vpop.xlane.xlu0 %3649
  %v3651 = vsel %vm785, %v3149, 0.0
  %3652 = vadd.xlane.f32.xlu0 %v3651
  %v3653 = vpop.xlane.xlu0 %3652
  %v3654 = vsel %vm785, %v3150, 0.0
  %3655 = vadd.xlane.f32.xlu0 %v3654
  %v3656 = vpop.xlane.xlu0 %3655
  %v3657 = vsel %vm785, %v3151, 0.0
  %3658 = vadd.xlane.f32.xlu0 %v3657
  %v3659 = vpop.xlane.xlu0 %3658
  %v3660 = vsel %vm785, %v3152, 0.0
  %3661 = vadd.xlane.f32.xlu0 %v3660
  %v3662 = vpop.xlane.xlu0 %3661
  %v3663 = vsel %vm785, %v3153, 0.0
  %3664 = vadd.xlane.f32.xlu0 %v3663
  %v3665 = vpop.xlane.xlu0 %3664
  %v3666 = vsel %vm785, %v3154, 0.0
  %3667 = vadd.xlane.f32.xlu0 %v3666
  %v3668 = vpop.xlane.xlu0 %3667
  %v3669 = vsel %vm785, %v3155, 0.0
  %3670 = vadd.xlane.f32.xlu0 %v3669
  %v3671 = vpop.xlane.xlu0 %3670
  %v3672 = vsel %vm785, %v3156, 0.0
  %3673 = vadd.xlane.f32.xlu0 %v3672
  %v3674 = vpop.xlane.xlu0 %3673
  %v3675 = vsel %vm785, %v3157, 0.0
  %3676 = vadd.xlane.f32.xlu0 %v3675
  %v3677 = vpop.xlane.xlu0 %3676
  %v3678 = vsel %vm785, %v3158, 0.0
  %3679 = vadd.xlane.f32.xlu0 %v3678
  %v3680 = vpop.xlane.xlu0 %3679
  %v3681 = vsel %vm785, %v3159, 0.0
  %3682 = vadd.xlane.f32.xlu0 %v3681
  %v3683 = vpop.xlane.xlu0 %3682
  %v3684 = vsel %vm785, %v3160, 0.0
  %3685 = vadd.xlane.f32.xlu0 %v3684
  %v3686 = vpop.xlane.xlu0 %3685
  %v3687 = vsel %vm785, %v3161, 0.0
  %3688 = vadd.xlane.f32.xlu0 %v3687
  %v3689 = vpop.xlane.xlu0 %3688
  %v3690 = vsel %vm785, %v3162, 0.0
  %3691 = vadd.xlane.f32.xlu0 %v3690
  %v3692 = vpop.xlane.xlu0 %3691
  %v3693 = vsel %vm785, %v3163, 0.0
  %3694 = vadd.xlane.f32.xlu0 %v3693
  %v3695 = vpop.xlane.xlu0 %3694
  %v3696 = vsel %vm785, %v3164, 0.0
  %3697 = vadd.xlane.f32.xlu0 %v3696
  %v3698 = vpop.xlane.xlu0 %3697
  %v3699 = vsel %vm785, %v3165, 0.0
  %3700 = vadd.xlane.f32.xlu0 %v3699
  %v3701 = vpop.xlane.xlu0 %3700
  %v3702 = vsel %vm785, %v3166, 0.0
  %3703 = vadd.xlane.f32.xlu0 %v3702
  %v3704 = vpop.xlane.xlu0 %3703
  %v3705 = vsel %vm785, %v3167, 0.0
  %3706 = vadd.xlane.f32.xlu0 %v3705
  %v3707 = vpop.xlane.xlu0 %3706
  %v3708 = vsel %vm785, %v3168, 0.0
  %3709 = vadd.xlane.f32.xlu0 %v3708
  %v3710 = vpop.xlane.xlu0 %3709
  %v3711 = vsel %vm785, %v3169, 0.0
  %3712 = vadd.xlane.f32.xlu0 %v3711
  %v3713 = vpop.xlane.xlu0 %3712
  %v3714 = vsel %vm785, %v3170, 0.0
  %3715 = vadd.xlane.f32.xlu0 %v3714
  %v3716 = vpop.xlane.xlu0 %3715
  %v3717 = vsel %vm785, %v3171, 0.0
  %3718 = vadd.xlane.f32.xlu0 %v3717
  %v3719 = vpop.xlane.xlu0 %3718
  %v3720 = vsel %vm785, %v3172, 0.0
  %3721 = vadd.xlane.f32.xlu0 %v3720
  %v3722 = vpop.xlane.xlu0 %3721
  %v3723 = vsel %vm785, %v3173, 0.0
  %3724 = vadd.xlane.f32.xlu0 %v3723
  %v3725 = vpop.xlane.xlu0 %3724
  %v3726 = vsel %vm785, %v3174, 0.0
  %3727 = vadd.xlane.f32.xlu0 %v3726
  %v3728 = vpop.xlane.xlu0 %3727
  %v3729 = vsel %vm785, %v3175, 0.0
  %3730 = vadd.xlane.f32.xlu0 %v3729
  %v3731 = vpop.xlane.xlu0 %3730
  %v3732 = vsel %vm785, %v3176, 0.0
  %3733 = vadd.xlane.f32.xlu0 %v3732
  %v3734 = vpop.xlane.xlu0 %3733
  %v3735 = vsel %vm785, %v3177, 0.0
  %3736 = vadd.xlane.f32.xlu0 %v3735
  %v3737 = vpop.xlane.xlu0 %3736
  %v3738 = vsel %vm785, %v3178, 0.0
  %3739 = vadd.xlane.f32.xlu0 %v3738
  %v3740 = vpop.xlane.xlu0 %3739
  %v3741 = vsel %vm785, %v3179, 0.0
  %3742 = vadd.xlane.f32.xlu0 %v3741
  %v3743 = vpop.xlane.xlu0 %3742
  %v3744 = vsel %vm785, %v3180, 0.0
  %3745 = vadd.xlane.f32.xlu0 %v3744
  %v3746 = vpop.xlane.xlu0 %3745
  %v3747 = vsel %vm785, %v3181, 0.0
  %3748 = vadd.xlane.f32.xlu0 %v3747
  %v3749 = vpop.xlane.xlu0 %3748
  %v3750 = vsel %vm785, %v3182, 0.0
  %3751 = vadd.xlane.f32.xlu0 %v3750
  %v3752 = vpop.xlane.xlu0 %3751
  %v3753 = vsel %vm785, %v3183, 0.0
  %3754 = vadd.xlane.f32.xlu0 %v3753
  %v3755 = vpop.xlane.xlu0 %3754
  %v3756 = vsel %vm785, %v3184, 0.0
  %3757 = vadd.xlane.f32.xlu0 %v3756
  %v3758 = vpop.xlane.xlu0 %3757
  %v3759 = vsel %vm785, %v3185, 0.0
  %3760 = vadd.xlane.f32.xlu0 %v3759
  %v3761 = vpop.xlane.xlu0 %3760
  %v3762 = vsel %vm785, %v3186, 0.0
  %3763 = vadd.xlane.f32.xlu0 %v3762
  %v3764 = vpop.xlane.xlu0 %3763
  %v3765 = vsel %vm785, %v3187, 0.0
  %3766 = vadd.xlane.f32.xlu0 %v3765
  %v3767 = vpop.xlane.xlu0 %3766
  %v3768 = vsel %vm785, %v3188, 0.0
  %3769 = vadd.xlane.f32.xlu0 %v3768
  %v3770 = vpop.xlane.xlu0 %3769
  %v3771 = vsel %vm785, %v3189, 0.0
  %3772 = vadd.xlane.f32.xlu0 %v3771
  %v3773 = vpop.xlane.xlu0 %3772
  %v3774 = vsel %vm785, %v3190, 0.0
  %3775 = vadd.xlane.f32.xlu0 %v3774
  %v3776 = vpop.xlane.xlu0 %3775
  %v3777 = vsel %vm785, %v3191, 0.0
  %3778 = vadd.xlane.f32.xlu0 %v3777
  %v3779 = vpop.xlane.xlu0 %3778
  %v3780 = vsel %vm785, %v3192, 0.0
  %3781 = vadd.xlane.f32.xlu0 %v3780
  %v3782 = vpop.xlane.xlu0 %3781
  %v3783 = vsel %vm785, %v3193, 0.0
  %3784 = vadd.xlane.f32.xlu0 %v3783
  %v3785 = vpop.xlane.xlu0 %3784
  %v3786 = vsel %vm785, %v3194, 0.0
  %3787 = vadd.xlane.f32.xlu0 %v3786
  %v3788 = vpop.xlane.xlu0 %3787
  %v3789 = vsel %vm785, %v3195, 0.0
  %3790 = vadd.xlane.f32.xlu0 %v3789
  %v3791 = vpop.xlane.xlu0 %3790
  %v3792 = vsel %vm785, %v3196, 0.0
  %3793 = vadd.xlane.f32.xlu0 %v3792
  %v3794 = vpop.xlane.xlu0 %3793
  %v3795 = vsel %vm785, %v3197, 0.0
  %3796 = vadd.xlane.f32.xlu0 %v3795
  %v3797 = vpop.xlane.xlu0 %3796
  %v3798 = vsel %vm785, %v3198, 0.0
  %3799 = vadd.xlane.f32.xlu0 %v3798
  %v3800 = vpop.xlane.xlu0 %3799
  %v3801 = vsel %vm785, %v3199, 0.0
  %3802 = vadd.xlane.f32.xlu0 %v3801
  %v3803 = vpop.xlane.xlu0 %3802
  %v3804 = vsel %vm785, %v3200, 0.0
  %3805 = vadd.xlane.f32.xlu0 %v3804
  %v3806 = vpop.xlane.xlu0 %3805
  %v3807 = vsel %vm785, %v3201, 0.0
  %3808 = vadd.xlane.f32.xlu0 %v3807
  %v3809 = vpop.xlane.xlu0 %3808
  %v3810 = vsel %vm785, %v3202, 0.0
  %3811 = vadd.xlane.f32.xlu0 %v3810
  %v3812 = vpop.xlane.xlu0 %3811
  %v3813 = vsel %vm785, %v3203, 0.0
  %3814 = vadd.xlane.f32.xlu0 %v3813
  %v3815 = vpop.xlane.xlu0 %3814
  %v3816 = vsel %vm785, %v3204, 0.0
  %3817 = vadd.xlane.f32.xlu0 %v3816
  %v3818 = vpop.xlane.xlu0 %3817
  %v3819 = vsel %vm785, %v3205, 0.0
  %3820 = vadd.xlane.f32.xlu0 %v3819
  %v3821 = vpop.xlane.xlu0 %3820
  %v3822 = vsel %vm785, %v3206, 0.0
  %3823 = vadd.xlane.f32.xlu0 %v3822
  %v3824 = vpop.xlane.xlu0 %3823
  %v3825 = vsel %vm785, %v3207, 0.0
  %3826 = vadd.xlane.f32.xlu0 %v3825
  %v3827 = vpop.xlane.xlu0 %3826
  %v3828 = vsel %vm785, %v3208, 0.0
  %3829 = vadd.xlane.f32.xlu0 %v3828
  %v3830 = vpop.xlane.xlu0 %3829
  %v3831 = vsel %vm785, %v3209, 0.0
  %3832 = vadd.xlane.f32.xlu0 %v3831
  %v3833 = vpop.xlane.xlu0 %3832
  %v3834 = vsel %vm785, %v3210, 0.0
  %3835 = vadd.xlane.f32.xlu0 %v3834
  %v3836 = vpop.xlane.xlu0 %3835
  %v3837 = vsel %vm785, %v3211, 0.0
  %3838 = vadd.xlane.f32.xlu0 %v3837
  %v3839 = vpop.xlane.xlu0 %3838
  %v3840 = vsel %vm785, %v3212, 0.0
  %3841 = vadd.xlane.f32.xlu0 %v3840
  %v3842 = vpop.xlane.xlu0 %3841
  %v3843 = vsel %vm785, %v3213, 0.0
  %3844 = vadd.xlane.f32.xlu0 %v3843
  %v3845 = vpop.xlane.xlu0 %3844
  %v3846 = vsel %vm785, %v3214, 0.0
  %3847 = vadd.xlane.f32.xlu0 %v3846
  %v3848 = vpop.xlane.xlu0 %3847
  %v3849 = vsel %vm785, %v3215, 0.0
  %3850 = vadd.xlane.f32.xlu0 %v3849
  %v3851 = vpop.xlane.xlu0 %3850
  %v3852 = vsel %vm785, %v3216, 0.0
  %3853 = vadd.xlane.f32.xlu0 %v3852
  %v3854 = vpop.xlane.xlu0 %3853
  %v3855 = vsel %vm785, %v3217, 0.0
  %3856 = vadd.xlane.f32.xlu0 %v3855
  %v3857 = vpop.xlane.xlu0 %3856
  %v3858 = vsel %vm785, %v3218, 0.0
  %3859 = vadd.xlane.f32.xlu0 %v3858
  %v3860 = vpop.xlane.xlu0 %3859
  %v3861 = vsel %vm785, %v3219, 0.0
  %3862 = vadd.xlane.f32.xlu0 %v3861
  %v3863 = vpop.xlane.xlu0 %3862
  %v3864 = vsel %vm785, %v3220, 0.0
  %3865 = vadd.xlane.f32.xlu0 %v3864
  %v3866 = vpop.xlane.xlu0 %3865
  %v3867 = vsel %vm785, %v3221, 0.0
  %3868 = vadd.xlane.f32.xlu0 %v3867
  %v3869 = vpop.xlane.xlu0 %3868
  %v3870 = vsel %vm785, %v3222, 0.0
  %3871 = vadd.xlane.f32.xlu0 %v3870
  %v3872 = vpop.xlane.xlu0 %3871
  %v3873 = vsel %vm785, %v3223, 0.0
  %3874 = vadd.xlane.f32.xlu0 %v3873
  %v3875 = vpop.xlane.xlu0 %3874
  %v3876 = vsel %vm785, %v3224, 0.0
  %3877 = vadd.xlane.f32.xlu0 %v3876
  %v3878 = vpop.xlane.xlu0 %3877
  %v3879 = vsel %vm785, %v3225, 0.0
  %3880 = vadd.xlane.f32.xlu0 %v3879
  %v3881 = vpop.xlane.xlu0 %3880
  %v3882 = vsel %vm785, %v3226, 0.0
  %3883 = vadd.xlane.f32.xlu0 %v3882
  %v3884 = vpop.xlane.xlu0 %3883
  %v3885 = vsel %vm785, %v3227, 0.0
  %3886 = vadd.xlane.f32.xlu0 %v3885
  %v3887 = vpop.xlane.xlu0 %3886
  %v3888 = vsel %vm785, %v3228, 0.0
  %3889 = vadd.xlane.f32.xlu0 %v3888
  %v3890 = vpop.xlane.xlu0 %3889
  %v3891 = vsel %vm785, %v3229, 0.0
  %3892 = vadd.xlane.f32.xlu0 %v3891
  %v3893 = vpop.xlane.xlu0 %3892
  %v3894 = vsel %vm785, %v3230, 0.0
  %3895 = vadd.xlane.f32.xlu0 %v3894
  %v3896 = vpop.xlane.xlu0 %3895
  %v3897 = vsel %vm785, %v3231, 0.0
  %3898 = vadd.xlane.f32.xlu0 %v3897
  %v3899 = vpop.xlane.xlu0 %3898
  %v3900 = vsel %vm785, %v3232, 0.0
  %3901 = vadd.xlane.f32.xlu0 %v3900
  %v3902 = vpop.xlane.xlu0 %3901
  %v3903 = vsel %vm785, %v3233, 0.0
  %3904 = vadd.xlane.f32.xlu0 %v3903
  %v3905 = vpop.xlane.xlu0 %3904
  %v3906 = vsel %vm785, %v3234, 0.0
  %3907 = vadd.xlane.f32.xlu0 %v3906
  %v3908 = vpop.xlane.xlu0 %3907
  %v3909 = vsel %vm785, %v3235, 0.0
  %3910 = vadd.xlane.f32.xlu0 %v3909
  %v3911 = vpop.xlane.xlu0 %3910
  %v3912 = vsel %vm785, %v3236, 0.0
  %3913 = vadd.xlane.f32.xlu0 %v3912
  %v3914 = vpop.xlane.xlu0 %3913
  %v3915 = vsel %vm785, %v3237, 0.0
  %3916 = vadd.xlane.f32.xlu0 %v3915
  %v3917 = vpop.xlane.xlu0 %3916
  %v3918 = vsel %vm785, %v3238, 0.0
  %3919 = vadd.xlane.f32.xlu0 %v3918
  %v3920 = vpop.xlane.xlu0 %3919
  %v3921 = vsel %vm785, %v3239, 0.0
  %3922 = vadd.xlane.f32.xlu0 %v3921
  %v3923 = vpop.xlane.xlu0 %3922
  %v3924 = vsel %vm785, %v3240, 0.0
  %3925 = vadd.xlane.f32.xlu0 %v3924
  %v3926 = vpop.xlane.xlu0 %3925
  %v3927 = vsel %vm785, %v3241, 0.0
  %3928 = vadd.xlane.f32.xlu0 %v3927
  %v3929 = vpop.xlane.xlu0 %3928
  %v3930 = vsel %vm785, %v3242, 0.0
  %3931 = vadd.xlane.f32.xlu0 %v3930
  %v3932 = vpop.xlane.xlu0 %3931
  %v3933 = vsel %vm785, %v3243, 0.0
  %3934 = vadd.xlane.f32.xlu0 %v3933
  %v3935 = vpop.xlane.xlu0 %3934
  %v3936 = vsel %vm785, %v3244, 0.0
  %3937 = vadd.xlane.f32.xlu0 %v3936
  %v3938 = vpop.xlane.xlu0 %3937
  %v3939 = vsel %vm785, %v3245, 0.0
  %3940 = vadd.xlane.f32.xlu0 %v3939
  %v3941 = vpop.xlane.xlu0 %3940
  %v3942 = vsel %vm785, %v3246, 0.0
  %3943 = vadd.xlane.f32.xlu0 %v3942
  %v3944 = vpop.xlane.xlu0 %3943
  %v3945 = vsel %vm785, %v3247, 0.0
  %3946 = vadd.xlane.f32.xlu0 %v3945
  %v3947 = vpop.xlane.xlu0 %3946
  %v3948 = vsel %vm785, %v3248, 0.0
  %3949 = vadd.xlane.f32.xlu0 %v3948
  %v3950 = vpop.xlane.xlu0 %3949
  %v3951 = vsel %vm785, %v3249, 0.0
  %3952 = vadd.xlane.f32.xlu0 %v3951
  %v3953 = vpop.xlane.xlu0 %3952
  %v3954 = vsel %vm785, %v3250, 0.0
  %3955 = vadd.xlane.f32.xlu0 %v3954
  %v3956 = vpop.xlane.xlu0 %3955
  %v3957 = vsel %vm785, %v3251, 0.0
  %3958 = vadd.xlane.f32.xlu0 %v3957
  %v3959 = vpop.xlane.xlu0 %3958
  %v3960 = vsel %vm785, %v3252, 0.0
  %3961 = vadd.xlane.f32.xlu0 %v3960
  %v3962 = vpop.xlane.xlu0 %3961
  %v3963 = vsel %vm785, %v3253, 0.0
  %3964 = vadd.xlane.f32.xlu0 %v3963
  %v3965 = vpop.xlane.xlu0 %3964
  %v3966 = vsel %vm785, %v3254, 0.0
  %3967 = vadd.xlane.f32.xlu0 %v3966
  %v3968 = vpop.xlane.xlu0 %3967
  %v3969 = vsel %vm785, %v3255, 0.0
  %3970 = vadd.xlane.f32.xlu0 %v3969
  %v3971 = vpop.xlane.xlu0 %3970
  %v3972 = vsel %vm785, %v3256, 0.0
  %3973 = vadd.xlane.f32.xlu0 %v3972
  %v3974 = vpop.xlane.xlu0 %3973
  %v3975 = vsel %vm785, %v3257, 0.0
  %3976 = vadd.xlane.f32.xlu0 %v3975
  %v3977 = vpop.xlane.xlu0 %3976
  %v3978 = vsel %vm785, %v3258, 0.0
  %3979 = vadd.xlane.f32.xlu0 %v3978
  %v3980 = vpop.xlane.xlu0 %3979
  %v3981 = vsel %vm785, %v3259, 0.0
  %3982 = vadd.xlane.f32.xlu0 %v3981
  %v3983 = vpop.xlane.xlu0 %3982
  %v3984 = vsel %vm785, %v3260, 0.0
  %3985 = vadd.xlane.f32.xlu0 %v3984
  %v3986 = vpop.xlane.xlu0 %3985
  %v3987 = vsel %vm785, %v3261, 0.0
  %3988 = vadd.xlane.f32.xlu0 %v3987
  %v3989 = vpop.xlane.xlu0 %3988
  %v3990 = vsel %vm785, %v3262, 0.0
  %3991 = vadd.xlane.f32.xlu0 %v3990
  %v3992 = vpop.xlane.xlu0 %3991
  %v3993 = vsel %vm785, %v3263, 0.0
  %3994 = vadd.xlane.f32.xlu0 %v3993
  %v3995 = vpop.xlane.xlu0 %3994
  %v3996 = vsel %vm785, %v3264, 0.0
  %3997 = vadd.xlane.f32.xlu0 %v3996
  %v3998 = vpop.xlane.xlu0 %3997
  %v3999 = vsel %vm785, %v3265, 0.0
  %4000 = vadd.xlane.f32.xlu0 %v3999
  %v4001 = vpop.xlane.xlu0 %4000
  %v4002 = vsel %vm785, %v3266, 0.0
  %4003 = vadd.xlane.f32.xlu0 %v4002
  %v4004 = vpop.xlane.xlu0 %4003
  %v4005 = vsel %vm785, %v3267, 0.0
  %4006 = vadd.xlane.f32.xlu0 %v4005
  %v4007 = vpop.xlane.xlu0 %4006
  %v4008 = vsel %vm785, %v3268, 0.0
  %4009 = vadd.xlane.f32.xlu0 %v4008
  %v4010 = vpop.xlane.xlu0 %4009
  %v4011 = vsel %vm785, %v3269, 0.0
  %4012 = vadd.xlane.f32.xlu0 %v4011
  %v4013 = vpop.xlane.xlu0 %4012
  %v4014 = vsel %vm785, %v3270, 0.0
  %4015 = vadd.xlane.f32.xlu0 %v4014
  %v4016 = vpop.xlane.xlu0 %4015
  %v4017 = vsel %vm785, %v3271, 0.0
  %4018 = vadd.xlane.f32.xlu0 %v4017
  %v4019 = vpop.xlane.xlu0 %4018
  %v4020 = vsel %vm785, %v3272, 0.0
  %4021 = vadd.xlane.f32.xlu0 %v4020
  %v4022 = vpop.xlane.xlu0 %4021
  %v4023 = vsel %vm785, %v3273, 0.0
  %4024 = vadd.xlane.f32.xlu0 %v4023
  %v4025 = vpop.xlane.xlu0 %4024
  %v4026 = vsel %vm785, %v3274, 0.0
  %4027 = vadd.xlane.f32.xlu0 %v4026
  %v4028 = vpop.xlane.xlu0 %4027
  %v4029 = vsel %vm785, %v3275, 0.0
  %4030 = vadd.xlane.f32.xlu0 %v4029
  %v4031 = vpop.xlane.xlu0 %4030
  %v4032 = vsel %vm785, %v3276, 0.0
  %4033 = vadd.xlane.f32.xlu0 %v4032
  %v4034 = vpop.xlane.xlu0 %4033
  %v4035 = vsel %vm785, %v3277, 0.0
  %4036 = vadd.xlane.f32.xlu0 %v4035
  %v4037 = vpop.xlane.xlu0 %4036
  %v4038 = vsel %vm785, %v3278, 0.0
  %4039 = vadd.xlane.f32.xlu0 %v4038
  %v4040 = vpop.xlane.xlu0 %4039
  %v4041 = vsel %vm785, %v3279, 0.0
  %4042 = vadd.xlane.f32.xlu0 %v4041
  %v4043 = vpop.xlane.xlu0 %4042
  %v4044 = vsel %vm785, %v3280, 0.0
  %4045 = vadd.xlane.f32.xlu0 %v4044
  %v4046 = vpop.xlane.xlu0 %4045
  %v4047 = vsel %vm785, %v3281, 0.0
  %4048 = vadd.xlane.f32.xlu0 %v4047
  %v4049 = vpop.xlane.xlu0 %4048
  %v4050 = vsel %vm785, %v3282, 0.0
  %4051 = vadd.xlane.f32.xlu0 %v4050
  %v4052 = vpop.xlane.xlu0 %4051
  %v4053 = vsel %vm785, %v3283, 0.0
  %4054 = vadd.xlane.f32.xlu0 %v4053
  %v4055 = vpop.xlane.xlu0 %4054
  %v4056 = vsel %vm785, %v3284, 0.0
  %4057 = vadd.xlane.f32.xlu0 %v4056
  %v4058 = vpop.xlane.xlu0 %4057
  %v4059 = vsel %vm785, %v3285, 0.0
  %4060 = vadd.xlane.f32.xlu0 %v4059
  %v4061 = vpop.xlane.xlu0 %4060
  %v4062 = vsel %vm785, %v3286, 0.0
  %4063 = vadd.xlane.f32.xlu0 %v4062
  %v4064 = vpop.xlane.xlu0 %4063
  %v4065 = vsel %vm785, %v3287, 0.0
  %4066 = vadd.xlane.f32.xlu0 %v4065
  %v4067 = vpop.xlane.xlu0 %4066
  %v4068 = vsel %vm785, %v3288, 0.0
  %4069 = vadd.xlane.f32.xlu0 %v4068
  %v4070 = vpop.xlane.xlu0 %4069
  %v4071 = vsel %vm785, %v3289, 0.0
  %4072 = vadd.xlane.f32.xlu0 %v4071
  %v4073 = vpop.xlane.xlu0 %4072
  %v4074 = vsel %vm785, %v3290, 0.0
  %4075 = vadd.xlane.f32.xlu0 %v4074
  %v4076 = vpop.xlane.xlu0 %4075
  %v4077 = vsel %vm785, %v3291, 0.0
  %4078 = vadd.xlane.f32.xlu0 %v4077
  %v4079 = vpop.xlane.xlu0 %4078
  %v4080 = vsel %vm785, %v3292, 0.0
  %4081 = vadd.xlane.f32.xlu0 %v4080
  %v4082 = vpop.xlane.xlu0 %4081
  %v4083 = vsel %vm785, %v3293, 0.0
  %4084 = vadd.xlane.f32.xlu0 %v4083
  %v4085 = vpop.xlane.xlu0 %4084
  %v4086 = vsel %vm785, %v3294, 0.0
  %4087 = vadd.xlane.f32.xlu0 %v4086
  %v4088 = vpop.xlane.xlu0 %4087
  %v4089 = vsel %vm785, %v3295, 0.0
  %4090 = vadd.xlane.f32.xlu0 %v4089
  %v4091 = vpop.xlane.xlu0 %4090
  %v4092 = vsel %vm785, %v3296, 0.0
  %4093 = vadd.xlane.f32.xlu0 %v4092
  %v4094 = vpop.xlane.xlu0 %4093
  %v4095 = vsel %vm785, %v3297, 0.0
  %4096 = vadd.xlane.f32.xlu0 %v4095
  %v4097 = vpop.xlane.xlu0 %4096
  %v4098 = vsel %vm785, %v3298, 0.0
  %4099 = vadd.xlane.f32.xlu0 %v4098
  %v4100 = vpop.xlane.xlu0 %4099
  %v4101 = vsel %vm785, %v3299, 0.0
  %4102 = vadd.xlane.f32.xlu0 %v4101
  %v4103 = vpop.xlane.xlu0 %4102
  %v4104 = vsel %vm785, %v3300, 0.0
  %4105 = vadd.xlane.f32.xlu0 %v4104
  %v4106 = vpop.xlane.xlu0 %4105
  %v4107 = vsel %vm785, %v3301, 0.0
  %4108 = vadd.xlane.f32.xlu0 %v4107
  %v4109 = vpop.xlane.xlu0 %4108
  %v4110 = vsel %vm785, %v3302, 0.0
  %4111 = vadd.xlane.f32.xlu0 %v4110
  %v4112 = vpop.xlane.xlu0 %4111
  %v4113 = vsel %vm785, %v3303, 0.0
  %4114 = vadd.xlane.f32.xlu0 %v4113
  %v4115 = vpop.xlane.xlu0 %4114
  %v4116 = vsel %vm785, %v3304, 0.0
  %4117 = vadd.xlane.f32.xlu0 %v4116
  %v4118 = vpop.xlane.xlu0 %4117
  %v4119 = vsel %vm785, %v3305, 0.0
  %4120 = vadd.xlane.f32.xlu0 %v4119
  %v4121 = vpop.xlane.xlu0 %4120
  %v4122 = vsel %vm785, %v3306, 0.0
  %4123 = vadd.xlane.f32.xlu0 %v4122
  %v4124 = vpop.xlane.xlu0 %4123
  %v4125 = vsel %vm785, %v3307, 0.0
  %4126 = vadd.xlane.f32.xlu0 %v4125
  %v4127 = vpop.xlane.xlu0 %4126
  %v4128 = vsel %vm785, %v3308, 0.0
  %4129 = vadd.xlane.f32.xlu0 %v4128
  %v4130 = vpop.xlane.xlu0 %4129
  %v4131 = vsel %vm785, %v3309, 0.0
  %4132 = vadd.xlane.f32.xlu0 %v4131
  %v4133 = vpop.xlane.xlu0 %4132
  %v4134 = vsel %vm785, %v3310, 0.0
  %4135 = vadd.xlane.f32.xlu0 %v4134
  %v4136 = vpop.xlane.xlu0 %4135
  %v4137 = vsel %vm785, %v3311, 0.0
  %4138 = vadd.xlane.f32.xlu0 %v4137
  %v4139 = vpop.xlane.xlu0 %4138
  %v4140 = vsel %vm785, %v3312, 0.0
  %4141 = vadd.xlane.f32.xlu0 %v4140
  %v4142 = vpop.xlane.xlu0 %4141
  %v4143 = vsel %vm785, %v3313, 0.0
  %4144 = vadd.xlane.f32.xlu0 %v4143
  %v4145 = vpop.xlane.xlu0 %4144
  %v4146 = vsel %vm785, %v3314, 0.0
  %4147 = vadd.xlane.f32.xlu0 %v4146
  %v4148 = vpop.xlane.xlu0 %4147
  %v4149 = vsel %vm785, %v3315, 0.0
  %4150 = vadd.xlane.f32.xlu0 %v4149
  %v4151 = vpop.xlane.xlu0 %4150
  %v4152 = vsel %vm785, %v3316, 0.0
  %4153 = vadd.xlane.f32.xlu0 %v4152
  %v4154 = vpop.xlane.xlu0 %4153
  %v4155 = vsel %vm785, %v3317, 0.0
  %4156 = vadd.xlane.f32.xlu0 %v4155
  %v4157 = vpop.xlane.xlu0 %4156
  %v4158 = vsel %vm785, %v3318, 0.0
  %4159 = vadd.xlane.f32.xlu0 %v4158
  %v4160 = vpop.xlane.xlu0 %4159
  %v4161 = vsel %vm785, %v3319, 0.0
  %4162 = vadd.xlane.f32.xlu0 %v4161
  %v4163 = vpop.xlane.xlu0 %4162
  %v4164 = vsel %vm785, %v3320, 0.0
  %4165 = vadd.xlane.f32.xlu0 %v4164
  %v4166 = vpop.xlane.xlu0 %4165
  %v4167 = vsel %vm785, %v3321, 0.0
  %4168 = vadd.xlane.f32.xlu0 %v4167
  %v4169 = vpop.xlane.xlu0 %4168
  %v4170 = vsel %vm785, %v3322, 0.0
  %4171 = vadd.xlane.f32.xlu0 %v4170
  %v4172 = vpop.xlane.xlu0 %4171
  %v4173 = vsel %vm785, %v3323, 0.0
  %4174 = vadd.xlane.f32.xlu0 %v4173
  %v4175 = vpop.xlane.xlu0 %4174
  %v4176 = vsel %vm785, %v3324, 0.0
  %4177 = vadd.xlane.f32.xlu0 %v4176
  %v4178 = vpop.xlane.xlu0 %4177
  %v4179 = vsel %vm785, %v3325, 0.0
  %4180 = vadd.xlane.f32.xlu0 %v4179
  %v4181 = vpop.xlane.xlu0 %4180
  %v4182 = vsel %vm785, %v3326, 0.0
  %4183 = vadd.xlane.f32.xlu0 %v4182
  %v4184 = vpop.xlane.xlu0 %4183
  %v4185 = vsel %vm785, %v3327, 0.0
  %4186 = vadd.xlane.f32.xlu0 %v4185
  %v4187 = vpop.xlane.xlu0 %4186
  %v4188 = vsel %vm785, %v3328, 0.0
  %4189 = vadd.xlane.f32.xlu0 %v4188
  %v4190 = vpop.xlane.xlu0 %4189
  %v4191 = vsel %vm785, %v3329, 0.0
  %4192 = vadd.xlane.f32.xlu0 %v4191
  %v4193 = vpop.xlane.xlu0 %4192
  %v4194 = vsel %vm785, %v3330, 0.0
  %4195 = vadd.xlane.f32.xlu0 %v4194
  %v4196 = vpop.xlane.xlu0 %4195
  %v4197 = vsel %vm785, %v3331, 0.0
  %4198 = vadd.xlane.f32.xlu0 %v4197
  %v4199 = vpop.xlane.xlu0 %4198
  %v4200 = vsel %vm785, %v3332, 0.0
  %4201 = vadd.xlane.f32.xlu0 %v4200
  %v4202 = vpop.xlane.xlu0 %4201
  %v4203 = vsel %vm785, %v3333, 0.0
  %4204 = vadd.xlane.f32.xlu0 %v4203
  %v4205 = vpop.xlane.xlu0 %4204
  %v4206 = vsel %vm785, %v3334, 0.0
  %4207 = vadd.xlane.f32.xlu0 %v4206
  %v4208 = vpop.xlane.xlu0 %4207
  %v4209 = vsel %vm785, %v3335, 0.0
  %4210 = vadd.xlane.f32.xlu0 %v4209
  %v4211 = vpop.xlane.xlu0 %4210
  %v4212 = vsel %vm785, %v3336, 0.0
  %4213 = vadd.xlane.f32.xlu0 %v4212
  %v4214 = vpop.xlane.xlu0 %4213
  %v4215 = vsel %vm785, %v3337, 0.0
  %4216 = vadd.xlane.f32.xlu0 %v4215
  %v4217 = vpop.xlane.xlu0 %4216
  %v4218 = vsel %vm785, %v3338, 0.0
  %4219 = vadd.xlane.f32.xlu0 %v4218
  %v4220 = vpop.xlane.xlu0 %4219
  %v4221 = vsel %vm785, %v3339, 0.0
  %4222 = vadd.xlane.f32.xlu0 %v4221
  %v4223 = vpop.xlane.xlu0 %4222
  %v4224 = vsel %vm785, %v3340, 0.0
  %4225 = vadd.xlane.f32.xlu0 %v4224
  %v4226 = vpop.xlane.xlu0 %4225
  %v4227 = vsel %vm785, %v3341, 0.0
  %4228 = vadd.xlane.f32.xlu0 %v4227
  %v4229 = vpop.xlane.xlu0 %4228
  %v4230 = vsel %vm785, %v3342, 0.0
  %4231 = vadd.xlane.f32.xlu0 %v4230
  %v4232 = vpop.xlane.xlu0 %4231
  %v4233 = vsel %vm785, %v3343, 0.0
  %4234 = vadd.xlane.f32.xlu0 %v4233
  %v4235 = vpop.xlane.xlu0 %4234
  %v4236 = vsel %vm785, %v3344, 0.0
  %4237 = vadd.xlane.f32.xlu0 %v4236
  %v4238 = vpop.xlane.xlu0 %4237
  %v4239 = vsel %vm785, %v3345, 0.0
  %4240 = vadd.xlane.f32.xlu0 %v4239
  %v4241 = vpop.xlane.xlu0 %4240
  %v4242 = vsel %vm785, %v3346, 0.0
  %4243 = vadd.xlane.f32.xlu0 %v4242
  %v4244 = vpop.xlane.xlu0 %4243
  %v4245 = vsel %vm785, %v3347, 0.0
  %4246 = vadd.xlane.f32.xlu0 %v4245
  %v4247 = vpop.xlane.xlu0 %4246
  %v4248 = vsel %vm785, %v3348, 0.0
  %4249 = vadd.xlane.f32.xlu0 %v4248
  %v4250 = vpop.xlane.xlu0 %4249
  %v4251 = vsel %vm785, %v3349, 0.0
  %4252 = vadd.xlane.f32.xlu0 %v4251
  %v4253 = vpop.xlane.xlu0 %4252
  %v4254 = vsel %vm785, %v3350, 0.0
  %4255 = vadd.xlane.f32.xlu0 %v4254
  %v4256 = vpop.xlane.xlu0 %4255
  %v4257 = vsel %vm785, %v3351, 0.0
  %4258 = vadd.xlane.f32.xlu0 %v4257
  %v4259 = vpop.xlane.xlu0 %4258
  %v4260 = vsel %vm785, %v3352, 0.0
  %4261 = vadd.xlane.f32.xlu0 %v4260
  %v4262 = vpop.xlane.xlu0 %4261
  %v4263 = vsel %vm785, %v3353, 0.0
  %4264 = vadd.xlane.f32.xlu0 %v4263
  %v4265 = vpop.xlane.xlu0 %4264
  %v4266 = vsel %vm785, %v3354, 0.0
  %4267 = vadd.xlane.f32.xlu0 %v4266
  %v4268 = vpop.xlane.xlu0 %4267
  %v4269 = vsel %vm785, %v3355, 0.0
  %4270 = vadd.xlane.f32.xlu0 %v4269
  %v4271 = vpop.xlane.xlu0 %4270
  %v4272 = vsel %vm785, %v3356, 0.0
  %4273 = vadd.xlane.f32.xlu0 %v4272
  %v4274 = vpop.xlane.xlu0 %4273
  %v4275 = vsel %vm785, %v3357, 0.0
  %4276 = vadd.xlane.f32.xlu0 %v4275
  %v4277 = vpop.xlane.xlu0 %4276
  %v4278 = vsel %vm785, %v3358, 0.0
  %4279 = vadd.xlane.f32.xlu0 %v4278
  %v4280 = vpop.xlane.xlu0 %4279
  %v4281 = vsel %vm785, %v3359, 0.0
  %4282 = vadd.xlane.f32.xlu0 %v4281
  %v4283 = vpop.xlane.xlu0 %4282
  %v4284 = vsel %vm785, %v3360, 0.0
  %4285 = vadd.xlane.f32.xlu0 %v4284
  %v4286 = vpop.xlane.xlu0 %4285
  %v4287 = vsel %vm785, %v3361, 0.0
  %4288 = vadd.xlane.f32.xlu0 %v4287
  %v4289 = vpop.xlane.xlu0 %4288
  %v4290 = vsel %vm785, %v3362, 0.0
  %4291 = vadd.xlane.f32.xlu0 %v4290
  %v4292 = vpop.xlane.xlu0 %4291
  %v4293 = vsel %vm785, %v3363, 0.0
  %4294 = vadd.xlane.f32.xlu0 %v4293
  %v4295 = vpop.xlane.xlu0 %4294
  %v4296 = vsel %vm785, %v3364, 0.0
  %4297 = vadd.xlane.f32.xlu0 %v4296
  %v4298 = vpop.xlane.xlu0 %4297
  %v4299 = vsel %vm785, %v3365, 0.0
  %4300 = vadd.xlane.f32.xlu0 %v4299
  %v4301 = vpop.xlane.xlu0 %4300
  %v4302 = vsel %vm785, %v3366, 0.0
  %4303 = vadd.xlane.f32.xlu0 %v4302
  %v4304 = vpop.xlane.xlu0 %4303
  %v4305 = vsel %vm785, %v3367, 0.0
  %4306 = vadd.xlane.f32.xlu0 %v4305
  %v4307 = vpop.xlane.xlu0 %4306
  %v4308 = vsel %vm785, %v3368, 0.0
  %4309 = vadd.xlane.f32.xlu0 %v4308
  %v4310 = vpop.xlane.xlu0 %4309
  %v4311 = vsel %vm785, %v3369, 0.0
  %4312 = vadd.xlane.f32.xlu0 %v4311
  %v4313 = vpop.xlane.xlu0 %4312
  %v4314 = vsel %vm785, %v3370, 0.0
  %4315 = vadd.xlane.f32.xlu0 %v4314
  %v4316 = vpop.xlane.xlu0 %4315
  %v4317 = vsel %vm785, %v3371, 0.0
  %4318 = vadd.xlane.f32.xlu0 %v4317
  %v4319 = vpop.xlane.xlu0 %4318
  %v4320 = vsel %vm785, %v3372, 0.0
  %4321 = vadd.xlane.f32.xlu0 %v4320
  %v4322 = vpop.xlane.xlu0 %4321
  %v4323 = vsel %vm785, %v3373, 0.0
  %4324 = vadd.xlane.f32.xlu0 %v4323
  %v4325 = vpop.xlane.xlu0 %4324
  %v4326 = vsel %vm785, %v3374, 0.0
  %4327 = vadd.xlane.f32.xlu0 %v4326
  %v4328 = vpop.xlane.xlu0 %4327
  %v4329 = vsel %vm785, %v3375, 0.0
  %4330 = vadd.xlane.f32.xlu0 %v4329
  %v4331 = vpop.xlane.xlu0 %4330
  %v4332 = vsel %vm785, %v3376, 0.0
  %4333 = vadd.xlane.f32.xlu0 %v4332
  %v4334 = vpop.xlane.xlu0 %4333
  %v4335 = vsel %vm785, %v3377, 0.0
  %4336 = vadd.xlane.f32.xlu0 %v4335
  %v4337 = vpop.xlane.xlu0 %4336
  %v4338 = vsel %vm785, %v3378, 0.0
  %4339 = vadd.xlane.f32.xlu0 %v4338
  %v4340 = vpop.xlane.xlu0 %4339
  %v4341 = vsel %vm785, %v3379, 0.0
  %4342 = vadd.xlane.f32.xlu0 %v4341
  %v4343 = vpop.xlane.xlu0 %4342
  %v4344 = vsel %vm785, %v3380, 0.0
  %4345 = vadd.xlane.f32.xlu0 %v4344
  %v4346 = vpop.xlane.xlu0 %4345
  %v4347 = vsel %vm785, %v3381, 0.0
  %4348 = vadd.xlane.f32.xlu0 %v4347
  %v4349 = vpop.xlane.xlu0 %4348
  %v4350 = vsel %vm785, %v3382, 0.0
  %4351 = vadd.xlane.f32.xlu0 %v4350
  %v4352 = vpop.xlane.xlu0 %4351
  %v4353 = vsel %vm785, %v3383, 0.0
  %4354 = vadd.xlane.f32.xlu0 %v4353
  %v4355 = vpop.xlane.xlu0 %4354
  %v4356 = vsel %vm785, %v3384, 0.0
  %4357 = vadd.xlane.f32.xlu0 %v4356
  %v4358 = vpop.xlane.xlu0 %4357
  %v4359 = vsel %vm785, %v3385, 0.0
  %4360 = vadd.xlane.f32.xlu0 %v4359
  %v4361 = vpop.xlane.xlu0 %4360
  %v4362 = vsel %vm785, %v3386, 0.0
  %4363 = vadd.xlane.f32.xlu0 %v4362
  %v4364 = vpop.xlane.xlu0 %4363
  %v4365 = vsel %vm785, %v3387, 0.0
  %4366 = vadd.xlane.f32.xlu0 %v4365
  %v4367 = vpop.xlane.xlu0 %4366
  %v4368 = vsel %vm785, %v3388, 0.0
  %4369 = vadd.xlane.f32.xlu0 %v4368
  %v4370 = vpop.xlane.xlu0 %4369
  %v4371 = vsel %vm785, %v3389, 0.0
  %4372 = vadd.xlane.f32.xlu0 %v4371
  %v4373 = vpop.xlane.xlu0 %4372
  %v4374 = vsel %vm785, %v3390, 0.0
  %4375 = vadd.xlane.f32.xlu0 %v4374
  %v4376 = vpop.xlane.xlu0 %4375
  %v4377 = vsel %vm785, %v3391, 0.0
  %4378 = vadd.xlane.f32.xlu0 %v4377
  %v4379 = vpop.xlane.xlu0 %4378
  %v4380 = vsel %vm785, %v3392, 0.0
  %4381 = vadd.xlane.f32.xlu0 %v4380
  %v4382 = vpop.xlane.xlu0 %4381
  %v4383 = vsel %vm785, %v3393, 0.0
  %4384 = vadd.xlane.f32.xlu0 %v4383
  %v4385 = vpop.xlane.xlu0 %4384
  %v4386 = vsel %vm785, %v3394, 0.0
  %4387 = vadd.xlane.f32.xlu0 %v4386
  %v4388 = vpop.xlane.xlu0 %4387
  %v4389 = vsel %vm785, %v3395, 0.0
  %4390 = vadd.xlane.f32.xlu0 %v4389
  %v4391 = vpop.xlane.xlu0 %4390
  %v4392 = vsel %vm785, %v3396, 0.0
  %4393 = vadd.xlane.f32.xlu0 %v4392
  %v4394 = vpop.xlane.xlu0 %4393
  %v4395 = vsel %vm785, %v3397, 0.0
  %4396 = vadd.xlane.f32.xlu0 %v4395
  %v4397 = vpop.xlane.xlu0 %4396
  %v4398 = vsel %vm785, %v3398, 0.0
  %4399 = vadd.xlane.f32.xlu0 %v4398
  %v4400 = vpop.xlane.xlu0 %4399
  %v4401 = vsel %vm785, %v3399, 0.0
  %4402 = vadd.xlane.f32.xlu0 %v4401
  %v4403 = vpop.xlane.xlu0 %4402
  %v4404 = vsel %vm785, %v3400, 0.0
  %4405 = vadd.xlane.f32.xlu0 %v4404
  %v4406 = vpop.xlane.xlu0 %4405
  %v4407 = vsel %vm785, %v3401, 0.0
  %4408 = vadd.xlane.f32.xlu0 %v4407
  %v4409 = vpop.xlane.xlu0 %4408
  %v4410 = vsel %vm785, %v3402, 0.0
  %4411 = vadd.xlane.f32.xlu0 %v4410
  %v4412 = vpop.xlane.xlu0 %4411
  %v4413 = vsel %vm785, %v3403, 0.0
  %4414 = vadd.xlane.f32.xlu0 %v4413
  %v4415 = vpop.xlane.xlu0 %4414
  %v4416 = vsel %vm785, %v3404, 0.0
  %4417 = vadd.xlane.f32.xlu0 %v4416
  %v4418 = vpop.xlane.xlu0 %4417
  %v4419 = vsel %vm785, %v3405, 0.0
  %4420 = vadd.xlane.f32.xlu0 %v4419
  %v4421 = vpop.xlane.xlu0 %4420
  %v4422 = vsel %vm785, %v3406, 0.0
  %4423 = vadd.xlane.f32.xlu0 %v4422
  %v4424 = vpop.xlane.xlu0 %4423
  %v4425 = vsel %vm785, %v3407, 0.0
  %4426 = vadd.xlane.f32.xlu0 %v4425
  %v4427 = vpop.xlane.xlu0 %4426
  %v4428 = vsel %vm785, %v3408, 0.0
  %4429 = vadd.xlane.f32.xlu0 %v4428
  %v4430 = vpop.xlane.xlu0 %4429
  %v4431 = vsel %vm785, %v3409, 0.0
  %4432 = vadd.xlane.f32.xlu0 %v4431
  %v4433 = vpop.xlane.xlu0 %4432
  %v4434 = vsel %vm785, %v3410, 0.0
  %4435 = vadd.xlane.f32.xlu0 %v4434
  %v4436 = vpop.xlane.xlu0 %4435
  %v4437 = vsel %vm785, %v3411, 0.0
  %4438 = vadd.xlane.f32.xlu0 %v4437
  %v4439 = vpop.xlane.xlu0 %4438
  %v4440 = vsel %vm785, %v3412, 0.0
  %4441 = vadd.xlane.f32.xlu0 %v4440
  %v4442 = vpop.xlane.xlu0 %4441
  %v4443 = vsel %vm785, %v3413, 0.0
  %4444 = vadd.xlane.f32.xlu0 %v4443
  %v4445 = vpop.xlane.xlu0 %4444
  %v4446 = vsel %vm785, %v3414, 0.0
  %4447 = vadd.xlane.f32.xlu0 %v4446
  %v4448 = vpop.xlane.xlu0 %4447
  %v4449 = vsel %vm785, %v3415, 0.0
  %4450 = vadd.xlane.f32.xlu0 %v4449
  %v4451 = vpop.xlane.xlu0 %4450
  %v4452 = vsel %vm785, %v3416, 0.0
  %4453 = vadd.xlane.f32.xlu0 %v4452
  %v4454 = vpop.xlane.xlu0 %4453
  %v4455 = vsel %vm785, %v3417, 0.0
  %4456 = vadd.xlane.f32.xlu0 %v4455
  %v4457 = vpop.xlane.xlu0 %4456
  %v4458 = vsel %vm785, %v3418, 0.0
  %4459 = vadd.xlane.f32.xlu0 %v4458
  %v4460 = vpop.xlane.xlu0 %4459
  %v4461 = vsel %vm785, %v3419, 0.0
  %4462 = vadd.xlane.f32.xlu0 %v4461
  %v4463 = vpop.xlane.xlu0 %4462
  %v4464 = vsel %vm785, %v3420, 0.0
  %4465 = vadd.xlane.f32.xlu0 %v4464
  %v4466 = vpop.xlane.xlu0 %4465
  %v4467 = vsel %vm785, %v3421, 0.0
  %4468 = vadd.xlane.f32.xlu0 %v4467
  %v4469 = vpop.xlane.xlu0 %4468
  %v4470 = vsel %vm785, %v3422, 0.0
  %4471 = vadd.xlane.f32.xlu0 %v4470
  %v4472 = vpop.xlane.xlu0 %4471
  %v4473 = vsel %vm785, %v3423, 0.0
  %4474 = vadd.xlane.f32.xlu0 %v4473
  %v4475 = vpop.xlane.xlu0 %4474
  %v4476 = vsel %vm785, %v3424, 0.0
  %4477 = vadd.xlane.f32.xlu0 %v4476
  %v4478 = vpop.xlane.xlu0 %4477
  %v4479 = vsel %vm785, %v3425, 0.0
  %4480 = vadd.xlane.f32.xlu0 %v4479
  %v4481 = vpop.xlane.xlu0 %4480
  %v4482 = vsel %vm785, %v3426, 0.0
  %4483 = vadd.xlane.f32.xlu0 %v4482
  %v4484 = vpop.xlane.xlu0 %4483
  %v4485 = vsel %vm785, %v3427, 0.0
  %4486 = vadd.xlane.f32.xlu0 %v4485
  %v4487 = vpop.xlane.xlu0 %4486
  %v4488 = vsel %vm785, %v3428, 0.0
  %4489 = vadd.xlane.f32.xlu0 %v4488
  %v4490 = vpop.xlane.xlu0 %4489
  %v4491 = vsel %vm785, %v3429, 0.0
  %4492 = vadd.xlane.f32.xlu0 %v4491
  %v4493 = vpop.xlane.xlu0 %4492
  %v4494 = vsel %vm785, %v3430, 0.0
  %4495 = vadd.xlane.f32.xlu0 %v4494
  %v4496 = vpop.xlane.xlu0 %4495
  %v4497 = vsel %vm785, %v3431, 0.0
  %4498 = vadd.xlane.f32.xlu0 %v4497
  %v4499 = vpop.xlane.xlu0 %4498
  %v4500 = vsel %vm785, %v3432, 0.0
  %4501 = vadd.xlane.f32.xlu0 %v4500
  %v4502 = vpop.xlane.xlu0 %4501
  %v4503 = vsel %vm785, %v3433, 0.0
  %4504 = vadd.xlane.f32.xlu0 %v4503
  %v4505 = vpop.xlane.xlu0 %4504
  %v4506 = vsel %vm785, %v3434, 0.0
  %4507 = vadd.xlane.f32.xlu0 %v4506
  %v4508 = vpop.xlane.xlu0 %4507
  %v4509 = vsel %vm785, %v3435, 0.0
  %4510 = vadd.xlane.f32.xlu0 %v4509
  %v4511 = vpop.xlane.xlu0 %4510
  %v4512 = vsel %vm785, %v3436, 0.0
  %4513 = vadd.xlane.f32.xlu0 %v4512
  %v4514 = vpop.xlane.xlu0 %4513
  %v4515 = vsel %vm785, %v3437, 0.0
  %4516 = vadd.xlane.f32.xlu0 %v4515
  %v4517 = vpop.xlane.xlu0 %4516
  %v4518 = vsel %vm785, %v3438, 0.0
  %4519 = vadd.xlane.f32.xlu0 %v4518
  %v4520 = vpop.xlane.xlu0 %4519
  %v4521 = vsel %vm785, %v3439, 0.0
  %4522 = vadd.xlane.f32.xlu0 %v4521
  %v4523 = vpop.xlane.xlu0 %4522
  %v4524 = vsel %vm785, %v3440, 0.0
  %4525 = vadd.xlane.f32.xlu0 %v4524
  %v4526 = vpop.xlane.xlu0 %4525
  %v4527 = vsel %vm785, %v3441, 0.0
  %4528 = vadd.xlane.f32.xlu0 %v4527
  %v4529 = vpop.xlane.xlu0 %4528
  %v4530 = vsel %vm785, %v3442, 0.0
  %4531 = vadd.xlane.f32.xlu0 %v4530
  %v4532 = vpop.xlane.xlu0 %4531
  %v4533 = vsel %vm785, %v3443, 0.0
  %4534 = vadd.xlane.f32.xlu0 %v4533
  %v4535 = vpop.xlane.xlu0 %4534
  %v4536 = vsel %vm785, %v3444, 0.0
  %4537 = vadd.xlane.f32.xlu0 %v4536
  %v4538 = vpop.xlane.xlu0 %4537
  %v4539 = vsel %vm785, %v3445, 0.0
  %4540 = vadd.xlane.f32.xlu0 %v4539
  %v4541 = vpop.xlane.xlu0 %4540
  %v4542 = vsel %vm785, %v3446, 0.0
  %4543 = vadd.xlane.f32.xlu0 %v4542
  %v4544 = vpop.xlane.xlu0 %4543
  %v4545 = vsel %vm785, %v3447, 0.0
  %4546 = vadd.xlane.f32.xlu0 %v4545
  %v4547 = vpop.xlane.xlu0 %4546
  %v4548 = vsel %vm785, %v3448, 0.0
  %4549 = vadd.xlane.f32.xlu0 %v4548
  %v4550 = vpop.xlane.xlu0 %4549
  %v4551 = vsel %vm785, %v3449, 0.0
  %4552 = vadd.xlane.f32.xlu0 %v4551
  %v4553 = vpop.xlane.xlu0 %4552
  %v4554 = vsel %vm785, %v3450, 0.0
  %4555 = vadd.xlane.f32.xlu0 %v4554
  %v4556 = vpop.xlane.xlu0 %4555
  %v4557 = vsel %vm785, %v3451, 0.0
  %4558 = vadd.xlane.f32.xlu0 %v4557
  %v4559 = vpop.xlane.xlu0 %4558
  %v4560 = vsel %vm785, %v3452, 0.0
  %4561 = vadd.xlane.f32.xlu0 %v4560
  %v4562 = vpop.xlane.xlu0 %4561
  %v4563 = vsel %vm785, %v3453, 0.0
  %4564 = vadd.xlane.f32.xlu0 %v4563
  %v4565 = vpop.xlane.xlu0 %4564
  %v4566 = vsel %vm785, %v3454, 0.0
  %4567 = vadd.xlane.f32.xlu0 %v4566
  %v4568 = vpop.xlane.xlu0 %4567
  %v4569 = vsel %vm785, %v3455, 0.0
  %4570 = vadd.xlane.f32.xlu0 %v4569
  %v4571 = vpop.xlane.xlu0 %4570
  %v4572 = vsel %vm785, %v3456, 0.0
  %4573 = vadd.xlane.f32.xlu0 %v4572
  %v4574 = vpop.xlane.xlu0 %4573
  %v4575 = vsel %vm785, %v3457, 0.0
  %4576 = vadd.xlane.f32.xlu0 %v4575
  %v4577 = vpop.xlane.xlu0 %4576
  %v4578 = vsel %vm785, %v3458, 0.0
  %4579 = vadd.xlane.f32.xlu0 %v4578
  %v4580 = vpop.xlane.xlu0 %4579
  %v4581 = vsel %vm785, %v3459, 0.0
  %4582 = vadd.xlane.f32.xlu0 %v4581
  %v4583 = vpop.xlane.xlu0 %4582
  %v4584 = vsel %vm785, %v3460, 0.0
  %4585 = vadd.xlane.f32.xlu0 %v4584
  %v4586 = vpop.xlane.xlu0 %4585
  %v4587 = vsel %vm785, %v3461, 0.0
  %4588 = vadd.xlane.f32.xlu0 %v4587
  %v4589 = vpop.xlane.xlu0 %4588
  %v4590 = vsel %vm785, %v3462, 0.0
  %4591 = vadd.xlane.f32.xlu0 %v4590
  %v4592 = vpop.xlane.xlu0 %4591
  %v4593 = vsel %vm785, %v3463, 0.0
  %4594 = vadd.xlane.f32.xlu0 %v4593
  %v4595 = vpop.xlane.xlu0 %4594
  %v4596 = vsel %vm785, %v3464, 0.0
  %4597 = vadd.xlane.f32.xlu0 %v4596
  %v4598 = vpop.xlane.xlu0 %4597
  %v4599 = vsel %vm785, %v3465, 0.0
  %4600 = vadd.xlane.f32.xlu0 %v4599
  %v4601 = vpop.xlane.xlu0 %4600
  %v4602 = vsel %vm785, %v3466, 0.0
  %4603 = vadd.xlane.f32.xlu0 %v4602
  %v4604 = vpop.xlane.xlu0 %4603
  %v4605 = vsel %vm785, %v3467, 0.0
  %4606 = vadd.xlane.f32.xlu0 %v4605
  %v4607 = vpop.xlane.xlu0 %4606
  %v4608 = vsel %vm785, %v3468, 0.0
  %4609 = vadd.xlane.f32.xlu0 %v4608
  %v4610 = vpop.xlane.xlu0 %4609
  %v4611 = vsel %vm785, %v3469, 0.0
  %4612 = vadd.xlane.f32.xlu0 %v4611
  %v4613 = vpop.xlane.xlu0 %4612
  %v4614 = vsel %vm785, %v3470, 0.0
  %4615 = vadd.xlane.f32.xlu0 %v4614
  %v4616 = vpop.xlane.xlu0 %4615
  %v4617 = vsel %vm785, %v3471, 0.0
  %4618 = vadd.xlane.f32.xlu0 %v4617
  %v4619 = vpop.xlane.xlu0 %4618
  %v4620 = vsel %vm785, %v3472, 0.0
  %4621 = vadd.xlane.f32.xlu0 %v4620
  %v4622 = vpop.xlane.xlu0 %4621
  %v4623 = vsel %vm785, %v3473, 0.0
  %4624 = vadd.xlane.f32.xlu0 %v4623
  %v4625 = vpop.xlane.xlu0 %4624
  %v4626 = vmul.f32 %v3476, 0.020408163
  %v4627 = vmul.f32 %v3479, 0.020408163
  %v4628 = vmul.f32 %v3482, 0.020408163
  %v4629 = vmul.f32 %v3485, 0.020408163
  %v4630 = vmul.f32 %v3488, 0.020408163
  %v4631 = vmul.f32 %v3491, 0.020408163
  %v4632 = vmul.f32 %v3494, 0.020408163
  %v4633 = vmul.f32 %v3497, 0.020408163
  %v4634 = vmul.f32 %v3500, 0.020408163
  %v4635 = vmul.f32 %v3503, 0.020408163
  %v4636 = vmul.f32 %v3506, 0.020408163
  %v4637 = vmul.f32 %v3509, 0.020408163
  %v4638 = vmul.f32 %v3512, 0.020408163
  %v4639 = vmul.f32 %v3515, 0.020408163
  %v4640 = vmul.f32 %v3518, 0.020408163
  %v4641 = vmul.f32 %v3521, 0.020408163
  %v4642 = vmul.f32 %v3524, 0.020408163
  %v4643 = vmul.f32 %v3527, 0.020408163
  %v4644 = vmul.f32 %v3530, 0.020408163
  %v4645 = vmul.f32 %v3533, 0.020408163
  %v4646 = vmul.f32 %v3536, 0.020408163
  %v4647 = vmul.f32 %v3539, 0.020408163
  %v4648 = vmul.f32 %v3542, 0.020408163
  %v4649 = vmul.f32 %v3545, 0.020408163
  %v4650 = vmul.f32 %v3548, 0.020408163
  %v4651 = vmul.f32 %v3551, 0.020408163
  %v4652 = vmul.f32 %v3554, 0.020408163
  %v4653 = vmul.f32 %v3557, 0.020408163
  %v4654 = vmul.f32 %v3560, 0.020408163
  %v4655 = vmul.f32 %v3563, 0.020408163
  %v4656 = vmul.f32 %v3566, 0.020408163
  %v4657 = vmul.f32 %v3569, 0.020408163
  %v4658 = vmul.f32 %v3572, 0.020408163
  %v4659 = vmul.f32 %v3575, 0.020408163
  %v4660 = vmul.f32 %v3578, 0.020408163
  %v4661 = vmul.f32 %v3581, 0.020408163
  %v4662 = vmul.f32 %v3584, 0.020408163
  %v4663 = vmul.f32 %v3587, 0.020408163
  %v4664 = vmul.f32 %v3590, 0.020408163
  %v4665 = vmul.f32 %v3593, 0.020408163
  %v4666 = vmul.f32 %v3596, 0.020408163
  %v4667 = vmul.f32 %v3599, 0.020408163
  %v4668 = vmul.f32 %v3602, 0.020408163
  %v4669 = vmul.f32 %v3605, 0.020408163
  %v4670 = vmul.f32 %v3608, 0.020408163
  %v4671 = vmul.f32 %v3611, 0.020408163
  %v4672 = vmul.f32 %v3614, 0.020408163
  %v4673 = vmul.f32 %v3617, 0.020408163
  %v4674 = vmul.f32 %v3620, 0.020408163
  %v4675 = vmul.f32 %v3623, 0.020408163
  %v4676 = vmul.f32 %v3626, 0.020408163
  %v4677 = vmul.f32 %v3629, 0.020408163
  %v4678 = vmul.f32 %v3632, 0.020408163
  %v4679 = vmul.f32 %v3635, 0.020408163
  %v4680 = vmul.f32 %v3638, 0.020408163
  %v4681 = vmul.f32 %v3641, 0.020408163
  %v4682 = vmul.f32 %v3644, 0.020408163
  %v4683 = vmul.f32 %v3647, 0.020408163
  %v4684 = vmul.f32 %v3650, 0.020408163
  %v4685 = vmul.f32 %v3653, 0.020408163
  %v4686 = vmul.f32 %v3656, 0.020408163
  %v4687 = vmul.f32 %v3659, 0.020408163
  %v4688 = vmul.f32 %v3662, 0.020408163
  %v4689 = vmul.f32 %v3665, 0.020408163
  %v4690 = vmul.f32 %v3668, 0.020408163
  %v4691 = vmul.f32 %v3671, 0.020408163
  %v4692 = vmul.f32 %v3674, 0.020408163
  %v4693 = vmul.f32 %v3677, 0.020408163
  %v4694 = vmul.f32 %v3680, 0.020408163
  %v4695 = vmul.f32 %v3683, 0.020408163
  %v4696 = vmul.f32 %v3686, 0.020408163
  %v4697 = vmul.f32 %v3689, 0.020408163
  %v4698 = vmul.f32 %v3692, 0.020408163
  %v4699 = vmul.f32 %v3695, 0.020408163
  %v4700 = vmul.f32 %v3698, 0.020408163
  %v4701 = vmul.f32 %v3701, 0.020408163
  %v4702 = vmul.f32 %v3704, 0.020408163
  %v4703 = vmul.f32 %v3707, 0.020408163
  %v4704 = vmul.f32 %v3710, 0.020408163
  %v4705 = vmul.f32 %v3713, 0.020408163
  %v4706 = vmul.f32 %v3716, 0.020408163
  %v4707 = vmul.f32 %v3719, 0.020408163
  %v4708 = vmul.f32 %v3722, 0.020408163
  %v4709 = vmul.f32 %v3725, 0.020408163
  %v4710 = vmul.f32 %v3728, 0.020408163
  %v4711 = vmul.f32 %v3731, 0.020408163
  %v4712 = vmul.f32 %v3734, 0.020408163
  %v4713 = vmul.f32 %v3737, 0.020408163
  %v4714 = vmul.f32 %v3740, 0.020408163
  %v4715 = vmul.f32 %v3743, 0.020408163
  %v4716 = vmul.f32 %v3746, 0.020408163
  %v4717 = vmul.f32 %v3749, 0.020408163
  %v4718 = vmul.f32 %v3752, 0.020408163
  %v4719 = vmul.f32 %v3755, 0.020408163
  %v4720 = vmul.f32 %v3758, 0.020408163
  %v4721 = vmul.f32 %v3761, 0.020408163
  %v4722 = vmul.f32 %v3764, 0.020408163
  %v4723 = vmul.f32 %v3767, 0.020408163
  %v4724 = vmul.f32 %v3770, 0.020408163
  %v4725 = vmul.f32 %v3773, 0.020408163
  %v4726 = vmul.f32 %v3776, 0.020408163
  %v4727 = vmul.f32 %v3779, 0.020408163
  %v4728 = vmul.f32 %v3782, 0.020408163
  %v4729 = vmul.f32 %v3785, 0.020408163
  %v4730 = vmul.f32 %v3788, 0.020408163
  %v4731 = vmul.f32 %v3791, 0.020408163
  %v4732 = vmul.f32 %v3794, 0.020408163
  %v4733 = vmul.f32 %v3797, 0.020408163
  %v4734 = vmul.f32 %v3800, 0.020408163
  %v4735 = vmul.f32 %v3803, 0.020408163
  %v4736 = vmul.f32 %v3806, 0.020408163
  %v4737 = vmul.f32 %v3809, 0.020408163
  %v4738 = vmul.f32 %v3812, 0.020408163
  %v4739 = vmul.f32 %v3815, 0.020408163
  %v4740 = vmul.f32 %v3818, 0.020408163
  %v4741 = vmul.f32 %v3821, 0.020408163
  %v4742 = vmul.f32 %v3824, 0.020408163
  %v4743 = vmul.f32 %v3827, 0.020408163
  %v4744 = vmul.f32 %v3830, 0.020408163
  %v4745 = vmul.f32 %v3833, 0.020408163
  %v4746 = vmul.f32 %v3836, 0.020408163
  %v4747 = vmul.f32 %v3839, 0.020408163
  %v4748 = vmul.f32 %v3842, 0.020408163
  %v4749 = vmul.f32 %v3845, 0.020408163
  %v4750 = vmul.f32 %v3848, 0.020408163
  %v4751 = vmul.f32 %v3851, 0.020408163
  %v4752 = vmul.f32 %v3854, 0.020408163
  %v4753 = vmul.f32 %v3857, 0.020408163
  %v4754 = vmul.f32 %v3860, 0.020408163
  %v4755 = vmul.f32 %v3863, 0.020408163
  %v4756 = vmul.f32 %v3866, 0.020408163
  %v4757 = vmul.f32 %v3869, 0.020408163
  %v4758 = vmul.f32 %v3872, 0.020408163
  %v4759 = vmul.f32 %v3875, 0.020408163
  %v4760 = vmul.f32 %v3878, 0.020408163
  %v4761 = vmul.f32 %v3881, 0.020408163
  %v4762 = vmul.f32 %v3884, 0.020408163
  %v4763 = vmul.f32 %v3887, 0.020408163
  %v4764 = vmul.f32 %v3890, 0.020408163
  %v4765 = vmul.f32 %v3893, 0.020408163
  %v4766 = vmul.f32 %v3896, 0.020408163
  %v4767 = vmul.f32 %v3899, 0.020408163
  %v4768 = vmul.f32 %v3902, 0.020408163
  %v4769 = vmul.f32 %v3905, 0.020408163
  %v4770 = vmul.f32 %v3908, 0.020408163
  %v4771 = vmul.f32 %v3911, 0.020408163
  %v4772 = vmul.f32 %v3914, 0.020408163
  %v4773 = vmul.f32 %v3917, 0.020408163
  %v4774 = vmul.f32 %v3920, 0.020408163
  %v4775 = vmul.f32 %v3923, 0.020408163
  %v4776 = vmul.f32 %v3926, 0.020408163
  %v4777 = vmul.f32 %v3929, 0.020408163
  %v4778 = vmul.f32 %v3932, 0.020408163
  %v4779 = vmul.f32 %v3935, 0.020408163
  %v4780 = vmul.f32 %v3938, 0.020408163
  %v4781 = vmul.f32 %v3941, 0.020408163
  %v4782 = vmul.f32 %v3944, 0.020408163
  %v4783 = vmul.f32 %v3947, 0.020408163
  %v4784 = vmul.f32 %v3950, 0.020408163
  %v4785 = vmul.f32 %v3953, 0.020408163
  %v4786 = vmul.f32 %v3956, 0.020408163
  %v4787 = vmul.f32 %v3959, 0.020408163
  %v4788 = vmul.f32 %v3962, 0.020408163
  %v4789 = vmul.f32 %v3965, 0.020408163
  %v4790 = vmul.f32 %v3968, 0.020408163
  %v4791 = vmul.f32 %v3971, 0.020408163
  %v4792 = vmul.f32 %v3974, 0.020408163
  %v4793 = vmul.f32 %v3977, 0.020408163
  %v4794 = vmul.f32 %v3980, 0.020408163
  %v4795 = vmul.f32 %v3983, 0.020408163
  %v4796 = vmul.f32 %v3986, 0.020408163
  %v4797 = vmul.f32 %v3989, 0.020408163
  %v4798 = vmul.f32 %v3992, 0.020408163
  %v4799 = vmul.f32 %v3995, 0.020408163
  %v4800 = vmul.f32 %v3998, 0.020408163
  %v4801 = vmul.f32 %v4001, 0.020408163
  %v4802 = vmul.f32 %v4004, 0.020408163
  %v4803 = vmul.f32 %v4007, 0.020408163
  %v4804 = vmul.f32 %v4010, 0.020408163
  %v4805 = vmul.f32 %v4013, 0.020408163
  %v4806 = vmul.f32 %v4016, 0.020408163
  %v4807 = vmul.f32 %v4019, 0.020408163
  %v4808 = vmul.f32 %v4022, 0.020408163
  %v4809 = vmul.f32 %v4025, 0.020408163
  %v4810 = vmul.f32 %v4028, 0.020408163
  %v4811 = vmul.f32 %v4031, 0.020408163
  %v4812 = vmul.f32 %v4034, 0.020408163
  %v4813 = vmul.f32 %v4037, 0.020408163
  %v4814 = vmul.f32 %v4040, 0.020408163
  %v4815 = vmul.f32 %v4043, 0.020408163
  %v4816 = vmul.f32 %v4046, 0.020408163
  %v4817 = vmul.f32 %v4049, 0.020408163
  %v4818 = vmul.f32 %v4052, 0.020408163
  %v4819 = vmul.f32 %v4055, 0.020408163
  %v4820 = vmul.f32 %v4058, 0.020408163
  %v4821 = vmul.f32 %v4061, 0.020408163
  %v4822 = vmul.f32 %v4064, 0.020408163
  %v4823 = vmul.f32 %v4067, 0.020408163
  %v4824 = vmul.f32 %v4070, 0.020408163
  %v4825 = vmul.f32 %v4073, 0.020408163
  %v4826 = vmul.f32 %v4076, 0.020408163
  %v4827 = vmul.f32 %v4079, 0.020408163
  %v4828 = vmul.f32 %v4082, 0.020408163
  %v4829 = vmul.f32 %v4085, 0.020408163
  %v4830 = vmul.f32 %v4088, 0.020408163
  %v4831 = vmul.f32 %v4091, 0.020408163
  %v4832 = vmul.f32 %v4094, 0.020408163
  %v4833 = vmul.f32 %v4097, 0.020408163
  %v4834 = vmul.f32 %v4100, 0.020408163
  %v4835 = vmul.f32 %v4103, 0.020408163
  %v4836 = vmul.f32 %v4106, 0.020408163
  %v4837 = vmul.f32 %v4109, 0.020408163
  %v4838 = vmul.f32 %v4112, 0.020408163
  %v4839 = vmul.f32 %v4115, 0.020408163
  %v4840 = vmul.f32 %v4118, 0.020408163
  %v4841 = vmul.f32 %v4121, 0.020408163
  %v4842 = vmul.f32 %v4124, 0.020408163
  %v4843 = vmul.f32 %v4127, 0.020408163
  %v4844 = vmul.f32 %v4130, 0.020408163
  %v4845 = vmul.f32 %v4133, 0.020408163
  %v4846 = vmul.f32 %v4136, 0.020408163
  %v4847 = vmul.f32 %v4139, 0.020408163
  %v4848 = vmul.f32 %v4142, 0.020408163
  %v4849 = vmul.f32 %v4145, 0.020408163
  %v4850 = vmul.f32 %v4148, 0.020408163
  %v4851 = vmul.f32 %v4151, 0.020408163
  %v4852 = vmul.f32 %v4154, 0.020408163
  %v4853 = vmul.f32 %v4157, 0.020408163
  %v4854 = vmul.f32 %v4160, 0.020408163
  %v4855 = vmul.f32 %v4163, 0.020408163
  %v4856 = vmul.f32 %v4166, 0.020408163
  %v4857 = vmul.f32 %v4169, 0.020408163
  %v4858 = vmul.f32 %v4172, 0.020408163
  %v4859 = vmul.f32 %v4175, 0.020408163
  %v4860 = vmul.f32 %v4178, 0.020408163
  %v4861 = vmul.f32 %v4181, 0.020408163
  %v4862 = vmul.f32 %v4184, 0.020408163
  %v4863 = vmul.f32 %v4187, 0.020408163
  %v4864 = vmul.f32 %v4190, 0.020408163
  %v4865 = vmul.f32 %v4193, 0.020408163
  %v4866 = vmul.f32 %v4196, 0.020408163
  %v4867 = vmul.f32 %v4199, 0.020408163
  %v4868 = vmul.f32 %v4202, 0.020408163
  %v4869 = vmul.f32 %v4205, 0.020408163
  %v4870 = vmul.f32 %v4208, 0.020408163
  %v4871 = vmul.f32 %v4211, 0.020408163
  %v4872 = vmul.f32 %v4214, 0.020408163
  %v4873 = vmul.f32 %v4217, 0.020408163
  %v4874 = vmul.f32 %v4220, 0.020408163
  %v4875 = vmul.f32 %v4223, 0.020408163
  %v4876 = vmul.f32 %v4226, 0.020408163
  %v4877 = vmul.f32 %v4229, 0.020408163
  %v4878 = vmul.f32 %v4232, 0.020408163
  %v4879 = vmul.f32 %v4235, 0.020408163
  %v4880 = vmul.f32 %v4238, 0.020408163
  %v4881 = vmul.f32 %v4241, 0.020408163
  %v4882 = vmul.f32 %v4244, 0.020408163
  %v4883 = vmul.f32 %v4247, 0.020408163
  %v4884 = vmul.f32 %v4250, 0.020408163
  %v4885 = vmul.f32 %v4253, 0.020408163
  %v4886 = vmul.f32 %v4256, 0.020408163
  %v4887 = vmul.f32 %v4259, 0.020408163
  %v4888 = vmul.f32 %v4262, 0.020408163
  %v4889 = vmul.f32 %v4265, 0.020408163
  %v4890 = vmul.f32 %v4268, 0.020408163
  %v4891 = vmul.f32 %v4271, 0.020408163
  %v4892 = vmul.f32 %v4274, 0.020408163
  %v4893 = vmul.f32 %v4277, 0.020408163
  %v4894 = vmul.f32 %v4280, 0.020408163
  %v4895 = vmul.f32 %v4283, 0.020408163
  %v4896 = vmul.f32 %v4286, 0.020408163
  %v4897 = vmul.f32 %v4289, 0.020408163
  %v4898 = vmul.f32 %v4292, 0.020408163
  %v4899 = vmul.f32 %v4295, 0.020408163
  %v4900 = vmul.f32 %v4298, 0.020408163
  %v4901 = vmul.f32 %v4301, 0.020408163
  %v4902 = vmul.f32 %v4304, 0.020408163
  %v4903 = vmul.f32 %v4307, 0.020408163
  %v4904 = vmul.f32 %v4310, 0.020408163
  %v4905 = vmul.f32 %v4313, 0.020408163
  %v4906 = vmul.f32 %v4316, 0.020408163
  %v4907 = vmul.f32 %v4319, 0.020408163
  %v4908 = vmul.f32 %v4322, 0.020408163
  %v4909 = vmul.f32 %v4325, 0.020408163
  %v4910 = vmul.f32 %v4328, 0.020408163
  %v4911 = vmul.f32 %v4331, 0.020408163
  %v4912 = vmul.f32 %v4334, 0.020408163
  %v4913 = vmul.f32 %v4337, 0.020408163
  %v4914 = vmul.f32 %v4340, 0.020408163
  %v4915 = vmul.f32 %v4343, 0.020408163
  %v4916 = vmul.f32 %v4346, 0.020408163
  %v4917 = vmul.f32 %v4349, 0.020408163
  %v4918 = vmul.f32 %v4352, 0.020408163
  %v4919 = vmul.f32 %v4355, 0.020408163
  %v4920 = vmul.f32 %v4358, 0.020408163
  %v4921 = vmul.f32 %v4361, 0.020408163
  %v4922 = vmul.f32 %v4364, 0.020408163
  %v4923 = vmul.f32 %v4367, 0.020408163
  %v4924 = vmul.f32 %v4370, 0.020408163
  %v4925 = vmul.f32 %v4373, 0.020408163
  %v4926 = vmul.f32 %v4376, 0.020408163
  %v4927 = vmul.f32 %v4379, 0.020408163
  %v4928 = vmul.f32 %v4382, 0.020408163
  %v4929 = vmul.f32 %v4385, 0.020408163
  %v4930 = vmul.f32 %v4388, 0.020408163
  %v4931 = vmul.f32 %v4391, 0.020408163
  %v4932 = vmul.f32 %v4394, 0.020408163
  %v4933 = vmul.f32 %v4397, 0.020408163
  %v4934 = vmul.f32 %v4400, 0.020408163
  %v4935 = vmul.f32 %v4403, 0.020408163
  %v4936 = vmul.f32 %v4406, 0.020408163
  %v4937 = vmul.f32 %v4409, 0.020408163
  %v4938 = vmul.f32 %v4412, 0.020408163
  %v4939 = vmul.f32 %v4415, 0.020408163
  %v4940 = vmul.f32 %v4418, 0.020408163
  %v4941 = vmul.f32 %v4421, 0.020408163
  %v4942 = vmul.f32 %v4424, 0.020408163
  %v4943 = vmul.f32 %v4427, 0.020408163
  %v4944 = vmul.f32 %v4430, 0.020408163
  %v4945 = vmul.f32 %v4433, 0.020408163
  %v4946 = vmul.f32 %v4436, 0.020408163
  %v4947 = vmul.f32 %v4439, 0.020408163
  %v4948 = vmul.f32 %v4442, 0.020408163
  %v4949 = vmul.f32 %v4445, 0.020408163
  %v4950 = vmul.f32 %v4448, 0.020408163
  %v4951 = vmul.f32 %v4451, 0.020408163
  %v4952 = vmul.f32 %v4454, 0.020408163
  %v4953 = vmul.f32 %v4457, 0.020408163
  %v4954 = vmul.f32 %v4460, 0.020408163
  %v4955 = vmul.f32 %v4463, 0.020408163
  %v4956 = vmul.f32 %v4466, 0.020408163
  %v4957 = vmul.f32 %v4469, 0.020408163
  %v4958 = vmul.f32 %v4472, 0.020408163
  %v4959 = vmul.f32 %v4475, 0.020408163
  %v4960 = vmul.f32 %v4478, 0.020408163
  %v4961 = vmul.f32 %v4481, 0.020408163
  %v4962 = vmul.f32 %v4484, 0.020408163
  %v4963 = vmul.f32 %v4487, 0.020408163
  %v4964 = vmul.f32 %v4490, 0.020408163
  %v4965 = vmul.f32 %v4493, 0.020408163
  %v4966 = vmul.f32 %v4496, 0.020408163
  %v4967 = vmul.f32 %v4499, 0.020408163
  %v4968 = vmul.f32 %v4502, 0.020408163
  %v4969 = vmul.f32 %v4505, 0.020408163
  %v4970 = vmul.f32 %v4508, 0.020408163
  %v4971 = vmul.f32 %v4511, 0.020408163
  %v4972 = vmul.f32 %v4514, 0.020408163
  %v4973 = vmul.f32 %v4517, 0.020408163
  %v4974 = vmul.f32 %v4520, 0.020408163
  %v4975 = vmul.f32 %v4523, 0.020408163
  %v4976 = vmul.f32 %v4526, 0.020408163
  %v4977 = vmul.f32 %v4529, 0.020408163
  %v4978 = vmul.f32 %v4532, 0.020408163
  %v4979 = vmul.f32 %v4535, 0.020408163
  %v4980 = vmul.f32 %v4538, 0.020408163
  %v4981 = vmul.f32 %v4541, 0.020408163
  %v4982 = vmul.f32 %v4544, 0.020408163
  %v4983 = vmul.f32 %v4547, 0.020408163
  %v4984 = vmul.f32 %v4550, 0.020408163
  %v4985 = vmul.f32 %v4553, 0.020408163
  %v4986 = vmul.f32 %v4556, 0.020408163
  %v4987 = vmul.f32 %v4559, 0.020408163
  %v4988 = vmul.f32 %v4562, 0.020408163
  %v4989 = vmul.f32 %v4565, 0.020408163
  %v4990 = vmul.f32 %v4568, 0.020408163
  %v4991 = vmul.f32 %v4571, 0.020408163
  %v4992 = vmul.f32 %v4574, 0.020408163
  %v4993 = vmul.f32 %v4577, 0.020408163
  %v4994 = vmul.f32 %v4580, 0.020408163
  %v4995 = vmul.f32 %v4583, 0.020408163
  %v4996 = vmul.f32 %v4586, 0.020408163
  %v4997 = vmul.f32 %v4589, 0.020408163
  %v4998 = vmul.f32 %v4592, 0.020408163
  %v4999 = vmul.f32 %v4595, 0.020408163
  %v5000 = vmul.f32 %v4598, 0.020408163
  %v5001 = vmul.f32 %v4601, 0.020408163
  %v5002 = vmul.f32 %v4604, 0.020408163
  %v5003 = vmul.f32 %v4607, 0.020408163
  %v5004 = vmul.f32 %v4610, 0.020408163
  %v5005 = vmul.f32 %v4613, 0.020408163
  %v5006 = vmul.f32 %v4616, 0.020408163
  %v5007 = vmul.f32 %v4619, 0.020408163
  %v5008 = vmul.f32 %v4622, 0.020408163
  %v5009 = vmul.f32 %v4625, 0.020408163
  %v5010 = vadd.f32 %v4626, 0.001
  %v5011 = vadd.f32 %v4627, 0.001
  %v5012 = vadd.f32 %v4628, 0.001
  %v5013 = vadd.f32 %v4629, 0.001
  %v5014 = vadd.f32 %v4630, 0.001
  %v5015 = vadd.f32 %v4631, 0.001
  %v5016 = vadd.f32 %v4632, 0.001
  %v5017 = vadd.f32 %v4633, 0.001
  %v5018 = vadd.f32 %v4634, 0.001
  %v5019 = vadd.f32 %v4635, 0.001
  %v5020 = vadd.f32 %v4636, 0.001
  %v5021 = vadd.f32 %v4637, 0.001
  %v5022 = vadd.f32 %v4638, 0.001
  %v5023 = vadd.f32 %v4639, 0.001
  %v5024 = vadd.f32 %v4640, 0.001
  %v5025 = vadd.f32 %v4641, 0.001
  %v5026 = vadd.f32 %v4642, 0.001
  %v5027 = vadd.f32 %v4643, 0.001
  %v5028 = vadd.f32 %v4644, 0.001
  %v5029 = vadd.f32 %v4645, 0.001
  %v5030 = vadd.f32 %v4646, 0.001
  %v5031 = vadd.f32 %v4647, 0.001
  %v5032 = vadd.f32 %v4648, 0.001
  %v5033 = vadd.f32 %v4649, 0.001
  %v5034 = vadd.f32 %v4650, 0.001
  %v5035 = vadd.f32 %v4651, 0.001
  %v5036 = vadd.f32 %v4652, 0.001
  %v5037 = vadd.f32 %v4653, 0.001
  %v5038 = vadd.f32 %v4654, 0.001
  %v5039 = vadd.f32 %v4655, 0.001
  %v5040 = vadd.f32 %v4656, 0.001
  %v5041 = vadd.f32 %v4657, 0.001
  %v5042 = vadd.f32 %v4658, 0.001
  %v5043 = vadd.f32 %v4659, 0.001
  %v5044 = vadd.f32 %v4660, 0.001
  %v5045 = vadd.f32 %v4661, 0.001
  %v5046 = vadd.f32 %v4662, 0.001
  %v5047 = vadd.f32 %v4663, 0.001
  %v5048 = vadd.f32 %v4664, 0.001
  %v5049 = vadd.f32 %v4665, 0.001
  %v5050 = vadd.f32 %v4666, 0.001
  %v5051 = vadd.f32 %v4667, 0.001
  %v5052 = vadd.f32 %v4668, 0.001
  %v5053 = vadd.f32 %v4669, 0.001
  %v5054 = vadd.f32 %v4670, 0.001
  %v5055 = vadd.f32 %v4671, 0.001
  %v5056 = vadd.f32 %v4672, 0.001
  %v5057 = vadd.f32 %v4673, 0.001
  %v5058 = vadd.f32 %v4674, 0.001
  %v5059 = vadd.f32 %v4675, 0.001
  %v5060 = vadd.f32 %v4676, 0.001
  %v5061 = vadd.f32 %v4677, 0.001
  %v5062 = vadd.f32 %v4678, 0.001
  %v5063 = vadd.f32 %v4679, 0.001
  %v5064 = vadd.f32 %v4680, 0.001
  %v5065 = vadd.f32 %v4681, 0.001
  %v5066 = vadd.f32 %v4682, 0.001
  %v5067 = vadd.f32 %v4683, 0.001
  %v5068 = vadd.f32 %v4684, 0.001
  %v5069 = vadd.f32 %v4685, 0.001
  %v5070 = vadd.f32 %v4686, 0.001
  %v5071 = vadd.f32 %v4687, 0.001
  %v5072 = vadd.f32 %v4688, 0.001
  %v5073 = vadd.f32 %v4689, 0.001
  %v5074 = vadd.f32 %v4690, 0.001
  %v5075 = vadd.f32 %v4691, 0.001
  %v5076 = vadd.f32 %v4692, 0.001
  %v5077 = vadd.f32 %v4693, 0.001
  %v5078 = vadd.f32 %v4694, 0.001
  %v5079 = vadd.f32 %v4695, 0.001
  %v5080 = vadd.f32 %v4696, 0.001
  %v5081 = vadd.f32 %v4697, 0.001
  %v5082 = vadd.f32 %v4698, 0.001
  %v5083 = vadd.f32 %v4699, 0.001
  %v5084 = vadd.f32 %v4700, 0.001
  %v5085 = vadd.f32 %v4701, 0.001
  %v5086 = vadd.f32 %v4702, 0.001
  %v5087 = vadd.f32 %v4703, 0.001
  %v5088 = vadd.f32 %v4704, 0.001
  %v5089 = vadd.f32 %v4705, 0.001
  %v5090 = vadd.f32 %v4706, 0.001
  %v5091 = vadd.f32 %v4707, 0.001
  %v5092 = vadd.f32 %v4708, 0.001
  %v5093 = vadd.f32 %v4709, 0.001
  %v5094 = vadd.f32 %v4710, 0.001
  %v5095 = vadd.f32 %v4711, 0.001
  %v5096 = vadd.f32 %v4712, 0.001
  %v5097 = vadd.f32 %v4713, 0.001
  %v5098 = vadd.f32 %v4714, 0.001
  %v5099 = vadd.f32 %v4715, 0.001
  %v5100 = vadd.f32 %v4716, 0.001
  %v5101 = vadd.f32 %v4717, 0.001
  %v5102 = vadd.f32 %v4718, 0.001
  %v5103 = vadd.f32 %v4719, 0.001
  %v5104 = vadd.f32 %v4720, 0.001
  %v5105 = vadd.f32 %v4721, 0.001
  %v5106 = vadd.f32 %v4722, 0.001
  %v5107 = vadd.f32 %v4723, 0.001
  %v5108 = vadd.f32 %v4724, 0.001
  %v5109 = vadd.f32 %v4725, 0.001
  %v5110 = vadd.f32 %v4726, 0.001
  %v5111 = vadd.f32 %v4727, 0.001
  %v5112 = vadd.f32 %v4728, 0.001
  %v5113 = vadd.f32 %v4729, 0.001
  %v5114 = vadd.f32 %v4730, 0.001
  %v5115 = vadd.f32 %v4731, 0.001
  %v5116 = vadd.f32 %v4732, 0.001
  %v5117 = vadd.f32 %v4733, 0.001
  %v5118 = vadd.f32 %v4734, 0.001
  %v5119 = vadd.f32 %v4735, 0.001
  %v5120 = vadd.f32 %v4736, 0.001
  %v5121 = vadd.f32 %v4737, 0.001
  %v5122 = vadd.f32 %v4738, 0.001
  %v5123 = vadd.f32 %v4739, 0.001
  %v5124 = vadd.f32 %v4740, 0.001
  %v5125 = vadd.f32 %v4741, 0.001
  %v5126 = vadd.f32 %v4742, 0.001
  %v5127 = vadd.f32 %v4743, 0.001
  %v5128 = vadd.f32 %v4744, 0.001
  %v5129 = vadd.f32 %v4745, 0.001
  %v5130 = vadd.f32 %v4746, 0.001
  %v5131 = vadd.f32 %v4747, 0.001
  %v5132 = vadd.f32 %v4748, 0.001
  %v5133 = vadd.f32 %v4749, 0.001
  %v5134 = vadd.f32 %v4750, 0.001
  %v5135 = vadd.f32 %v4751, 0.001
  %v5136 = vadd.f32 %v4752, 0.001
  %v5137 = vadd.f32 %v4753, 0.001
  %v5138 = vadd.f32 %v4754, 0.001
  %v5139 = vadd.f32 %v4755, 0.001
  %v5140 = vadd.f32 %v4756, 0.001
  %v5141 = vadd.f32 %v4757, 0.001
  %v5142 = vadd.f32 %v4758, 0.001
  %v5143 = vadd.f32 %v4759, 0.001
  %v5144 = vadd.f32 %v4760, 0.001
  %v5145 = vadd.f32 %v4761, 0.001
  %v5146 = vadd.f32 %v4762, 0.001
  %v5147 = vadd.f32 %v4763, 0.001
  %v5148 = vadd.f32 %v4764, 0.001
  %v5149 = vadd.f32 %v4765, 0.001
  %v5150 = vadd.f32 %v4766, 0.001
  %v5151 = vadd.f32 %v4767, 0.001
  %v5152 = vadd.f32 %v4768, 0.001
  %v5153 = vadd.f32 %v4769, 0.001
  %v5154 = vadd.f32 %v4770, 0.001
  %v5155 = vadd.f32 %v4771, 0.001
  %v5156 = vadd.f32 %v4772, 0.001
  %v5157 = vadd.f32 %v4773, 0.001
  %v5158 = vadd.f32 %v4774, 0.001
  %v5159 = vadd.f32 %v4775, 0.001
  %v5160 = vadd.f32 %v4776, 0.001
  %v5161 = vadd.f32 %v4777, 0.001
  %v5162 = vadd.f32 %v4778, 0.001
  %v5163 = vadd.f32 %v4779, 0.001
  %v5164 = vadd.f32 %v4780, 0.001
  %v5165 = vadd.f32 %v4781, 0.001
  %v5166 = vadd.f32 %v4782, 0.001
  %v5167 = vadd.f32 %v4783, 0.001
  %v5168 = vadd.f32 %v4784, 0.001
  %v5169 = vadd.f32 %v4785, 0.001
  %v5170 = vadd.f32 %v4786, 0.001
  %v5171 = vadd.f32 %v4787, 0.001
  %v5172 = vadd.f32 %v4788, 0.001
  %v5173 = vadd.f32 %v4789, 0.001
  %v5174 = vadd.f32 %v4790, 0.001
  %v5175 = vadd.f32 %v4791, 0.001
  %v5176 = vadd.f32 %v4792, 0.001
  %v5177 = vadd.f32 %v4793, 0.001
  %v5178 = vadd.f32 %v4794, 0.001
  %v5179 = vadd.f32 %v4795, 0.001
  %v5180 = vadd.f32 %v4796, 0.001
  %v5181 = vadd.f32 %v4797, 0.001
  %v5182 = vadd.f32 %v4798, 0.001
  %v5183 = vadd.f32 %v4799, 0.001
  %v5184 = vadd.f32 %v4800, 0.001
  %v5185 = vadd.f32 %v4801, 0.001
  %v5186 = vadd.f32 %v4802, 0.001
  %v5187 = vadd.f32 %v4803, 0.001
  %v5188 = vadd.f32 %v4804, 0.001
  %v5189 = vadd.f32 %v4805, 0.001
  %v5190 = vadd.f32 %v4806, 0.001
  %v5191 = vadd.f32 %v4807, 0.001
  %v5192 = vadd.f32 %v4808, 0.001
  %v5193 = vadd.f32 %v4809, 0.001
  %v5194 = vadd.f32 %v4810, 0.001
  %v5195 = vadd.f32 %v4811, 0.001
  %v5196 = vadd.f32 %v4812, 0.001
  %v5197 = vadd.f32 %v4813, 0.001
  %v5198 = vadd.f32 %v4814, 0.001
  %v5199 = vadd.f32 %v4815, 0.001
  %v5200 = vadd.f32 %v4816, 0.001
  %v5201 = vadd.f32 %v4817, 0.001
  %v5202 = vadd.f32 %v4818, 0.001
  %v5203 = vadd.f32 %v4819, 0.001
  %v5204 = vadd.f32 %v4820, 0.001
  %v5205 = vadd.f32 %v4821, 0.001
  %v5206 = vadd.f32 %v4822, 0.001
  %v5207 = vadd.f32 %v4823, 0.001
  %v5208 = vadd.f32 %v4824, 0.001
  %v5209 = vadd.f32 %v4825, 0.001
  %v5210 = vadd.f32 %v4826, 0.001
  %v5211 = vadd.f32 %v4827, 0.001
  %v5212 = vadd.f32 %v4828, 0.001
  %v5213 = vadd.f32 %v4829, 0.001
  %v5214 = vadd.f32 %v4830, 0.001
  %v5215 = vadd.f32 %v4831, 0.001
  %v5216 = vadd.f32 %v4832, 0.001
  %v5217 = vadd.f32 %v4833, 0.001
  %v5218 = vadd.f32 %v4834, 0.001
  %v5219 = vadd.f32 %v4835, 0.001
  %v5220 = vadd.f32 %v4836, 0.001
  %v5221 = vadd.f32 %v4837, 0.001
  %v5222 = vadd.f32 %v4838, 0.001
  %v5223 = vadd.f32 %v4839, 0.001
  %v5224 = vadd.f32 %v4840, 0.001
  %v5225 = vadd.f32 %v4841, 0.001
  %v5226 = vadd.f32 %v4842, 0.001
  %v5227 = vadd.f32 %v4843, 0.001
  %v5228 = vadd.f32 %v4844, 0.001
  %v5229 = vadd.f32 %v4845, 0.001
  %v5230 = vadd.f32 %v4846, 0.001
  %v5231 = vadd.f32 %v4847, 0.001
  %v5232 = vadd.f32 %v4848, 0.001
  %v5233 = vadd.f32 %v4849, 0.001
  %v5234 = vadd.f32 %v4850, 0.001
  %v5235 = vadd.f32 %v4851, 0.001
  %v5236 = vadd.f32 %v4852, 0.001
  %v5237 = vadd.f32 %v4853, 0.001
  %v5238 = vadd.f32 %v4854, 0.001
  %v5239 = vadd.f32 %v4855, 0.001
  %v5240 = vadd.f32 %v4856, 0.001
  %v5241 = vadd.f32 %v4857, 0.001
  %v5242 = vadd.f32 %v4858, 0.001
  %v5243 = vadd.f32 %v4859, 0.001
  %v5244 = vadd.f32 %v4860, 0.001
  %v5245 = vadd.f32 %v4861, 0.001
  %v5246 = vadd.f32 %v4862, 0.001
  %v5247 = vadd.f32 %v4863, 0.001
  %v5248 = vadd.f32 %v4864, 0.001
  %v5249 = vadd.f32 %v4865, 0.001
  %v5250 = vadd.f32 %v4866, 0.001
  %v5251 = vadd.f32 %v4867, 0.001
  %v5252 = vadd.f32 %v4868, 0.001
  %v5253 = vadd.f32 %v4869, 0.001
  %v5254 = vadd.f32 %v4870, 0.001
  %v5255 = vadd.f32 %v4871, 0.001
  %v5256 = vadd.f32 %v4872, 0.001
  %v5257 = vadd.f32 %v4873, 0.001
  %v5258 = vadd.f32 %v4874, 0.001
  %v5259 = vadd.f32 %v4875, 0.001
  %v5260 = vadd.f32 %v4876, 0.001
  %v5261 = vadd.f32 %v4877, 0.001
  %v5262 = vadd.f32 %v4878, 0.001
  %v5263 = vadd.f32 %v4879, 0.001
  %v5264 = vadd.f32 %v4880, 0.001
  %v5265 = vadd.f32 %v4881, 0.001
  %v5266 = vadd.f32 %v4882, 0.001
  %v5267 = vadd.f32 %v4883, 0.001
  %v5268 = vadd.f32 %v4884, 0.001
  %v5269 = vadd.f32 %v4885, 0.001
  %v5270 = vadd.f32 %v4886, 0.001
  %v5271 = vadd.f32 %v4887, 0.001
  %v5272 = vadd.f32 %v4888, 0.001
  %v5273 = vadd.f32 %v4889, 0.001
  %v5274 = vadd.f32 %v4890, 0.001
  %v5275 = vadd.f32 %v4891, 0.001
  %v5276 = vadd.f32 %v4892, 0.001
  %v5277 = vadd.f32 %v4893, 0.001
  %v5278 = vadd.f32 %v4894, 0.001
  %v5279 = vadd.f32 %v4895, 0.001
  %v5280 = vadd.f32 %v4896, 0.001
  %v5281 = vadd.f32 %v4897, 0.001
  %v5282 = vadd.f32 %v4898, 0.001
  %v5283 = vadd.f32 %v4899, 0.001
  %v5284 = vadd.f32 %v4900, 0.001
  %v5285 = vadd.f32 %v4901, 0.001
  %v5286 = vadd.f32 %v4902, 0.001
  %v5287 = vadd.f32 %v4903, 0.001
  %v5288 = vadd.f32 %v4904, 0.001
  %v5289 = vadd.f32 %v4905, 0.001
  %v5290 = vadd.f32 %v4906, 0.001
  %v5291 = vadd.f32 %v4907, 0.001
  %v5292 = vadd.f32 %v4908, 0.001
  %v5293 = vadd.f32 %v4909, 0.001
  %v5294 = vadd.f32 %v4910, 0.001
  %v5295 = vadd.f32 %v4911, 0.001
  %v5296 = vadd.f32 %v4912, 0.001
  %v5297 = vadd.f32 %v4913, 0.001
  %v5298 = vadd.f32 %v4914, 0.001
  %v5299 = vadd.f32 %v4915, 0.001
  %v5300 = vadd.f32 %v4916, 0.001
  %v5301 = vadd.f32 %v4917, 0.001
  %v5302 = vadd.f32 %v4918, 0.001
  %v5303 = vadd.f32 %v4919, 0.001
  %v5304 = vadd.f32 %v4920, 0.001
  %v5305 = vadd.f32 %v4921, 0.001
  %v5306 = vadd.f32 %v4922, 0.001
  %v5307 = vadd.f32 %v4923, 0.001
  %v5308 = vadd.f32 %v4924, 0.001
  %v5309 = vadd.f32 %v4925, 0.001
  %v5310 = vadd.f32 %v4926, 0.001
  %v5311 = vadd.f32 %v4927, 0.001
  %v5312 = vadd.f32 %v4928, 0.001
  %v5313 = vadd.f32 %v4929, 0.001
  %v5314 = vadd.f32 %v4930, 0.001
  %v5315 = vadd.f32 %v4931, 0.001
  %v5316 = vadd.f32 %v4932, 0.001
  %v5317 = vadd.f32 %v4933, 0.001
  %v5318 = vadd.f32 %v4934, 0.001
  %v5319 = vadd.f32 %v4935, 0.001
  %v5320 = vadd.f32 %v4936, 0.001
  %v5321 = vadd.f32 %v4937, 0.001
  %v5322 = vadd.f32 %v4938, 0.001
  %v5323 = vadd.f32 %v4939, 0.001
  %v5324 = vadd.f32 %v4940, 0.001
  %v5325 = vadd.f32 %v4941, 0.001
  %v5326 = vadd.f32 %v4942, 0.001
  %v5327 = vadd.f32 %v4943, 0.001
  %v5328 = vadd.f32 %v4944, 0.001
  %v5329 = vadd.f32 %v4945, 0.001
  %v5330 = vadd.f32 %v4946, 0.001
  %v5331 = vadd.f32 %v4947, 0.001
  %v5332 = vadd.f32 %v4948, 0.001
  %v5333 = vadd.f32 %v4949, 0.001
  %v5334 = vadd.f32 %v4950, 0.001
  %v5335 = vadd.f32 %v4951, 0.001
  %v5336 = vadd.f32 %v4952, 0.001
  %v5337 = vadd.f32 %v4953, 0.001
  %v5338 = vadd.f32 %v4954, 0.001
  %v5339 = vadd.f32 %v4955, 0.001
  %v5340 = vadd.f32 %v4956, 0.001
  %v5341 = vadd.f32 %v4957, 0.001
  %v5342 = vadd.f32 %v4958, 0.001
  %v5343 = vadd.f32 %v4959, 0.001
  %v5344 = vadd.f32 %v4960, 0.001
  %v5345 = vadd.f32 %v4961, 0.001
  %v5346 = vadd.f32 %v4962, 0.001
  %v5347 = vadd.f32 %v4963, 0.001
  %v5348 = vadd.f32 %v4964, 0.001
  %v5349 = vadd.f32 %v4965, 0.001
  %v5350 = vadd.f32 %v4966, 0.001
  %v5351 = vadd.f32 %v4967, 0.001
  %v5352 = vadd.f32 %v4968, 0.001
  %v5353 = vadd.f32 %v4969, 0.001
  %v5354 = vadd.f32 %v4970, 0.001
  %v5355 = vadd.f32 %v4971, 0.001
  %v5356 = vadd.f32 %v4972, 0.001
  %v5357 = vadd.f32 %v4973, 0.001
  %v5358 = vadd.f32 %v4974, 0.001
  %v5359 = vadd.f32 %v4975, 0.001
  %v5360 = vadd.f32 %v4976, 0.001
  %v5361 = vadd.f32 %v4977, 0.001
  %v5362 = vadd.f32 %v4978, 0.001
  %v5363 = vadd.f32 %v4979, 0.001
  %v5364 = vadd.f32 %v4980, 0.001
  %v5365 = vadd.f32 %v4981, 0.001
  %v5366 = vadd.f32 %v4982, 0.001
  %v5367 = vadd.f32 %v4983, 0.001
  %v5368 = vadd.f32 %v4984, 0.001
  %v5369 = vadd.f32 %v4985, 0.001
  %v5370 = vadd.f32 %v4986, 0.001
  %v5371 = vadd.f32 %v4987, 0.001
  %v5372 = vadd.f32 %v4988, 0.001
  %v5373 = vadd.f32 %v4989, 0.001
  %v5374 = vadd.f32 %v4990, 0.001
  %v5375 = vadd.f32 %v4991, 0.001
  %v5376 = vadd.f32 %v4992, 0.001
  %v5377 = vadd.f32 %v4993, 0.001
  %v5378 = vadd.f32 %v4994, 0.001
  %v5379 = vadd.f32 %v4995, 0.001
  %v5380 = vadd.f32 %v4996, 0.001
  %v5381 = vadd.f32 %v4997, 0.001
  %v5382 = vadd.f32 %v4998, 0.001
  %v5383 = vadd.f32 %v4999, 0.001
  %v5384 = vadd.f32 %v5000, 0.001
  %v5385 = vadd.f32 %v5001, 0.001
  %v5386 = vadd.f32 %v5002, 0.001
  %v5387 = vadd.f32 %v5003, 0.001
  %v5388 = vadd.f32 %v5004, 0.001
  %v5389 = vadd.f32 %v5005, 0.001
  %v5390 = vadd.f32 %v5006, 0.001
  %v5391 = vadd.f32 %v5007, 0.001
  %v5392 = vadd.f32 %v5008, 0.001
  %v5393 = vadd.f32 %v5009, 0.001
  %v5394 = vrsqrt.pop %v5010
  %v5395 = vrsqrt.pop %v5011
  %v5396 = vrsqrt.pop %v5012
  %v5397 = vrsqrt.pop %v5013
  %v5398 = vrsqrt.pop %v5014
  %v5399 = vrsqrt.pop %v5015
  %v5400 = vrsqrt.pop %v5016
  %v5401 = vrsqrt.pop %v5017
  %v5402 = vrsqrt.pop %v5018
  %v5403 = vrsqrt.pop %v5019
  %v5404 = vrsqrt.pop %v5020
  %v5405 = vrsqrt.pop %v5021
  %v5406 = vrsqrt.pop %v5022
  %v5407 = vrsqrt.pop %v5023
  %v5408 = vrsqrt.pop %v5024
  %v5409 = vrsqrt.pop %v5025
  %v5410 = vrsqrt.pop %v5026
  %v5411 = vrsqrt.pop %v5027
  %v5412 = vrsqrt.pop %v5028
  %v5413 = vrsqrt.pop %v5029
  %v5414 = vrsqrt.pop %v5030
  %v5415 = vrsqrt.pop %v5031
  %v5416 = vrsqrt.pop %v5032
  %v5417 = vrsqrt.pop %v5033
  %v5418 = vrsqrt.pop %v5034
  %v5419 = vrsqrt.pop %v5035
  %v5420 = vrsqrt.pop %v5036
  %v5421 = vrsqrt.pop %v5037
  %v5422 = vrsqrt.pop %v5038
  %v5423 = vrsqrt.pop %v5039
  %v5424 = vrsqrt.pop %v5040
  %v5425 = vrsqrt.pop %v5041
  %v5426 = vrsqrt.pop %v5042
  %v5427 = vrsqrt.pop %v5043
  %v5428 = vrsqrt.pop %v5044
  %v5429 = vrsqrt.pop %v5045
  %v5430 = vrsqrt.pop %v5046
  %v5431 = vrsqrt.pop %v5047
  %v5432 = vrsqrt.pop %v5048
  %v5433 = vrsqrt.pop %v5049
  %v5434 = vrsqrt.pop %v5050
  %v5435 = vrsqrt.pop %v5051
  %v5436 = vrsqrt.pop %v5052
  %v5437 = vrsqrt.pop %v5053
  %v5438 = vrsqrt.pop %v5054
  %v5439 = vrsqrt.pop %v5055
  %v5440 = vrsqrt.pop %v5056
  %v5441 = vrsqrt.pop %v5057
  %v5442 = vrsqrt.pop %v5058
  %v5443 = vrsqrt.pop %v5059
  %v5444 = vrsqrt.pop %v5060
  %v5445 = vrsqrt.pop %v5061
  %v5446 = vrsqrt.pop %v5062
  %v5447 = vrsqrt.pop %v5063
  %v5448 = vrsqrt.pop %v5064
  %v5449 = vrsqrt.pop %v5065
  %v5450 = vrsqrt.pop %v5066
  %v5451 = vrsqrt.pop %v5067
  %v5452 = vrsqrt.pop %v5068
  %v5453 = vrsqrt.pop %v5069
  %v5454 = vrsqrt.pop %v5070
  %v5455 = vrsqrt.pop %v5071
  %v5456 = vrsqrt.pop %v5072
  %v5457 = vrsqrt.pop %v5073
  %v5458 = vrsqrt.pop %v5074
  %v5459 = vrsqrt.pop %v5075
  %v5460 = vrsqrt.pop %v5076
  %v5461 = vrsqrt.pop %v5077
  %v5462 = vrsqrt.pop %v5078
  %v5463 = vrsqrt.pop %v5079
  %v5464 = vrsqrt.pop %v5080
  %v5465 = vrsqrt.pop %v5081
  %v5466 = vrsqrt.pop %v5082
  %v5467 = vrsqrt.pop %v5083
  %v5468 = vrsqrt.pop %v5084
  %v5469 = vrsqrt.pop %v5085
  %v5470 = vrsqrt.pop %v5086
  %v5471 = vrsqrt.pop %v5087
  %v5472 = vrsqrt.pop %v5088
  %v5473 = vrsqrt.pop %v5089
  %v5474 = vrsqrt.pop %v5090
  %v5475 = vrsqrt.pop %v5091
  %v5476 = vrsqrt.pop %v5092
  %v5477 = vrsqrt.pop %v5093
  %v5478 = vrsqrt.pop %v5094
  %v5479 = vrsqrt.pop %v5095
  %v5480 = vrsqrt.pop %v5096
  %v5481 = vrsqrt.pop %v5097
  %v5482 = vrsqrt.pop %v5098
  %v5483 = vrsqrt.pop %v5099
  %v5484 = vrsqrt.pop %v5100
  %v5485 = vrsqrt.pop %v5101
  %v5486 = vrsqrt.pop %v5102
  %v5487 = vrsqrt.pop %v5103
  %v5488 = vrsqrt.pop %v5104
  %v5489 = vrsqrt.pop %v5105
  %v5490 = vrsqrt.pop %v5106
  %v5491 = vrsqrt.pop %v5107
  %v5492 = vrsqrt.pop %v5108
  %v5493 = vrsqrt.pop %v5109
  %v5494 = vrsqrt.pop %v5110
  %v5495 = vrsqrt.pop %v5111
  %v5496 = vrsqrt.pop %v5112
  %v5497 = vrsqrt.pop %v5113
  %v5498 = vrsqrt.pop %v5114
  %v5499 = vrsqrt.pop %v5115
  %v5500 = vrsqrt.pop %v5116
  %v5501 = vrsqrt.pop %v5117
  %v5502 = vrsqrt.pop %v5118
  %v5503 = vrsqrt.pop %v5119
  %v5504 = vrsqrt.pop %v5120
  %v5505 = vrsqrt.pop %v5121
  %v5506 = vrsqrt.pop %v5122
  %v5507 = vrsqrt.pop %v5123
  %v5508 = vrsqrt.pop %v5124
  %v5509 = vrsqrt.pop %v5125
  %v5510 = vrsqrt.pop %v5126
  %v5511 = vrsqrt.pop %v5127
  %v5512 = vrsqrt.pop %v5128
  %v5513 = vrsqrt.pop %v5129
  %v5514 = vrsqrt.pop %v5130
  %v5515 = vrsqrt.pop %v5131
  %v5516 = vrsqrt.pop %v5132
  %v5517 = vrsqrt.pop %v5133
  %v5518 = vrsqrt.pop %v5134
  %v5519 = vrsqrt.pop %v5135
  %v5520 = vrsqrt.pop %v5136
  %v5521 = vrsqrt.pop %v5137
  %v5522 = vrsqrt.pop %v5138
  %v5523 = vrsqrt.pop %v5139
  %v5524 = vrsqrt.pop %v5140
  %v5525 = vrsqrt.pop %v5141
  %v5526 = vrsqrt.pop %v5142
  %v5527 = vrsqrt.pop %v5143
  %v5528 = vrsqrt.pop %v5144
  %v5529 = vrsqrt.pop %v5145
  %v5530 = vrsqrt.pop %v5146
  %v5531 = vrsqrt.pop %v5147
  %v5532 = vrsqrt.pop %v5148
  %v5533 = vrsqrt.pop %v5149
  %v5534 = vrsqrt.pop %v5150
  %v5535 = vrsqrt.pop %v5151
  %v5536 = vrsqrt.pop %v5152
  %v5537 = vrsqrt.pop %v5153
  %v5538 = vrsqrt.pop %v5154
  %v5539 = vrsqrt.pop %v5155
  %v5540 = vrsqrt.pop %v5156
  %v5541 = vrsqrt.pop %v5157
  %v5542 = vrsqrt.pop %v5158
  %v5543 = vrsqrt.pop %v5159
  %v5544 = vrsqrt.pop %v5160
  %v5545 = vrsqrt.pop %v5161
  %v5546 = vrsqrt.pop %v5162
  %v5547 = vrsqrt.pop %v5163
  %v5548 = vrsqrt.pop %v5164
  %v5549 = vrsqrt.pop %v5165
  %v5550 = vrsqrt.pop %v5166
  %v5551 = vrsqrt.pop %v5167
  %v5552 = vrsqrt.pop %v5168
  %v5553 = vrsqrt.pop %v5169
  %v5554 = vrsqrt.pop %v5170
  %v5555 = vrsqrt.pop %v5171
  %v5556 = vrsqrt.pop %v5172
  %v5557 = vrsqrt.pop %v5173
  %v5558 = vrsqrt.pop %v5174
  %v5559 = vrsqrt.pop %v5175
  %v5560 = vrsqrt.pop %v5176
  %v5561 = vrsqrt.pop %v5177
  %v5562 = vrsqrt.pop %v5178
  %v5563 = vrsqrt.pop %v5179
  %v5564 = vrsqrt.pop %v5180
  %v5565 = vrsqrt.pop %v5181
  %v5566 = vrsqrt.pop %v5182
  %v5567 = vrsqrt.pop %v5183
  %v5568 = vrsqrt.pop %v5184
  %v5569 = vrsqrt.pop %v5185
  %v5570 = vrsqrt.pop %v5186
  %v5571 = vrsqrt.pop %v5187
  %v5572 = vrsqrt.pop %v5188
  %v5573 = vrsqrt.pop %v5189
  %v5574 = vrsqrt.pop %v5190
  %v5575 = vrsqrt.pop %v5191
  %v5576 = vrsqrt.pop %v5192
  %v5577 = vrsqrt.pop %v5193
  %v5578 = vrsqrt.pop %v5194
  %v5579 = vrsqrt.pop %v5195
  %v5580 = vrsqrt.pop %v5196
  %v5581 = vrsqrt.pop %v5197
  %v5582 = vrsqrt.pop %v5198
  %v5583 = vrsqrt.pop %v5199
  %v5584 = vrsqrt.pop %v5200
  %v5585 = vrsqrt.pop %v5201
  %v5586 = vrsqrt.pop %v5202
  %v5587 = vrsqrt.pop %v5203
  %v5588 = vrsqrt.pop %v5204
  %v5589 = vrsqrt.pop %v5205
  %v5590 = vrsqrt.pop %v5206
  %v5591 = vrsqrt.pop %v5207
  %v5592 = vrsqrt.pop %v5208
  %v5593 = vrsqrt.pop %v5209
  %v5594 = vrsqrt.pop %v5210
  %v5595 = vrsqrt.pop %v5211
  %v5596 = vrsqrt.pop %v5212
  %v5597 = vrsqrt.pop %v5213
  %v5598 = vrsqrt.pop %v5214
  %v5599 = vrsqrt.pop %v5215
  %v5600 = vrsqrt.pop %v5216
  %v5601 = vrsqrt.pop %v5217
  %v5602 = vrsqrt.pop %v5218
  %v5603 = vrsqrt.pop %v5219
  %v5604 = vrsqrt.pop %v5220
  %v5605 = vrsqrt.pop %v5221
  %v5606 = vrsqrt.pop %v5222
  %v5607 = vrsqrt.pop %v5223
  %v5608 = vrsqrt.pop %v5224
  %v5609 = vrsqrt.pop %v5225
  %v5610 = vrsqrt.pop %v5226
  %v5611 = vrsqrt.pop %v5227
  %v5612 = vrsqrt.pop %v5228
  %v5613 = vrsqrt.pop %v5229
  %v5614 = vrsqrt.pop %v5230
  %v5615 = vrsqrt.pop %v5231
  %v5616 = vrsqrt.pop %v5232
  %v5617 = vrsqrt.pop %v5233
  %v5618 = vrsqrt.pop %v5234
  %v5619 = vrsqrt.pop %v5235
  %v5620 = vrsqrt.pop %v5236
  %v5621 = vrsqrt.pop %v5237
  %v5622 = vrsqrt.pop %v5238
  %v5623 = vrsqrt.pop %v5239
  %v5624 = vrsqrt.pop %v5240
  %v5625 = vrsqrt.pop %v5241
  %v5626 = vrsqrt.pop %v5242
  %v5627 = vrsqrt.pop %v5243
  %v5628 = vrsqrt.pop %v5244
  %v5629 = vrsqrt.pop %v5245
  %v5630 = vrsqrt.pop %v5246
  %v5631 = vrsqrt.pop %v5247
  %v5632 = vrsqrt.pop %v5248
  %v5633 = vrsqrt.pop %v5249
  %v5634 = vrsqrt.pop %v5250
  %v5635 = vrsqrt.pop %v5251
  %v5636 = vrsqrt.pop %v5252
  %v5637 = vrsqrt.pop %v5253
  %v5638 = vrsqrt.pop %v5254
  %v5639 = vrsqrt.pop %v5255
  %v5640 = vrsqrt.pop %v5256
  %v5641 = vrsqrt.pop %v5257
  %v5642 = vrsqrt.pop %v5258
  %v5643 = vrsqrt.pop %v5259
  %v5644 = vrsqrt.pop %v5260
  %v5645 = vrsqrt.pop %v5261
  %v5646 = vrsqrt.pop %v5262
  %v5647 = vrsqrt.pop %v5263
  %v5648 = vrsqrt.pop %v5264
  %v5649 = vrsqrt.pop %v5265
  %v5650 = vrsqrt.pop %v5266
  %v5651 = vrsqrt.pop %v5267
  %v5652 = vrsqrt.pop %v5268
  %v5653 = vrsqrt.pop %v5269
  %v5654 = vrsqrt.pop %v5270
  %v5655 = vrsqrt.pop %v5271
  %v5656 = vrsqrt.pop %v5272
  %v5657 = vrsqrt.pop %v5273
  %v5658 = vrsqrt.pop %v5274
  %v5659 = vrsqrt.pop %v5275
  %v5660 = vrsqrt.pop %v5276
  %v5661 = vrsqrt.pop %v5277
  %v5662 = vrsqrt.pop %v5278
  %v5663 = vrsqrt.pop %v5279
  %v5664 = vrsqrt.pop %v5280
  %v5665 = vrsqrt.pop %v5281
  %v5666 = vrsqrt.pop %v5282
  %v5667 = vrsqrt.pop %v5283
  %v5668 = vrsqrt.pop %v5284
  %v5669 = vrsqrt.pop %v5285
  %v5670 = vrsqrt.pop %v5286
  %v5671 = vrsqrt.pop %v5287
  %v5672 = vrsqrt.pop %v5288
  %v5673 = vrsqrt.pop %v5289
  %v5674 = vrsqrt.pop %v5290
  %v5675 = vrsqrt.pop %v5291
  %v5676 = vrsqrt.pop %v5292
  %v5677 = vrsqrt.pop %v5293
  %v5678 = vrsqrt.pop %v5294
  %v5679 = vrsqrt.pop %v5295
  %v5680 = vrsqrt.pop %v5296
  %v5681 = vrsqrt.pop %v5297
  %v5682 = vrsqrt.pop %v5298
  %v5683 = vrsqrt.pop %v5299
  %v5684 = vrsqrt.pop %v5300
  %v5685 = vrsqrt.pop %v5301
  %v5686 = vrsqrt.pop %v5302
  %v5687 = vrsqrt.pop %v5303
  %v5688 = vrsqrt.pop %v5304
  %v5689 = vrsqrt.pop %v5305
  %v5690 = vrsqrt.pop %v5306
  %v5691 = vrsqrt.pop %v5307
  %v5692 = vrsqrt.pop %v5308
  %v5693 = vrsqrt.pop %v5309
  %v5694 = vrsqrt.pop %v5310
  %v5695 = vrsqrt.pop %v5311
  %v5696 = vrsqrt.pop %v5312
  %v5697 = vrsqrt.pop %v5313
  %v5698 = vrsqrt.pop %v5314
  %v5699 = vrsqrt.pop %v5315
  %v5700 = vrsqrt.pop %v5316
  %v5701 = vrsqrt.pop %v5317
  %v5702 = vrsqrt.pop %v5318
  %v5703 = vrsqrt.pop %v5319
  %v5704 = vrsqrt.pop %v5320
  %v5705 = vrsqrt.pop %v5321
  %v5706 = vrsqrt.pop %v5322
  %v5707 = vrsqrt.pop %v5323
  %v5708 = vrsqrt.pop %v5324
  %v5709 = vrsqrt.pop %v5325
  %v5710 = vrsqrt.pop %v5326
  %v5711 = vrsqrt.pop %v5327
  %v5712 = vrsqrt.pop %v5328
  %v5713 = vrsqrt.pop %v5329
  %v5714 = vrsqrt.pop %v5330
  %v5715 = vrsqrt.pop %v5331
  %v5716 = vrsqrt.pop %v5332
  %v5717 = vrsqrt.pop %v5333
  %v5718 = vrsqrt.pop %v5334
  %v5719 = vrsqrt.pop %v5335
  %v5720 = vrsqrt.pop %v5336
  %v5721 = vrsqrt.pop %v5337
  %v5722 = vrsqrt.pop %v5338
  %v5723 = vrsqrt.pop %v5339
  %v5724 = vrsqrt.pop %v5340
  %v5725 = vrsqrt.pop %v5341
  %v5726 = vrsqrt.pop %v5342
  %v5727 = vrsqrt.pop %v5343
  %v5728 = vrsqrt.pop %v5344
  %v5729 = vrsqrt.pop %v5345
  %v5730 = vrsqrt.pop %v5346
  %v5731 = vrsqrt.pop %v5347
  %v5732 = vrsqrt.pop %v5348
  %v5733 = vrsqrt.pop %v5349
  %v5734 = vrsqrt.pop %v5350
  %v5735 = vrsqrt.pop %v5351
  %v5736 = vrsqrt.pop %v5352
  %v5737 = vrsqrt.pop %v5353
  %v5738 = vrsqrt.pop %v5354
  %v5739 = vrsqrt.pop %v5355
  %v5740 = vrsqrt.pop %v5356
  %v5741 = vrsqrt.pop %v5357
  %v5742 = vrsqrt.pop %v5358
  %v5743 = vrsqrt.pop %v5359
  %v5744 = vrsqrt.pop %v5360
  %v5745 = vrsqrt.pop %v5361
  %v5746 = vrsqrt.pop %v5362
  %v5747 = vrsqrt.pop %v5363
  %v5748 = vrsqrt.pop %v5364
  %v5749 = vrsqrt.pop %v5365
  %v5750 = vrsqrt.pop %v5366
  %v5751 = vrsqrt.pop %v5367
  %v5752 = vrsqrt.pop %v5368
  %v5753 = vrsqrt.pop %v5369
  %v5754 = vrsqrt.pop %v5370
  %v5755 = vrsqrt.pop %v5371
  %v5756 = vrsqrt.pop %v5372
  %v5757 = vrsqrt.pop %v5373
  %v5758 = vrsqrt.pop %v5374
  %v5759 = vrsqrt.pop %v5375
  %v5760 = vrsqrt.pop %v5376
  %v5761 = vrsqrt.pop %v5377
  %v5762 = vrsqrt.pop %v5378
  %v5763 = vrsqrt.pop %v5379
  %v5764 = vrsqrt.pop %v5380
  %v5765 = vrsqrt.pop %v5381
  %v5766 = vrsqrt.pop %v5382
  %v5767 = vrsqrt.pop %v5383
  %v5768 = vrsqrt.pop %v5384
  %v5769 = vrsqrt.pop %v5385
  %v5770 = vrsqrt.pop %v5386
  %v5771 = vrsqrt.pop %v5387
  %v5772 = vrsqrt.pop %v5388
  %v5773 = vrsqrt.pop %v5389
  %v5774 = vrsqrt.pop %v5390
  %v5775 = vrsqrt.pop %v5391
  %v5776 = vrsqrt.pop %v5392
  %v5777 = vrsqrt.pop %v5393
  %v5778 = vld [vmem:[%s1] sm:$0xff]
  %v5779 = vld [vmem:[%s1 + $0x8] sm:$0xff]
  %v5780 = vld [vmem:[%s1 + $0x10] sm:$0xff]
  %v5781 = vld [vmem:[%s1 + $0x18] sm:$0xff]
  %v5782 = vld [vmem:[%s1 + $0x20] sm:$0xff]
  %v5783 = vld [vmem:[%s1 + $0x28] sm:$0xff]
  %v5784 = vld [vmem:[%s1 + $0x30] sm:$0xff]
  %v5785 = vld [vmem:[%s1 + $0x38] sm:$0xff]
  %v5786 = vld [vmem:[%s1 + $0x40] sm:$0xff]
  %v5787 = vld [vmem:[%s1 + $0x48] sm:$0xff]
  %v5788 = vld [vmem:[%s1 + $0x50] sm:$0xff]
  %v5789 = vld [vmem:[%s1 + $0x58] sm:$0xff]
  %v5790 = vld [vmem:[%s1 + $0x60] sm:$0xff]
  %v5791 = vld [vmem:[%s1 + $0x68] sm:$0xff]
  %v5792 = vld [vmem:[%s1 + $0x70] sm:$0xff]
  %v5793 = vld [vmem:[%s1 + $0x78] sm:$0xff]
  %v5794 = vld [vmem:[%s1 + $0x80] sm:$0xff]
  %v5795 = vld [vmem:[%s1 + $0x88] sm:$0xff]
  %v5796 = vld [vmem:[%s1 + $0x90] sm:$0xff]
  %v5797 = vld [vmem:[%s1 + $0x98] sm:$0xff]
  %v5798 = vld [vmem:[%s1 + $0xa0] sm:$0xff]
  %v5799 = vld [vmem:[%s1 + $0xa8] sm:$0xff]
  %v5800 = vld [vmem:[%s1 + $0xb0] sm:$0xff]
  %v5801 = vld [vmem:[%s1 + $0xb8] sm:$0xff]
  %v5802 = vld [vmem:[%s1 + $0xc0] sm:$0xff]
  %v5803 = vld [vmem:[%s1 + $0xc8] sm:$0xff]
  %v5804 = vld [vmem:[%s1 + $0xd0] sm:$0xff]
  %v5805 = vld [vmem:[%s1 + $0xd8] sm:$0xff]
  %v5806 = vld [vmem:[%s1 + $0xe0] sm:$0xff]
  %v5807 = vld [vmem:[%s1 + $0xe8] sm:$0xff]
  %v5808 = vld [vmem:[%s1 + $0xf0] sm:$0xff]
  %v5809 = vld [vmem:[%s1 + $0xf8] sm:$0xff]
  %v5810 = vld [vmem:[%s1 + $0x100] sm:$0xff]
  %v5811 = vld [vmem:[%s1 + $0x108] sm:$0xff]
  %v5812 = vld [vmem:[%s1 + $0x110] sm:$0xff]
  %v5813 = vld [vmem:[%s1 + $0x118] sm:$0xff]
  %v5814 = vld [vmem:[%s1 + $0x120] sm:$0xff]
  %v5815 = vld [vmem:[%s1 + $0x128] sm:$0xff]
  %v5816 = vld [vmem:[%s1 + $0x130] sm:$0xff]
  %v5817 = vld [vmem:[%s1 + $0x138] sm:$0xff]
  %v5818 = vld [vmem:[%s1 + $0x140] sm:$0xff]
  %v5819 = vld [vmem:[%s1 + $0x148] sm:$0xff]
  %v5820 = vld [vmem:[%s1 + $0x150] sm:$0xff]
  %v5821 = vld [vmem:[%s1 + $0x158] sm:$0xff]
  %v5822 = vld [vmem:[%s1 + $0x160] sm:$0xff]
  %v5823 = vld [vmem:[%s1 + $0x168] sm:$0xff]
  %v5824 = vld [vmem:[%s1 + $0x170] sm:$0xff]
  %v5825 = vld [vmem:[%s1 + $0x178] sm:$0xff]
  %v5826 = vld [vmem:[%s1 + $0x180] sm:$0xff]
  %v5827 = vld [vmem:[%s1 + $0x188] sm:$0xff]
  %v5828 = vld [vmem:[%s1 + $0x190] sm:$0xff]
  %v5829 = vld [vmem:[%s1 + $0x198] sm:$0xff]
  %v5830 = vld [vmem:[%s1 + $0x1a0] sm:$0xff]
  %v5831 = vld [vmem:[%s1 + $0x1a8] sm:$0xff]
  %v5832 = vld [vmem:[%s1 + $0x1b0] sm:$0xff]
  %v5833 = vld [vmem:[%s1 + $0x1b8] sm:$0xff]
  %v5834 = vld [vmem:[%s1 + $0x1c0] sm:$0xff]
  %v5835 = vld [vmem:[%s1 + $0x1c8] sm:$0xff]
  %v5836 = vld [vmem:[%s1 + $0x1d0] sm:$0xff]
  %v5837 = vld [vmem:[%s1 + $0x1d8] sm:$0xff]
  %v5838 = vld [vmem:[%s1 + $0x1e0] sm:$0xff]
  %v5839 = vld [vmem:[%s1 + $0x1e8] sm:$0xff]
  %v5840 = vld [vmem:[%s1 + $0x1f0] sm:$0xff]
  %v5841 = vld [vmem:[%s1 + $0x1f8] sm:$0xff]
  %v5842 = vld [vmem:[%s1 + $0x200] sm:$0xff]
  %v5843 = vld [vmem:[%s1 + $0x208] sm:$0xff]
  %v5844 = vld [vmem:[%s1 + $0x210] sm:$0xff]
  %v5845 = vld [vmem:[%s1 + $0x218] sm:$0xff]
  %v5846 = vld [vmem:[%s1 + $0x220] sm:$0xff]
  %v5847 = vld [vmem:[%s1 + $0x228] sm:$0xff]
  %v5848 = vld [vmem:[%s1 + $0x230] sm:$0xff]
  %v5849 = vld [vmem:[%s1 + $0x238] sm:$0xff]
  %v5850 = vld [vmem:[%s1 + $0x240] sm:$0xff]
  %v5851 = vld [vmem:[%s1 + $0x248] sm:$0xff]
  %v5852 = vld [vmem:[%s1 + $0x250] sm:$0xff]
  %v5853 = vld [vmem:[%s1 + $0x258] sm:$0xff]
  %v5854 = vld [vmem:[%s1 + $0x260] sm:$0xff]
  %v5855 = vld [vmem:[%s1 + $0x268] sm:$0xff]
  %v5856 = vld [vmem:[%s1 + $0x270] sm:$0xff]
  %v5857 = vld [vmem:[%s1 + $0x278] sm:$0xff]
  %v5858 = vld [vmem:[%s1 + $0x280] sm:$0xff]
  %v5859 = vld [vmem:[%s1 + $0x288] sm:$0xff]
  %v5860 = vld [vmem:[%s1 + $0x290] sm:$0xff]
  %v5861 = vld [vmem:[%s1 + $0x298] sm:$0xff]
  %v5862 = vld [vmem:[%s1 + $0x2a0] sm:$0xff]
  %v5863 = vld [vmem:[%s1 + $0x2a8] sm:$0xff]
  %v5864 = vld [vmem:[%s1 + $0x2b0] sm:$0xff]
  %v5865 = vld [vmem:[%s1 + $0x2b8] sm:$0xff]
  %v5866 = vld [vmem:[%s1 + $0x2c0] sm:$0xff]
  %v5867 = vld [vmem:[%s1 + $0x2c8] sm:$0xff]
  %v5868 = vld [vmem:[%s1 + $0x2d0] sm:$0xff]
  %v5869 = vld [vmem:[%s1 + $0x2d8] sm:$0xff]
  %v5870 = vld [vmem:[%s1 + $0x2e0] sm:$0xff]
  %v5871 = vld [vmem:[%s1 + $0x2e8] sm:$0xff]
  %v5872 = vld [vmem:[%s1 + $0x2f0] sm:$0xff]
  %v5873 = vld [vmem:[%s1 + $0x2f8] sm:$0xff]
  %v5874 = vld [vmem:[%s1 + $0x300] sm:$0xff]
  %v5875 = vld [vmem:[%s1 + $0x308] sm:$0xff]
  %v5876 = vld [vmem:[%s1 + $0x310] sm:$0xff]
  %v5877 = vld [vmem:[%s1 + $0x318] sm:$0xff]
  %v5878 = vld [vmem:[%s1 + $0x320] sm:$0xff]
  %v5879 = vld [vmem:[%s1 + $0x328] sm:$0xff]
  %v5880 = vld [vmem:[%s1 + $0x330] sm:$0xff]
  %v5881 = vld [vmem:[%s1 + $0x338] sm:$0xff]
  %v5882 = vld [vmem:[%s1 + $0x340] sm:$0xff]
  %v5883 = vld [vmem:[%s1 + $0x348] sm:$0xff]
  %v5884 = vld [vmem:[%s1 + $0x350] sm:$0xff]
  %v5885 = vld [vmem:[%s1 + $0x358] sm:$0xff]
  %v5886 = vld [vmem:[%s1 + $0x360] sm:$0xff]
  %v5887 = vld [vmem:[%s1 + $0x368] sm:$0xff]
  %v5888 = vld [vmem:[%s1 + $0x370] sm:$0xff]
  %v5889 = vld [vmem:[%s1 + $0x378] sm:$0xff]
  %v5890 = vld [vmem:[%s1 + $0x380] sm:$0xff]
  %v5891 = vld [vmem:[%s1 + $0x388] sm:$0xff]
  %v5892 = vld [vmem:[%s1 + $0x390] sm:$0xff]
  %v5893 = vld [vmem:[%s1 + $0x398] sm:$0xff]
  %v5894 = vld [vmem:[%s1 + $0x3a0] sm:$0xff]
  %v5895 = vld [vmem:[%s1 + $0x3a8] sm:$0xff]
  %v5896 = vld [vmem:[%s1 + $0x3b0] sm:$0xff]
  %v5897 = vld [vmem:[%s1 + $0x3b8] sm:$0xff]
  %v5898 = vld [vmem:[%s1 + $0x3c0] sm:$0xff]
  %v5899 = vld [vmem:[%s1 + $0x3c8] sm:$0xff]
  %v5900 = vld [vmem:[%s1 + $0x3d0] sm:$0xff]
  %v5901 = vld [vmem:[%s1 + $0x3d8] sm:$0xff]
  %v5902 = vld [vmem:[%s1 + $0x3e0] sm:$0xff]
  %v5903 = vld [vmem:[%s1 + $0x3e8] sm:$0xff]
  %v5904 = vld [vmem:[%s1 + $0x3f0] sm:$0xff]
  %v5905 = vld [vmem:[%s1 + $0x3f8] sm:$0xff]
  %v5906 = vld [vmem:[%s1 + $0x400] sm:$0xff]
  %v5907 = vld [vmem:[%s1 + $0x408] sm:$0xff]
  %v5908 = vld [vmem:[%s1 + $0x410] sm:$0xff]
  %v5909 = vld [vmem:[%s1 + $0x418] sm:$0xff]
  %v5910 = vld [vmem:[%s1 + $0x420] sm:$0xff]
  %v5911 = vld [vmem:[%s1 + $0x428] sm:$0xff]
  %v5912 = vld [vmem:[%s1 + $0x430] sm:$0xff]
  %v5913 = vld [vmem:[%s1 + $0x438] sm:$0xff]
  %v5914 = vld [vmem:[%s1 + $0x440] sm:$0xff]
  %v5915 = vld [vmem:[%s1 + $0x448] sm:$0xff]
  %v5916 = vld [vmem:[%s1 + $0x450] sm:$0xff]
  %v5917 = vld [vmem:[%s1 + $0x458] sm:$0xff]
  %v5918 = vld [vmem:[%s1 + $0x460] sm:$0xff]
  %v5919 = vld [vmem:[%s1 + $0x468] sm:$0xff]
  %v5920 = vld [vmem:[%s1 + $0x470] sm:$0xff]
  %v5921 = vld [vmem:[%s1 + $0x478] sm:$0xff]
  %v5922 = vld [vmem:[%s1 + $0x480] sm:$0xff]
  %v5923 = vld [vmem:[%s1 + $0x488] sm:$0xff]
  %v5924 = vld [vmem:[%s1 + $0x490] sm:$0xff]
  %v5925 = vld [vmem:[%s1 + $0x498] sm:$0xff]
  %v5926 = vld [vmem:[%s1 + $0x4a0] sm:$0xff]
  %v5927 = vld [vmem:[%s1 + $0x4a8] sm:$0xff]
  %v5928 = vld [vmem:[%s1 + $0x4b0] sm:$0xff]
  %v5929 = vld [vmem:[%s1 + $0x4b8] sm:$0xff]
  %v5930 = vld [vmem:[%s1 + $0x4c0] sm:$0xff]
  %v5931 = vld [vmem:[%s1 + $0x4c8] sm:$0xff]
  %v5932 = vld [vmem:[%s1 + $0x4d0] sm:$0xff]
  %v5933 = vld [vmem:[%s1 + $0x4d8] sm:$0xff]
  %v5934 = vld [vmem:[%s1 + $0x4e0] sm:$0xff]
  %v5935 = vld [vmem:[%s1 + $0x4e8] sm:$0xff]
  %v5936 = vld [vmem:[%s1 + $0x4f0] sm:$0xff]
  %v5937 = vld [vmem:[%s1 + $0x4f8] sm:$0xff]
  %v5938 = vld [vmem:[%s1 + $0x500] sm:$0xff]
  %v5939 = vld [vmem:[%s1 + $0x508] sm:$0xff]
  %v5940 = vld [vmem:[%s1 + $0x510] sm:$0xff]
  %v5941 = vld [vmem:[%s1 + $0x518] sm:$0xff]
  %v5942 = vld [vmem:[%s1 + $0x520] sm:$0xff]
  %v5943 = vld [vmem:[%s1 + $0x528] sm:$0xff]
  %v5944 = vld [vmem:[%s1 + $0x530] sm:$0xff]
  %v5945 = vld [vmem:[%s1 + $0x538] sm:$0xff]
  %v5946 = vld [vmem:[%s1 + $0x540] sm:$0xff]
  %v5947 = vld [vmem:[%s1 + $0x548] sm:$0xff]
  %v5948 = vld [vmem:[%s1 + $0x550] sm:$0xff]
  %v5949 = vld [vmem:[%s1 + $0x558] sm:$0xff]
  %v5950 = vld [vmem:[%s1 + $0x560] sm:$0xff]
  %v5951 = vld [vmem:[%s1 + $0x568] sm:$0xff]
  %v5952 = vld [vmem:[%s1 + $0x570] sm:$0xff]
  %v5953 = vld [vmem:[%s1 + $0x578] sm:$0xff]
  %v5954 = vld [vmem:[%s1 + $0x580] sm:$0xff]
  %v5955 = vld [vmem:[%s1 + $0x588] sm:$0xff]
  %v5956 = vld [vmem:[%s1 + $0x590] sm:$0xff]
  %v5957 = vld [vmem:[%s1 + $0x598] sm:$0xff]
  %v5958 = vld [vmem:[%s1 + $0x5a0] sm:$0xff]
  %v5959 = vld [vmem:[%s1 + $0x5a8] sm:$0xff]
  %v5960 = vld [vmem:[%s1 + $0x5b0] sm:$0xff]
  %v5961 = vld [vmem:[%s1 + $0x5b8] sm:$0xff]
  %v5962 = vld [vmem:[%s1 + $0x5c0] sm:$0xff]
  %v5963 = vld [vmem:[%s1 + $0x5c8] sm:$0xff]
  %v5964 = vld [vmem:[%s1 + $0x5d0] sm:$0xff]
  %v5965 = vld [vmem:[%s1 + $0x5d8] sm:$0xff]
  %v5966 = vld [vmem:[%s1 + $0x5e0] sm:$0xff]
  %v5967 = vld [vmem:[%s1 + $0x5e8] sm:$0xff]
  %v5968 = vld [vmem:[%s1 + $0x5f0] sm:$0xff]
  %v5969 = vld [vmem:[%s1 + $0x5f8] sm:$0xff]
  %v5970 = vld [vmem:[%s1 + $0x600] sm:$0xff]
  %v5971 = vld [vmem:[%s1 + $0x608] sm:$0xff]
  %v5972 = vld [vmem:[%s1 + $0x610] sm:$0xff]
  %v5973 = vld [vmem:[%s1 + $0x618] sm:$0xff]
  %v5974 = vld [vmem:[%s1 + $0x620] sm:$0xff]
  %v5975 = vld [vmem:[%s1 + $0x628] sm:$0xff]
  %v5976 = vld [vmem:[%s1 + $0x630] sm:$0xff]
  %v5977 = vld [vmem:[%s1 + $0x638] sm:$0xff]
  %v5978 = vld [vmem:[%s1 + $0x640] sm:$0xff]
  %v5979 = vld [vmem:[%s1 + $0x648] sm:$0xff]
  %v5980 = vld [vmem:[%s1 + $0x650] sm:$0xff]
  %v5981 = vld [vmem:[%s1 + $0x658] sm:$0xff]
  %v5982 = vld [vmem:[%s1 + $0x660] sm:$0xff]
  %v5983 = vld [vmem:[%s1 + $0x668] sm:$0xff]
  %v5984 = vld [vmem:[%s1 + $0x670] sm:$0xff]
  %v5985 = vld [vmem:[%s1 + $0x678] sm:$0xff]
  %v5986 = vld [vmem:[%s1 + $0x680] sm:$0xff]
  %v5987 = vld [vmem:[%s1 + $0x688] sm:$0xff]
  %v5988 = vld [vmem:[%s1 + $0x690] sm:$0xff]
  %v5989 = vld [vmem:[%s1 + $0x698] sm:$0xff]
  %v5990 = vld [vmem:[%s1 + $0x6a0] sm:$0xff]
  %v5991 = vld [vmem:[%s1 + $0x6a8] sm:$0xff]
  %v5992 = vld [vmem:[%s1 + $0x6b0] sm:$0xff]
  %v5993 = vld [vmem:[%s1 + $0x6b8] sm:$0xff]
  %v5994 = vld [vmem:[%s1 + $0x6c0] sm:$0xff]
  %v5995 = vld [vmem:[%s1 + $0x6c8] sm:$0xff]
  %v5996 = vld [vmem:[%s1 + $0x6d0] sm:$0xff]
  %v5997 = vld [vmem:[%s1 + $0x6d8] sm:$0xff]
  %v5998 = vld [vmem:[%s1 + $0x6e0] sm:$0xff]
  %v5999 = vld [vmem:[%s1 + $0x6e8] sm:$0xff]
  %v6000 = vld [vmem:[%s1 + $0x6f0] sm:$0xff]
  %v6001 = vld [vmem:[%s1 + $0x6f8] sm:$0xff]
  %v6002 = vld [vmem:[%s1 + $0x700] sm:$0xff]
  %v6003 = vld [vmem:[%s1 + $0x708] sm:$0xff]
  %v6004 = vld [vmem:[%s1 + $0x710] sm:$0xff]
  %v6005 = vld [vmem:[%s1 + $0x718] sm:$0xff]
  %v6006 = vld [vmem:[%s1 + $0x720] sm:$0xff]
  %v6007 = vld [vmem:[%s1 + $0x728] sm:$0xff]
  %v6008 = vld [vmem:[%s1 + $0x730] sm:$0xff]
  %v6009 = vld [vmem:[%s1 + $0x738] sm:$0xff]
  %v6010 = vld [vmem:[%s1 + $0x740] sm:$0xff]
  %v6011 = vld [vmem:[%s1 + $0x748] sm:$0xff]
  %v6012 = vld [vmem:[%s1 + $0x750] sm:$0xff]
  %v6013 = vld [vmem:[%s1 + $0x758] sm:$0xff]
  %v6014 = vld [vmem:[%s1 + $0x760] sm:$0xff]
  %v6015 = vld [vmem:[%s1 + $0x768] sm:$0xff]
  %v6016 = vld [vmem:[%s1 + $0x770] sm:$0xff]
  %v6017 = vld [vmem:[%s1 + $0x778] sm:$0xff]
  %v6018 = vld [vmem:[%s1 + $0x780] sm:$0xff]
  %v6019 = vld [vmem:[%s1 + $0x788] sm:$0xff]
  %v6020 = vld [vmem:[%s1 + $0x790] sm:$0xff]
  %v6021 = vld [vmem:[%s1 + $0x798] sm:$0xff]
  %v6022 = vld [vmem:[%s1 + $0x7a0] sm:$0xff]
  %v6023 = vld [vmem:[%s1 + $0x7a8] sm:$0xff]
  %v6024 = vld [vmem:[%s1 + $0x7b0] sm:$0xff]
  %v6025 = vld [vmem:[%s1 + $0x7b8] sm:$0xff]
  %v6026 = vld [vmem:[%s1 + $0x7c0] sm:$0xff]
  %v6027 = vld [vmem:[%s1 + $0x7c8] sm:$0xff]
  %v6028 = vld [vmem:[%s1 + $0x7d0] sm:$0xff]
  %v6029 = vld [vmem:[%s1 + $0x7d8] sm:$0xff]
  %v6030 = vld [vmem:[%s1 + $0x7e0] sm:$0xff]
  %v6031 = vld [vmem:[%s1 + $0x7e8] sm:$0xff]
  %v6032 = vld [vmem:[%s1 + $0x7f0] sm:$0xff]
  %v6033 = vld [vmem:[%s1 + $0x7f8] sm:$0xff]
  %v6034 = vld [vmem:[%s1 + $0x800] sm:$0xff]
  %v6035 = vld [vmem:[%s1 + $0x808] sm:$0xff]
  %v6036 = vld [vmem:[%s1 + $0x810] sm:$0xff]
  %v6037 = vld [vmem:[%s1 + $0x818] sm:$0xff]
  %v6038 = vld [vmem:[%s1 + $0x820] sm:$0xff]
  %v6039 = vld [vmem:[%s1 + $0x828] sm:$0xff]
  %v6040 = vld [vmem:[%s1 + $0x830] sm:$0xff]
  %v6041 = vld [vmem:[%s1 + $0x838] sm:$0xff]
  %v6042 = vld [vmem:[%s1 + $0x840] sm:$0xff]
  %v6043 = vld [vmem:[%s1 + $0x848] sm:$0xff]
  %v6044 = vld [vmem:[%s1 + $0x850] sm:$0xff]
  %v6045 = vld [vmem:[%s1 + $0x858] sm:$0xff]
  %v6046 = vld [vmem:[%s1 + $0x860] sm:$0xff]
  %v6047 = vld [vmem:[%s1 + $0x868] sm:$0xff]
  %v6048 = vld [vmem:[%s1 + $0x870] sm:$0xff]
  %v6049 = vld [vmem:[%s1 + $0x878] sm:$0xff]
  %v6050 = vld [vmem:[%s1 + $0x880] sm:$0xff]
  %v6051 = vld [vmem:[%s1 + $0x888] sm:$0xff]
  %v6052 = vld [vmem:[%s1 + $0x890] sm:$0xff]
  %v6053 = vld [vmem:[%s1 + $0x898] sm:$0xff]
  %v6054 = vld [vmem:[%s1 + $0x8a0] sm:$0xff]
  %v6055 = vld [vmem:[%s1 + $0x8a8] sm:$0xff]
  %v6056 = vld [vmem:[%s1 + $0x8b0] sm:$0xff]
  %v6057 = vld [vmem:[%s1 + $0x8b8] sm:$0xff]
  %v6058 = vld [vmem:[%s1 + $0x8c0] sm:$0xff]
  %v6059 = vld [vmem:[%s1 + $0x8c8] sm:$0xff]
  %v6060 = vld [vmem:[%s1 + $0x8d0] sm:$0xff]
  %v6061 = vld [vmem:[%s1 + $0x8d8] sm:$0xff]
  %v6062 = vld [vmem:[%s1 + $0x8e0] sm:$0xff]
  %v6063 = vld [vmem:[%s1 + $0x8e8] sm:$0xff]
  %v6064 = vld [vmem:[%s1 + $0x8f0] sm:$0xff]
  %v6065 = vld [vmem:[%s1 + $0x8f8] sm:$0xff]
  %v6066 = vld [vmem:[%s1 + $0x900] sm:$0xff]
  %v6067 = vld [vmem:[%s1 + $0x908] sm:$0xff]
  %v6068 = vld [vmem:[%s1 + $0x910] sm:$0xff]
  %v6069 = vld [vmem:[%s1 + $0x918] sm:$0xff]
  %v6070 = vld [vmem:[%s1 + $0x920] sm:$0xff]
  %v6071 = vld [vmem:[%s1 + $0x928] sm:$0xff]
  %v6072 = vld [vmem:[%s1 + $0x930] sm:$0xff]
  %v6073 = vld [vmem:[%s1 + $0x938] sm:$0xff]
  %v6074 = vld [vmem:[%s1 + $0x940] sm:$0xff]
  %v6075 = vld [vmem:[%s1 + $0x948] sm:$0xff]
  %v6076 = vld [vmem:[%s1 + $0x950] sm:$0xff]
  %v6077 = vld [vmem:[%s1 + $0x958] sm:$0xff]
  %v6078 = vld [vmem:[%s1 + $0x960] sm:$0xff]
  %v6079 = vld [vmem:[%s1 + $0x968] sm:$0xff]
  %v6080 = vld [vmem:[%s1 + $0x970] sm:$0xff]
  %v6081 = vld [vmem:[%s1 + $0x978] sm:$0xff]
  %v6082 = vld [vmem:[%s1 + $0x980] sm:$0xff]
  %v6083 = vld [vmem:[%s1 + $0x988] sm:$0xff]
  %v6084 = vld [vmem:[%s1 + $0x990] sm:$0xff]
  %v6085 = vld [vmem:[%s1 + $0x998] sm:$0xff]
  %v6086 = vld [vmem:[%s1 + $0x9a0] sm:$0xff]
  %v6087 = vld [vmem:[%s1 + $0x9a8] sm:$0xff]
  %v6088 = vld [vmem:[%s1 + $0x9b0] sm:$0xff]
  %v6089 = vld [vmem:[%s1 + $0x9b8] sm:$0xff]
  %v6090 = vld [vmem:[%s1 + $0x9c0] sm:$0xff]
  %v6091 = vld [vmem:[%s1 + $0x9c8] sm:$0xff]
  %v6092 = vld [vmem:[%s1 + $0x9d0] sm:$0xff]
  %v6093 = vld [vmem:[%s1 + $0x9d8] sm:$0xff]
  %v6094 = vld [vmem:[%s1 + $0x9e0] sm:$0xff]
  %v6095 = vld [vmem:[%s1 + $0x9e8] sm:$0xff]
  %v6096 = vld [vmem:[%s1 + $0x9f0] sm:$0xff]
  %v6097 = vld [vmem:[%s1 + $0x9f8] sm:$0xff]
  %v6098 = vld [vmem:[%s1 + $0xa00] sm:$0xff]
  %v6099 = vld [vmem:[%s1 + $0xa08] sm:$0xff]
  %v6100 = vld [vmem:[%s1 + $0xa10] sm:$0xff]
  %v6101 = vld [vmem:[%s1 + $0xa18] sm:$0xff]
  %v6102 = vld [vmem:[%s1 + $0xa20] sm:$0xff]
  %v6103 = vld [vmem:[%s1 + $0xa28] sm:$0xff]
  %v6104 = vld [vmem:[%s1 + $0xa30] sm:$0xff]
  %v6105 = vld [vmem:[%s1 + $0xa38] sm:$0xff]
  %v6106 = vld [vmem:[%s1 + $0xa40] sm:$0xff]
  %v6107 = vld [vmem:[%s1 + $0xa48] sm:$0xff]
  %v6108 = vld [vmem:[%s1 + $0xa50] sm:$0xff]
  %v6109 = vld [vmem:[%s1 + $0xa58] sm:$0xff]
  %v6110 = vld [vmem:[%s1 + $0xa60] sm:$0xff]
  %v6111 = vld [vmem:[%s1 + $0xa68] sm:$0xff]
  %v6112 = vld [vmem:[%s1 + $0xa70] sm:$0xff]
  %v6113 = vld [vmem:[%s1 + $0xa78] sm:$0xff]
  %v6114 = vld [vmem:[%s1 + $0xa80] sm:$0xff]
  %v6115 = vld [vmem:[%s1 + $0xa88] sm:$0xff]
  %v6116 = vld [vmem:[%s1 + $0xa90] sm:$0xff]
  %v6117 = vld [vmem:[%s1 + $0xa98] sm:$0xff]
  %v6118 = vld [vmem:[%s1 + $0xaa0] sm:$0xff]
  %v6119 = vld [vmem:[%s1 + $0xaa8] sm:$0xff]
  %v6120 = vld [vmem:[%s1 + $0xab0] sm:$0xff]
  %v6121 = vld [vmem:[%s1 + $0xab8] sm:$0xff]
  %v6122 = vld [vmem:[%s1 + $0xac0] sm:$0xff]
  %v6123 = vld [vmem:[%s1 + $0xac8] sm:$0xff]
  %v6124 = vld [vmem:[%s1 + $0xad0] sm:$0xff]
  %v6125 = vld [vmem:[%s1 + $0xad8] sm:$0xff]
  %v6126 = vld [vmem:[%s1 + $0xae0] sm:$0xff]
  %v6127 = vld [vmem:[%s1 + $0xae8] sm:$0xff]
  %v6128 = vld [vmem:[%s1 + $0xaf0] sm:$0xff]
  %v6129 = vld [vmem:[%s1 + $0xaf8] sm:$0xff]
  %v6130 = vld [vmem:[%s1 + $0xb00] sm:$0xff]
  %v6131 = vld [vmem:[%s1 + $0xb08] sm:$0xff]
  %v6132 = vld [vmem:[%s1 + $0xb10] sm:$0xff]
  %v6133 = vld [vmem:[%s1 + $0xb18] sm:$0xff]
  %v6134 = vld [vmem:[%s1 + $0xb20] sm:$0xff]
  %v6135 = vld [vmem:[%s1 + $0xb28] sm:$0xff]
  %v6136 = vld [vmem:[%s1 + $0xb30] sm:$0xff]
  %v6137 = vld [vmem:[%s1 + $0xb38] sm:$0xff]
  %v6138 = vld [vmem:[%s1 + $0xb40] sm:$0xff]
  %v6139 = vld [vmem:[%s1 + $0xb48] sm:$0xff]
  %v6140 = vld [vmem:[%s1 + $0xb50] sm:$0xff]
  %v6141 = vld [vmem:[%s1 + $0xb58] sm:$0xff]
  %v6142 = vld [vmem:[%s1 + $0xb60] sm:$0xff]
  %v6143 = vld [vmem:[%s1 + $0xb68] sm:$0xff]
  %v6144 = vld [vmem:[%s1 + $0xb70] sm:$0xff]
  %v6145 = vld [vmem:[%s1 + $0xb78] sm:$0xff]
  %v6146 = vld [vmem:[%s1 + $0xb80] sm:$0xff]
  %v6147 = vld [vmem:[%s1 + $0xb88] sm:$0xff]
  %v6148 = vld [vmem:[%s1 + $0xb90] sm:$0xff]
  %v6149 = vld [vmem:[%s1 + $0xb98] sm:$0xff]
  %v6150 = vld [vmem:[%s1 + $0xba0] sm:$0xff]
  %v6151 = vld [vmem:[%s1 + $0xba8] sm:$0xff]
  %v6152 = vld [vmem:[%s1 + $0xbb0] sm:$0xff]
  %v6153 = vld [vmem:[%s1 + $0xbb8] sm:$0xff]
  %v6154 = vld [vmem:[%s1 + $0xbc0] sm:$0xff]
  %v6155 = vld [vmem:[%s1 + $0xbc8] sm:$0xff]
  %v6156 = vld [vmem:[%s1 + $0xbd0] sm:$0xff]
  %v6157 = vld [vmem:[%s1 + $0xbd8] sm:$0xff]
  %v6158 = vld [vmem:[%s1 + $0xbe0] sm:$0xff]
  %v6159 = vld [vmem:[%s1 + $0xbe8] sm:$0xff]
  %v6160 = vld [vmem:[%s1 + $0xbf0] sm:$0xff]
  %v6161 = vld [vmem:[%s1 + $0xbf8] sm:$0xff]
  %v6162 = vmul.f32 %v5778, %v5394
  %v6163 = vmul.f32 %v5779, %v5395
  %v6164 = vmul.f32 %v5780, %v5396
  %v6165 = vmul.f32 %v5781, %v5397
  %v6166 = vmul.f32 %v5782, %v5398
  %v6167 = vmul.f32 %v5783, %v5399
  %v6168 = vmul.f32 %v5784, %v5400
  %v6169 = vmul.f32 %v5785, %v5401
  %v6170 = vmul.f32 %v5786, %v5402
  %v6171 = vmul.f32 %v5787, %v5403
  %v6172 = vmul.f32 %v5788, %v5404
  %v6173 = vmul.f32 %v5789, %v5405
  %v6174 = vmul.f32 %v5790, %v5406
  %v6175 = vmul.f32 %v5791, %v5407
  %v6176 = vmul.f32 %v5792, %v5408
  %v6177 = vmul.f32 %v5793, %v5409
  %v6178 = vmul.f32 %v5794, %v5410
  %v6179 = vmul.f32 %v5795, %v5411
  %v6180 = vmul.f32 %v5796, %v5412
  %v6181 = vmul.f32 %v5797, %v5413
  %v6182 = vmul.f32 %v5798, %v5414
  %v6183 = vmul.f32 %v5799, %v5415
  %v6184 = vmul.f32 %v5800, %v5416
  %v6185 = vmul.f32 %v5801, %v5417
  %v6186 = vmul.f32 %v5802, %v5418
  %v6187 = vmul.f32 %v5803, %v5419
  %v6188 = vmul.f32 %v5804, %v5420
  %v6189 = vmul.f32 %v5805, %v5421
  %v6190 = vmul.f32 %v5806, %v5422
  %v6191 = vmul.f32 %v5807, %v5423
  %v6192 = vmul.f32 %v5808, %v5424
  %v6193 = vmul.f32 %v5809, %v5425
  %v6194 = vmul.f32 %v5810, %v5426
  %v6195 = vmul.f32 %v5811, %v5427
  %v6196 = vmul.f32 %v5812, %v5428
  %v6197 = vmul.f32 %v5813, %v5429
  %v6198 = vmul.f32 %v5814, %v5430
  %v6199 = vmul.f32 %v5815, %v5431
  %v6200 = vmul.f32 %v5816, %v5432
  %v6201 = vmul.f32 %v5817, %v5433
  %v6202 = vmul.f32 %v5818, %v5434
  %v6203 = vmul.f32 %v5819, %v5435
  %v6204 = vmul.f32 %v5820, %v5436
  %v6205 = vmul.f32 %v5821, %v5437
  %v6206 = vmul.f32 %v5822, %v5438
  %v6207 = vmul.f32 %v5823, %v5439
  %v6208 = vmul.f32 %v5824, %v5440
  %v6209 = vmul.f32 %v5825, %v5441
  %v6210 = vmul.f32 %v5826, %v5442
  %v6211 = vmul.f32 %v5827, %v5443
  %v6212 = vmul.f32 %v5828, %v5444
  %v6213 = vmul.f32 %v5829, %v5445
  %v6214 = vmul.f32 %v5830, %v5446
  %v6215 = vmul.f32 %v5831, %v5447
  %v6216 = vmul.f32 %v5832, %v5448
  %v6217 = vmul.f32 %v5833, %v5449
  %v6218 = vmul.f32 %v5834, %v5450
  %v6219 = vmul.f32 %v5835, %v5451
  %v6220 = vmul.f32 %v5836, %v5452
  %v6221 = vmul.f32 %v5837, %v5453
  %v6222 = vmul.f32 %v5838, %v5454
  %v6223 = vmul.f32 %v5839, %v5455
  %v6224 = vmul.f32 %v5840, %v5456
  %v6225 = vmul.f32 %v5841, %v5457
  %v6226 = vmul.f32 %v5842, %v5458
  %v6227 = vmul.f32 %v5843, %v5459
  %v6228 = vmul.f32 %v5844, %v5460
  %v6229 = vmul.f32 %v5845, %v5461
  %v6230 = vmul.f32 %v5846, %v5462
  %v6231 = vmul.f32 %v5847, %v5463
  %v6232 = vmul.f32 %v5848, %v5464
  %v6233 = vmul.f32 %v5849, %v5465
  %v6234 = vmul.f32 %v5850, %v5466
  %v6235 = vmul.f32 %v5851, %v5467
  %v6236 = vmul.f32 %v5852, %v5468
  %v6237 = vmul.f32 %v5853, %v5469
  %v6238 = vmul.f32 %v5854, %v5470
  %v6239 = vmul.f32 %v5855, %v5471
  %v6240 = vmul.f32 %v5856, %v5472
  %v6241 = vmul.f32 %v5857, %v5473
  %v6242 = vmul.f32 %v5858, %v5474
  %v6243 = vmul.f32 %v5859, %v5475
  %v6244 = vmul.f32 %v5860, %v5476
  %v6245 = vmul.f32 %v5861, %v5477
  %v6246 = vmul.f32 %v5862, %v5478
  %v6247 = vmul.f32 %v5863, %v5479
  %v6248 = vmul.f32 %v5864, %v5480
  %v6249 = vmul.f32 %v5865, %v5481
  %v6250 = vmul.f32 %v5866, %v5482
  %v6251 = vmul.f32 %v5867, %v5483
  %v6252 = vmul.f32 %v5868, %v5484
  %v6253 = vmul.f32 %v5869, %v5485
  %v6254 = vmul.f32 %v5870, %v5486
  %v6255 = vmul.f32 %v5871, %v5487
  %v6256 = vmul.f32 %v5872, %v5488
  %v6257 = vmul.f32 %v5873, %v5489
  %v6258 = vmul.f32 %v5874, %v5490
  %v6259 = vmul.f32 %v5875, %v5491
  %v6260 = vmul.f32 %v5876, %v5492
  %v6261 = vmul.f32 %v5877, %v5493
  %v6262 = vmul.f32 %v5878, %v5494
  %v6263 = vmul.f32 %v5879, %v5495
  %v6264 = vmul.f32 %v5880, %v5496
  %v6265 = vmul.f32 %v5881, %v5497
  %v6266 = vmul.f32 %v5882, %v5498
  %v6267 = vmul.f32 %v5883, %v5499
  %v6268 = vmul.f32 %v5884, %v5500
  %v6269 = vmul.f32 %v5885, %v5501
  %v6270 = vmul.f32 %v5886, %v5502
  %v6271 = vmul.f32 %v5887, %v5503
  %v6272 = vmul.f32 %v5888, %v5504
  %v6273 = vmul.f32 %v5889, %v5505
  %v6274 = vmul.f32 %v5890, %v5506
  %v6275 = vmul.f32 %v5891, %v5507
  %v6276 = vmul.f32 %v5892, %v5508
  %v6277 = vmul.f32 %v5893, %v5509
  %v6278 = vmul.f32 %v5894, %v5510
  %v6279 = vmul.f32 %v5895, %v5511
  %v6280 = vmul.f32 %v5896, %v5512
  %v6281 = vmul.f32 %v5897, %v5513
  %v6282 = vmul.f32 %v5898, %v5514
  %v6283 = vmul.f32 %v5899, %v5515
  %v6284 = vmul.f32 %v5900, %v5516
  %v6285 = vmul.f32 %v5901, %v5517
  %v6286 = vmul.f32 %v5902, %v5518
  %v6287 = vmul.f32 %v5903, %v5519
  %v6288 = vmul.f32 %v5904, %v5520
  %v6289 = vmul.f32 %v5905, %v5521
  %v6290 = vmul.f32 %v5906, %v5522
  %v6291 = vmul.f32 %v5907, %v5523
  %v6292 = vmul.f32 %v5908, %v5524
  %v6293 = vmul.f32 %v5909, %v5525
  %v6294 = vmul.f32 %v5910, %v5526
  %v6295 = vmul.f32 %v5911, %v5527
  %v6296 = vmul.f32 %v5912, %v5528
  %v6297 = vmul.f32 %v5913, %v5529
  %v6298 = vmul.f32 %v5914, %v5530
  %v6299 = vmul.f32 %v5915, %v5531
  %v6300 = vmul.f32 %v5916, %v5532
  %v6301 = vmul.f32 %v5917, %v5533
  %v6302 = vmul.f32 %v5918, %v5534
  %v6303 = vmul.f32 %v5919, %v5535
  %v6304 = vmul.f32 %v5920, %v5536
  %v6305 = vmul.f32 %v5921, %v5537
  %v6306 = vmul.f32 %v5922, %v5538
  %v6307 = vmul.f32 %v5923, %v5539
  %v6308 = vmul.f32 %v5924, %v5540
  %v6309 = vmul.f32 %v5925, %v5541
  %v6310 = vmul.f32 %v5926, %v5542
  %v6311 = vmul.f32 %v5927, %v5543
  %v6312 = vmul.f32 %v5928, %v5544
  %v6313 = vmul.f32 %v5929, %v5545
  %v6314 = vmul.f32 %v5930, %v5546
  %v6315 = vmul.f32 %v5931, %v5547
  %v6316 = vmul.f32 %v5932, %v5548
  %v6317 = vmul.f32 %v5933, %v5549
  %v6318 = vmul.f32 %v5934, %v5550
  %v6319 = vmul.f32 %v5935, %v5551
  %v6320 = vmul.f32 %v5936, %v5552
  %v6321 = vmul.f32 %v5937, %v5553
  %v6322 = vmul.f32 %v5938, %v5554
  %v6323 = vmul.f32 %v5939, %v5555
  %v6324 = vmul.f32 %v5940, %v5556
  %v6325 = vmul.f32 %v5941, %v5557
  %v6326 = vmul.f32 %v5942, %v5558
  %v6327 = vmul.f32 %v5943, %v5559
  %v6328 = vmul.f32 %v5944, %v5560
  %v6329 = vmul.f32 %v5945, %v5561
  %v6330 = vmul.f32 %v5946, %v5562
  %v6331 = vmul.f32 %v5947, %v5563
  %v6332 = vmul.f32 %v5948, %v5564
  %v6333 = vmul.f32 %v5949, %v5565
  %v6334 = vmul.f32 %v5950, %v5566
  %v6335 = vmul.f32 %v5951, %v5567
  %v6336 = vmul.f32 %v5952, %v5568
  %v6337 = vmul.f32 %v5953, %v5569
  %v6338 = vmul.f32 %v5954, %v5570
  %v6339 = vmul.f32 %v5955, %v5571
  %v6340 = vmul.f32 %v5956, %v5572
  %v6341 = vmul.f32 %v5957, %v5573
  %v6342 = vmul.f32 %v5958, %v5574
  %v6343 = vmul.f32 %v5959, %v5575
  %v6344 = vmul.f32 %v5960, %v5576
  %v6345 = vmul.f32 %v5961, %v5577
  %v6346 = vmul.f32 %v5962, %v5578
  %v6347 = vmul.f32 %v5963, %v5579
  %v6348 = vmul.f32 %v5964, %v5580
  %v6349 = vmul.f32 %v5965, %v5581
  %v6350 = vmul.f32 %v5966, %v5582
  %v6351 = vmul.f32 %v5967, %v5583
  %v6352 = vmul.f32 %v5968, %v5584
  %v6353 = vmul.f32 %v5969, %v5585
  %v6354 = vmul.f32 %v5970, %v5586
  %v6355 = vmul.f32 %v5971, %v5587
  %v6356 = vmul.f32 %v5972, %v5588
  %v6357 = vmul.f32 %v5973, %v5589
  %v6358 = vmul.f32 %v5974, %v5590
  %v6359 = vmul.f32 %v5975, %v5591
  %v6360 = vmul.f32 %v5976, %v5592
  %v6361 = vmul.f32 %v5977, %v5593
  %v6362 = vmul.f32 %v5978, %v5594
  %v6363 = vmul.f32 %v5979, %v5595
  %v6364 = vmul.f32 %v5980, %v5596
  %v6365 = vmul.f32 %v5981, %v5597
  %v6366 = vmul.f32 %v5982, %v5598
  %v6367 = vmul.f32 %v5983, %v5599
  %v6368 = vmul.f32 %v5984, %v5600
  %v6369 = vmul.f32 %v5985, %v5601
  %v6370 = vmul.f32 %v5986, %v5602
  %v6371 = vmul.f32 %v5987, %v5603
  %v6372 = vmul.f32 %v5988, %v5604
  %v6373 = vmul.f32 %v5989, %v5605
  %v6374 = vmul.f32 %v5990, %v5606
  %v6375 = vmul.f32 %v5991, %v5607
  %v6376 = vmul.f32 %v5992, %v5608
  %v6377 = vmul.f32 %v5993, %v5609
  %v6378 = vmul.f32 %v5994, %v5610
  %v6379 = vmul.f32 %v5995, %v5611
  %v6380 = vmul.f32 %v5996, %v5612
  %v6381 = vmul.f32 %v5997, %v5613
  %v6382 = vmul.f32 %v5998, %v5614
  %v6383 = vmul.f32 %v5999, %v5615
  %v6384 = vmul.f32 %v6000, %v5616
  %v6385 = vmul.f32 %v6001, %v5617
  %v6386 = vmul.f32 %v6002, %v5618
  %v6387 = vmul.f32 %v6003, %v5619
  %v6388 = vmul.f32 %v6004, %v5620
  %v6389 = vmul.f32 %v6005, %v5621
  %v6390 = vmul.f32 %v6006, %v5622
  %v6391 = vmul.f32 %v6007, %v5623
  %v6392 = vmul.f32 %v6008, %v5624
  %v6393 = vmul.f32 %v6009, %v5625
  %v6394 = vmul.f32 %v6010, %v5626
  %v6395 = vmul.f32 %v6011, %v5627
  %v6396 = vmul.f32 %v6012, %v5628
  %v6397 = vmul.f32 %v6013, %v5629
  %v6398 = vmul.f32 %v6014, %v5630
  %v6399 = vmul.f32 %v6015, %v5631
  %v6400 = vmul.f32 %v6016, %v5632
  %v6401 = vmul.f32 %v6017, %v5633
  %v6402 = vmul.f32 %v6018, %v5634
  %v6403 = vmul.f32 %v6019, %v5635
  %v6404 = vmul.f32 %v6020, %v5636
  %v6405 = vmul.f32 %v6021, %v5637
  %v6406 = vmul.f32 %v6022, %v5638
  %v6407 = vmul.f32 %v6023, %v5639
  %v6408 = vmul.f32 %v6024, %v5640
  %v6409 = vmul.f32 %v6025, %v5641
  %v6410 = vmul.f32 %v6026, %v5642
  %v6411 = vmul.f32 %v6027, %v5643
  %v6412 = vmul.f32 %v6028, %v5644
  %v6413 = vmul.f32 %v6029, %v5645
  %v6414 = vmul.f32 %v6030, %v5646
  %v6415 = vmul.f32 %v6031, %v5647
  %v6416 = vmul.f32 %v6032, %v5648
  %v6417 = vmul.f32 %v6033, %v5649
  %v6418 = vmul.f32 %v6034, %v5650
  %v6419 = vmul.f32 %v6035, %v5651
  %v6420 = vmul.f32 %v6036, %v5652
  %v6421 = vmul.f32 %v6037, %v5653
  %v6422 = vmul.f32 %v6038, %v5654
  %v6423 = vmul.f32 %v6039, %v5655
  %v6424 = vmul.f32 %v6040, %v5656
  %v6425 = vmul.f32 %v6041, %v5657
  %v6426 = vmul.f32 %v6042, %v5658
  %v6427 = vmul.f32 %v6043, %v5659
  %v6428 = vmul.f32 %v6044, %v5660
  %v6429 = vmul.f32 %v6045, %v5661
  %v6430 = vmul.f32 %v6046, %v5662
  %v6431 = vmul.f32 %v6047, %v5663
  %v6432 = vmul.f32 %v6048, %v5664
  %v6433 = vmul.f32 %v6049, %v5665
  %v6434 = vmul.f32 %v6050, %v5666
  %v6435 = vmul.f32 %v6051, %v5667
  %v6436 = vmul.f32 %v6052, %v5668
  %v6437 = vmul.f32 %v6053, %v5669
  %v6438 = vmul.f32 %v6054, %v5670
  %v6439 = vmul.f32 %v6055, %v5671
  %v6440 = vmul.f32 %v6056, %v5672
  %v6441 = vmul.f32 %v6057, %v5673
  %v6442 = vmul.f32 %v6058, %v5674
  %v6443 = vmul.f32 %v6059, %v5675
  %v6444 = vmul.f32 %v6060, %v5676
  %v6445 = vmul.f32 %v6061, %v5677
  %v6446 = vmul.f32 %v6062, %v5678
  %v6447 = vmul.f32 %v6063, %v5679
  %v6448 = vmul.f32 %v6064, %v5680
  %v6449 = vmul.f32 %v6065, %v5681
  %v6450 = vmul.f32 %v6066, %v5682
  %v6451 = vmul.f32 %v6067, %v5683
  %v6452 = vmul.f32 %v6068, %v5684
  %v6453 = vmul.f32 %v6069, %v5685
  %v6454 = vmul.f32 %v6070, %v5686
  %v6455 = vmul.f32 %v6071, %v5687
  %v6456 = vmul.f32 %v6072, %v5688
  %v6457 = vmul.f32 %v6073, %v5689
  %v6458 = vmul.f32 %v6074, %v5690
  %v6459 = vmul.f32 %v6075, %v5691
  %v6460 = vmul.f32 %v6076, %v5692
  %v6461 = vmul.f32 %v6077, %v5693
  %v6462 = vmul.f32 %v6078, %v5694
  %v6463 = vmul.f32 %v6079, %v5695
  %v6464 = vmul.f32 %v6080, %v5696
  %v6465 = vmul.f32 %v6081, %v5697
  %v6466 = vmul.f32 %v6082, %v5698
  %v6467 = vmul.f32 %v6083, %v5699
  %v6468 = vmul.f32 %v6084, %v5700
  %v6469 = vmul.f32 %v6085, %v5701
  %v6470 = vmul.f32 %v6086, %v5702
  %v6471 = vmul.f32 %v6087, %v5703
  %v6472 = vmul.f32 %v6088, %v5704
  %v6473 = vmul.f32 %v6089, %v5705
  %v6474 = vmul.f32 %v6090, %v5706
  %v6475 = vmul.f32 %v6091, %v5707
  %v6476 = vmul.f32 %v6092, %v5708
  %v6477 = vmul.f32 %v6093, %v5709
  %v6478 = vmul.f32 %v6094, %v5710
  %v6479 = vmul.f32 %v6095, %v5711
  %v6480 = vmul.f32 %v6096, %v5712
  %v6481 = vmul.f32 %v6097, %v5713
  %v6482 = vmul.f32 %v6098, %v5714
  %v6483 = vmul.f32 %v6099, %v5715
  %v6484 = vmul.f32 %v6100, %v5716
  %v6485 = vmul.f32 %v6101, %v5717
  %v6486 = vmul.f32 %v6102, %v5718
  %v6487 = vmul.f32 %v6103, %v5719
  %v6488 = vmul.f32 %v6104, %v5720
  %v6489 = vmul.f32 %v6105, %v5721
  %v6490 = vmul.f32 %v6106, %v5722
  %v6491 = vmul.f32 %v6107, %v5723
  %v6492 = vmul.f32 %v6108, %v5724
  %v6493 = vmul.f32 %v6109, %v5725
  %v6494 = vmul.f32 %v6110, %v5726
  %v6495 = vmul.f32 %v6111, %v5727
  %v6496 = vmul.f32 %v6112, %v5728
  %v6497 = vmul.f32 %v6113, %v5729
  %v6498 = vmul.f32 %v6114, %v5730
  %v6499 = vmul.f32 %v6115, %v5731
  %v6500 = vmul.f32 %v6116, %v5732
  %v6501 = vmul.f32 %v6117, %v5733
  %v6502 = vmul.f32 %v6118, %v5734
  %v6503 = vmul.f32 %v6119, %v5735
  %v6504 = vmul.f32 %v6120, %v5736
  %v6505 = vmul.f32 %v6121, %v5737
  %v6506 = vmul.f32 %v6122, %v5738
  %v6507 = vmul.f32 %v6123, %v5739
  %v6508 = vmul.f32 %v6124, %v5740
  %v6509 = vmul.f32 %v6125, %v5741
  %v6510 = vmul.f32 %v6126, %v5742
  %v6511 = vmul.f32 %v6127, %v5743
  %v6512 = vmul.f32 %v6128, %v5744
  %v6513 = vmul.f32 %v6129, %v5745
  %v6514 = vmul.f32 %v6130, %v5746
  %v6515 = vmul.f32 %v6131, %v5747
  %v6516 = vmul.f32 %v6132, %v5748
  %v6517 = vmul.f32 %v6133, %v5749
  %v6518 = vmul.f32 %v6134, %v5750
  %v6519 = vmul.f32 %v6135, %v5751
  %v6520 = vmul.f32 %v6136, %v5752
  %v6521 = vmul.f32 %v6137, %v5753
  %v6522 = vmul.f32 %v6138, %v5754
  %v6523 = vmul.f32 %v6139, %v5755
  %v6524 = vmul.f32 %v6140, %v5756
  %v6525 = vmul.f32 %v6141, %v5757
  %v6526 = vmul.f32 %v6142, %v5758
  %v6527 = vmul.f32 %v6143, %v5759
  %v6528 = vmul.f32 %v6144, %v5760
  %v6529 = vmul.f32 %v6145, %v5761
  %v6530 = vmul.f32 %v6146, %v5762
  %v6531 = vmul.f32 %v6147, %v5763
  %v6532 = vmul.f32 %v6148, %v5764
  %v6533 = vmul.f32 %v6149, %v5765
  %v6534 = vmul.f32 %v6150, %v5766
  %v6535 = vmul.f32 %v6151, %v5767
  %v6536 = vmul.f32 %v6152, %v5768
  %v6537 = vmul.f32 %v6153, %v5769
  %v6538 = vmul.f32 %v6154, %v5770
  %v6539 = vmul.f32 %v6155, %v5771
  %v6540 = vmul.f32 %v6156, %v5772
  %v6541 = vmul.f32 %v6157, %v5773
  %v6542 = vmul.f32 %v6158, %v5774
  %v6543 = vmul.f32 %v6159, %v5775
  %v6544 = vmul.f32 %v6160, %v5776
  %v6545 = vmul.f32 %v6161, %v5777
  %v6546 = vld [vmem:[%s2] sm:$0xff]
  %v6547 = vld [vmem:[%s2 + $0x8] sm:$0xff]
  %v6548 = vld [vmem:[%s2 + $0x10] sm:$0xff]
  %v6549 = vld [vmem:[%s2 + $0x18] sm:$0xff]
  %v6550 = vld [vmem:[%s2 + $0x20] sm:$0xff]
  %v6551 = vld [vmem:[%s2 + $0x28] sm:$0xff]
  %v6552 = vld [vmem:[%s2 + $0x30] sm:$0xff]
  %v6553 = vld [vmem:[%s2 + $0x38] sm:$0xff]
  %v6554 = vld [vmem:[%s2 + $0x40] sm:$0xff]
  %v6555 = vld [vmem:[%s2 + $0x48] sm:$0xff]
  %v6556 = vld [vmem:[%s2 + $0x50] sm:$0xff]
  %v6557 = vld [vmem:[%s2 + $0x58] sm:$0xff]
  %v6558 = vld [vmem:[%s2 + $0x60] sm:$0xff]
  %v6559 = vld [vmem:[%s2 + $0x68] sm:$0xff]
  %v6560 = vld [vmem:[%s2 + $0x70] sm:$0xff]
  %v6561 = vld [vmem:[%s2 + $0x78] sm:$0xff]
  %v6562 = vld [vmem:[%s2 + $0x80] sm:$0xff]
  %v6563 = vld [vmem:[%s2 + $0x88] sm:$0xff]
  %v6564 = vld [vmem:[%s2 + $0x90] sm:$0xff]
  %v6565 = vld [vmem:[%s2 + $0x98] sm:$0xff]
  %v6566 = vld [vmem:[%s2 + $0xa0] sm:$0xff]
  %v6567 = vld [vmem:[%s2 + $0xa8] sm:$0xff]
  %v6568 = vld [vmem:[%s2 + $0xb0] sm:$0xff]
  %v6569 = vld [vmem:[%s2 + $0xb8] sm:$0xff]
  %v6570 = vld [vmem:[%s2 + $0xc0] sm:$0xff]
  %v6571 = vld [vmem:[%s2 + $0xc8] sm:$0xff]
  %v6572 = vld [vmem:[%s2 + $0xd0] sm:$0xff]
  %v6573 = vld [vmem:[%s2 + $0xd8] sm:$0xff]
  %v6574 = vld [vmem:[%s2 + $0xe0] sm:$0xff]
  %v6575 = vld [vmem:[%s2 + $0xe8] sm:$0xff]
  %v6576 = vld [vmem:[%s2 + $0xf0] sm:$0xff]
  %v6577 = vld [vmem:[%s2 + $0xf8] sm:$0xff]
  %v6578 = vld [vmem:[%s2 + $0x100] sm:$0xff]
  %v6579 = vld [vmem:[%s2 + $0x108] sm:$0xff]
  %v6580 = vld [vmem:[%s2 + $0x110] sm:$0xff]
  %v6581 = vld [vmem:[%s2 + $0x118] sm:$0xff]
  %v6582 = vld [vmem:[%s2 + $0x120] sm:$0xff]
  %v6583 = vld [vmem:[%s2 + $0x128] sm:$0xff]
  %v6584 = vld [vmem:[%s2 + $0x130] sm:$0xff]
  %v6585 = vld [vmem:[%s2 + $0x138] sm:$0xff]
  %v6586 = vld [vmem:[%s2 + $0x140] sm:$0xff]
  %v6587 = vld [vmem:[%s2 + $0x148] sm:$0xff]
  %v6588 = vld [vmem:[%s2 + $0x150] sm:$0xff]
  %v6589 = vld [vmem:[%s2 + $0x158] sm:$0xff]
  %v6590 = vld [vmem:[%s2 + $0x160] sm:$0xff]
  %v6591 = vld [vmem:[%s2 + $0x168] sm:$0xff]
  %v6592 = vld [vmem:[%s2 + $0x170] sm:$0xff]
  %v6593 = vld [vmem:[%s2 + $0x178] sm:$0xff]
  %v6594 = vld [vmem:[%s2 + $0x180] sm:$0xff]
  %v6595 = vld [vmem:[%s2 + $0x188] sm:$0xff]
  %v6596 = vld [vmem:[%s2 + $0x190] sm:$0xff]
  %v6597 = vld [vmem:[%s2 + $0x198] sm:$0xff]
  %v6598 = vld [vmem:[%s2 + $0x1a0] sm:$0xff]
  %v6599 = vld [vmem:[%s2 + $0x1a8] sm:$0xff]
  %v6600 = vld [vmem:[%s2 + $0x1b0] sm:$0xff]
  %v6601 = vld [vmem:[%s2 + $0x1b8] sm:$0xff]
  %v6602 = vld [vmem:[%s2 + $0x1c0] sm:$0xff]
  %v6603 = vld [vmem:[%s2 + $0x1c8] sm:$0xff]
  %v6604 = vld [vmem:[%s2 + $0x1d0] sm:$0xff]
  %v6605 = vld [vmem:[%s2 + $0x1d8] sm:$0xff]
  %v6606 = vld [vmem:[%s2 + $0x1e0] sm:$0xff]
  %v6607 = vld [vmem:[%s2 + $0x1e8] sm:$0xff]
  %v6608 = vld [vmem:[%s2 + $0x1f0] sm:$0xff]
  %v6609 = vld [vmem:[%s2 + $0x1f8] sm:$0xff]
  %v6610 = vld [vmem:[%s2 + $0x200] sm:$0xff]
  %v6611 = vld [vmem:[%s2 + $0x208] sm:$0xff]
  %v6612 = vld [vmem:[%s2 + $0x210] sm:$0xff]
  %v6613 = vld [vmem:[%s2 + $0x218] sm:$0xff]
  %v6614 = vld [vmem:[%s2 + $0x220] sm:$0xff]
  %v6615 = vld [vmem:[%s2 + $0x228] sm:$0xff]
  %v6616 = vld [vmem:[%s2 + $0x230] sm:$0xff]
  %v6617 = vld [vmem:[%s2 + $0x238] sm:$0xff]
  %v6618 = vld [vmem:[%s2 + $0x240] sm:$0xff]
  %v6619 = vld [vmem:[%s2 + $0x248] sm:$0xff]
  %v6620 = vld [vmem:[%s2 + $0x250] sm:$0xff]
  %v6621 = vld [vmem:[%s2 + $0x258] sm:$0xff]
  %v6622 = vld [vmem:[%s2 + $0x260] sm:$0xff]
  %v6623 = vld [vmem:[%s2 + $0x268] sm:$0xff]
  %v6624 = vld [vmem:[%s2 + $0x270] sm:$0xff]
  %v6625 = vld [vmem:[%s2 + $0x278] sm:$0xff]
  %v6626 = vld [vmem:[%s2 + $0x280] sm:$0xff]
  %v6627 = vld [vmem:[%s2 + $0x288] sm:$0xff]
  %v6628 = vld [vmem:[%s2 + $0x290] sm:$0xff]
  %v6629 = vld [vmem:[%s2 + $0x298] sm:$0xff]
  %v6630 = vld [vmem:[%s2 + $0x2a0] sm:$0xff]
  %v6631 = vld [vmem:[%s2 + $0x2a8] sm:$0xff]
  %v6632 = vld [vmem:[%s2 + $0x2b0] sm:$0xff]
  %v6633 = vld [vmem:[%s2 + $0x2b8] sm:$0xff]
  %v6634 = vld [vmem:[%s2 + $0x2c0] sm:$0xff]
  %v6635 = vld [vmem:[%s2 + $0x2c8] sm:$0xff]
  %v6636 = vld [vmem:[%s2 + $0x2d0] sm:$0xff]
  %v6637 = vld [vmem:[%s2 + $0x2d8] sm:$0xff]
  %v6638 = vld [vmem:[%s2 + $0x2e0] sm:$0xff]
  %v6639 = vld [vmem:[%s2 + $0x2e8] sm:$0xff]
  %v6640 = vld [vmem:[%s2 + $0x2f0] sm:$0xff]
  %v6641 = vld [vmem:[%s2 + $0x2f8] sm:$0xff]
  %v6642 = vld [vmem:[%s2 + $0x300] sm:$0xff]
  %v6643 = vld [vmem:[%s2 + $0x308] sm:$0xff]
  %v6644 = vld [vmem:[%s2 + $0x310] sm:$0xff]
  %v6645 = vld [vmem:[%s2 + $0x318] sm:$0xff]
  %v6646 = vld [vmem:[%s2 + $0x320] sm:$0xff]
  %v6647 = vld [vmem:[%s2 + $0x328] sm:$0xff]
  %v6648 = vld [vmem:[%s2 + $0x330] sm:$0xff]
  %v6649 = vld [vmem:[%s2 + $0x338] sm:$0xff]
  %v6650 = vld [vmem:[%s2 + $0x340] sm:$0xff]
  %v6651 = vld [vmem:[%s2 + $0x348] sm:$0xff]
  %v6652 = vld [vmem:[%s2 + $0x350] sm:$0xff]
  %v6653 = vld [vmem:[%s2 + $0x358] sm:$0xff]
  %v6654 = vld [vmem:[%s2 + $0x360] sm:$0xff]
  %v6655 = vld [vmem:[%s2 + $0x368] sm:$0xff]
  %v6656 = vld [vmem:[%s2 + $0x370] sm:$0xff]
  %v6657 = vld [vmem:[%s2 + $0x378] sm:$0xff]
  %v6658 = vld [vmem:[%s2 + $0x380] sm:$0xff]
  %v6659 = vld [vmem:[%s2 + $0x388] sm:$0xff]
  %v6660 = vld [vmem:[%s2 + $0x390] sm:$0xff]
  %v6661 = vld [vmem:[%s2 + $0x398] sm:$0xff]
  %v6662 = vld [vmem:[%s2 + $0x3a0] sm:$0xff]
  %v6663 = vld [vmem:[%s2 + $0x3a8] sm:$0xff]
  %v6664 = vld [vmem:[%s2 + $0x3b0] sm:$0xff]
  %v6665 = vld [vmem:[%s2 + $0x3b8] sm:$0xff]
  %v6666 = vld [vmem:[%s2 + $0x3c0] sm:$0xff]
  %v6667 = vld [vmem:[%s2 + $0x3c8] sm:$0xff]
  %v6668 = vld [vmem:[%s2 + $0x3d0] sm:$0xff]
  %v6669 = vld [vmem:[%s2 + $0x3d8] sm:$0xff]
  %v6670 = vld [vmem:[%s2 + $0x3e0] sm:$0xff]
  %v6671 = vld [vmem:[%s2 + $0x3e8] sm:$0xff]
  %v6672 = vld [vmem:[%s2 + $0x3f0] sm:$0xff]
  %v6673 = vld [vmem:[%s2 + $0x3f8] sm:$0xff]
  %v6674 = vld [vmem:[%s2 + $0x400] sm:$0xff]
  %v6675 = vld [vmem:[%s2 + $0x408] sm:$0xff]
  %v6676 = vld [vmem:[%s2 + $0x410] sm:$0xff]
  %v6677 = vld [vmem:[%s2 + $0x418] sm:$0xff]
  %v6678 = vld [vmem:[%s2 + $0x420] sm:$0xff]
  %v6679 = vld [vmem:[%s2 + $0x428] sm:$0xff]
  %v6680 = vld [vmem:[%s2 + $0x430] sm:$0xff]
  %v6681 = vld [vmem:[%s2 + $0x438] sm:$0xff]
  %v6682 = vld [vmem:[%s2 + $0x440] sm:$0xff]
  %v6683 = vld [vmem:[%s2 + $0x448] sm:$0xff]
  %v6684 = vld [vmem:[%s2 + $0x450] sm:$0xff]
  %v6685 = vld [vmem:[%s2 + $0x458] sm:$0xff]
  %v6686 = vld [vmem:[%s2 + $0x460] sm:$0xff]
  %v6687 = vld [vmem:[%s2 + $0x468] sm:$0xff]
  %v6688 = vld [vmem:[%s2 + $0x470] sm:$0xff]
  %v6689 = vld [vmem:[%s2 + $0x478] sm:$0xff]
  %v6690 = vld [vmem:[%s2 + $0x480] sm:$0xff]
  %v6691 = vld [vmem:[%s2 + $0x488] sm:$0xff]
  %v6692 = vld [vmem:[%s2 + $0x490] sm:$0xff]
  %v6693 = vld [vmem:[%s2 + $0x498] sm:$0xff]
  %v6694 = vld [vmem:[%s2 + $0x4a0] sm:$0xff]
  %v6695 = vld [vmem:[%s2 + $0x4a8] sm:$0xff]
  %v6696 = vld [vmem:[%s2 + $0x4b0] sm:$0xff]
  %v6697 = vld [vmem:[%s2 + $0x4b8] sm:$0xff]
  %v6698 = vld [vmem:[%s2 + $0x4c0] sm:$0xff]
  %v6699 = vld [vmem:[%s2 + $0x4c8] sm:$0xff]
  %v6700 = vld [vmem:[%s2 + $0x4d0] sm:$0xff]
  %v6701 = vld [vmem:[%s2 + $0x4d8] sm:$0xff]
  %v6702 = vld [vmem:[%s2 + $0x4e0] sm:$0xff]
  %v6703 = vld [vmem:[%s2 + $0x4e8] sm:$0xff]
  %v6704 = vld [vmem:[%s2 + $0x4f0] sm:$0xff]
  %v6705 = vld [vmem:[%s2 + $0x4f8] sm:$0xff]
  %v6706 = vld [vmem:[%s2 + $0x500] sm:$0xff]
  %v6707 = vld [vmem:[%s2 + $0x508] sm:$0xff]
  %v6708 = vld [vmem:[%s2 + $0x510] sm:$0xff]
  %v6709 = vld [vmem:[%s2 + $0x518] sm:$0xff]
  %v6710 = vld [vmem:[%s2 + $0x520] sm:$0xff]
  %v6711 = vld [vmem:[%s2 + $0x528] sm:$0xff]
  %v6712 = vld [vmem:[%s2 + $0x530] sm:$0xff]
  %v6713 = vld [vmem:[%s2 + $0x538] sm:$0xff]
  %v6714 = vld [vmem:[%s2 + $0x540] sm:$0xff]
  %v6715 = vld [vmem:[%s2 + $0x548] sm:$0xff]
  %v6716 = vld [vmem:[%s2 + $0x550] sm:$0xff]
  %v6717 = vld [vmem:[%s2 + $0x558] sm:$0xff]
  %v6718 = vld [vmem:[%s2 + $0x560] sm:$0xff]
  %v6719 = vld [vmem:[%s2 + $0x568] sm:$0xff]
  %v6720 = vld [vmem:[%s2 + $0x570] sm:$0xff]
  %v6721 = vld [vmem:[%s2 + $0x578] sm:$0xff]
  %v6722 = vld [vmem:[%s2 + $0x580] sm:$0xff]
  %v6723 = vld [vmem:[%s2 + $0x588] sm:$0xff]
  %v6724 = vld [vmem:[%s2 + $0x590] sm:$0xff]
  %v6725 = vld [vmem:[%s2 + $0x598] sm:$0xff]
  %v6726 = vld [vmem:[%s2 + $0x5a0] sm:$0xff]
  %v6727 = vld [vmem:[%s2 + $0x5a8] sm:$0xff]
  %v6728 = vld [vmem:[%s2 + $0x5b0] sm:$0xff]
  %v6729 = vld [vmem:[%s2 + $0x5b8] sm:$0xff]
  %v6730 = vld [vmem:[%s2 + $0x5c0] sm:$0xff]
  %v6731 = vld [vmem:[%s2 + $0x5c8] sm:$0xff]
  %v6732 = vld [vmem:[%s2 + $0x5d0] sm:$0xff]
  %v6733 = vld [vmem:[%s2 + $0x5d8] sm:$0xff]
  %v6734 = vld [vmem:[%s2 + $0x5e0] sm:$0xff]
  %v6735 = vld [vmem:[%s2 + $0x5e8] sm:$0xff]
  %v6736 = vld [vmem:[%s2 + $0x5f0] sm:$0xff]
  %v6737 = vld [vmem:[%s2 + $0x5f8] sm:$0xff]
  %v6738 = vld [vmem:[%s2 + $0x600] sm:$0xff]
  %v6739 = vld [vmem:[%s2 + $0x608] sm:$0xff]
  %v6740 = vld [vmem:[%s2 + $0x610] sm:$0xff]
  %v6741 = vld [vmem:[%s2 + $0x618] sm:$0xff]
  %v6742 = vld [vmem:[%s2 + $0x620] sm:$0xff]
  %v6743 = vld [vmem:[%s2 + $0x628] sm:$0xff]
  %v6744 = vld [vmem:[%s2 + $0x630] sm:$0xff]
  %v6745 = vld [vmem:[%s2 + $0x638] sm:$0xff]
  %v6746 = vld [vmem:[%s2 + $0x640] sm:$0xff]
  %v6747 = vld [vmem:[%s2 + $0x648] sm:$0xff]
  %v6748 = vld [vmem:[%s2 + $0x650] sm:$0xff]
  %v6749 = vld [vmem:[%s2 + $0x658] sm:$0xff]
  %v6750 = vld [vmem:[%s2 + $0x660] sm:$0xff]
  %v6751 = vld [vmem:[%s2 + $0x668] sm:$0xff]
  %v6752 = vld [vmem:[%s2 + $0x670] sm:$0xff]
  %v6753 = vld [vmem:[%s2 + $0x678] sm:$0xff]
  %v6754 = vld [vmem:[%s2 + $0x680] sm:$0xff]
  %v6755 = vld [vmem:[%s2 + $0x688] sm:$0xff]
  %v6756 = vld [vmem:[%s2 + $0x690] sm:$0xff]
  %v6757 = vld [vmem:[%s2 + $0x698] sm:$0xff]
  %v6758 = vld [vmem:[%s2 + $0x6a0] sm:$0xff]
  %v6759 = vld [vmem:[%s2 + $0x6a8] sm:$0xff]
  %v6760 = vld [vmem:[%s2 + $0x6b0] sm:$0xff]
  %v6761 = vld [vmem:[%s2 + $0x6b8] sm:$0xff]
  %v6762 = vld [vmem:[%s2 + $0x6c0] sm:$0xff]
  %v6763 = vld [vmem:[%s2 + $0x6c8] sm:$0xff]
  %v6764 = vld [vmem:[%s2 + $0x6d0] sm:$0xff]
  %v6765 = vld [vmem:[%s2 + $0x6d8] sm:$0xff]
  %v6766 = vld [vmem:[%s2 + $0x6e0] sm:$0xff]
  %v6767 = vld [vmem:[%s2 + $0x6e8] sm:$0xff]
  %v6768 = vld [vmem:[%s2 + $0x6f0] sm:$0xff]
  %v6769 = vld [vmem:[%s2 + $0x6f8] sm:$0xff]
  %v6770 = vld [vmem:[%s2 + $0x700] sm:$0xff]
  %v6771 = vld [vmem:[%s2 + $0x708] sm:$0xff]
  %v6772 = vld [vmem:[%s2 + $0x710] sm:$0xff]
  %v6773 = vld [vmem:[%s2 + $0x718] sm:$0xff]
  %v6774 = vld [vmem:[%s2 + $0x720] sm:$0xff]
  %v6775 = vld [vmem:[%s2 + $0x728] sm:$0xff]
  %v6776 = vld [vmem:[%s2 + $0x730] sm:$0xff]
  %v6777 = vld [vmem:[%s2 + $0x738] sm:$0xff]
  %v6778 = vld [vmem:[%s2 + $0x740] sm:$0xff]
  %v6779 = vld [vmem:[%s2 + $0x748] sm:$0xff]
  %v6780 = vld [vmem:[%s2 + $0x750] sm:$0xff]
  %v6781 = vld [vmem:[%s2 + $0x758] sm:$0xff]
  %v6782 = vld [vmem:[%s2 + $0x760] sm:$0xff]
  %v6783 = vld [vmem:[%s2 + $0x768] sm:$0xff]
  %v6784 = vld [vmem:[%s2 + $0x770] sm:$0xff]
  %v6785 = vld [vmem:[%s2 + $0x778] sm:$0xff]
  %v6786 = vld [vmem:[%s2 + $0x780] sm:$0xff]
  %v6787 = vld [vmem:[%s2 + $0x788] sm:$0xff]
  %v6788 = vld [vmem:[%s2 + $0x790] sm:$0xff]
  %v6789 = vld [vmem:[%s2 + $0x798] sm:$0xff]
  %v6790 = vld [vmem:[%s2 + $0x7a0] sm:$0xff]
  %v6791 = vld [vmem:[%s2 + $0x7a8] sm:$0xff]
  %v6792 = vld [vmem:[%s2 + $0x7b0] sm:$0xff]
  %v6793 = vld [vmem:[%s2 + $0x7b8] sm:$0xff]
  %v6794 = vld [vmem:[%s2 + $0x7c0] sm:$0xff]
  %v6795 = vld [vmem:[%s2 + $0x7c8] sm:$0xff]
  %v6796 = vld [vmem:[%s2 + $0x7d0] sm:$0xff]
  %v6797 = vld [vmem:[%s2 + $0x7d8] sm:$0xff]
  %v6798 = vld [vmem:[%s2 + $0x7e0] sm:$0xff]
  %v6799 = vld [vmem:[%s2 + $0x7e8] sm:$0xff]
  %v6800 = vld [vmem:[%s2 + $0x7f0] sm:$0xff]
  %v6801 = vld [vmem:[%s2 + $0x7f8] sm:$0xff]
  %v6802 = vld [vmem:[%s2 + $0x800] sm:$0xff]
  %v6803 = vld [vmem:[%s2 + $0x808] sm:$0xff]
  %v6804 = vld [vmem:[%s2 + $0x810] sm:$0xff]
  %v6805 = vld [vmem:[%s2 + $0x818] sm:$0xff]
  %v6806 = vld [vmem:[%s2 + $0x820] sm:$0xff]
  %v6807 = vld [vmem:[%s2 + $0x828] sm:$0xff]
  %v6808 = vld [vmem:[%s2 + $0x830] sm:$0xff]
  %v6809 = vld [vmem:[%s2 + $0x838] sm:$0xff]
  %v6810 = vld [vmem:[%s2 + $0x840] sm:$0xff]
  %v6811 = vld [vmem:[%s2 + $0x848] sm:$0xff]
  %v6812 = vld [vmem:[%s2 + $0x850] sm:$0xff]
  %v6813 = vld [vmem:[%s2 + $0x858] sm:$0xff]
  %v6814 = vld [vmem:[%s2 + $0x860] sm:$0xff]
  %v6815 = vld [vmem:[%s2 + $0x868] sm:$0xff]
  %v6816 = vld [vmem:[%s2 + $0x870] sm:$0xff]
  %v6817 = vld [vmem:[%s2 + $0x878] sm:$0xff]
  %v6818 = vld [vmem:[%s2 + $0x880] sm:$0xff]
  %v6819 = vld [vmem:[%s2 + $0x888] sm:$0xff]
  %v6820 = vld [vmem:[%s2 + $0x890] sm:$0xff]
  %v6821 = vld [vmem:[%s2 + $0x898] sm:$0xff]
  %v6822 = vld [vmem:[%s2 + $0x8a0] sm:$0xff]
  %v6823 = vld [vmem:[%s2 + $0x8a8] sm:$0xff]
  %v6824 = vld [vmem:[%s2 + $0x8b0] sm:$0xff]
  %v6825 = vld [vmem:[%s2 + $0x8b8] sm:$0xff]
  %v6826 = vld [vmem:[%s2 + $0x8c0] sm:$0xff]
  %v6827 = vld [vmem:[%s2 + $0x8c8] sm:$0xff]
  %v6828 = vld [vmem:[%s2 + $0x8d0] sm:$0xff]
  %v6829 = vld [vmem:[%s2 + $0x8d8] sm:$0xff]
  %v6830 = vld [vmem:[%s2 + $0x8e0] sm:$0xff]
  %v6831 = vld [vmem:[%s2 + $0x8e8] sm:$0xff]
  %v6832 = vld [vmem:[%s2 + $0x8f0] sm:$0xff]
  %v6833 = vld [vmem:[%s2 + $0x8f8] sm:$0xff]
  %v6834 = vld [vmem:[%s2 + $0x900] sm:$0xff]
  %v6835 = vld [vmem:[%s2 + $0x908] sm:$0xff]
  %v6836 = vld [vmem:[%s2 + $0x910] sm:$0xff]
  %v6837 = vld [vmem:[%s2 + $0x918] sm:$0xff]
  %v6838 = vld [vmem:[%s2 + $0x920] sm:$0xff]
  %v6839 = vld [vmem:[%s2 + $0x928] sm:$0xff]
  %v6840 = vld [vmem:[%s2 + $0x930] sm:$0xff]
  %v6841 = vld [vmem:[%s2 + $0x938] sm:$0xff]
  %v6842 = vld [vmem:[%s2 + $0x940] sm:$0xff]
  %v6843 = vld [vmem:[%s2 + $0x948] sm:$0xff]
  %v6844 = vld [vmem:[%s2 + $0x950] sm:$0xff]
  %v6845 = vld [vmem:[%s2 + $0x958] sm:$0xff]
  %v6846 = vld [vmem:[%s2 + $0x960] sm:$0xff]
  %v6847 = vld [vmem:[%s2 + $0x968] sm:$0xff]
  %v6848 = vld [vmem:[%s2 + $0x970] sm:$0xff]
  %v6849 = vld [vmem:[%s2 + $0x978] sm:$0xff]
  %v6850 = vld [vmem:[%s2 + $0x980] sm:$0xff]
  %v6851 = vld [vmem:[%s2 + $0x988] sm:$0xff]
  %v6852 = vld [vmem:[%s2 + $0x990] sm:$0xff]
  %v6853 = vld [vmem:[%s2 + $0x998] sm:$0xff]
  %v6854 = vld [vmem:[%s2 + $0x9a0] sm:$0xff]
  %v6855 = vld [vmem:[%s2 + $0x9a8] sm:$0xff]
  %v6856 = vld [vmem:[%s2 + $0x9b0] sm:$0xff]
  %v6857 = vld [vmem:[%s2 + $0x9b8] sm:$0xff]
  %v6858 = vld [vmem:[%s2 + $0x9c0] sm:$0xff]
  %v6859 = vld [vmem:[%s2 + $0x9c8] sm:$0xff]
  %v6860 = vld [vmem:[%s2 + $0x9d0] sm:$0xff]
  %v6861 = vld [vmem:[%s2 + $0x9d8] sm:$0xff]
  %v6862 = vld [vmem:[%s2 + $0x9e0] sm:$0xff]
  %v6863 = vld [vmem:[%s2 + $0x9e8] sm:$0xff]
  %v6864 = vld [vmem:[%s2 + $0x9f0] sm:$0xff]
  %v6865 = vld [vmem:[%s2 + $0x9f8] sm:$0xff]
  %v6866 = vld [vmem:[%s2 + $0xa00] sm:$0xff]
  %v6867 = vld [vmem:[%s2 + $0xa08] sm:$0xff]
  %v6868 = vld [vmem:[%s2 + $0xa10] sm:$0xff]
  %v6869 = vld [vmem:[%s2 + $0xa18] sm:$0xff]
  %v6870 = vld [vmem:[%s2 + $0xa20] sm:$0xff]
  %v6871 = vld [vmem:[%s2 + $0xa28] sm:$0xff]
  %v6872 = vld [vmem:[%s2 + $0xa30] sm:$0xff]
  %v6873 = vld [vmem:[%s2 + $0xa38] sm:$0xff]
  %v6874 = vld [vmem:[%s2 + $0xa40] sm:$0xff]
  %v6875 = vld [vmem:[%s2 + $0xa48] sm:$0xff]
  %v6876 = vld [vmem:[%s2 + $0xa50] sm:$0xff]
  %v6877 = vld [vmem:[%s2 + $0xa58] sm:$0xff]
  %v6878 = vld [vmem:[%s2 + $0xa60] sm:$0xff]
  %v6879 = vld [vmem:[%s2 + $0xa68] sm:$0xff]
  %v6880 = vld [vmem:[%s2 + $0xa70] sm:$0xff]
  %v6881 = vld [vmem:[%s2 + $0xa78] sm:$0xff]
  %v6882 = vld [vmem:[%s2 + $0xa80] sm:$0xff]
  %v6883 = vld [vmem:[%s2 + $0xa88] sm:$0xff]
  %v6884 = vld [vmem:[%s2 + $0xa90] sm:$0xff]
  %v6885 = vld [vmem:[%s2 + $0xa98] sm:$0xff]
  %v6886 = vld [vmem:[%s2 + $0xaa0] sm:$0xff]
  %v6887 = vld [vmem:[%s2 + $0xaa8] sm:$0xff]
  %v6888 = vld [vmem:[%s2 + $0xab0] sm:$0xff]
  %v6889 = vld [vmem:[%s2 + $0xab8] sm:$0xff]
  %v6890 = vld [vmem:[%s2 + $0xac0] sm:$0xff]
  %v6891 = vld [vmem:[%s2 + $0xac8] sm:$0xff]
  %v6892 = vld [vmem:[%s2 + $0xad0] sm:$0xff]
  %v6893 = vld [vmem:[%s2 + $0xad8] sm:$0xff]
  %v6894 = vld [vmem:[%s2 + $0xae0] sm:$0xff]
  %v6895 = vld [vmem:[%s2 + $0xae8] sm:$0xff]
  %v6896 = vld [vmem:[%s2 + $0xaf0] sm:$0xff]
  %v6897 = vld [vmem:[%s2 + $0xaf8] sm:$0xff]
  %v6898 = vld [vmem:[%s2 + $0xb00] sm:$0xff]
  %v6899 = vld [vmem:[%s2 + $0xb08] sm:$0xff]
  %v6900 = vld [vmem:[%s2 + $0xb10] sm:$0xff]
  %v6901 = vld [vmem:[%s2 + $0xb18] sm:$0xff]
  %v6902 = vld [vmem:[%s2 + $0xb20] sm:$0xff]
  %v6903 = vld [vmem:[%s2 + $0xb28] sm:$0xff]
  %v6904 = vld [vmem:[%s2 + $0xb30] sm:$0xff]
  %v6905 = vld [vmem:[%s2 + $0xb38] sm:$0xff]
  %v6906 = vld [vmem:[%s2 + $0xb40] sm:$0xff]
  %v6907 = vld [vmem:[%s2 + $0xb48] sm:$0xff]
  %v6908 = vld [vmem:[%s2 + $0xb50] sm:$0xff]
  %v6909 = vld [vmem:[%s2 + $0xb58] sm:$0xff]
  %v6910 = vld [vmem:[%s2 + $0xb60] sm:$0xff]
  %v6911 = vld [vmem:[%s2 + $0xb68] sm:$0xff]
  %v6912 = vld [vmem:[%s2 + $0xb70] sm:$0xff]
  %v6913 = vld [vmem:[%s2 + $0xb78] sm:$0xff]
  %v6914 = vld [vmem:[%s2 + $0xb80] sm:$0xff]
  %v6915 = vld [vmem:[%s2 + $0xb88] sm:$0xff]
  %v6916 = vld [vmem:[%s2 + $0xb90] sm:$0xff]
  %v6917 = vld [vmem:[%s2 + $0xb98] sm:$0xff]
  %v6918 = vld [vmem:[%s2 + $0xba0] sm:$0xff]
  %v6919 = vld [vmem:[%s2 + $0xba8] sm:$0xff]
  %v6920 = vld [vmem:[%s2 + $0xbb0] sm:$0xff]
  %v6921 = vld [vmem:[%s2 + $0xbb8] sm:$0xff]
  %v6922 = vld [vmem:[%s2 + $0xbc0] sm:$0xff]
  %v6923 = vld [vmem:[%s2 + $0xbc8] sm:$0xff]
  %v6924 = vld [vmem:[%s2 + $0xbd0] sm:$0xff]
  %v6925 = vld [vmem:[%s2 + $0xbd8] sm:$0xff]
  %v6926 = vld [vmem:[%s2 + $0xbe0] sm:$0xff]
  %v6927 = vld [vmem:[%s2 + $0xbe8] sm:$0xff]
  %v6928 = vld [vmem:[%s2 + $0xbf0] sm:$0xff]
  %v6929 = vld [vmem:[%s2 + $0xbf8] sm:$0xff]
  %v6930 = vmul.f32 %v1938, %v6162
  %v6931 = vmul.f32 %v1939, %v6163
  %v6932 = vmul.f32 %v1940, %v6164
  %v6933 = vmul.f32 %v1941, %v6165
  %v6934 = vmul.f32 %v1942, %v6166
  %v6935 = vmul.f32 %v1943, %v6167
  %v6936 = vmul.f32 %v1944, %v6168
  %v6937 = vmul.f32 %v1945, %v6169
  %v6938 = vmul.f32 %v1946, %v6170
  %v6939 = vmul.f32 %v1947, %v6171
  %v6940 = vmul.f32 %v1948, %v6172
  %v6941 = vmul.f32 %v1949, %v6173
  %v6942 = vmul.f32 %v1950, %v6174
  %v6943 = vmul.f32 %v1951, %v6175
  %v6944 = vmul.f32 %v1952, %v6176
  %v6945 = vmul.f32 %v1953, %v6177
  %v6946 = vmul.f32 %v1954, %v6178
  %v6947 = vmul.f32 %v1955, %v6179
  %v6948 = vmul.f32 %v1956, %v6180
  %v6949 = vmul.f32 %v1957, %v6181
  %v6950 = vmul.f32 %v1958, %v6182
  %v6951 = vmul.f32 %v1959, %v6183
  %v6952 = vmul.f32 %v1960, %v6184
  %v6953 = vmul.f32 %v1961, %v6185
  %v6954 = vmul.f32 %v1962, %v6186
  %v6955 = vmul.f32 %v1963, %v6187
  %v6956 = vmul.f32 %v1964, %v6188
  %v6957 = vmul.f32 %v1965, %v6189
  %v6958 = vmul.f32 %v1966, %v6190
  %v6959 = vmul.f32 %v1967, %v6191
  %v6960 = vmul.f32 %v1968, %v6192
  %v6961 = vmul.f32 %v1969, %v6193
  %v6962 = vmul.f32 %v1970, %v6194
  %v6963 = vmul.f32 %v1971, %v6195
  %v6964 = vmul.f32 %v1972, %v6196
  %v6965 = vmul.f32 %v1973, %v6197
  %v6966 = vmul.f32 %v1974, %v6198
  %v6967 = vmul.f32 %v1975, %v6199
  %v6968 = vmul.f32 %v1976, %v6200
  %v6969 = vmul.f32 %v1977, %v6201
  %v6970 = vmul.f32 %v1978, %v6202
  %v6971 = vmul.f32 %v1979, %v6203
  %v6972 = vmul.f32 %v1980, %v6204
  %v6973 = vmul.f32 %v1981, %v6205
  %v6974 = vmul.f32 %v1982, %v6206
  %v6975 = vmul.f32 %v1983, %v6207
  %v6976 = vmul.f32 %v1984, %v6208
  %v6977 = vmul.f32 %v1985, %v6209
  %v6978 = vmul.f32 %v1986, %v6210
  %v6979 = vmul.f32 %v1987, %v6211
  %v6980 = vmul.f32 %v1988, %v6212
  %v6981 = vmul.f32 %v1989, %v6213
  %v6982 = vmul.f32 %v1990, %v6214
  %v6983 = vmul.f32 %v1991, %v6215
  %v6984 = vmul.f32 %v1992, %v6216
  %v6985 = vmul.f32 %v1993, %v6217
  %v6986 = vmul.f32 %v1994, %v6218
  %v6987 = vmul.f32 %v1995, %v6219
  %v6988 = vmul.f32 %v1996, %v6220
  %v6989 = vmul.f32 %v1997, %v6221
  %v6990 = vmul.f32 %v1998, %v6222
  %v6991 = vmul.f32 %v1999, %v6223
  %v6992 = vmul.f32 %v2000, %v6224
  %v6993 = vmul.f32 %v2001, %v6225
  %v6994 = vmul.f32 %v2002, %v6226
  %v6995 = vmul.f32 %v2003, %v6227
  %v6996 = vmul.f32 %v2004, %v6228
  %v6997 = vmul.f32 %v2005, %v6229
  %v6998 = vmul.f32 %v2006, %v6230
  %v6999 = vmul.f32 %v2007, %v6231
  %v7000 = vmul.f32 %v2008, %v6232
  %v7001 = vmul.f32 %v2009, %v6233
  %v7002 = vmul.f32 %v2010, %v6234
  %v7003 = vmul.f32 %v2011, %v6235
  %v7004 = vmul.f32 %v2012, %v6236
  %v7005 = vmul.f32 %v2013, %v6237
  %v7006 = vmul.f32 %v2014, %v6238
  %v7007 = vmul.f32 %v2015, %v6239
  %v7008 = vmul.f32 %v2016, %v6240
  %v7009 = vmul.f32 %v2017, %v6241
  %v7010 = vmul.f32 %v2018, %v6242
  %v7011 = vmul.f32 %v2019, %v6243
  %v7012 = vmul.f32 %v2020, %v6244
  %v7013 = vmul.f32 %v2021, %v6245
  %v7014 = vmul.f32 %v2022, %v6246
  %v7015 = vmul.f32 %v2023, %v6247
  %v7016 = vmul.f32 %v2024, %v6248
  %v7017 = vmul.f32 %v2025, %v6249
  %v7018 = vmul.f32 %v2026, %v6250
  %v7019 = vmul.f32 %v2027, %v6251
  %v7020 = vmul.f32 %v2028, %v6252
  %v7021 = vmul.f32 %v2029, %v6253
  %v7022 = vmul.f32 %v2030, %v6254
  %v7023 = vmul.f32 %v2031, %v6255
  %v7024 = vmul.f32 %v2032, %v6256
  %v7025 = vmul.f32 %v2033, %v6257
  %v7026 = vmul.f32 %v2034, %v6258
  %v7027 = vmul.f32 %v2035, %v6259
  %v7028 = vmul.f32 %v2036, %v6260
  %v7029 = vmul.f32 %v2037, %v6261
  %v7030 = vmul.f32 %v2038, %v6262
  %v7031 = vmul.f32 %v2039, %v6263
  %v7032 = vmul.f32 %v2040, %v6264
  %v7033 = vmul.f32 %v2041, %v6265
  %v7034 = vmul.f32 %v2042, %v6266
  %v7035 = vmul.f32 %v2043, %v6267
  %v7036 = vmul.f32 %v2044, %v6268
  %v7037 = vmul.f32 %v2045, %v6269
  %v7038 = vmul.f32 %v2046, %v6270
  %v7039 = vmul.f32 %v2047, %v6271
  %v7040 = vmul.f32 %v2048, %v6272
  %v7041 = vmul.f32 %v2049, %v6273
  %v7042 = vmul.f32 %v2050, %v6274
  %v7043 = vmul.f32 %v2051, %v6275
  %v7044 = vmul.f32 %v2052, %v6276
  %v7045 = vmul.f32 %v2053, %v6277
  %v7046 = vmul.f32 %v2054, %v6278
  %v7047 = vmul.f32 %v2055, %v6279
  %v7048 = vmul.f32 %v2056, %v6280
  %v7049 = vmul.f32 %v2057, %v6281
  %v7050 = vmul.f32 %v2058, %v6282
  %v7051 = vmul.f32 %v2059, %v6283
  %v7052 = vmul.f32 %v2060, %v6284
  %v7053 = vmul.f32 %v2061, %v6285
  %v7054 = vmul.f32 %v2062, %v6286
  %v7055 = vmul.f32 %v2063, %v6287
  %v7056 = vmul.f32 %v2064, %v6288
  %v7057 = vmul.f32 %v2065, %v6289
  %v7058 = vmul.f32 %v2066, %v6290
  %v7059 = vmul.f32 %v2067, %v6291
  %v7060 = vmul.f32 %v2068, %v6292
  %v7061 = vmul.f32 %v2069, %v6293
  %v7062 = vmul.f32 %v2070, %v6294
  %v7063 = vmul.f32 %v2071, %v6295
  %v7064 = vmul.f32 %v2072, %v6296
  %v7065 = vmul.f32 %v2073, %v6297
  %v7066 = vmul.f32 %v2074, %v6298
  %v7067 = vmul.f32 %v2075, %v6299
  %v7068 = vmul.f32 %v2076, %v6300
  %v7069 = vmul.f32 %v2077, %v6301
  %v7070 = vmul.f32 %v2078, %v6302
  %v7071 = vmul.f32 %v2079, %v6303
  %v7072 = vmul.f32 %v2080, %v6304
  %v7073 = vmul.f32 %v2081, %v6305
  %v7074 = vmul.f32 %v2082, %v6306
  %v7075 = vmul.f32 %v2083, %v6307
  %v7076 = vmul.f32 %v2084, %v6308
  %v7077 = vmul.f32 %v2085, %v6309
  %v7078 = vmul.f32 %v2086, %v6310
  %v7079 = vmul.f32 %v2087, %v6311
  %v7080 = vmul.f32 %v2088, %v6312
  %v7081 = vmul.f32 %v2089, %v6313
  %v7082 = vmul.f32 %v2090, %v6314
  %v7083 = vmul.f32 %v2091, %v6315
  %v7084 = vmul.f32 %v2092, %v6316
  %v7085 = vmul.f32 %v2093, %v6317
  %v7086 = vmul.f32 %v2094, %v6318
  %v7087 = vmul.f32 %v2095, %v6319
  %v7088 = vmul.f32 %v2096, %v6320
  %v7089 = vmul.f32 %v2097, %v6321
  %v7090 = vmul.f32 %v2098, %v6322
  %v7091 = vmul.f32 %v2099, %v6323
  %v7092 = vmul.f32 %v2100, %v6324
  %v7093 = vmul.f32 %v2101, %v6325
  %v7094 = vmul.f32 %v2102, %v6326
  %v7095 = vmul.f32 %v2103, %v6327
  %v7096 = vmul.f32 %v2104, %v6328
  %v7097 = vmul.f32 %v2105, %v6329
  %v7098 = vmul.f32 %v2106, %v6330
  %v7099 = vmul.f32 %v2107, %v6331
  %v7100 = vmul.f32 %v2108, %v6332
  %v7101 = vmul.f32 %v2109, %v6333
  %v7102 = vmul.f32 %v2110, %v6334
  %v7103 = vmul.f32 %v2111, %v6335
  %v7104 = vmul.f32 %v2112, %v6336
  %v7105 = vmul.f32 %v2113, %v6337
  %v7106 = vmul.f32 %v2114, %v6338
  %v7107 = vmul.f32 %v2115, %v6339
  %v7108 = vmul.f32 %v2116, %v6340
  %v7109 = vmul.f32 %v2117, %v6341
  %v7110 = vmul.f32 %v2118, %v6342
  %v7111 = vmul.f32 %v2119, %v6343
  %v7112 = vmul.f32 %v2120, %v6344
  %v7113 = vmul.f32 %v2121, %v6345
  %v7114 = vmul.f32 %v2122, %v6346
  %v7115 = vmul.f32 %v2123, %v6347
  %v7116 = vmul.f32 %v2124, %v6348
  %v7117 = vmul.f32 %v2125, %v6349
  %v7118 = vmul.f32 %v2126, %v6350
  %v7119 = vmul.f32 %v2127, %v6351
  %v7120 = vmul.f32 %v2128, %v6352
  %v7121 = vmul.f32 %v2129, %v6353
  %v7122 = vmul.f32 %v2130, %v6354
  %v7123 = vmul.f32 %v2131, %v6355
  %v7124 = vmul.f32 %v2132, %v6356
  %v7125 = vmul.f32 %v2133, %v6357
  %v7126 = vmul.f32 %v2134, %v6358
  %v7127 = vmul.f32 %v2135, %v6359
  %v7128 = vmul.f32 %v2136, %v6360
  %v7129 = vmul.f32 %v2137, %v6361
  %v7130 = vmul.f32 %v2138, %v6362
  %v7131 = vmul.f32 %v2139, %v6363
  %v7132 = vmul.f32 %v2140, %v6364
  %v7133 = vmul.f32 %v2141, %v6365
  %v7134 = vmul.f32 %v2142, %v6366
  %v7135 = vmul.f32 %v2143, %v6367
  %v7136 = vmul.f32 %v2144, %v6368
  %v7137 = vmul.f32 %v2145, %v6369
  %v7138 = vmul.f32 %v2146, %v6370
  %v7139 = vmul.f32 %v2147, %v6371
  %v7140 = vmul.f32 %v2148, %v6372
  %v7141 = vmul.f32 %v2149, %v6373
  %v7142 = vmul.f32 %v2150, %v6374
  %v7143 = vmul.f32 %v2151, %v6375
  %v7144 = vmul.f32 %v2152, %v6376
  %v7145 = vmul.f32 %v2153, %v6377
  %v7146 = vmul.f32 %v2154, %v6378
  %v7147 = vmul.f32 %v2155, %v6379
  %v7148 = vmul.f32 %v2156, %v6380
  %v7149 = vmul.f32 %v2157, %v6381
  %v7150 = vmul.f32 %v2158, %v6382
  %v7151 = vmul.f32 %v2159, %v6383
  %v7152 = vmul.f32 %v2160, %v6384
  %v7153 = vmul.f32 %v2161, %v6385
  %v7154 = vmul.f32 %v2162, %v6386
  %v7155 = vmul.f32 %v2163, %v6387
  %v7156 = vmul.f32 %v2164, %v6388
  %v7157 = vmul.f32 %v2165, %v6389
  %v7158 = vmul.f32 %v2166, %v6390
  %v7159 = vmul.f32 %v2167, %v6391
  %v7160 = vmul.f32 %v2168, %v6392
  %v7161 = vmul.f32 %v2169, %v6393
  %v7162 = vmul.f32 %v2170, %v6394
  %v7163 = vmul.f32 %v2171, %v6395
  %v7164 = vmul.f32 %v2172, %v6396
  %v7165 = vmul.f32 %v2173, %v6397
  %v7166 = vmul.f32 %v2174, %v6398
  %v7167 = vmul.f32 %v2175, %v6399
  %v7168 = vmul.f32 %v2176, %v6400
  %v7169 = vmul.f32 %v2177, %v6401
  %v7170 = vmul.f32 %v2178, %v6402
  %v7171 = vmul.f32 %v2179, %v6403
  %v7172 = vmul.f32 %v2180, %v6404
  %v7173 = vmul.f32 %v2181, %v6405
  %v7174 = vmul.f32 %v2182, %v6406
  %v7175 = vmul.f32 %v2183, %v6407
  %v7176 = vmul.f32 %v2184, %v6408
  %v7177 = vmul.f32 %v2185, %v6409
  %v7178 = vmul.f32 %v2186, %v6410
  %v7179 = vmul.f32 %v2187, %v6411
  %v7180 = vmul.f32 %v2188, %v6412
  %v7181 = vmul.f32 %v2189, %v6413
  %v7182 = vmul.f32 %v2190, %v6414
  %v7183 = vmul.f32 %v2191, %v6415
  %v7184 = vmul.f32 %v2192, %v6416
  %v7185 = vmul.f32 %v2193, %v6417
  %v7186 = vmul.f32 %v2194, %v6418
  %v7187 = vmul.f32 %v2195, %v6419
  %v7188 = vmul.f32 %v2196, %v6420
  %v7189 = vmul.f32 %v2197, %v6421
  %v7190 = vmul.f32 %v2198, %v6422
  %v7191 = vmul.f32 %v2199, %v6423
  %v7192 = vmul.f32 %v2200, %v6424
  %v7193 = vmul.f32 %v2201, %v6425
  %v7194 = vmul.f32 %v2202, %v6426
  %v7195 = vmul.f32 %v2203, %v6427
  %v7196 = vmul.f32 %v2204, %v6428
  %v7197 = vmul.f32 %v2205, %v6429
  %v7198 = vmul.f32 %v2206, %v6430
  %v7199 = vmul.f32 %v2207, %v6431
  %v7200 = vmul.f32 %v2208, %v6432
  %v7201 = vmul.f32 %v2209, %v6433
  %v7202 = vmul.f32 %v2210, %v6434
  %v7203 = vmul.f32 %v2211, %v6435
  %v7204 = vmul.f32 %v2212, %v6436
  %v7205 = vmul.f32 %v2213, %v6437
  %v7206 = vmul.f32 %v2214, %v6438
  %v7207 = vmul.f32 %v2215, %v6439
  %v7208 = vmul.f32 %v2216, %v6440
  %v7209 = vmul.f32 %v2217, %v6441
  %v7210 = vmul.f32 %v2218, %v6442
  %v7211 = vmul.f32 %v2219, %v6443
  %v7212 = vmul.f32 %v2220, %v6444
  %v7213 = vmul.f32 %v2221, %v6445
  %v7214 = vmul.f32 %v2222, %v6446
  %v7215 = vmul.f32 %v2223, %v6447
  %v7216 = vmul.f32 %v2224, %v6448
  %v7217 = vmul.f32 %v2225, %v6449
  %v7218 = vmul.f32 %v2226, %v6450
  %v7219 = vmul.f32 %v2227, %v6451
  %v7220 = vmul.f32 %v2228, %v6452
  %v7221 = vmul.f32 %v2229, %v6453
  %v7222 = vmul.f32 %v2230, %v6454
  %v7223 = vmul.f32 %v2231, %v6455
  %v7224 = vmul.f32 %v2232, %v6456
  %v7225 = vmul.f32 %v2233, %v6457
  %v7226 = vmul.f32 %v2234, %v6458
  %v7227 = vmul.f32 %v2235, %v6459
  %v7228 = vmul.f32 %v2236, %v6460
  %v7229 = vmul.f32 %v2237, %v6461
  %v7230 = vmul.f32 %v2238, %v6462
  %v7231 = vmul.f32 %v2239, %v6463
  %v7232 = vmul.f32 %v2240, %v6464
  %v7233 = vmul.f32 %v2241, %v6465
  %v7234 = vmul.f32 %v2242, %v6466
  %v7235 = vmul.f32 %v2243, %v6467
  %v7236 = vmul.f32 %v2244, %v6468
  %v7237 = vmul.f32 %v2245, %v6469
  %v7238 = vmul.f32 %v2246, %v6470
  %v7239 = vmul.f32 %v2247, %v6471
  %v7240 = vmul.f32 %v2248, %v6472
  %v7241 = vmul.f32 %v2249, %v6473
  %v7242 = vmul.f32 %v2250, %v6474
  %v7243 = vmul.f32 %v2251, %v6475
  %v7244 = vmul.f32 %v2252, %v6476
  %v7245 = vmul.f32 %v2253, %v6477
  %v7246 = vmul.f32 %v2254, %v6478
  %v7247 = vmul.f32 %v2255, %v6479
  %v7248 = vmul.f32 %v2256, %v6480
  %v7249 = vmul.f32 %v2257, %v6481
  %v7250 = vmul.f32 %v2258, %v6482
  %v7251 = vmul.f32 %v2259, %v6483
  %v7252 = vmul.f32 %v2260, %v6484
  %v7253 = vmul.f32 %v2261, %v6485
  %v7254 = vmul.f32 %v2262, %v6486
  %v7255 = vmul.f32 %v2263, %v6487
  %v7256 = vmul.f32 %v2264, %v6488
  %v7257 = vmul.f32 %v2265, %v6489
  %v7258 = vmul.f32 %v2266, %v6490
  %v7259 = vmul.f32 %v2267, %v6491
  %v7260 = vmul.f32 %v2268, %v6492
  %v7261 = vmul.f32 %v2269, %v6493
  %v7262 = vmul.f32 %v2270, %v6494
  %v7263 = vmul.f32 %v2271, %v6495
  %v7264 = vmul.f32 %v2272, %v6496
  %v7265 = vmul.f32 %v2273, %v6497
  %v7266 = vmul.f32 %v2274, %v6498
  %v7267 = vmul.f32 %v2275, %v6499
  %v7268 = vmul.f32 %v2276, %v6500
  %v7269 = vmul.f32 %v2277, %v6501
  %v7270 = vmul.f32 %v2278, %v6502
  %v7271 = vmul.f32 %v2279, %v6503
  %v7272 = vmul.f32 %v2280, %v6504
  %v7273 = vmul.f32 %v2281, %v6505
  %v7274 = vmul.f32 %v2282, %v6506
  %v7275 = vmul.f32 %v2283, %v6507
  %v7276 = vmul.f32 %v2284, %v6508
  %v7277 = vmul.f32 %v2285, %v6509
  %v7278 = vmul.f32 %v2286, %v6510
  %v7279 = vmul.f32 %v2287, %v6511
  %v7280 = vmul.f32 %v2288, %v6512
  %v7281 = vmul.f32 %v2289, %v6513
  %v7282 = vmul.f32 %v2290, %v6514
  %v7283 = vmul.f32 %v2291, %v6515
  %v7284 = vmul.f32 %v2292, %v6516
  %v7285 = vmul.f32 %v2293, %v6517
  %v7286 = vmul.f32 %v2294, %v6518
  %v7287 = vmul.f32 %v2295, %v6519
  %v7288 = vmul.f32 %v2296, %v6520
  %v7289 = vmul.f32 %v2297, %v6521
  %v7290 = vmul.f32 %v2298, %v6522
  %v7291 = vmul.f32 %v2299, %v6523
  %v7292 = vmul.f32 %v2300, %v6524
  %v7293 = vmul.f32 %v2301, %v6525
  %v7294 = vmul.f32 %v2302, %v6526
  %v7295 = vmul.f32 %v2303, %v6527
  %v7296 = vmul.f32 %v2304, %v6528
  %v7297 = vmul.f32 %v2305, %v6529
  %v7298 = vmul.f32 %v2306, %v6530
  %v7299 = vmul.f32 %v2307, %v6531
  %v7300 = vmul.f32 %v2308, %v6532
  %v7301 = vmul.f32 %v2309, %v6533
  %v7302 = vmul.f32 %v2310, %v6534
  %v7303 = vmul.f32 %v2311, %v6535
  %v7304 = vmul.f32 %v2312, %v6536
  %v7305 = vmul.f32 %v2313, %v6537
  %v7306 = vmul.f32 %v2314, %v6538
  %v7307 = vmul.f32 %v2315, %v6539
  %v7308 = vmul.f32 %v2316, %v6540
  %v7309 = vmul.f32 %v2317, %v6541
  %v7310 = vmul.f32 %v2318, %v6542
  %v7311 = vmul.f32 %v2319, %v6543
  %v7312 = vmul.f32 %v2320, %v6544
  %v7313 = vmul.f32 %v2321, %v6545
  %v7314 = vsub.f32 %v6546, %v6930
  %v7315 = vsub.f32 %v6547, %v6931
  %v7316 = vsub.f32 %v6548, %v6932
  %v7317 = vsub.f32 %v6549, %v6933
  %v7318 = vsub.f32 %v6550, %v6934
  %v7319 = vsub.f32 %v6551, %v6935
  %v7320 = vsub.f32 %v6552, %v6936
  %v7321 = vsub.f32 %v6553, %v6937
  %v7322 = vsub.f32 %v6554, %v6938
  %v7323 = vsub.f32 %v6555, %v6939
  %v7324 = vsub.f32 %v6556, %v6940
  %v7325 = vsub.f32 %v6557, %v6941
  %v7326 = vsub.f32 %v6558, %v6942
  %v7327 = vsub.f32 %v6559, %v6943
  %v7328 = vsub.f32 %v6560, %v6944
  %v7329 = vsub.f32 %v6561, %v6945
  %v7330 = vsub.f32 %v6562, %v6946
  %v7331 = vsub.f32 %v6563, %v6947
  %v7332 = vsub.f32 %v6564, %v6948
  %v7333 = vsub.f32 %v6565, %v6949
  %v7334 = vsub.f32 %v6566, %v6950
  %v7335 = vsub.f32 %v6567, %v6951
  %v7336 = vsub.f32 %v6568, %v6952
  %v7337 = vsub.f32 %v6569, %v6953
  %v7338 = vsub.f32 %v6570, %v6954
  %v7339 = vsub.f32 %v6571, %v6955
  %v7340 = vsub.f32 %v6572, %v6956
  %v7341 = vsub.f32 %v6573, %v6957
  %v7342 = vsub.f32 %v6574, %v6958
  %v7343 = vsub.f32 %v6575, %v6959
  %v7344 = vsub.f32 %v6576, %v6960
  %v7345 = vsub.f32 %v6577, %v6961
  %v7346 = vsub.f32 %v6578, %v6962
  %v7347 = vsub.f32 %v6579, %v6963
  %v7348 = vsub.f32 %v6580, %v6964
  %v7349 = vsub.f32 %v6581, %v6965
  %v7350 = vsub.f32 %v6582, %v6966
  %v7351 = vsub.f32 %v6583, %v6967
  %v7352 = vsub.f32 %v6584, %v6968
  %v7353 = vsub.f32 %v6585, %v6969
  %v7354 = vsub.f32 %v6586, %v6970
  %v7355 = vsub.f32 %v6587, %v6971
  %v7356 = vsub.f32 %v6588, %v6972
  %v7357 = vsub.f32 %v6589, %v6973
  %v7358 = vsub.f32 %v6590, %v6974
  %v7359 = vsub.f32 %v6591, %v6975
  %v7360 = vsub.f32 %v6592, %v6976
  %v7361 = vsub.f32 %v6593, %v6977
  %v7362 = vsub.f32 %v6594, %v6978
  %v7363 = vsub.f32 %v6595, %v6979
  %v7364 = vsub.f32 %v6596, %v6980
  %v7365 = vsub.f32 %v6597, %v6981
  %v7366 = vsub.f32 %v6598, %v6982
  %v7367 = vsub.f32 %v6599, %v6983
  %v7368 = vsub.f32 %v6600, %v6984
  %v7369 = vsub.f32 %v6601, %v6985
  %v7370 = vsub.f32 %v6602, %v6986
  %v7371 = vsub.f32 %v6603, %v6987
  %v7372 = vsub.f32 %v6604, %v6988
  %v7373 = vsub.f32 %v6605, %v6989
  %v7374 = vsub.f32 %v6606, %v6990
  %v7375 = vsub.f32 %v6607, %v6991
  %v7376 = vsub.f32 %v6608, %v6992
  %v7377 = vsub.f32 %v6609, %v6993
  %v7378 = vsub.f32 %v6610, %v6994
  %v7379 = vsub.f32 %v6611, %v6995
  %v7380 = vsub.f32 %v6612, %v6996
  %v7381 = vsub.f32 %v6613, %v6997
  %v7382 = vsub.f32 %v6614, %v6998
  %v7383 = vsub.f32 %v6615, %v6999
  %v7384 = vsub.f32 %v6616, %v7000
  %v7385 = vsub.f32 %v6617, %v7001
  %v7386 = vsub.f32 %v6618, %v7002
  %v7387 = vsub.f32 %v6619, %v7003
  %v7388 = vsub.f32 %v6620, %v7004
  %v7389 = vsub.f32 %v6621, %v7005
  %v7390 = vsub.f32 %v6622, %v7006
  %v7391 = vsub.f32 %v6623, %v7007
  %v7392 = vsub.f32 %v6624, %v7008
  %v7393 = vsub.f32 %v6625, %v7009
  %v7394 = vsub.f32 %v6626, %v7010
  %v7395 = vsub.f32 %v6627, %v7011
  %v7396 = vsub.f32 %v6628, %v7012
  %v7397 = vsub.f32 %v6629, %v7013
  %v7398 = vsub.f32 %v6630, %v7014
  %v7399 = vsub.f32 %v6631, %v7015
  %v7400 = vsub.f32 %v6632, %v7016
  %v7401 = vsub.f32 %v6633, %v7017
  %v7402 = vsub.f32 %v6634, %v7018
  %v7403 = vsub.f32 %v6635, %v7019
  %v7404 = vsub.f32 %v6636, %v7020
  %v7405 = vsub.f32 %v6637, %v7021
  %v7406 = vsub.f32 %v6638, %v7022
  %v7407 = vsub.f32 %v6639, %v7023
  %v7408 = vsub.f32 %v6640, %v7024
  %v7409 = vsub.f32 %v6641, %v7025
  %v7410 = vsub.f32 %v6642, %v7026
  %v7411 = vsub.f32 %v6643, %v7027
  %v7412 = vsub.f32 %v6644, %v7028
  %v7413 = vsub.f32 %v6645, %v7029
  %v7414 = vsub.f32 %v6646, %v7030
  %v7415 = vsub.f32 %v6647, %v7031
  %v7416 = vsub.f32 %v6648, %v7032
  %v7417 = vsub.f32 %v6649, %v7033
  %v7418 = vsub.f32 %v6650, %v7034
  %v7419 = vsub.f32 %v6651, %v7035
  %v7420 = vsub.f32 %v6652, %v7036
  %v7421 = vsub.f32 %v6653, %v7037
  %v7422 = vsub.f32 %v6654, %v7038
  %v7423 = vsub.f32 %v6655, %v7039
  %v7424 = vsub.f32 %v6656, %v7040
  %v7425 = vsub.f32 %v6657, %v7041
  %v7426 = vsub.f32 %v6658, %v7042
  %v7427 = vsub.f32 %v6659, %v7043
  %v7428 = vsub.f32 %v6660, %v7044
  %v7429 = vsub.f32 %v6661, %v7045
  %v7430 = vsub.f32 %v6662, %v7046
  %v7431 = vsub.f32 %v6663, %v7047
  %v7432 = vsub.f32 %v6664, %v7048
  %v7433 = vsub.f32 %v6665, %v7049
  %v7434 = vsub.f32 %v6666, %v7050
  %v7435 = vsub.f32 %v6667, %v7051
  %v7436 = vsub.f32 %v6668, %v7052
  %v7437 = vsub.f32 %v6669, %v7053
  %v7438 = vsub.f32 %v6670, %v7054
  %v7439 = vsub.f32 %v6671, %v7055
  %v7440 = vsub.f32 %v6672, %v7056
  %v7441 = vsub.f32 %v6673, %v7057
  %v7442 = vsub.f32 %v6674, %v7058
  %v7443 = vsub.f32 %v6675, %v7059
  %v7444 = vsub.f32 %v6676, %v7060
  %v7445 = vsub.f32 %v6677, %v7061
  %v7446 = vsub.f32 %v6678, %v7062
  %v7447 = vsub.f32 %v6679, %v7063
  %v7448 = vsub.f32 %v6680, %v7064
  %v7449 = vsub.f32 %v6681, %v7065
  %v7450 = vsub.f32 %v6682, %v7066
  %v7451 = vsub.f32 %v6683, %v7067
  %v7452 = vsub.f32 %v6684, %v7068
  %v7453 = vsub.f32 %v6685, %v7069
  %v7454 = vsub.f32 %v6686, %v7070
  %v7455 = vsub.f32 %v6687, %v7071
  %v7456 = vsub.f32 %v6688, %v7072
  %v7457 = vsub.f32 %v6689, %v7073
  %v7458 = vsub.f32 %v6690, %v7074
  %v7459 = vsub.f32 %v6691, %v7075
  %v7460 = vsub.f32 %v6692, %v7076
  %v7461 = vsub.f32 %v6693, %v7077
  %v7462 = vsub.f32 %v6694, %v7078
  %v7463 = vsub.f32 %v6695, %v7079
  %v7464 = vsub.f32 %v6696, %v7080
  %v7465 = vsub.f32 %v6697, %v7081
  %v7466 = vsub.f32 %v6698, %v7082
  %v7467 = vsub.f32 %v6699, %v7083
  %v7468 = vsub.f32 %v6700, %v7084
  %v7469 = vsub.f32 %v6701, %v7085
  %v7470 = vsub.f32 %v6702, %v7086
  %v7471 = vsub.f32 %v6703, %v7087
  %v7472 = vsub.f32 %v6704, %v7088
  %v7473 = vsub.f32 %v6705, %v7089
  %v7474 = vsub.f32 %v6706, %v7090
  %v7475 = vsub.f32 %v6707, %v7091
  %v7476 = vsub.f32 %v6708, %v7092
  %v7477 = vsub.f32 %v6709, %v7093
  %v7478 = vsub.f32 %v6710, %v7094
  %v7479 = vsub.f32 %v6711, %v7095
  %v7480 = vsub.f32 %v6712, %v7096
  %v7481 = vsub.f32 %v6713, %v7097
  %v7482 = vsub.f32 %v6714, %v7098
  %v7483 = vsub.f32 %v6715, %v7099
  %v7484 = vsub.f32 %v6716, %v7100
  %v7485 = vsub.f32 %v6717, %v7101
  %v7486 = vsub.f32 %v6718, %v7102
  %v7487 = vsub.f32 %v6719, %v7103
  %v7488 = vsub.f32 %v6720, %v7104
  %v7489 = vsub.f32 %v6721, %v7105
  %v7490 = vsub.f32 %v6722, %v7106
  %v7491 = vsub.f32 %v6723, %v7107
  %v7492 = vsub.f32 %v6724, %v7108
  %v7493 = vsub.f32 %v6725, %v7109
  %v7494 = vsub.f32 %v6726, %v7110
  %v7495 = vsub.f32 %v6727, %v7111
  %v7496 = vsub.f32 %v6728, %v7112
  %v7497 = vsub.f32 %v6729, %v7113
  %v7498 = vsub.f32 %v6730, %v7114
  %v7499 = vsub.f32 %v6731, %v7115
  %v7500 = vsub.f32 %v6732, %v7116
  %v7501 = vsub.f32 %v6733, %v7117
  %v7502 = vsub.f32 %v6734, %v7118
  %v7503 = vsub.f32 %v6735, %v7119
  %v7504 = vsub.f32 %v6736, %v7120
  %v7505 = vsub.f32 %v6737, %v7121
  %v7506 = vsub.f32 %v6738, %v7122
  %v7507 = vsub.f32 %v6739, %v7123
  %v7508 = vsub.f32 %v6740, %v7124
  %v7509 = vsub.f32 %v6741, %v7125
  %v7510 = vsub.f32 %v6742, %v7126
  %v7511 = vsub.f32 %v6743, %v7127
  %v7512 = vsub.f32 %v6744, %v7128
  %v7513 = vsub.f32 %v6745, %v7129
  %v7514 = vsub.f32 %v6746, %v7130
  %v7515 = vsub.f32 %v6747, %v7131
  %v7516 = vsub.f32 %v6748, %v7132
  %v7517 = vsub.f32 %v6749, %v7133
  %v7518 = vsub.f32 %v6750, %v7134
  %v7519 = vsub.f32 %v6751, %v7135
  %v7520 = vsub.f32 %v6752, %v7136
  %v7521 = vsub.f32 %v6753, %v7137
  %v7522 = vsub.f32 %v6754, %v7138
  %v7523 = vsub.f32 %v6755, %v7139
  %v7524 = vsub.f32 %v6756, %v7140
  %v7525 = vsub.f32 %v6757, %v7141
  %v7526 = vsub.f32 %v6758, %v7142
  %v7527 = vsub.f32 %v6759, %v7143
  %v7528 = vsub.f32 %v6760, %v7144
  %v7529 = vsub.f32 %v6761, %v7145
  %v7530 = vsub.f32 %v6762, %v7146
  %v7531 = vsub.f32 %v6763, %v7147
  %v7532 = vsub.f32 %v6764, %v7148
  %v7533 = vsub.f32 %v6765, %v7149
  %v7534 = vsub.f32 %v6766, %v7150
  %v7535 = vsub.f32 %v6767, %v7151
  %v7536 = vsub.f32 %v6768, %v7152
  %v7537 = vsub.f32 %v6769, %v7153
  %v7538 = vsub.f32 %v6770, %v7154
  %v7539 = vsub.f32 %v6771, %v7155
  %v7540 = vsub.f32 %v6772, %v7156
  %v7541 = vsub.f32 %v6773, %v7157
  %v7542 = vsub.f32 %v6774, %v7158
  %v7543 = vsub.f32 %v6775, %v7159
  %v7544 = vsub.f32 %v6776, %v7160
  %v7545 = vsub.f32 %v6777, %v7161
  %v7546 = vsub.f32 %v6778, %v7162
  %v7547 = vsub.f32 %v6779, %v7163
  %v7548 = vsub.f32 %v6780, %v7164
  %v7549 = vsub.f32 %v6781, %v7165
  %v7550 = vsub.f32 %v6782, %v7166
  %v7551 = vsub.f32 %v6783, %v7167
  %v7552 = vsub.f32 %v6784, %v7168
  %v7553 = vsub.f32 %v6785, %v7169
  %v7554 = vsub.f32 %v6786, %v7170
  %v7555 = vsub.f32 %v6787, %v7171
  %v7556 = vsub.f32 %v6788, %v7172
  %v7557 = vsub.f32 %v6789, %v7173
  %v7558 = vsub.f32 %v6790, %v7174
  %v7559 = vsub.f32 %v6791, %v7175
  %v7560 = vsub.f32 %v6792, %v7176
  %v7561 = vsub.f32 %v6793, %v7177
  %v7562 = vsub.f32 %v6794, %v7178
  %v7563 = vsub.f32 %v6795, %v7179
  %v7564 = vsub.f32 %v6796, %v7180
  %v7565 = vsub.f32 %v6797, %v7181
  %v7566 = vsub.f32 %v6798, %v7182
  %v7567 = vsub.f32 %v6799, %v7183
  %v7568 = vsub.f32 %v6800, %v7184
  %v7569 = vsub.f32 %v6801, %v7185
  %v7570 = vsub.f32 %v6802, %v7186
  %v7571 = vsub.f32 %v6803, %v7187
  %v7572 = vsub.f32 %v6804, %v7188
  %v7573 = vsub.f32 %v6805, %v7189
  %v7574 = vsub.f32 %v6806, %v7190
  %v7575 = vsub.f32 %v6807, %v7191
  %v7576 = vsub.f32 %v6808, %v7192
  %v7577 = vsub.f32 %v6809, %v7193
  %v7578 = vsub.f32 %v6810, %v7194
  %v7579 = vsub.f32 %v6811, %v7195
  %v7580 = vsub.f32 %v6812, %v7196
  %v7581 = vsub.f32 %v6813, %v7197
  %v7582 = vsub.f32 %v6814, %v7198
  %v7583 = vsub.f32 %v6815, %v7199
  %v7584 = vsub.f32 %v6816, %v7200
  %v7585 = vsub.f32 %v6817, %v7201
  %v7586 = vsub.f32 %v6818, %v7202
  %v7587 = vsub.f32 %v6819, %v7203
  %v7588 = vsub.f32 %v6820, %v7204
  %v7589 = vsub.f32 %v6821, %v7205
  %v7590 = vsub.f32 %v6822, %v7206
  %v7591 = vsub.f32 %v6823, %v7207
  %v7592 = vsub.f32 %v6824, %v7208
  %v7593 = vsub.f32 %v6825, %v7209
  %v7594 = vsub.f32 %v6826, %v7210
  %v7595 = vsub.f32 %v6827, %v7211
  %v7596 = vsub.f32 %v6828, %v7212
  %v7597 = vsub.f32 %v6829, %v7213
  %v7598 = vsub.f32 %v6830, %v7214
  %v7599 = vsub.f32 %v6831, %v7215
  %v7600 = vsub.f32 %v6832, %v7216
  %v7601 = vsub.f32 %v6833, %v7217
  %v7602 = vsub.f32 %v6834, %v7218
  %v7603 = vsub.f32 %v6835, %v7219
  %v7604 = vsub.f32 %v6836, %v7220
  %v7605 = vsub.f32 %v6837, %v7221
  %v7606 = vsub.f32 %v6838, %v7222
  %v7607 = vsub.f32 %v6839, %v7223
  %v7608 = vsub.f32 %v6840, %v7224
  %v7609 = vsub.f32 %v6841, %v7225
  %v7610 = vsub.f32 %v6842, %v7226
  %v7611 = vsub.f32 %v6843, %v7227
  %v7612 = vsub.f32 %v6844, %v7228
  %v7613 = vsub.f32 %v6845, %v7229
  %v7614 = vsub.f32 %v6846, %v7230
  %v7615 = vsub.f32 %v6847, %v7231
  %v7616 = vsub.f32 %v6848, %v7232
  %v7617 = vsub.f32 %v6849, %v7233
  %v7618 = vsub.f32 %v6850, %v7234
  %v7619 = vsub.f32 %v6851, %v7235
  %v7620 = vsub.f32 %v6852, %v7236
  %v7621 = vsub.f32 %v6853, %v7237
  %v7622 = vsub.f32 %v6854, %v7238
  %v7623 = vsub.f32 %v6855, %v7239
  %v7624 = vsub.f32 %v6856, %v7240
  %v7625 = vsub.f32 %v6857, %v7241
  %v7626 = vsub.f32 %v6858, %v7242
  %v7627 = vsub.f32 %v6859, %v7243
  %v7628 = vsub.f32 %v6860, %v7244
  %v7629 = vsub.f32 %v6861, %v7245
  %v7630 = vsub.f32 %v6862, %v7246
  %v7631 = vsub.f32 %v6863, %v7247
  %v7632 = vsub.f32 %v6864, %v7248
  %v7633 = vsub.f32 %v6865, %v7249
  %v7634 = vsub.f32 %v6866, %v7250
  %v7635 = vsub.f32 %v6867, %v7251
  %v7636 = vsub.f32 %v6868, %v7252
  %v7637 = vsub.f32 %v6869, %v7253
  %v7638 = vsub.f32 %v6870, %v7254
  %v7639 = vsub.f32 %v6871, %v7255
  %v7640 = vsub.f32 %v6872, %v7256
  %v7641 = vsub.f32 %v6873, %v7257
  %v7642 = vsub.f32 %v6874, %v7258
  %v7643 = vsub.f32 %v6875, %v7259
  %v7644 = vsub.f32 %v6876, %v7260
  %v7645 = vsub.f32 %v6877, %v7261
  %v7646 = vsub.f32 %v6878, %v7262
  %v7647 = vsub.f32 %v6879, %v7263
  %v7648 = vsub.f32 %v6880, %v7264
  %v7649 = vsub.f32 %v6881, %v7265
  %v7650 = vsub.f32 %v6882, %v7266
  %v7651 = vsub.f32 %v6883, %v7267
  %v7652 = vsub.f32 %v6884, %v7268
  %v7653 = vsub.f32 %v6885, %v7269
  %v7654 = vsub.f32 %v6886, %v7270
  %v7655 = vsub.f32 %v6887, %v7271
  %v7656 = vsub.f32 %v6888, %v7272
  %v7657 = vsub.f32 %v6889, %v7273
  %v7658 = vsub.f32 %v6890, %v7274
  %v7659 = vsub.f32 %v6891, %v7275
  %v7660 = vsub.f32 %v6892, %v7276
  %v7661 = vsub.f32 %v6893, %v7277
  %v7662 = vsub.f32 %v6894, %v7278
  %v7663 = vsub.f32 %v6895, %v7279
  %v7664 = vsub.f32 %v6896, %v7280
  %v7665 = vsub.f32 %v6897, %v7281
  %v7666 = vsub.f32 %v6898, %v7282
  %v7667 = vsub.f32 %v6899, %v7283
  %v7668 = vsub.f32 %v6900, %v7284
  %v7669 = vsub.f32 %v6901, %v7285
  %v7670 = vsub.f32 %v6902, %v7286
  %v7671 = vsub.f32 %v6903, %v7287
  %v7672 = vsub.f32 %v6904, %v7288
  %v7673 = vsub.f32 %v6905, %v7289
  %v7674 = vsub.f32 %v6906, %v7290
  %v7675 = vsub.f32 %v6907, %v7291
  %v7676 = vsub.f32 %v6908, %v7292
  %v7677 = vsub.f32 %v6909, %v7293
  %v7678 = vsub.f32 %v6910, %v7294
  %v7679 = vsub.f32 %v6911, %v7295
  %v7680 = vsub.f32 %v6912, %v7296
  %v7681 = vsub.f32 %v6913, %v7297
  %v7682 = vsub.f32 %v6914, %v7298
  %v7683 = vsub.f32 %v6915, %v7299
  %v7684 = vsub.f32 %v6916, %v7300
  %v7685 = vsub.f32 %v6917, %v7301
  %v7686 = vsub.f32 %v6918, %v7302
  %v7687 = vsub.f32 %v6919, %v7303
  %v7688 = vsub.f32 %v6920, %v7304
  %v7689 = vsub.f32 %v6921, %v7305
  %v7690 = vsub.f32 %v6922, %v7306
  %v7691 = vsub.f32 %v6923, %v7307
  %v7692 = vsub.f32 %v6924, %v7308
  %v7693 = vsub.f32 %v6925, %v7309
  %v7694 = vsub.f32 %v6926, %v7310
  %v7695 = vsub.f32 %v6927, %v7311
  %v7696 = vsub.f32 %v6928, %v7312
  %v7697 = vsub.f32 %v6929, %v7313
  %7699 = vset.pattern.permute.xlu0 0
  %7700 = vperm.xlu0 %7699, %v6162
  %v7701 = vpop.permute.xlu0 %7700
  %7704 = vset.pattern.permute.xlu0 0
  %7705 = vperm.xlu0 %7704, %v6163
  %v7706 = vpop.permute.xlu0 %7705
  %7709 = vset.pattern.permute.xlu0 0
  %7710 = vperm.xlu0 %7709, %v6164
  %v7711 = vpop.permute.xlu0 %7710
  %7714 = vset.pattern.permute.xlu0 0
  %7715 = vperm.xlu0 %7714, %v6165
  %v7716 = vpop.permute.xlu0 %7715
  %7719 = vset.pattern.permute.xlu0 0
  %7720 = vperm.xlu0 %7719, %v6166
  %v7721 = vpop.permute.xlu0 %7720
  %7724 = vset.pattern.permute.xlu0 0
  %7725 = vperm.xlu0 %7724, %v6167
  %v7726 = vpop.permute.xlu0 %7725
  %7729 = vset.pattern.permute.xlu0 0
  %7730 = vperm.xlu0 %7729, %v6168
  %v7731 = vpop.permute.xlu0 %7730
  %7734 = vset.pattern.permute.xlu0 0
  %7735 = vperm.xlu0 %7734, %v6169
  %v7736 = vpop.permute.xlu0 %7735
  %7739 = vset.pattern.permute.xlu0 0
  %7740 = vperm.xlu0 %7739, %v6170
  %v7741 = vpop.permute.xlu0 %7740
  %7744 = vset.pattern.permute.xlu0 0
  %7745 = vperm.xlu0 %7744, %v6171
  %v7746 = vpop.permute.xlu0 %7745
  %7749 = vset.pattern.permute.xlu0 0
  %7750 = vperm.xlu0 %7749, %v6172
  %v7751 = vpop.permute.xlu0 %7750
  %7754 = vset.pattern.permute.xlu0 0
  %7755 = vperm.xlu0 %7754, %v6173
  %v7756 = vpop.permute.xlu0 %7755
  %7759 = vset.pattern.permute.xlu0 0
  %7760 = vperm.xlu0 %7759, %v6174
  %v7761 = vpop.permute.xlu0 %7760
  %7764 = vset.pattern.permute.xlu0 0
  %7765 = vperm.xlu0 %7764, %v6175
  %v7766 = vpop.permute.xlu0 %7765
  %7769 = vset.pattern.permute.xlu0 0
  %7770 = vperm.xlu0 %7769, %v6176
  %v7771 = vpop.permute.xlu0 %7770
  %7774 = vset.pattern.permute.xlu0 0
  %7775 = vperm.xlu0 %7774, %v6177
  %v7776 = vpop.permute.xlu0 %7775
  %7779 = vset.pattern.permute.xlu0 0
  %7780 = vperm.xlu0 %7779, %v6178
  %v7781 = vpop.permute.xlu0 %7780
  %7784 = vset.pattern.permute.xlu0 0
  %7785 = vperm.xlu0 %7784, %v6179
  %v7786 = vpop.permute.xlu0 %7785
  %7789 = vset.pattern.permute.xlu0 0
  %7790 = vperm.xlu0 %7789, %v6180
  %v7791 = vpop.permute.xlu0 %7790
  %7794 = vset.pattern.permute.xlu0 0
  %7795 = vperm.xlu0 %7794, %v6181
  %v7796 = vpop.permute.xlu0 %7795
  %7799 = vset.pattern.permute.xlu0 0
  %7800 = vperm.xlu0 %7799, %v6182
  %v7801 = vpop.permute.xlu0 %7800
  %7804 = vset.pattern.permute.xlu0 0
  %7805 = vperm.xlu0 %7804, %v6183
  %v7806 = vpop.permute.xlu0 %7805
  %7809 = vset.pattern.permute.xlu0 0
  %7810 = vperm.xlu0 %7809, %v6184
  %v7811 = vpop.permute.xlu0 %7810
  %7814 = vset.pattern.permute.xlu0 0
  %7815 = vperm.xlu0 %7814, %v6185
  %v7816 = vpop.permute.xlu0 %7815
  %7819 = vset.pattern.permute.xlu0 0
  %7820 = vperm.xlu0 %7819, %v6186
  %v7821 = vpop.permute.xlu0 %7820
  %7824 = vset.pattern.permute.xlu0 0
  %7825 = vperm.xlu0 %7824, %v6187
  %v7826 = vpop.permute.xlu0 %7825
  %7829 = vset.pattern.permute.xlu0 0
  %7830 = vperm.xlu0 %7829, %v6188
  %v7831 = vpop.permute.xlu0 %7830
  %7834 = vset.pattern.permute.xlu0 0
  %7835 = vperm.xlu0 %7834, %v6189
  %v7836 = vpop.permute.xlu0 %7835
  %7839 = vset.pattern.permute.xlu0 0
  %7840 = vperm.xlu0 %7839, %v6190
  %v7841 = vpop.permute.xlu0 %7840
  %7844 = vset.pattern.permute.xlu0 0
  %7845 = vperm.xlu0 %7844, %v6191
  %v7846 = vpop.permute.xlu0 %7845
  %7849 = vset.pattern.permute.xlu0 0
  %7850 = vperm.xlu0 %7849, %v6192
  %v7851 = vpop.permute.xlu0 %7850
  %7854 = vset.pattern.permute.xlu0 0
  %7855 = vperm.xlu0 %7854, %v6193
  %v7856 = vpop.permute.xlu0 %7855
  %7859 = vset.pattern.permute.xlu0 0
  %7860 = vperm.xlu0 %7859, %v6194
  %v7861 = vpop.permute.xlu0 %7860
  %7864 = vset.pattern.permute.xlu0 0
  %7865 = vperm.xlu0 %7864, %v6195
  %v7866 = vpop.permute.xlu0 %7865
  %7869 = vset.pattern.permute.xlu0 0
  %7870 = vperm.xlu0 %7869, %v6196
  %v7871 = vpop.permute.xlu0 %7870
  %7874 = vset.pattern.permute.xlu0 0
  %7875 = vperm.xlu0 %7874, %v6197
  %v7876 = vpop.permute.xlu0 %7875
  %7879 = vset.pattern.permute.xlu0 0
  %7880 = vperm.xlu0 %7879, %v6198
  %v7881 = vpop.permute.xlu0 %7880
  %7884 = vset.pattern.permute.xlu0 0
  %7885 = vperm.xlu0 %7884, %v6199
  %v7886 = vpop.permute.xlu0 %7885
  %7889 = vset.pattern.permute.xlu0 0
  %7890 = vperm.xlu0 %7889, %v6200
  %v7891 = vpop.permute.xlu0 %7890
  %7894 = vset.pattern.permute.xlu0 0
  %7895 = vperm.xlu0 %7894, %v6201
  %v7896 = vpop.permute.xlu0 %7895
  %7899 = vset.pattern.permute.xlu0 0
  %7900 = vperm.xlu0 %7899, %v6202
  %v7901 = vpop.permute.xlu0 %7900
  %7904 = vset.pattern.permute.xlu0 0
  %7905 = vperm.xlu0 %7904, %v6203
  %v7906 = vpop.permute.xlu0 %7905
  %7909 = vset.pattern.permute.xlu0 0
  %7910 = vperm.xlu0 %7909, %v6204
  %v7911 = vpop.permute.xlu0 %7910
  %7914 = vset.pattern.permute.xlu0 0
  %7915 = vperm.xlu0 %7914, %v6205
  %v7916 = vpop.permute.xlu0 %7915
  %7919 = vset.pattern.permute.xlu0 0
  %7920 = vperm.xlu0 %7919, %v6206
  %v7921 = vpop.permute.xlu0 %7920
  %7924 = vset.pattern.permute.xlu0 0
  %7925 = vperm.xlu0 %7924, %v6207
  %v7926 = vpop.permute.xlu0 %7925
  %7929 = vset.pattern.permute.xlu0 0
  %7930 = vperm.xlu0 %7929, %v6208
  %v7931 = vpop.permute.xlu0 %7930
  %7934 = vset.pattern.permute.xlu0 0
  %7935 = vperm.xlu0 %7934, %v6209
  %v7936 = vpop.permute.xlu0 %7935
  %7939 = vset.pattern.permute.xlu0 0
  %7940 = vperm.xlu0 %7939, %v6210
  %v7941 = vpop.permute.xlu0 %7940
  %7944 = vset.pattern.permute.xlu0 0
  %7945 = vperm.xlu0 %7944, %v6211
  %v7946 = vpop.permute.xlu0 %7945
  %7949 = vset.pattern.permute.xlu0 0
  %7950 = vperm.xlu0 %7949, %v6212
  %v7951 = vpop.permute.xlu0 %7950
  %7954 = vset.pattern.permute.xlu0 0
  %7955 = vperm.xlu0 %7954, %v6213
  %v7956 = vpop.permute.xlu0 %7955
  %7959 = vset.pattern.permute.xlu0 0
  %7960 = vperm.xlu0 %7959, %v6214
  %v7961 = vpop.permute.xlu0 %7960
  %7964 = vset.pattern.permute.xlu0 0
  %7965 = vperm.xlu0 %7964, %v6215
  %v7966 = vpop.permute.xlu0 %7965
  %7969 = vset.pattern.permute.xlu0 0
  %7970 = vperm.xlu0 %7969, %v6216
  %v7971 = vpop.permute.xlu0 %7970
  %7974 = vset.pattern.permute.xlu0 0
  %7975 = vperm.xlu0 %7974, %v6217
  %v7976 = vpop.permute.xlu0 %7975
  %7979 = vset.pattern.permute.xlu0 0
  %7980 = vperm.xlu0 %7979, %v6218
  %v7981 = vpop.permute.xlu0 %7980
  %7984 = vset.pattern.permute.xlu0 0
  %7985 = vperm.xlu0 %7984, %v6219
  %v7986 = vpop.permute.xlu0 %7985
  %7989 = vset.pattern.permute.xlu0 0
  %7990 = vperm.xlu0 %7989, %v6220
  %v7991 = vpop.permute.xlu0 %7990
  %7994 = vset.pattern.permute.xlu0 0
  %7995 = vperm.xlu0 %7994, %v6221
  %v7996 = vpop.permute.xlu0 %7995
  %7999 = vset.pattern.permute.xlu0 0
  %8000 = vperm.xlu0 %7999, %v6222
  %v8001 = vpop.permute.xlu0 %8000
  %8004 = vset.pattern.permute.xlu0 0
  %8005 = vperm.xlu0 %8004, %v6223
  %v8006 = vpop.permute.xlu0 %8005
  %8009 = vset.pattern.permute.xlu0 0
  %8010 = vperm.xlu0 %8009, %v6224
  %v8011 = vpop.permute.xlu0 %8010
  %8014 = vset.pattern.permute.xlu0 0
  %8015 = vperm.xlu0 %8014, %v6225
  %v8016 = vpop.permute.xlu0 %8015
  %8019 = vset.pattern.permute.xlu0 0
  %8020 = vperm.xlu0 %8019, %v6226
  %v8021 = vpop.permute.xlu0 %8020
  %8024 = vset.pattern.permute.xlu0 0
  %8025 = vperm.xlu0 %8024, %v6227
  %v8026 = vpop.permute.xlu0 %8025
  %8029 = vset.pattern.permute.xlu0 0
  %8030 = vperm.xlu0 %8029, %v6228
  %v8031 = vpop.permute.xlu0 %8030
  %8034 = vset.pattern.permute.xlu0 0
  %8035 = vperm.xlu0 %8034, %v6229
  %v8036 = vpop.permute.xlu0 %8035
  %8039 = vset.pattern.permute.xlu0 0
  %8040 = vperm.xlu0 %8039, %v6230
  %v8041 = vpop.permute.xlu0 %8040
  %8044 = vset.pattern.permute.xlu0 0
  %8045 = vperm.xlu0 %8044, %v6231
  %v8046 = vpop.permute.xlu0 %8045
  %8049 = vset.pattern.permute.xlu0 0
  %8050 = vperm.xlu0 %8049, %v6232
  %v8051 = vpop.permute.xlu0 %8050
  %8054 = vset.pattern.permute.xlu0 0
  %8055 = vperm.xlu0 %8054, %v6233
  %v8056 = vpop.permute.xlu0 %8055
  %8059 = vset.pattern.permute.xlu0 0
  %8060 = vperm.xlu0 %8059, %v6234
  %v8061 = vpop.permute.xlu0 %8060
  %8064 = vset.pattern.permute.xlu0 0
  %8065 = vperm.xlu0 %8064, %v6235
  %v8066 = vpop.permute.xlu0 %8065
  %8069 = vset.pattern.permute.xlu0 0
  %8070 = vperm.xlu0 %8069, %v6236
  %v8071 = vpop.permute.xlu0 %8070
  %8074 = vset.pattern.permute.xlu0 0
  %8075 = vperm.xlu0 %8074, %v6237
  %v8076 = vpop.permute.xlu0 %8075
  %8079 = vset.pattern.permute.xlu0 0
  %8080 = vperm.xlu0 %8079, %v6238
  %v8081 = vpop.permute.xlu0 %8080
  %8084 = vset.pattern.permute.xlu0 0
  %8085 = vperm.xlu0 %8084, %v6239
  %v8086 = vpop.permute.xlu0 %8085
  %8089 = vset.pattern.permute.xlu0 0
  %8090 = vperm.xlu0 %8089, %v6240
  %v8091 = vpop.permute.xlu0 %8090
  %8094 = vset.pattern.permute.xlu0 0
  %8095 = vperm.xlu0 %8094, %v6241
  %v8096 = vpop.permute.xlu0 %8095
  %8099 = vset.pattern.permute.xlu0 0
  %8100 = vperm.xlu0 %8099, %v6242
  %v8101 = vpop.permute.xlu0 %8100
  %8104 = vset.pattern.permute.xlu0 0
  %8105 = vperm.xlu0 %8104, %v6243
  %v8106 = vpop.permute.xlu0 %8105
  %8109 = vset.pattern.permute.xlu0 0
  %8110 = vperm.xlu0 %8109, %v6244
  %v8111 = vpop.permute.xlu0 %8110
  %8114 = vset.pattern.permute.xlu0 0
  %8115 = vperm.xlu0 %8114, %v6245
  %v8116 = vpop.permute.xlu0 %8115
  %8119 = vset.pattern.permute.xlu0 0
  %8120 = vperm.xlu0 %8119, %v6246
  %v8121 = vpop.permute.xlu0 %8120
  %8124 = vset.pattern.permute.xlu0 0
  %8125 = vperm.xlu0 %8124, %v6247
  %v8126 = vpop.permute.xlu0 %8125
  %8129 = vset.pattern.permute.xlu0 0
  %8130 = vperm.xlu0 %8129, %v6248
  %v8131 = vpop.permute.xlu0 %8130
  %8134 = vset.pattern.permute.xlu0 0
  %8135 = vperm.xlu0 %8134, %v6249
  %v8136 = vpop.permute.xlu0 %8135
  %8139 = vset.pattern.permute.xlu0 0
  %8140 = vperm.xlu0 %8139, %v6250
  %v8141 = vpop.permute.xlu0 %8140
  %8144 = vset.pattern.permute.xlu0 0
  %8145 = vperm.xlu0 %8144, %v6251
  %v8146 = vpop.permute.xlu0 %8145
  %8149 = vset.pattern.permute.xlu0 0
  %8150 = vperm.xlu0 %8149, %v6252
  %v8151 = vpop.permute.xlu0 %8150
  %8154 = vset.pattern.permute.xlu0 0
  %8155 = vperm.xlu0 %8154, %v6253
  %v8156 = vpop.permute.xlu0 %8155
  %8159 = vset.pattern.permute.xlu0 0
  %8160 = vperm.xlu0 %8159, %v6254
  %v8161 = vpop.permute.xlu0 %8160
  %8164 = vset.pattern.permute.xlu0 0
  %8165 = vperm.xlu0 %8164, %v6255
  %v8166 = vpop.permute.xlu0 %8165
  %8169 = vset.pattern.permute.xlu0 0
  %8170 = vperm.xlu0 %8169, %v6256
  %v8171 = vpop.permute.xlu0 %8170
  %8174 = vset.pattern.permute.xlu0 0
  %8175 = vperm.xlu0 %8174, %v6257
  %v8176 = vpop.permute.xlu0 %8175
  %8179 = vset.pattern.permute.xlu0 0
  %8180 = vperm.xlu0 %8179, %v6258
  %v8181 = vpop.permute.xlu0 %8180
  %8184 = vset.pattern.permute.xlu0 0
  %8185 = vperm.xlu0 %8184, %v6259
  %v8186 = vpop.permute.xlu0 %8185
  %8189 = vset.pattern.permute.xlu0 0
  %8190 = vperm.xlu0 %8189, %v6260
  %v8191 = vpop.permute.xlu0 %8190
  %8194 = vset.pattern.permute.xlu0 0
  %8195 = vperm.xlu0 %8194, %v6261
  %v8196 = vpop.permute.xlu0 %8195
  %8199 = vset.pattern.permute.xlu0 0
  %8200 = vperm.xlu0 %8199, %v6262
  %v8201 = vpop.permute.xlu0 %8200
  %8204 = vset.pattern.permute.xlu0 0
  %8205 = vperm.xlu0 %8204, %v6263
  %v8206 = vpop.permute.xlu0 %8205
  %8209 = vset.pattern.permute.xlu0 0
  %8210 = vperm.xlu0 %8209, %v6264
  %v8211 = vpop.permute.xlu0 %8210
  %8214 = vset.pattern.permute.xlu0 0
  %8215 = vperm.xlu0 %8214, %v6265
  %v8216 = vpop.permute.xlu0 %8215
  %8219 = vset.pattern.permute.xlu0 0
  %8220 = vperm.xlu0 %8219, %v6266
  %v8221 = vpop.permute.xlu0 %8220
  %8224 = vset.pattern.permute.xlu0 0
  %8225 = vperm.xlu0 %8224, %v6267
  %v8226 = vpop.permute.xlu0 %8225
  %8229 = vset.pattern.permute.xlu0 0
  %8230 = vperm.xlu0 %8229, %v6268
  %v8231 = vpop.permute.xlu0 %8230
  %8234 = vset.pattern.permute.xlu0 0
  %8235 = vperm.xlu0 %8234, %v6269
  %v8236 = vpop.permute.xlu0 %8235
  %8239 = vset.pattern.permute.xlu0 0
  %8240 = vperm.xlu0 %8239, %v6270
  %v8241 = vpop.permute.xlu0 %8240
  %8244 = vset.pattern.permute.xlu0 0
  %8245 = vperm.xlu0 %8244, %v6271
  %v8246 = vpop.permute.xlu0 %8245
  %8249 = vset.pattern.permute.xlu0 0
  %8250 = vperm.xlu0 %8249, %v6272
  %v8251 = vpop.permute.xlu0 %8250
  %8254 = vset.pattern.permute.xlu0 0
  %8255 = vperm.xlu0 %8254, %v6273
  %v8256 = vpop.permute.xlu0 %8255
  %8259 = vset.pattern.permute.xlu0 0
  %8260 = vperm.xlu0 %8259, %v6274
  %v8261 = vpop.permute.xlu0 %8260
  %8264 = vset.pattern.permute.xlu0 0
  %8265 = vperm.xlu0 %8264, %v6275
  %v8266 = vpop.permute.xlu0 %8265
  %8269 = vset.pattern.permute.xlu0 0
  %8270 = vperm.xlu0 %8269, %v6276
  %v8271 = vpop.permute.xlu0 %8270
  %8274 = vset.pattern.permute.xlu0 0
  %8275 = vperm.xlu0 %8274, %v6277
  %v8276 = vpop.permute.xlu0 %8275
  %8279 = vset.pattern.permute.xlu0 0
  %8280 = vperm.xlu0 %8279, %v6278
  %v8281 = vpop.permute.xlu0 %8280
  %8284 = vset.pattern.permute.xlu0 0
  %8285 = vperm.xlu0 %8284, %v6279
  %v8286 = vpop.permute.xlu0 %8285
  %8289 = vset.pattern.permute.xlu0 0
  %8290 = vperm.xlu0 %8289, %v6280
  %v8291 = vpop.permute.xlu0 %8290
  %8294 = vset.pattern.permute.xlu0 0
  %8295 = vperm.xlu0 %8294, %v6281
  %v8296 = vpop.permute.xlu0 %8295
  %8299 = vset.pattern.permute.xlu0 0
  %8300 = vperm.xlu0 %8299, %v6282
  %v8301 = vpop.permute.xlu0 %8300
  %8304 = vset.pattern.permute.xlu0 0
  %8305 = vperm.xlu0 %8304, %v6283
  %v8306 = vpop.permute.xlu0 %8305
  %8309 = vset.pattern.permute.xlu0 0
  %8310 = vperm.xlu0 %8309, %v6284
  %v8311 = vpop.permute.xlu0 %8310
  %8314 = vset.pattern.permute.xlu0 0
  %8315 = vperm.xlu0 %8314, %v6285
  %v8316 = vpop.permute.xlu0 %8315
  %8319 = vset.pattern.permute.xlu0 0
  %8320 = vperm.xlu0 %8319, %v6286
  %v8321 = vpop.permute.xlu0 %8320
  %8324 = vset.pattern.permute.xlu0 0
  %8325 = vperm.xlu0 %8324, %v6287
  %v8326 = vpop.permute.xlu0 %8325
  %8329 = vset.pattern.permute.xlu0 0
  %8330 = vperm.xlu0 %8329, %v6288
  %v8331 = vpop.permute.xlu0 %8330
  %8334 = vset.pattern.permute.xlu0 0
  %8335 = vperm.xlu0 %8334, %v6289
  %v8336 = vpop.permute.xlu0 %8335
  %8339 = vset.pattern.permute.xlu0 0
  %8340 = vperm.xlu0 %8339, %v6290
  %v8341 = vpop.permute.xlu0 %8340
  %8344 = vset.pattern.permute.xlu0 0
  %8345 = vperm.xlu0 %8344, %v6291
  %v8346 = vpop.permute.xlu0 %8345
  %8349 = vset.pattern.permute.xlu0 0
  %8350 = vperm.xlu0 %8349, %v6292
  %v8351 = vpop.permute.xlu0 %8350
  %8354 = vset.pattern.permute.xlu0 0
  %8355 = vperm.xlu0 %8354, %v6293
  %v8356 = vpop.permute.xlu0 %8355
  %8359 = vset.pattern.permute.xlu0 0
  %8360 = vperm.xlu0 %8359, %v6294
  %v8361 = vpop.permute.xlu0 %8360
  %8364 = vset.pattern.permute.xlu0 0
  %8365 = vperm.xlu0 %8364, %v6295
  %v8366 = vpop.permute.xlu0 %8365
  %8369 = vset.pattern.permute.xlu0 0
  %8370 = vperm.xlu0 %8369, %v6296
  %v8371 = vpop.permute.xlu0 %8370
  %8374 = vset.pattern.permute.xlu0 0
  %8375 = vperm.xlu0 %8374, %v6297
  %v8376 = vpop.permute.xlu0 %8375
  %8379 = vset.pattern.permute.xlu0 0
  %8380 = vperm.xlu0 %8379, %v6298
  %v8381 = vpop.permute.xlu0 %8380
  %8384 = vset.pattern.permute.xlu0 0
  %8385 = vperm.xlu0 %8384, %v6299
  %v8386 = vpop.permute.xlu0 %8385
  %8389 = vset.pattern.permute.xlu0 0
  %8390 = vperm.xlu0 %8389, %v6300
  %v8391 = vpop.permute.xlu0 %8390
  %8394 = vset.pattern.permute.xlu0 0
  %8395 = vperm.xlu0 %8394, %v6301
  %v8396 = vpop.permute.xlu0 %8395
  %8399 = vset.pattern.permute.xlu0 0
  %8400 = vperm.xlu0 %8399, %v6302
  %v8401 = vpop.permute.xlu0 %8400
  %8404 = vset.pattern.permute.xlu0 0
  %8405 = vperm.xlu0 %8404, %v6303
  %v8406 = vpop.permute.xlu0 %8405
  %8409 = vset.pattern.permute.xlu0 0
  %8410 = vperm.xlu0 %8409, %v6304
  %v8411 = vpop.permute.xlu0 %8410
  %8414 = vset.pattern.permute.xlu0 0
  %8415 = vperm.xlu0 %8414, %v6305
  %v8416 = vpop.permute.xlu0 %8415
  %8419 = vset.pattern.permute.xlu0 0
  %8420 = vperm.xlu0 %8419, %v6306
  %v8421 = vpop.permute.xlu0 %8420
  %8424 = vset.pattern.permute.xlu0 0
  %8425 = vperm.xlu0 %8424, %v6307
  %v8426 = vpop.permute.xlu0 %8425
  %8429 = vset.pattern.permute.xlu0 0
  %8430 = vperm.xlu0 %8429, %v6308
  %v8431 = vpop.permute.xlu0 %8430
  %8434 = vset.pattern.permute.xlu0 0
  %8435 = vperm.xlu0 %8434, %v6309
  %v8436 = vpop.permute.xlu0 %8435
  %8439 = vset.pattern.permute.xlu0 0
  %8440 = vperm.xlu0 %8439, %v6310
  %v8441 = vpop.permute.xlu0 %8440
  %8444 = vset.pattern.permute.xlu0 0
  %8445 = vperm.xlu0 %8444, %v6311
  %v8446 = vpop.permute.xlu0 %8445
  %8449 = vset.pattern.permute.xlu0 0
  %8450 = vperm.xlu0 %8449, %v6312
  %v8451 = vpop.permute.xlu0 %8450
  %8454 = vset.pattern.permute.xlu0 0
  %8455 = vperm.xlu0 %8454, %v6313
  %v8456 = vpop.permute.xlu0 %8455
  %8459 = vset.pattern.permute.xlu0 0
  %8460 = vperm.xlu0 %8459, %v6314
  %v8461 = vpop.permute.xlu0 %8460
  %8464 = vset.pattern.permute.xlu0 0
  %8465 = vperm.xlu0 %8464, %v6315
  %v8466 = vpop.permute.xlu0 %8465
  %8469 = vset.pattern.permute.xlu0 0
  %8470 = vperm.xlu0 %8469, %v6316
  %v8471 = vpop.permute.xlu0 %8470
  %8474 = vset.pattern.permute.xlu0 0
  %8475 = vperm.xlu0 %8474, %v6317
  %v8476 = vpop.permute.xlu0 %8475
  %8479 = vset.pattern.permute.xlu0 0
  %8480 = vperm.xlu0 %8479, %v6318
  %v8481 = vpop.permute.xlu0 %8480
  %8484 = vset.pattern.permute.xlu0 0
  %8485 = vperm.xlu0 %8484, %v6319
  %v8486 = vpop.permute.xlu0 %8485
  %8489 = vset.pattern.permute.xlu0 0
  %8490 = vperm.xlu0 %8489, %v6320
  %v8491 = vpop.permute.xlu0 %8490
  %8494 = vset.pattern.permute.xlu0 0
  %8495 = vperm.xlu0 %8494, %v6321
  %v8496 = vpop.permute.xlu0 %8495
  %8499 = vset.pattern.permute.xlu0 0
  %8500 = vperm.xlu0 %8499, %v6322
  %v8501 = vpop.permute.xlu0 %8500
  %8504 = vset.pattern.permute.xlu0 0
  %8505 = vperm.xlu0 %8504, %v6323
  %v8506 = vpop.permute.xlu0 %8505
  %8509 = vset.pattern.permute.xlu0 0
  %8510 = vperm.xlu0 %8509, %v6324
  %v8511 = vpop.permute.xlu0 %8510
  %8514 = vset.pattern.permute.xlu0 0
  %8515 = vperm.xlu0 %8514, %v6325
  %v8516 = vpop.permute.xlu0 %8515
  %8519 = vset.pattern.permute.xlu0 0
  %8520 = vperm.xlu0 %8519, %v6326
  %v8521 = vpop.permute.xlu0 %8520
  %8524 = vset.pattern.permute.xlu0 0
  %8525 = vperm.xlu0 %8524, %v6327
  %v8526 = vpop.permute.xlu0 %8525
  %8529 = vset.pattern.permute.xlu0 0
  %8530 = vperm.xlu0 %8529, %v6328
  %v8531 = vpop.permute.xlu0 %8530
  %8534 = vset.pattern.permute.xlu0 0
  %8535 = vperm.xlu0 %8534, %v6329
  %v8536 = vpop.permute.xlu0 %8535
  %8539 = vset.pattern.permute.xlu0 0
  %8540 = vperm.xlu0 %8539, %v6330
  %v8541 = vpop.permute.xlu0 %8540
  %8544 = vset.pattern.permute.xlu0 0
  %8545 = vperm.xlu0 %8544, %v6331
  %v8546 = vpop.permute.xlu0 %8545
  %8549 = vset.pattern.permute.xlu0 0
  %8550 = vperm.xlu0 %8549, %v6332
  %v8551 = vpop.permute.xlu0 %8550
  %8554 = vset.pattern.permute.xlu0 0
  %8555 = vperm.xlu0 %8554, %v6333
  %v8556 = vpop.permute.xlu0 %8555
  %8559 = vset.pattern.permute.xlu0 0
  %8560 = vperm.xlu0 %8559, %v6334
  %v8561 = vpop.permute.xlu0 %8560
  %8564 = vset.pattern.permute.xlu0 0
  %8565 = vperm.xlu0 %8564, %v6335
  %v8566 = vpop.permute.xlu0 %8565
  %8569 = vset.pattern.permute.xlu0 0
  %8570 = vperm.xlu0 %8569, %v6336
  %v8571 = vpop.permute.xlu0 %8570
  %8574 = vset.pattern.permute.xlu0 0
  %8575 = vperm.xlu0 %8574, %v6337
  %v8576 = vpop.permute.xlu0 %8575
  %8579 = vset.pattern.permute.xlu0 0
  %8580 = vperm.xlu0 %8579, %v6338
  %v8581 = vpop.permute.xlu0 %8580
  %8584 = vset.pattern.permute.xlu0 0
  %8585 = vperm.xlu0 %8584, %v6339
  %v8586 = vpop.permute.xlu0 %8585
  %8589 = vset.pattern.permute.xlu0 0
  %8590 = vperm.xlu0 %8589, %v6340
  %v8591 = vpop.permute.xlu0 %8590
  %8594 = vset.pattern.permute.xlu0 0
  %8595 = vperm.xlu0 %8594, %v6341
  %v8596 = vpop.permute.xlu0 %8595
  %8599 = vset.pattern.permute.xlu0 0
  %8600 = vperm.xlu0 %8599, %v6342
  %v8601 = vpop.permute.xlu0 %8600
  %8604 = vset.pattern.permute.xlu0 0
  %8605 = vperm.xlu0 %8604, %v6343
  %v8606 = vpop.permute.xlu0 %8605
  %8609 = vset.pattern.permute.xlu0 0
  %8610 = vperm.xlu0 %8609, %v6344
  %v8611 = vpop.permute.xlu0 %8610
  %8614 = vset.pattern.permute.xlu0 0
  %8615 = vperm.xlu0 %8614, %v6345
  %v8616 = vpop.permute.xlu0 %8615
  %8619 = vset.pattern.permute.xlu0 0
  %8620 = vperm.xlu0 %8619, %v6346
  %v8621 = vpop.permute.xlu0 %8620
  %8624 = vset.pattern.permute.xlu0 0
  %8625 = vperm.xlu0 %8624, %v6347
  %v8626 = vpop.permute.xlu0 %8625
  %8629 = vset.pattern.permute.xlu0 0
  %8630 = vperm.xlu0 %8629, %v6348
  %v8631 = vpop.permute.xlu0 %8630
  %8634 = vset.pattern.permute.xlu0 0
  %8635 = vperm.xlu0 %8634, %v6349
  %v8636 = vpop.permute.xlu0 %8635
  %8639 = vset.pattern.permute.xlu0 0
  %8640 = vperm.xlu0 %8639, %v6350
  %v8641 = vpop.permute.xlu0 %8640
  %8644 = vset.pattern.permute.xlu0 0
  %8645 = vperm.xlu0 %8644, %v6351
  %v8646 = vpop.permute.xlu0 %8645
  %8649 = vset.pattern.permute.xlu0 0
  %8650 = vperm.xlu0 %8649, %v6352
  %v8651 = vpop.permute.xlu0 %8650
  %8654 = vset.pattern.permute.xlu0 0
  %8655 = vperm.xlu0 %8654, %v6353
  %v8656 = vpop.permute.xlu0 %8655
  %8659 = vset.pattern.permute.xlu0 0
  %8660 = vperm.xlu0 %8659, %v6354
  %v8661 = vpop.permute.xlu0 %8660
  %8664 = vset.pattern.permute.xlu0 0
  %8665 = vperm.xlu0 %8664, %v6355
  %v8666 = vpop.permute.xlu0 %8665
  %8669 = vset.pattern.permute.xlu0 0
  %8670 = vperm.xlu0 %8669, %v6356
  %v8671 = vpop.permute.xlu0 %8670
  %8674 = vset.pattern.permute.xlu0 0
  %8675 = vperm.xlu0 %8674, %v6357
  %v8676 = vpop.permute.xlu0 %8675
  %8679 = vset.pattern.permute.xlu0 0
  %8680 = vperm.xlu0 %8679, %v6358
  %v8681 = vpop.permute.xlu0 %8680
  %8684 = vset.pattern.permute.xlu0 0
  %8685 = vperm.xlu0 %8684, %v6359
  %v8686 = vpop.permute.xlu0 %8685
  %8689 = vset.pattern.permute.xlu0 0
  %8690 = vperm.xlu0 %8689, %v6360
  %v8691 = vpop.permute.xlu0 %8690
  %8694 = vset.pattern.permute.xlu0 0
  %8695 = vperm.xlu0 %8694, %v6361
  %v8696 = vpop.permute.xlu0 %8695
  %8699 = vset.pattern.permute.xlu0 0
  %8700 = vperm.xlu0 %8699, %v6362
  %v8701 = vpop.permute.xlu0 %8700
  %8704 = vset.pattern.permute.xlu0 0
  %8705 = vperm.xlu0 %8704, %v6363
  %v8706 = vpop.permute.xlu0 %8705
  %8709 = vset.pattern.permute.xlu0 0
  %8710 = vperm.xlu0 %8709, %v6364
  %v8711 = vpop.permute.xlu0 %8710
  %8714 = vset.pattern.permute.xlu0 0
  %8715 = vperm.xlu0 %8714, %v6365
  %v8716 = vpop.permute.xlu0 %8715
  %8719 = vset.pattern.permute.xlu0 0
  %8720 = vperm.xlu0 %8719, %v6366
  %v8721 = vpop.permute.xlu0 %8720
  %8724 = vset.pattern.permute.xlu0 0
  %8725 = vperm.xlu0 %8724, %v6367
  %v8726 = vpop.permute.xlu0 %8725
  %8729 = vset.pattern.permute.xlu0 0
  %8730 = vperm.xlu0 %8729, %v6368
  %v8731 = vpop.permute.xlu0 %8730
  %8734 = vset.pattern.permute.xlu0 0
  %8735 = vperm.xlu0 %8734, %v6369
  %v8736 = vpop.permute.xlu0 %8735
  %8739 = vset.pattern.permute.xlu0 0
  %8740 = vperm.xlu0 %8739, %v6370
  %v8741 = vpop.permute.xlu0 %8740
  %8744 = vset.pattern.permute.xlu0 0
  %8745 = vperm.xlu0 %8744, %v6371
  %v8746 = vpop.permute.xlu0 %8745
  %8749 = vset.pattern.permute.xlu0 0
  %8750 = vperm.xlu0 %8749, %v6372
  %v8751 = vpop.permute.xlu0 %8750
  %8754 = vset.pattern.permute.xlu0 0
  %8755 = vperm.xlu0 %8754, %v6373
  %v8756 = vpop.permute.xlu0 %8755
  %8759 = vset.pattern.permute.xlu0 0
  %8760 = vperm.xlu0 %8759, %v6374
  %v8761 = vpop.permute.xlu0 %8760
  %8764 = vset.pattern.permute.xlu0 0
  %8765 = vperm.xlu0 %8764, %v6375
  %v8766 = vpop.permute.xlu0 %8765
  %8769 = vset.pattern.permute.xlu0 0
  %8770 = vperm.xlu0 %8769, %v6376
  %v8771 = vpop.permute.xlu0 %8770
  %8774 = vset.pattern.permute.xlu0 0
  %8775 = vperm.xlu0 %8774, %v6377
  %v8776 = vpop.permute.xlu0 %8775
  %8779 = vset.pattern.permute.xlu0 0
  %8780 = vperm.xlu0 %8779, %v6378
  %v8781 = vpop.permute.xlu0 %8780
  %8784 = vset.pattern.permute.xlu0 0
  %8785 = vperm.xlu0 %8784, %v6379
  %v8786 = vpop.permute.xlu0 %8785
  %8789 = vset.pattern.permute.xlu0 0
  %8790 = vperm.xlu0 %8789, %v6380
  %v8791 = vpop.permute.xlu0 %8790
  %8794 = vset.pattern.permute.xlu0 0
  %8795 = vperm.xlu0 %8794, %v6381
  %v8796 = vpop.permute.xlu0 %8795
  %8799 = vset.pattern.permute.xlu0 0
  %8800 = vperm.xlu0 %8799, %v6382
  %v8801 = vpop.permute.xlu0 %8800
  %8804 = vset.pattern.permute.xlu0 0
  %8805 = vperm.xlu0 %8804, %v6383
  %v8806 = vpop.permute.xlu0 %8805
  %8809 = vset.pattern.permute.xlu0 0
  %8810 = vperm.xlu0 %8809, %v6384
  %v8811 = vpop.permute.xlu0 %8810
  %8814 = vset.pattern.permute.xlu0 0
  %8815 = vperm.xlu0 %8814, %v6385
  %v8816 = vpop.permute.xlu0 %8815
  %8819 = vset.pattern.permute.xlu0 0
  %8820 = vperm.xlu0 %8819, %v6386
  %v8821 = vpop.permute.xlu0 %8820
  %8824 = vset.pattern.permute.xlu0 0
  %8825 = vperm.xlu0 %8824, %v6387
  %v8826 = vpop.permute.xlu0 %8825
  %8829 = vset.pattern.permute.xlu0 0
  %8830 = vperm.xlu0 %8829, %v6388
  %v8831 = vpop.permute.xlu0 %8830
  %8834 = vset.pattern.permute.xlu0 0
  %8835 = vperm.xlu0 %8834, %v6389
  %v8836 = vpop.permute.xlu0 %8835
  %8839 = vset.pattern.permute.xlu0 0
  %8840 = vperm.xlu0 %8839, %v6390
  %v8841 = vpop.permute.xlu0 %8840
  %8844 = vset.pattern.permute.xlu0 0
  %8845 = vperm.xlu0 %8844, %v6391
  %v8846 = vpop.permute.xlu0 %8845
  %8849 = vset.pattern.permute.xlu0 0
  %8850 = vperm.xlu0 %8849, %v6392
  %v8851 = vpop.permute.xlu0 %8850
  %8854 = vset.pattern.permute.xlu0 0
  %8855 = vperm.xlu0 %8854, %v6393
  %v8856 = vpop.permute.xlu0 %8855
  %8859 = vset.pattern.permute.xlu0 0
  %8860 = vperm.xlu0 %8859, %v6394
  %v8861 = vpop.permute.xlu0 %8860
  %8864 = vset.pattern.permute.xlu0 0
  %8865 = vperm.xlu0 %8864, %v6395
  %v8866 = vpop.permute.xlu0 %8865
  %8869 = vset.pattern.permute.xlu0 0
  %8870 = vperm.xlu0 %8869, %v6396
  %v8871 = vpop.permute.xlu0 %8870
  %8874 = vset.pattern.permute.xlu0 0
  %8875 = vperm.xlu0 %8874, %v6397
  %v8876 = vpop.permute.xlu0 %8875
  %8879 = vset.pattern.permute.xlu0 0
  %8880 = vperm.xlu0 %8879, %v6398
  %v8881 = vpop.permute.xlu0 %8880
  %8884 = vset.pattern.permute.xlu0 0
  %8885 = vperm.xlu0 %8884, %v6399
  %v8886 = vpop.permute.xlu0 %8885
  %8889 = vset.pattern.permute.xlu0 0
  %8890 = vperm.xlu0 %8889, %v6400
  %v8891 = vpop.permute.xlu0 %8890
  %8894 = vset.pattern.permute.xlu0 0
  %8895 = vperm.xlu0 %8894, %v6401
  %v8896 = vpop.permute.xlu0 %8895
  %8899 = vset.pattern.permute.xlu0 0
  %8900 = vperm.xlu0 %8899, %v6402
  %v8901 = vpop.permute.xlu0 %8900
  %8904 = vset.pattern.permute.xlu0 0
  %8905 = vperm.xlu0 %8904, %v6403
  %v8906 = vpop.permute.xlu0 %8905
  %8909 = vset.pattern.permute.xlu0 0
  %8910 = vperm.xlu0 %8909, %v6404
  %v8911 = vpop.permute.xlu0 %8910
  %8914 = vset.pattern.permute.xlu0 0
  %8915 = vperm.xlu0 %8914, %v6405
  %v8916 = vpop.permute.xlu0 %8915
  %8919 = vset.pattern.permute.xlu0 0
  %8920 = vperm.xlu0 %8919, %v6406
  %v8921 = vpop.permute.xlu0 %8920
  %8924 = vset.pattern.permute.xlu0 0
  %8925 = vperm.xlu0 %8924, %v6407
  %v8926 = vpop.permute.xlu0 %8925
  %8929 = vset.pattern.permute.xlu0 0
  %8930 = vperm.xlu0 %8929, %v6408
  %v8931 = vpop.permute.xlu0 %8930
  %8934 = vset.pattern.permute.xlu0 0
  %8935 = vperm.xlu0 %8934, %v6409
  %v8936 = vpop.permute.xlu0 %8935
  %8939 = vset.pattern.permute.xlu0 0
  %8940 = vperm.xlu0 %8939, %v6410
  %v8941 = vpop.permute.xlu0 %8940
  %8944 = vset.pattern.permute.xlu0 0
  %8945 = vperm.xlu0 %8944, %v6411
  %v8946 = vpop.permute.xlu0 %8945
  %8949 = vset.pattern.permute.xlu0 0
  %8950 = vperm.xlu0 %8949, %v6412
  %v8951 = vpop.permute.xlu0 %8950
  %8954 = vset.pattern.permute.xlu0 0
  %8955 = vperm.xlu0 %8954, %v6413
  %v8956 = vpop.permute.xlu0 %8955
  %8959 = vset.pattern.permute.xlu0 0
  %8960 = vperm.xlu0 %8959, %v6414
  %v8961 = vpop.permute.xlu0 %8960
  %8964 = vset.pattern.permute.xlu0 0
  %8965 = vperm.xlu0 %8964, %v6415
  %v8966 = vpop.permute.xlu0 %8965
  %8969 = vset.pattern.permute.xlu0 0
  %8970 = vperm.xlu0 %8969, %v6416
  %v8971 = vpop.permute.xlu0 %8970
  %8974 = vset.pattern.permute.xlu0 0
  %8975 = vperm.xlu0 %8974, %v6417
  %v8976 = vpop.permute.xlu0 %8975
  %8979 = vset.pattern.permute.xlu0 0
  %8980 = vperm.xlu0 %8979, %v6418
  %v8981 = vpop.permute.xlu0 %8980
  %8984 = vset.pattern.permute.xlu0 0
  %8985 = vperm.xlu0 %8984, %v6419
  %v8986 = vpop.permute.xlu0 %8985
  %8989 = vset.pattern.permute.xlu0 0
  %8990 = vperm.xlu0 %8989, %v6420
  %v8991 = vpop.permute.xlu0 %8990
  %8994 = vset.pattern.permute.xlu0 0
  %8995 = vperm.xlu0 %8994, %v6421
  %v8996 = vpop.permute.xlu0 %8995
  %8999 = vset.pattern.permute.xlu0 0
  %9000 = vperm.xlu0 %8999, %v6422
  %v9001 = vpop.permute.xlu0 %9000
  %9004 = vset.pattern.permute.xlu0 0
  %9005 = vperm.xlu0 %9004, %v6423
  %v9006 = vpop.permute.xlu0 %9005
  %9009 = vset.pattern.permute.xlu0 0
  %9010 = vperm.xlu0 %9009, %v6424
  %v9011 = vpop.permute.xlu0 %9010
  %9014 = vset.pattern.permute.xlu0 0
  %9015 = vperm.xlu0 %9014, %v6425
  %v9016 = vpop.permute.xlu0 %9015
  %9019 = vset.pattern.permute.xlu0 0
  %9020 = vperm.xlu0 %9019, %v6426
  %v9021 = vpop.permute.xlu0 %9020
  %9024 = vset.pattern.permute.xlu0 0
  %9025 = vperm.xlu0 %9024, %v6427
  %v9026 = vpop.permute.xlu0 %9025
  %9029 = vset.pattern.permute.xlu0 0
  %9030 = vperm.xlu0 %9029, %v6428
  %v9031 = vpop.permute.xlu0 %9030
  %9034 = vset.pattern.permute.xlu0 0
  %9035 = vperm.xlu0 %9034, %v6429
  %v9036 = vpop.permute.xlu0 %9035
  %9039 = vset.pattern.permute.xlu0 0
  %9040 = vperm.xlu0 %9039, %v6430
  %v9041 = vpop.permute.xlu0 %9040
  %9044 = vset.pattern.permute.xlu0 0
  %9045 = vperm.xlu0 %9044, %v6431
  %v9046 = vpop.permute.xlu0 %9045
  %9049 = vset.pattern.permute.xlu0 0
  %9050 = vperm.xlu0 %9049, %v6432
  %v9051 = vpop.permute.xlu0 %9050
  %9054 = vset.pattern.permute.xlu0 0
  %9055 = vperm.xlu0 %9054, %v6433
  %v9056 = vpop.permute.xlu0 %9055
  %9059 = vset.pattern.permute.xlu0 0
  %9060 = vperm.xlu0 %9059, %v6434
  %v9061 = vpop.permute.xlu0 %9060
  %9064 = vset.pattern.permute.xlu0 0
  %9065 = vperm.xlu0 %9064, %v6435
  %v9066 = vpop.permute.xlu0 %9065
  %9069 = vset.pattern.permute.xlu0 0
  %9070 = vperm.xlu0 %9069, %v6436
  %v9071 = vpop.permute.xlu0 %9070
  %9074 = vset.pattern.permute.xlu0 0
  %9075 = vperm.xlu0 %9074, %v6437
  %v9076 = vpop.permute.xlu0 %9075
  %9079 = vset.pattern.permute.xlu0 0
  %9080 = vperm.xlu0 %9079, %v6438
  %v9081 = vpop.permute.xlu0 %9080
  %9084 = vset.pattern.permute.xlu0 0
  %9085 = vperm.xlu0 %9084, %v6439
  %v9086 = vpop.permute.xlu0 %9085
  %9089 = vset.pattern.permute.xlu0 0
  %9090 = vperm.xlu0 %9089, %v6440
  %v9091 = vpop.permute.xlu0 %9090
  %9094 = vset.pattern.permute.xlu0 0
  %9095 = vperm.xlu0 %9094, %v6441
  %v9096 = vpop.permute.xlu0 %9095
  %9099 = vset.pattern.permute.xlu0 0
  %9100 = vperm.xlu0 %9099, %v6442
  %v9101 = vpop.permute.xlu0 %9100
  %9104 = vset.pattern.permute.xlu0 0
  %9105 = vperm.xlu0 %9104, %v6443
  %v9106 = vpop.permute.xlu0 %9105
  %9109 = vset.pattern.permute.xlu0 0
  %9110 = vperm.xlu0 %9109, %v6444
  %v9111 = vpop.permute.xlu0 %9110
  %9114 = vset.pattern.permute.xlu0 0
  %9115 = vperm.xlu0 %9114, %v6445
  %v9116 = vpop.permute.xlu0 %9115
  %9119 = vset.pattern.permute.xlu0 0
  %9120 = vperm.xlu0 %9119, %v6446
  %v9121 = vpop.permute.xlu0 %9120
  %9124 = vset.pattern.permute.xlu0 0
  %9125 = vperm.xlu0 %9124, %v6447
  %v9126 = vpop.permute.xlu0 %9125
  %9129 = vset.pattern.permute.xlu0 0
  %9130 = vperm.xlu0 %9129, %v6448
  %v9131 = vpop.permute.xlu0 %9130
  %9134 = vset.pattern.permute.xlu0 0
  %9135 = vperm.xlu0 %9134, %v6449
  %v9136 = vpop.permute.xlu0 %9135
  %9139 = vset.pattern.permute.xlu0 0
  %9140 = vperm.xlu0 %9139, %v6450
  %v9141 = vpop.permute.xlu0 %9140
  %9144 = vset.pattern.permute.xlu0 0
  %9145 = vperm.xlu0 %9144, %v6451
  %v9146 = vpop.permute.xlu0 %9145
  %9149 = vset.pattern.permute.xlu0 0
  %9150 = vperm.xlu0 %9149, %v6452
  %v9151 = vpop.permute.xlu0 %9150
  %9154 = vset.pattern.permute.xlu0 0
  %9155 = vperm.xlu0 %9154, %v6453
  %v9156 = vpop.permute.xlu0 %9155
  %9159 = vset.pattern.permute.xlu0 0
  %9160 = vperm.xlu0 %9159, %v6454
  %v9161 = vpop.permute.xlu0 %9160
  %9164 = vset.pattern.permute.xlu0 0
  %9165 = vperm.xlu0 %9164, %v6455
  %v9166 = vpop.permute.xlu0 %9165
  %9169 = vset.pattern.permute.xlu0 0
  %9170 = vperm.xlu0 %9169, %v6456
  %v9171 = vpop.permute.xlu0 %9170
  %9174 = vset.pattern.permute.xlu0 0
  %9175 = vperm.xlu0 %9174, %v6457
  %v9176 = vpop.permute.xlu0 %9175
  %9179 = vset.pattern.permute.xlu0 0
  %9180 = vperm.xlu0 %9179, %v6458
  %v9181 = vpop.permute.xlu0 %9180
  %9184 = vset.pattern.permute.xlu0 0
  %9185 = vperm.xlu0 %9184, %v6459
  %v9186 = vpop.permute.xlu0 %9185
  %9189 = vset.pattern.permute.xlu0 0
  %9190 = vperm.xlu0 %9189, %v6460
  %v9191 = vpop.permute.xlu0 %9190
  %9194 = vset.pattern.permute.xlu0 0
  %9195 = vperm.xlu0 %9194, %v6461
  %v9196 = vpop.permute.xlu0 %9195
  %9199 = vset.pattern.permute.xlu0 0
  %9200 = vperm.xlu0 %9199, %v6462
  %v9201 = vpop.permute.xlu0 %9200
  %9204 = vset.pattern.permute.xlu0 0
  %9205 = vperm.xlu0 %9204, %v6463
  %v9206 = vpop.permute.xlu0 %9205
  %9209 = vset.pattern.permute.xlu0 0
  %9210 = vperm.xlu0 %9209, %v6464
  %v9211 = vpop.permute.xlu0 %9210
  %9214 = vset.pattern.permute.xlu0 0
  %9215 = vperm.xlu0 %9214, %v6465
  %v9216 = vpop.permute.xlu0 %9215
  %9219 = vset.pattern.permute.xlu0 0
  %9220 = vperm.xlu0 %9219, %v6466
  %v9221 = vpop.permute.xlu0 %9220
  %9224 = vset.pattern.permute.xlu0 0
  %9225 = vperm.xlu0 %9224, %v6467
  %v9226 = vpop.permute.xlu0 %9225
  %9229 = vset.pattern.permute.xlu0 0
  %9230 = vperm.xlu0 %9229, %v6468
  %v9231 = vpop.permute.xlu0 %9230
  %9234 = vset.pattern.permute.xlu0 0
  %9235 = vperm.xlu0 %9234, %v6469
  %v9236 = vpop.permute.xlu0 %9235
  %9239 = vset.pattern.permute.xlu0 0
  %9240 = vperm.xlu0 %9239, %v6470
  %v9241 = vpop.permute.xlu0 %9240
  %9244 = vset.pattern.permute.xlu0 0
  %9245 = vperm.xlu0 %9244, %v6471
  %v9246 = vpop.permute.xlu0 %9245
  %9249 = vset.pattern.permute.xlu0 0
  %9250 = vperm.xlu0 %9249, %v6472
  %v9251 = vpop.permute.xlu0 %9250
  %9254 = vset.pattern.permute.xlu0 0
  %9255 = vperm.xlu0 %9254, %v6473
  %v9256 = vpop.permute.xlu0 %9255
  %9259 = vset.pattern.permute.xlu0 0
  %9260 = vperm.xlu0 %9259, %v6474
  %v9261 = vpop.permute.xlu0 %9260
  %9264 = vset.pattern.permute.xlu0 0
  %9265 = vperm.xlu0 %9264, %v6475
  %v9266 = vpop.permute.xlu0 %9265
  %9269 = vset.pattern.permute.xlu0 0
  %9270 = vperm.xlu0 %9269, %v6476
  %v9271 = vpop.permute.xlu0 %9270
  %9274 = vset.pattern.permute.xlu0 0
  %9275 = vperm.xlu0 %9274, %v6477
  %v9276 = vpop.permute.xlu0 %9275
  %9279 = vset.pattern.permute.xlu0 0
  %9280 = vperm.xlu0 %9279, %v6478
  %v9281 = vpop.permute.xlu0 %9280
  %9284 = vset.pattern.permute.xlu0 0
  %9285 = vperm.xlu0 %9284, %v6479
  %v9286 = vpop.permute.xlu0 %9285
  %9289 = vset.pattern.permute.xlu0 0
  %9290 = vperm.xlu0 %9289, %v6480
  %v9291 = vpop.permute.xlu0 %9290
  %9294 = vset.pattern.permute.xlu0 0
  %9295 = vperm.xlu0 %9294, %v6481
  %v9296 = vpop.permute.xlu0 %9295
  %9299 = vset.pattern.permute.xlu0 0
  %9300 = vperm.xlu0 %9299, %v6482
  %v9301 = vpop.permute.xlu0 %9300
  %9304 = vset.pattern.permute.xlu0 0
  %9305 = vperm.xlu0 %9304, %v6483
  %v9306 = vpop.permute.xlu0 %9305
  %9309 = vset.pattern.permute.xlu0 0
  %9310 = vperm.xlu0 %9309, %v6484
  %v9311 = vpop.permute.xlu0 %9310
  %9314 = vset.pattern.permute.xlu0 0
  %9315 = vperm.xlu0 %9314, %v6485
  %v9316 = vpop.permute.xlu0 %9315
  %9319 = vset.pattern.permute.xlu0 0
  %9320 = vperm.xlu0 %9319, %v6486
  %v9321 = vpop.permute.xlu0 %9320
  %9324 = vset.pattern.permute.xlu0 0
  %9325 = vperm.xlu0 %9324, %v6487
  %v9326 = vpop.permute.xlu0 %9325
  %9329 = vset.pattern.permute.xlu0 0
  %9330 = vperm.xlu0 %9329, %v6488
  %v9331 = vpop.permute.xlu0 %9330
  %9334 = vset.pattern.permute.xlu0 0
  %9335 = vperm.xlu0 %9334, %v6489
  %v9336 = vpop.permute.xlu0 %9335
  %9339 = vset.pattern.permute.xlu0 0
  %9340 = vperm.xlu0 %9339, %v6490
  %v9341 = vpop.permute.xlu0 %9340
  %9344 = vset.pattern.permute.xlu0 0
  %9345 = vperm.xlu0 %9344, %v6491
  %v9346 = vpop.permute.xlu0 %9345
  %9349 = vset.pattern.permute.xlu0 0
  %9350 = vperm.xlu0 %9349, %v6492
  %v9351 = vpop.permute.xlu0 %9350
  %9354 = vset.pattern.permute.xlu0 0
  %9355 = vperm.xlu0 %9354, %v6493
  %v9356 = vpop.permute.xlu0 %9355
  %9359 = vset.pattern.permute.xlu0 0
  %9360 = vperm.xlu0 %9359, %v6494
  %v9361 = vpop.permute.xlu0 %9360
  %9364 = vset.pattern.permute.xlu0 0
  %9365 = vperm.xlu0 %9364, %v6495
  %v9366 = vpop.permute.xlu0 %9365
  %9369 = vset.pattern.permute.xlu0 0
  %9370 = vperm.xlu0 %9369, %v6496
  %v9371 = vpop.permute.xlu0 %9370
  %9374 = vset.pattern.permute.xlu0 0
  %9375 = vperm.xlu0 %9374, %v6497
  %v9376 = vpop.permute.xlu0 %9375
  %9379 = vset.pattern.permute.xlu0 0
  %9380 = vperm.xlu0 %9379, %v6498
  %v9381 = vpop.permute.xlu0 %9380
  %9384 = vset.pattern.permute.xlu0 0
  %9385 = vperm.xlu0 %9384, %v6499
  %v9386 = vpop.permute.xlu0 %9385
  %9389 = vset.pattern.permute.xlu0 0
  %9390 = vperm.xlu0 %9389, %v6500
  %v9391 = vpop.permute.xlu0 %9390
  %9394 = vset.pattern.permute.xlu0 0
  %9395 = vperm.xlu0 %9394, %v6501
  %v9396 = vpop.permute.xlu0 %9395
  %9399 = vset.pattern.permute.xlu0 0
  %9400 = vperm.xlu0 %9399, %v6502
  %v9401 = vpop.permute.xlu0 %9400
  %9404 = vset.pattern.permute.xlu0 0
  %9405 = vperm.xlu0 %9404, %v6503
  %v9406 = vpop.permute.xlu0 %9405
  %9409 = vset.pattern.permute.xlu0 0
  %9410 = vperm.xlu0 %9409, %v6504
  %v9411 = vpop.permute.xlu0 %9410
  %9414 = vset.pattern.permute.xlu0 0
  %9415 = vperm.xlu0 %9414, %v6505
  %v9416 = vpop.permute.xlu0 %9415
  %9419 = vset.pattern.permute.xlu0 0
  %9420 = vperm.xlu0 %9419, %v6506
  %v9421 = vpop.permute.xlu0 %9420
  %9424 = vset.pattern.permute.xlu0 0
  %9425 = vperm.xlu0 %9424, %v6507
  %v9426 = vpop.permute.xlu0 %9425
  %9429 = vset.pattern.permute.xlu0 0
  %9430 = vperm.xlu0 %9429, %v6508
  %v9431 = vpop.permute.xlu0 %9430
  %9434 = vset.pattern.permute.xlu0 0
  %9435 = vperm.xlu0 %9434, %v6509
  %v9436 = vpop.permute.xlu0 %9435
  %9439 = vset.pattern.permute.xlu0 0
  %9440 = vperm.xlu0 %9439, %v6510
  %v9441 = vpop.permute.xlu0 %9440
  %9444 = vset.pattern.permute.xlu0 0
  %9445 = vperm.xlu0 %9444, %v6511
  %v9446 = vpop.permute.xlu0 %9445
  %9449 = vset.pattern.permute.xlu0 0
  %9450 = vperm.xlu0 %9449, %v6512
  %v9451 = vpop.permute.xlu0 %9450
  %9454 = vset.pattern.permute.xlu0 0
  %9455 = vperm.xlu0 %9454, %v6513
  %v9456 = vpop.permute.xlu0 %9455
  %9459 = vset.pattern.permute.xlu0 0
  %9460 = vperm.xlu0 %9459, %v6514
  %v9461 = vpop.permute.xlu0 %9460
  %9464 = vset.pattern.permute.xlu0 0
  %9465 = vperm.xlu0 %9464, %v6515
  %v9466 = vpop.permute.xlu0 %9465
  %9469 = vset.pattern.permute.xlu0 0
  %9470 = vperm.xlu0 %9469, %v6516
  %v9471 = vpop.permute.xlu0 %9470
  %9474 = vset.pattern.permute.xlu0 0
  %9475 = vperm.xlu0 %9474, %v6517
  %v9476 = vpop.permute.xlu0 %9475
  %9479 = vset.pattern.permute.xlu0 0
  %9480 = vperm.xlu0 %9479, %v6518
  %v9481 = vpop.permute.xlu0 %9480
  %9484 = vset.pattern.permute.xlu0 0
  %9485 = vperm.xlu0 %9484, %v6519
  %v9486 = vpop.permute.xlu0 %9485
  %9489 = vset.pattern.permute.xlu0 0
  %9490 = vperm.xlu0 %9489, %v6520
  %v9491 = vpop.permute.xlu0 %9490
  %9494 = vset.pattern.permute.xlu0 0
  %9495 = vperm.xlu0 %9494, %v6521
  %v9496 = vpop.permute.xlu0 %9495
  %9499 = vset.pattern.permute.xlu0 0
  %9500 = vperm.xlu0 %9499, %v6522
  %v9501 = vpop.permute.xlu0 %9500
  %9504 = vset.pattern.permute.xlu0 0
  %9505 = vperm.xlu0 %9504, %v6523
  %v9506 = vpop.permute.xlu0 %9505
  %9509 = vset.pattern.permute.xlu0 0
  %9510 = vperm.xlu0 %9509, %v6524
  %v9511 = vpop.permute.xlu0 %9510
  %9514 = vset.pattern.permute.xlu0 0
  %9515 = vperm.xlu0 %9514, %v6525
  %v9516 = vpop.permute.xlu0 %9515
  %9519 = vset.pattern.permute.xlu0 0
  %9520 = vperm.xlu0 %9519, %v6526
  %v9521 = vpop.permute.xlu0 %9520
  %9524 = vset.pattern.permute.xlu0 0
  %9525 = vperm.xlu0 %9524, %v6527
  %v9526 = vpop.permute.xlu0 %9525
  %9529 = vset.pattern.permute.xlu0 0
  %9530 = vperm.xlu0 %9529, %v6528
  %v9531 = vpop.permute.xlu0 %9530
  %9534 = vset.pattern.permute.xlu0 0
  %9535 = vperm.xlu0 %9534, %v6529
  %v9536 = vpop.permute.xlu0 %9535
  %9539 = vset.pattern.permute.xlu0 0
  %9540 = vperm.xlu0 %9539, %v6530
  %v9541 = vpop.permute.xlu0 %9540
  %9544 = vset.pattern.permute.xlu0 0
  %9545 = vperm.xlu0 %9544, %v6531
  %v9546 = vpop.permute.xlu0 %9545
  %9549 = vset.pattern.permute.xlu0 0
  %9550 = vperm.xlu0 %9549, %v6532
  %v9551 = vpop.permute.xlu0 %9550
  %9554 = vset.pattern.permute.xlu0 0
  %9555 = vperm.xlu0 %9554, %v6533
  %v9556 = vpop.permute.xlu0 %9555
  %9559 = vset.pattern.permute.xlu0 0
  %9560 = vperm.xlu0 %9559, %v6534
  %v9561 = vpop.permute.xlu0 %9560
  %9564 = vset.pattern.permute.xlu0 0
  %9565 = vperm.xlu0 %9564, %v6535
  %v9566 = vpop.permute.xlu0 %9565
  %9569 = vset.pattern.permute.xlu0 0
  %9570 = vperm.xlu0 %9569, %v6536
  %v9571 = vpop.permute.xlu0 %9570
  %9574 = vset.pattern.permute.xlu0 0
  %9575 = vperm.xlu0 %9574, %v6537
  %v9576 = vpop.permute.xlu0 %9575
  %9579 = vset.pattern.permute.xlu0 0
  %9580 = vperm.xlu0 %9579, %v6538
  %v9581 = vpop.permute.xlu0 %9580
  %9584 = vset.pattern.permute.xlu0 0
  %9585 = vperm.xlu0 %9584, %v6539
  %v9586 = vpop.permute.xlu0 %9585
  %9589 = vset.pattern.permute.xlu0 0
  %9590 = vperm.xlu0 %9589, %v6540
  %v9591 = vpop.permute.xlu0 %9590
  %9594 = vset.pattern.permute.xlu0 0
  %9595 = vperm.xlu0 %9594, %v6541
  %v9596 = vpop.permute.xlu0 %9595
  %9599 = vset.pattern.permute.xlu0 0
  %9600 = vperm.xlu0 %9599, %v6542
  %v9601 = vpop.permute.xlu0 %9600
  %9604 = vset.pattern.permute.xlu0 0
  %9605 = vperm.xlu0 %9604, %v6543
  %v9606 = vpop.permute.xlu0 %9605
  %9609 = vset.pattern.permute.xlu0 0
  %9610 = vperm.xlu0 %9609, %v6544
  %v9611 = vpop.permute.xlu0 %9610
  %9614 = vset.pattern.permute.xlu0 0
  %9615 = vperm.xlu0 %9614, %v6545
  %v9616 = vpop.permute.xlu0 %9615
  %v9618 = vmul.f32 %v14, %v7701
  %v9619 = vmul.f32 %v15, %v7706
  %v9620 = vmul.f32 %v16, %v7711
  %v9621 = vmul.f32 %v17, %v7716
  %v9622 = vmul.f32 %v18, %v7721
  %v9623 = vmul.f32 %v19, %v7726
  %v9624 = vmul.f32 %v20, %v7731
  %v9625 = vmul.f32 %v21, %v7736
  %v9626 = vmul.f32 %v22, %v7741
  %v9627 = vmul.f32 %v23, %v7746
  %v9628 = vmul.f32 %v24, %v7751
  %v9629 = vmul.f32 %v25, %v7756
  %v9630 = vmul.f32 %v26, %v7761
  %v9631 = vmul.f32 %v27, %v7766
  %v9632 = vmul.f32 %v28, %v7771
  %v9633 = vmul.f32 %v29, %v7776
  %v9634 = vmul.f32 %v30, %v7781
  %v9635 = vmul.f32 %v31, %v7786
  %v9636 = vmul.f32 %v32, %v7791
  %v9637 = vmul.f32 %v33, %v7796
  %v9638 = vmul.f32 %v34, %v7801
  %v9639 = vmul.f32 %v35, %v7806
  %v9640 = vmul.f32 %v36, %v7811
  %v9641 = vmul.f32 %v37, %v7816
  %v9642 = vmul.f32 %v38, %v7821
  %v9643 = vmul.f32 %v39, %v7826
  %v9644 = vmul.f32 %v40, %v7831
  %v9645 = vmul.f32 %v41, %v7836
  %v9646 = vmul.f32 %v42, %v7841
  %v9647 = vmul.f32 %v43, %v7846
  %v9648 = vmul.f32 %v44, %v7851
  %v9649 = vmul.f32 %v45, %v7856
  %v9650 = vmul.f32 %v46, %v7861
  %v9651 = vmul.f32 %v47, %v7866
  %v9652 = vmul.f32 %v48, %v7871
  %v9653 = vmul.f32 %v49, %v7876
  %v9654 = vmul.f32 %v50, %v7881
  %v9655 = vmul.f32 %v51, %v7886
  %v9656 = vmul.f32 %v52, %v7891
  %v9657 = vmul.f32 %v53, %v7896
  %v9658 = vmul.f32 %v54, %v7901
  %v9659 = vmul.f32 %v55, %v7906
  %v9660 = vmul.f32 %v56, %v7911
  %v9661 = vmul.f32 %v57, %v7916
  %v9662 = vmul.f32 %v58, %v7921
  %v9663 = vmul.f32 %v59, %v7926
  %v9664 = vmul.f32 %v60, %v7931
  %v9665 = vmul.f32 %v61, %v7936
  %v9666 = vmul.f32 %v62, %v7941
  %v9667 = vmul.f32 %v63, %v7946
  %v9668 = vmul.f32 %v64, %v7951
  %v9669 = vmul.f32 %v65, %v7956
  %v9670 = vmul.f32 %v66, %v7961
  %v9671 = vmul.f32 %v67, %v7966
  %v9672 = vmul.f32 %v68, %v7971
  %v9673 = vmul.f32 %v69, %v7976
  %v9674 = vmul.f32 %v70, %v7981
  %v9675 = vmul.f32 %v71, %v7986
  %v9676 = vmul.f32 %v72, %v7991
  %v9677 = vmul.f32 %v73, %v7996
  %v9678 = vmul.f32 %v74, %v8001
  %v9679 = vmul.f32 %v75, %v8006
  %v9680 = vmul.f32 %v76, %v8011
  %v9681 = vmul.f32 %v77, %v8016
  %v9682 = vmul.f32 %v78, %v8021
  %v9683 = vmul.f32 %v79, %v8026
  %v9684 = vmul.f32 %v80, %v8031
  %v9685 = vmul.f32 %v81, %v8036
  %v9686 = vmul.f32 %v82, %v8041
  %v9687 = vmul.f32 %v83, %v8046
  %v9688 = vmul.f32 %v84, %v8051
  %v9689 = vmul.f32 %v85, %v8056
  %v9690 = vmul.f32 %v86, %v8061
  %v9691 = vmul.f32 %v87, %v8066
  %v9692 = vmul.f32 %v88, %v8071
  %v9693 = vmul.f32 %v89, %v8076
  %v9694 = vmul.f32 %v90, %v8081
  %v9695 = vmul.f32 %v91, %v8086
  %v9696 = vmul.f32 %v92, %v8091
  %v9697 = vmul.f32 %v93, %v8096
  %v9698 = vmul.f32 %v94, %v8101
  %v9699 = vmul.f32 %v95, %v8106
  %v9700 = vmul.f32 %v96, %v8111
  %v9701 = vmul.f32 %v97, %v8116
  %v9702 = vmul.f32 %v98, %v8121
  %v9703 = vmul.f32 %v99, %v8126
  %v9704 = vmul.f32 %v100, %v8131
  %v9705 = vmul.f32 %v101, %v8136
  %v9706 = vmul.f32 %v102, %v8141
  %v9707 = vmul.f32 %v103, %v8146
  %v9708 = vmul.f32 %v104, %v8151
  %v9709 = vmul.f32 %v105, %v8156
  %v9710 = vmul.f32 %v106, %v8161
  %v9711 = vmul.f32 %v107, %v8166
  %v9712 = vmul.f32 %v108, %v8171
  %v9713 = vmul.f32 %v109, %v8176
  %v9714 = vmul.f32 %v110, %v8181
  %v9715 = vmul.f32 %v111, %v8186
  %v9716 = vmul.f32 %v112, %v8191
  %v9717 = vmul.f32 %v113, %v8196
  %v9718 = vmul.f32 %v114, %v8201
  %v9719 = vmul.f32 %v115, %v8206
  %v9720 = vmul.f32 %v116, %v8211
  %v9721 = vmul.f32 %v117, %v8216
  %v9722 = vmul.f32 %v118, %v8221
  %v9723 = vmul.f32 %v119, %v8226
  %v9724 = vmul.f32 %v120, %v8231
  %v9725 = vmul.f32 %v121, %v8236
  %v9726 = vmul.f32 %v122, %v8241
  %v9727 = vmul.f32 %v123, %v8246
  %v9728 = vmul.f32 %v124, %v8251
  %v9729 = vmul.f32 %v125, %v8256
  %v9730 = vmul.f32 %v126, %v8261
  %v9731 = vmul.f32 %v127, %v8266
  %v9732 = vmul.f32 %v128, %v8271
  %v9733 = vmul.f32 %v129, %v8276
  %v9734 = vmul.f32 %v130, %v8281
  %v9735 = vmul.f32 %v131, %v8286
  %v9736 = vmul.f32 %v132, %v8291
  %v9737 = vmul.f32 %v133, %v8296
  %v9738 = vmul.f32 %v134, %v8301
  %v9739 = vmul.f32 %v135, %v8306
  %v9740 = vmul.f32 %v136, %v8311
  %v9741 = vmul.f32 %v137, %v8316
  %v9742 = vmul.f32 %v138, %v8321
  %v9743 = vmul.f32 %v139, %v8326
  %v9744 = vmul.f32 %v140, %v8331
  %v9745 = vmul.f32 %v141, %v8336
  %v9746 = vmul.f32 %v142, %v8341
  %v9747 = vmul.f32 %v143, %v8346
  %v9748 = vmul.f32 %v144, %v8351
  %v9749 = vmul.f32 %v145, %v8356
  %v9750 = vmul.f32 %v146, %v8361
  %v9751 = vmul.f32 %v147, %v8366
  %v9752 = vmul.f32 %v148, %v8371
  %v9753 = vmul.f32 %v149, %v8376
  %v9754 = vmul.f32 %v150, %v8381
  %v9755 = vmul.f32 %v151, %v8386
  %v9756 = vmul.f32 %v152, %v8391
  %v9757 = vmul.f32 %v153, %v8396
  %v9758 = vmul.f32 %v154, %v8401
  %v9759 = vmul.f32 %v155, %v8406
  %v9760 = vmul.f32 %v156, %v8411
  %v9761 = vmul.f32 %v157, %v8416
  %v9762 = vmul.f32 %v158, %v8421
  %v9763 = vmul.f32 %v159, %v8426
  %v9764 = vmul.f32 %v160, %v8431
  %v9765 = vmul.f32 %v161, %v8436
  %v9766 = vmul.f32 %v162, %v8441
  %v9767 = vmul.f32 %v163, %v8446
  %v9768 = vmul.f32 %v164, %v8451
  %v9769 = vmul.f32 %v165, %v8456
  %v9770 = vmul.f32 %v166, %v8461
  %v9771 = vmul.f32 %v167, %v8466
  %v9772 = vmul.f32 %v168, %v8471
  %v9773 = vmul.f32 %v169, %v8476
  %v9774 = vmul.f32 %v170, %v8481
  %v9775 = vmul.f32 %v171, %v8486
  %v9776 = vmul.f32 %v172, %v8491
  %v9777 = vmul.f32 %v173, %v8496
  %v9778 = vmul.f32 %v174, %v8501
  %v9779 = vmul.f32 %v175, %v8506
  %v9780 = vmul.f32 %v176, %v8511
  %v9781 = vmul.f32 %v177, %v8516
  %v9782 = vmul.f32 %v178, %v8521
  %v9783 = vmul.f32 %v179, %v8526
  %v9784 = vmul.f32 %v180, %v8531
  %v9785 = vmul.f32 %v181, %v8536
  %v9786 = vmul.f32 %v182, %v8541
  %v9787 = vmul.f32 %v183, %v8546
  %v9788 = vmul.f32 %v184, %v8551
  %v9789 = vmul.f32 %v185, %v8556
  %v9790 = vmul.f32 %v186, %v8561
  %v9791 = vmul.f32 %v187, %v8566
  %v9792 = vmul.f32 %v188, %v8571
  %v9793 = vmul.f32 %v189, %v8576
  %v9794 = vmul.f32 %v190, %v8581
  %v9795 = vmul.f32 %v191, %v8586
  %v9796 = vmul.f32 %v192, %v8591
  %v9797 = vmul.f32 %v193, %v8596
  %v9798 = vmul.f32 %v194, %v8601
  %v9799 = vmul.f32 %v195, %v8606
  %v9800 = vmul.f32 %v196, %v8611
  %v9801 = vmul.f32 %v197, %v8616
  %v9802 = vmul.f32 %v198, %v8621
  %v9803 = vmul.f32 %v199, %v8626
  %v9804 = vmul.f32 %v200, %v8631
  %v9805 = vmul.f32 %v201, %v8636
  %v9806 = vmul.f32 %v202, %v8641
  %v9807 = vmul.f32 %v203, %v8646
  %v9808 = vmul.f32 %v204, %v8651
  %v9809 = vmul.f32 %v205, %v8656
  %v9810 = vmul.f32 %v206, %v8661
  %v9811 = vmul.f32 %v207, %v8666
  %v9812 = vmul.f32 %v208, %v8671
  %v9813 = vmul.f32 %v209, %v8676
  %v9814 = vmul.f32 %v210, %v8681
  %v9815 = vmul.f32 %v211, %v8686
  %v9816 = vmul.f32 %v212, %v8691
  %v9817 = vmul.f32 %v213, %v8696
  %v9818 = vmul.f32 %v214, %v8701
  %v9819 = vmul.f32 %v215, %v8706
  %v9820 = vmul.f32 %v216, %v8711
  %v9821 = vmul.f32 %v217, %v8716
  %v9822 = vmul.f32 %v218, %v8721
  %v9823 = vmul.f32 %v219, %v8726
  %v9824 = vmul.f32 %v220, %v8731
  %v9825 = vmul.f32 %v221, %v8736
  %v9826 = vmul.f32 %v222, %v8741
  %v9827 = vmul.f32 %v223, %v8746
  %v9828 = vmul.f32 %v224, %v8751
  %v9829 = vmul.f32 %v225, %v8756
  %v9830 = vmul.f32 %v226, %v8761
  %v9831 = vmul.f32 %v227, %v8766
  %v9832 = vmul.f32 %v228, %v8771
  %v9833 = vmul.f32 %v229, %v8776
  %v9834 = vmul.f32 %v230, %v8781
  %v9835 = vmul.f32 %v231, %v8786
  %v9836 = vmul.f32 %v232, %v8791
  %v9837 = vmul.f32 %v233, %v8796
  %v9838 = vmul.f32 %v234, %v8801
  %v9839 = vmul.f32 %v235, %v8806
  %v9840 = vmul.f32 %v236, %v8811
  %v9841 = vmul.f32 %v237, %v8816
  %v9842 = vmul.f32 %v238, %v8821
  %v9843 = vmul.f32 %v239, %v8826
  %v9844 = vmul.f32 %v240, %v8831
  %v9845 = vmul.f32 %v241, %v8836
  %v9846 = vmul.f32 %v242, %v8841
  %v9847 = vmul.f32 %v243, %v8846
  %v9848 = vmul.f32 %v244, %v8851
  %v9849 = vmul.f32 %v245, %v8856
  %v9850 = vmul.f32 %v246, %v8861
  %v9851 = vmul.f32 %v247, %v8866
  %v9852 = vmul.f32 %v248, %v8871
  %v9853 = vmul.f32 %v249, %v8876
  %v9854 = vmul.f32 %v250, %v8881
  %v9855 = vmul.f32 %v251, %v8886
  %v9856 = vmul.f32 %v252, %v8891
  %v9857 = vmul.f32 %v253, %v8896
  %v9858 = vmul.f32 %v254, %v8901
  %v9859 = vmul.f32 %v255, %v8906
  %v9860 = vmul.f32 %v256, %v8911
  %v9861 = vmul.f32 %v257, %v8916
  %v9862 = vmul.f32 %v258, %v8921
  %v9863 = vmul.f32 %v259, %v8926
  %v9864 = vmul.f32 %v260, %v8931
  %v9865 = vmul.f32 %v261, %v8936
  %v9866 = vmul.f32 %v262, %v8941
  %v9867 = vmul.f32 %v263, %v8946
  %v9868 = vmul.f32 %v264, %v8951
  %v9869 = vmul.f32 %v265, %v8956
  %v9870 = vmul.f32 %v266, %v8961
  %v9871 = vmul.f32 %v267, %v8966
  %v9872 = vmul.f32 %v268, %v8971
  %v9873 = vmul.f32 %v269, %v8976
  %v9874 = vmul.f32 %v270, %v8981
  %v9875 = vmul.f32 %v271, %v8986
  %v9876 = vmul.f32 %v272, %v8991
  %v9877 = vmul.f32 %v273, %v8996
  %v9878 = vmul.f32 %v274, %v9001
  %v9879 = vmul.f32 %v275, %v9006
  %v9880 = vmul.f32 %v276, %v9011
  %v9881 = vmul.f32 %v277, %v9016
  %v9882 = vmul.f32 %v278, %v9021
  %v9883 = vmul.f32 %v279, %v9026
  %v9884 = vmul.f32 %v280, %v9031
  %v9885 = vmul.f32 %v281, %v9036
  %v9886 = vmul.f32 %v282, %v9041
  %v9887 = vmul.f32 %v283, %v9046
  %v9888 = vmul.f32 %v284, %v9051
  %v9889 = vmul.f32 %v285, %v9056
  %v9890 = vmul.f32 %v286, %v9061
  %v9891 = vmul.f32 %v287, %v9066
  %v9892 = vmul.f32 %v288, %v9071
  %v9893 = vmul.f32 %v289, %v9076
  %v9894 = vmul.f32 %v290, %v9081
  %v9895 = vmul.f32 %v291, %v9086
  %v9896 = vmul.f32 %v292, %v9091
  %v9897 = vmul.f32 %v293, %v9096
  %v9898 = vmul.f32 %v294, %v9101
  %v9899 = vmul.f32 %v295, %v9106
  %v9900 = vmul.f32 %v296, %v9111
  %v9901 = vmul.f32 %v297, %v9116
  %v9902 = vmul.f32 %v298, %v9121
  %v9903 = vmul.f32 %v299, %v9126
  %v9904 = vmul.f32 %v300, %v9131
  %v9905 = vmul.f32 %v301, %v9136
  %v9906 = vmul.f32 %v302, %v9141
  %v9907 = vmul.f32 %v303, %v9146
  %v9908 = vmul.f32 %v304, %v9151
  %v9909 = vmul.f32 %v305, %v9156
  %v9910 = vmul.f32 %v306, %v9161
  %v9911 = vmul.f32 %v307, %v9166
  %v9912 = vmul.f32 %v308, %v9171
  %v9913 = vmul.f32 %v309, %v9176
  %v9914 = vmul.f32 %v310, %v9181
  %v9915 = vmul.f32 %v311, %v9186
  %v9916 = vmul.f32 %v312, %v9191
  %v9917 = vmul.f32 %v313, %v9196
  %v9918 = vmul.f32 %v314, %v9201
  %v9919 = vmul.f32 %v315, %v9206
  %v9920 = vmul.f32 %v316, %v9211
  %v9921 = vmul.f32 %v317, %v9216
  %v9922 = vmul.f32 %v318, %v9221
  %v9923 = vmul.f32 %v319, %v9226
  %v9924 = vmul.f32 %v320, %v9231
  %v9925 = vmul.f32 %v321, %v9236
  %v9926 = vmul.f32 %v322, %v9241
  %v9927 = vmul.f32 %v323, %v9246
  %v9928 = vmul.f32 %v324, %v9251
  %v9929 = vmul.f32 %v325, %v9256
  %v9930 = vmul.f32 %v326, %v9261
  %v9931 = vmul.f32 %v327, %v9266
  %v9932 = vmul.f32 %v328, %v9271
  %v9933 = vmul.f32 %v329, %v9276
  %v9934 = vmul.f32 %v330, %v9281
  %v9935 = vmul.f32 %v331, %v9286
  %v9936 = vmul.f32 %v332, %v9291
  %v9937 = vmul.f32 %v333, %v9296
  %v9938 = vmul.f32 %v334, %v9301
  %v9939 = vmul.f32 %v335, %v9306
  %v9940 = vmul.f32 %v336, %v9311
  %v9941 = vmul.f32 %v337, %v9316
  %v9942 = vmul.f32 %v338, %v9321
  %v9943 = vmul.f32 %v339, %v9326
  %v9944 = vmul.f32 %v340, %v9331
  %v9945 = vmul.f32 %v341, %v9336
  %v9946 = vmul.f32 %v342, %v9341
  %v9947 = vmul.f32 %v343, %v9346
  %v9948 = vmul.f32 %v344, %v9351
  %v9949 = vmul.f32 %v345, %v9356
  %v9950 = vmul.f32 %v346, %v9361
  %v9951 = vmul.f32 %v347, %v9366
  %v9952 = vmul.f32 %v348, %v9371
  %v9953 = vmul.f32 %v349, %v9376
  %v9954 = vmul.f32 %v350, %v9381
  %v9955 = vmul.f32 %v351, %v9386
  %v9956 = vmul.f32 %v352, %v9391
  %v9957 = vmul.f32 %v353, %v9396
  %v9958 = vmul.f32 %v354, %v9401
  %v9959 = vmul.f32 %v355, %v9406
  %v9960 = vmul.f32 %v356, %v9411
  %v9961 = vmul.f32 %v357, %v9416
  %v9962 = vmul.f32 %v358, %v9421
  %v9963 = vmul.f32 %v359, %v9426
  %v9964 = vmul.f32 %v360, %v9431
  %v9965 = vmul.f32 %v361, %v9436
  %v9966 = vmul.f32 %v362, %v9441
  %v9967 = vmul.f32 %v363, %v9446
  %v9968 = vmul.f32 %v364, %v9451
  %v9969 = vmul.f32 %v365, %v9456
  %v9970 = vmul.f32 %v366, %v9461
  %v9971 = vmul.f32 %v367, %v9466
  %v9972 = vmul.f32 %v368, %v9471
  %v9973 = vmul.f32 %v369, %v9476
  %v9974 = vmul.f32 %v370, %v9481
  %v9975 = vmul.f32 %v371, %v9486
  %v9976 = vmul.f32 %v372, %v9491
  %v9977 = vmul.f32 %v373, %v9496
  %v9978 = vmul.f32 %v374, %v9501
  %v9979 = vmul.f32 %v375, %v9506
  %v9980 = vmul.f32 %v376, %v9511
  %v9981 = vmul.f32 %v377, %v9516
  %v9982 = vmul.f32 %v378, %v9521
  %v9983 = vmul.f32 %v379, %v9526
  %v9984 = vmul.f32 %v380, %v9531
  %v9985 = vmul.f32 %v381, %v9536
  %v9986 = vmul.f32 %v382, %v9541
  %v9987 = vmul.f32 %v383, %v9546
  %v9988 = vmul.f32 %v384, %v9551
  %v9989 = vmul.f32 %v385, %v9556
  %v9990 = vmul.f32 %v386, %v9561
  %v9991 = vmul.f32 %v387, %v9566
  %v9992 = vmul.f32 %v388, %v9571
  %v9993 = vmul.f32 %v389, %v9576
  %v9994 = vmul.f32 %v390, %v9581
  %v9995 = vmul.f32 %v391, %v9586
  %v9996 = vmul.f32 %v392, %v9591
  %v9997 = vmul.f32 %v393, %v9596
  %v9998 = vmul.f32 %v394, %v9601
  %v9999 = vmul.f32 %v395, %v9606
  %v10000 = vmul.f32 %v396, %v9611
  %v10001 = vmul.f32 %v397, %v9616
  %10003 = vset.pattern.permute.xlu0 0
  %10004 = vperm.xlu0 %10003, %v7314
  %v10005 = vpop.permute.xlu0 %10004
  %10008 = vset.pattern.permute.xlu0 0
  %10009 = vperm.xlu0 %10008, %v7315
  %v10010 = vpop.permute.xlu0 %10009
  %10013 = vset.pattern.permute.xlu0 0
  %10014 = vperm.xlu0 %10013, %v7316
  %v10015 = vpop.permute.xlu0 %10014
  %10018 = vset.pattern.permute.xlu0 0
  %10019 = vperm.xlu0 %10018, %v7317
  %v10020 = vpop.permute.xlu0 %10019
  %10023 = vset.pattern.permute.xlu0 0
  %10024 = vperm.xlu0 %10023, %v7318
  %v10025 = vpop.permute.xlu0 %10024
  %10028 = vset.pattern.permute.xlu0 0
  %10029 = vperm.xlu0 %10028, %v7319
  %v10030 = vpop.permute.xlu0 %10029
  %10033 = vset.pattern.permute.xlu0 0
  %10034 = vperm.xlu0 %10033, %v7320
  %v10035 = vpop.permute.xlu0 %10034
  %10038 = vset.pattern.permute.xlu0 0
  %10039 = vperm.xlu0 %10038, %v7321
  %v10040 = vpop.permute.xlu0 %10039
  %10043 = vset.pattern.permute.xlu0 0
  %10044 = vperm.xlu0 %10043, %v7322
  %v10045 = vpop.permute.xlu0 %10044
  %10048 = vset.pattern.permute.xlu0 0
  %10049 = vperm.xlu0 %10048, %v7323
  %v10050 = vpop.permute.xlu0 %10049
  %10053 = vset.pattern.permute.xlu0 0
  %10054 = vperm.xlu0 %10053, %v7324
  %v10055 = vpop.permute.xlu0 %10054
  %10058 = vset.pattern.permute.xlu0 0
  %10059 = vperm.xlu0 %10058, %v7325
  %v10060 = vpop.permute.xlu0 %10059
  %10063 = vset.pattern.permute.xlu0 0
  %10064 = vperm.xlu0 %10063, %v7326
  %v10065 = vpop.permute.xlu0 %10064
  %10068 = vset.pattern.permute.xlu0 0
  %10069 = vperm.xlu0 %10068, %v7327
  %v10070 = vpop.permute.xlu0 %10069
  %10073 = vset.pattern.permute.xlu0 0
  %10074 = vperm.xlu0 %10073, %v7328
  %v10075 = vpop.permute.xlu0 %10074
  %10078 = vset.pattern.permute.xlu0 0
  %10079 = vperm.xlu0 %10078, %v7329
  %v10080 = vpop.permute.xlu0 %10079
  %10083 = vset.pattern.permute.xlu0 0
  %10084 = vperm.xlu0 %10083, %v7330
  %v10085 = vpop.permute.xlu0 %10084
  %10088 = vset.pattern.permute.xlu0 0
  %10089 = vperm.xlu0 %10088, %v7331
  %v10090 = vpop.permute.xlu0 %10089
  %10093 = vset.pattern.permute.xlu0 0
  %10094 = vperm.xlu0 %10093, %v7332
  %v10095 = vpop.permute.xlu0 %10094
  %10098 = vset.pattern.permute.xlu0 0
  %10099 = vperm.xlu0 %10098, %v7333
  %v10100 = vpop.permute.xlu0 %10099
  %10103 = vset.pattern.permute.xlu0 0
  %10104 = vperm.xlu0 %10103, %v7334
  %v10105 = vpop.permute.xlu0 %10104
  %10108 = vset.pattern.permute.xlu0 0
  %10109 = vperm.xlu0 %10108, %v7335
  %v10110 = vpop.permute.xlu0 %10109
  %10113 = vset.pattern.permute.xlu0 0
  %10114 = vperm.xlu0 %10113, %v7336
  %v10115 = vpop.permute.xlu0 %10114
  %10118 = vset.pattern.permute.xlu0 0
  %10119 = vperm.xlu0 %10118, %v7337
  %v10120 = vpop.permute.xlu0 %10119
  %10123 = vset.pattern.permute.xlu0 0
  %10124 = vperm.xlu0 %10123, %v7338
  %v10125 = vpop.permute.xlu0 %10124
  %10128 = vset.pattern.permute.xlu0 0
  %10129 = vperm.xlu0 %10128, %v7339
  %v10130 = vpop.permute.xlu0 %10129
  %10133 = vset.pattern.permute.xlu0 0
  %10134 = vperm.xlu0 %10133, %v7340
  %v10135 = vpop.permute.xlu0 %10134
  %10138 = vset.pattern.permute.xlu0 0
  %10139 = vperm.xlu0 %10138, %v7341
  %v10140 = vpop.permute.xlu0 %10139
  %10143 = vset.pattern.permute.xlu0 0
  %10144 = vperm.xlu0 %10143, %v7342
  %v10145 = vpop.permute.xlu0 %10144
  %10148 = vset.pattern.permute.xlu0 0
  %10149 = vperm.xlu0 %10148, %v7343
  %v10150 = vpop.permute.xlu0 %10149
  %10153 = vset.pattern.permute.xlu0 0
  %10154 = vperm.xlu0 %10153, %v7344
  %v10155 = vpop.permute.xlu0 %10154
  %10158 = vset.pattern.permute.xlu0 0
  %10159 = vperm.xlu0 %10158, %v7345
  %v10160 = vpop.permute.xlu0 %10159
  %10163 = vset.pattern.permute.xlu0 0
  %10164 = vperm.xlu0 %10163, %v7346
  %v10165 = vpop.permute.xlu0 %10164
  %10168 = vset.pattern.permute.xlu0 0
  %10169 = vperm.xlu0 %10168, %v7347
  %v10170 = vpop.permute.xlu0 %10169
  %10173 = vset.pattern.permute.xlu0 0
  %10174 = vperm.xlu0 %10173, %v7348
  %v10175 = vpop.permute.xlu0 %10174
  %10178 = vset.pattern.permute.xlu0 0
  %10179 = vperm.xlu0 %10178, %v7349
  %v10180 = vpop.permute.xlu0 %10179
  %10183 = vset.pattern.permute.xlu0 0
  %10184 = vperm.xlu0 %10183, %v7350
  %v10185 = vpop.permute.xlu0 %10184
  %10188 = vset.pattern.permute.xlu0 0
  %10189 = vperm.xlu0 %10188, %v7351
  %v10190 = vpop.permute.xlu0 %10189
  %10193 = vset.pattern.permute.xlu0 0
  %10194 = vperm.xlu0 %10193, %v7352
  %v10195 = vpop.permute.xlu0 %10194
  %10198 = vset.pattern.permute.xlu0 0
  %10199 = vperm.xlu0 %10198, %v7353
  %v10200 = vpop.permute.xlu0 %10199
  %10203 = vset.pattern.permute.xlu0 0
  %10204 = vperm.xlu0 %10203, %v7354
  %v10205 = vpop.permute.xlu0 %10204
  %10208 = vset.pattern.permute.xlu0 0
  %10209 = vperm.xlu0 %10208, %v7355
  %v10210 = vpop.permute.xlu0 %10209
  %10213 = vset.pattern.permute.xlu0 0
  %10214 = vperm.xlu0 %10213, %v7356
  %v10215 = vpop.permute.xlu0 %10214
  %10218 = vset.pattern.permute.xlu0 0
  %10219 = vperm.xlu0 %10218, %v7357
  %v10220 = vpop.permute.xlu0 %10219
  %10223 = vset.pattern.permute.xlu0 0
  %10224 = vperm.xlu0 %10223, %v7358
  %v10225 = vpop.permute.xlu0 %10224
  %10228 = vset.pattern.permute.xlu0 0
  %10229 = vperm.xlu0 %10228, %v7359
  %v10230 = vpop.permute.xlu0 %10229
  %10233 = vset.pattern.permute.xlu0 0
  %10234 = vperm.xlu0 %10233, %v7360
  %v10235 = vpop.permute.xlu0 %10234
  %10238 = vset.pattern.permute.xlu0 0
  %10239 = vperm.xlu0 %10238, %v7361
  %v10240 = vpop.permute.xlu0 %10239
  %10243 = vset.pattern.permute.xlu0 0
  %10244 = vperm.xlu0 %10243, %v7362
  %v10245 = vpop.permute.xlu0 %10244
  %10248 = vset.pattern.permute.xlu0 0
  %10249 = vperm.xlu0 %10248, %v7363
  %v10250 = vpop.permute.xlu0 %10249
  %10253 = vset.pattern.permute.xlu0 0
  %10254 = vperm.xlu0 %10253, %v7364
  %v10255 = vpop.permute.xlu0 %10254
  %10258 = vset.pattern.permute.xlu0 0
  %10259 = vperm.xlu0 %10258, %v7365
  %v10260 = vpop.permute.xlu0 %10259
  %10263 = vset.pattern.permute.xlu0 0
  %10264 = vperm.xlu0 %10263, %v7366
  %v10265 = vpop.permute.xlu0 %10264
  %10268 = vset.pattern.permute.xlu0 0
  %10269 = vperm.xlu0 %10268, %v7367
  %v10270 = vpop.permute.xlu0 %10269
  %10273 = vset.pattern.permute.xlu0 0
  %10274 = vperm.xlu0 %10273, %v7368
  %v10275 = vpop.permute.xlu0 %10274
  %10278 = vset.pattern.permute.xlu0 0
  %10279 = vperm.xlu0 %10278, %v7369
  %v10280 = vpop.permute.xlu0 %10279
  %10283 = vset.pattern.permute.xlu0 0
  %10284 = vperm.xlu0 %10283, %v7370
  %v10285 = vpop.permute.xlu0 %10284
  %10288 = vset.pattern.permute.xlu0 0
  %10289 = vperm.xlu0 %10288, %v7371
  %v10290 = vpop.permute.xlu0 %10289
  %10293 = vset.pattern.permute.xlu0 0
  %10294 = vperm.xlu0 %10293, %v7372
  %v10295 = vpop.permute.xlu0 %10294
  %10298 = vset.pattern.permute.xlu0 0
  %10299 = vperm.xlu0 %10298, %v7373
  %v10300 = vpop.permute.xlu0 %10299
  %10303 = vset.pattern.permute.xlu0 0
  %10304 = vperm.xlu0 %10303, %v7374
  %v10305 = vpop.permute.xlu0 %10304
  %10308 = vset.pattern.permute.xlu0 0
  %10309 = vperm.xlu0 %10308, %v7375
  %v10310 = vpop.permute.xlu0 %10309
  %10313 = vset.pattern.permute.xlu0 0
  %10314 = vperm.xlu0 %10313, %v7376
  %v10315 = vpop.permute.xlu0 %10314
  %10318 = vset.pattern.permute.xlu0 0
  %10319 = vperm.xlu0 %10318, %v7377
  %v10320 = vpop.permute.xlu0 %10319
  %10323 = vset.pattern.permute.xlu0 0
  %10324 = vperm.xlu0 %10323, %v7378
  %v10325 = vpop.permute.xlu0 %10324
  %10328 = vset.pattern.permute.xlu0 0
  %10329 = vperm.xlu0 %10328, %v7379
  %v10330 = vpop.permute.xlu0 %10329
  %10333 = vset.pattern.permute.xlu0 0
  %10334 = vperm.xlu0 %10333, %v7380
  %v10335 = vpop.permute.xlu0 %10334
  %10338 = vset.pattern.permute.xlu0 0
  %10339 = vperm.xlu0 %10338, %v7381
  %v10340 = vpop.permute.xlu0 %10339
  %10343 = vset.pattern.permute.xlu0 0
  %10344 = vperm.xlu0 %10343, %v7382
  %v10345 = vpop.permute.xlu0 %10344
  %10348 = vset.pattern.permute.xlu0 0
  %10349 = vperm.xlu0 %10348, %v7383
  %v10350 = vpop.permute.xlu0 %10349
  %10353 = vset.pattern.permute.xlu0 0
  %10354 = vperm.xlu0 %10353, %v7384
  %v10355 = vpop.permute.xlu0 %10354
  %10358 = vset.pattern.permute.xlu0 0
  %10359 = vperm.xlu0 %10358, %v7385
  %v10360 = vpop.permute.xlu0 %10359
  %10363 = vset.pattern.permute.xlu0 0
  %10364 = vperm.xlu0 %10363, %v7386
  %v10365 = vpop.permute.xlu0 %10364
  %10368 = vset.pattern.permute.xlu0 0
  %10369 = vperm.xlu0 %10368, %v7387
  %v10370 = vpop.permute.xlu0 %10369
  %10373 = vset.pattern.permute.xlu0 0
  %10374 = vperm.xlu0 %10373, %v7388
  %v10375 = vpop.permute.xlu0 %10374
  %10378 = vset.pattern.permute.xlu0 0
  %10379 = vperm.xlu0 %10378, %v7389
  %v10380 = vpop.permute.xlu0 %10379
  %10383 = vset.pattern.permute.xlu0 0
  %10384 = vperm.xlu0 %10383, %v7390
  %v10385 = vpop.permute.xlu0 %10384
  %10388 = vset.pattern.permute.xlu0 0
  %10389 = vperm.xlu0 %10388, %v7391
  %v10390 = vpop.permute.xlu0 %10389
  %10393 = vset.pattern.permute.xlu0 0
  %10394 = vperm.xlu0 %10393, %v7392
  %v10395 = vpop.permute.xlu0 %10394
  %10398 = vset.pattern.permute.xlu0 0
  %10399 = vperm.xlu0 %10398, %v7393
  %v10400 = vpop.permute.xlu0 %10399
  %10403 = vset.pattern.permute.xlu0 0
  %10404 = vperm.xlu0 %10403, %v7394
  %v10405 = vpop.permute.xlu0 %10404
  %10408 = vset.pattern.permute.xlu0 0
  %10409 = vperm.xlu0 %10408, %v7395
  %v10410 = vpop.permute.xlu0 %10409
  %10413 = vset.pattern.permute.xlu0 0
  %10414 = vperm.xlu0 %10413, %v7396
  %v10415 = vpop.permute.xlu0 %10414
  %10418 = vset.pattern.permute.xlu0 0
  %10419 = vperm.xlu0 %10418, %v7397
  %v10420 = vpop.permute.xlu0 %10419
  %10423 = vset.pattern.permute.xlu0 0
  %10424 = vperm.xlu0 %10423, %v7398
  %v10425 = vpop.permute.xlu0 %10424
  %10428 = vset.pattern.permute.xlu0 0
  %10429 = vperm.xlu0 %10428, %v7399
  %v10430 = vpop.permute.xlu0 %10429
  %10433 = vset.pattern.permute.xlu0 0
  %10434 = vperm.xlu0 %10433, %v7400
  %v10435 = vpop.permute.xlu0 %10434
  %10438 = vset.pattern.permute.xlu0 0
  %10439 = vperm.xlu0 %10438, %v7401
  %v10440 = vpop.permute.xlu0 %10439
  %10443 = vset.pattern.permute.xlu0 0
  %10444 = vperm.xlu0 %10443, %v7402
  %v10445 = vpop.permute.xlu0 %10444
  %10448 = vset.pattern.permute.xlu0 0
  %10449 = vperm.xlu0 %10448, %v7403
  %v10450 = vpop.permute.xlu0 %10449
  %10453 = vset.pattern.permute.xlu0 0
  %10454 = vperm.xlu0 %10453, %v7404
  %v10455 = vpop.permute.xlu0 %10454
  %10458 = vset.pattern.permute.xlu0 0
  %10459 = vperm.xlu0 %10458, %v7405
  %v10460 = vpop.permute.xlu0 %10459
  %10463 = vset.pattern.permute.xlu0 0
  %10464 = vperm.xlu0 %10463, %v7406
  %v10465 = vpop.permute.xlu0 %10464
  %10468 = vset.pattern.permute.xlu0 0
  %10469 = vperm.xlu0 %10468, %v7407
  %v10470 = vpop.permute.xlu0 %10469
  %10473 = vset.pattern.permute.xlu0 0
  %10474 = vperm.xlu0 %10473, %v7408
  %v10475 = vpop.permute.xlu0 %10474
  %10478 = vset.pattern.permute.xlu0 0
  %10479 = vperm.xlu0 %10478, %v7409
  %v10480 = vpop.permute.xlu0 %10479
  %10483 = vset.pattern.permute.xlu0 0
  %10484 = vperm.xlu0 %10483, %v7410
  %v10485 = vpop.permute.xlu0 %10484
  %10488 = vset.pattern.permute.xlu0 0
  %10489 = vperm.xlu0 %10488, %v7411
  %v10490 = vpop.permute.xlu0 %10489
  %10493 = vset.pattern.permute.xlu0 0
  %10494 = vperm.xlu0 %10493, %v7412
  %v10495 = vpop.permute.xlu0 %10494
  %10498 = vset.pattern.permute.xlu0 0
  %10499 = vperm.xlu0 %10498, %v7413
  %v10500 = vpop.permute.xlu0 %10499
  %10503 = vset.pattern.permute.xlu0 0
  %10504 = vperm.xlu0 %10503, %v7414
  %v10505 = vpop.permute.xlu0 %10504
  %10508 = vset.pattern.permute.xlu0 0
  %10509 = vperm.xlu0 %10508, %v7415
  %v10510 = vpop.permute.xlu0 %10509
  %10513 = vset.pattern.permute.xlu0 0
  %10514 = vperm.xlu0 %10513, %v7416
  %v10515 = vpop.permute.xlu0 %10514
  %10518 = vset.pattern.permute.xlu0 0
  %10519 = vperm.xlu0 %10518, %v7417
  %v10520 = vpop.permute.xlu0 %10519
  %10523 = vset.pattern.permute.xlu0 0
  %10524 = vperm.xlu0 %10523, %v7418
  %v10525 = vpop.permute.xlu0 %10524
  %10528 = vset.pattern.permute.xlu0 0
  %10529 = vperm.xlu0 %10528, %v7419
  %v10530 = vpop.permute.xlu0 %10529
  %10533 = vset.pattern.permute.xlu0 0
  %10534 = vperm.xlu0 %10533, %v7420
  %v10535 = vpop.permute.xlu0 %10534
  %10538 = vset.pattern.permute.xlu0 0
  %10539 = vperm.xlu0 %10538, %v7421
  %v10540 = vpop.permute.xlu0 %10539
  %10543 = vset.pattern.permute.xlu0 0
  %10544 = vperm.xlu0 %10543, %v7422
  %v10545 = vpop.permute.xlu0 %10544
  %10548 = vset.pattern.permute.xlu0 0
  %10549 = vperm.xlu0 %10548, %v7423
  %v10550 = vpop.permute.xlu0 %10549
  %10553 = vset.pattern.permute.xlu0 0
  %10554 = vperm.xlu0 %10553, %v7424
  %v10555 = vpop.permute.xlu0 %10554
  %10558 = vset.pattern.permute.xlu0 0
  %10559 = vperm.xlu0 %10558, %v7425
  %v10560 = vpop.permute.xlu0 %10559
  %10563 = vset.pattern.permute.xlu0 0
  %10564 = vperm.xlu0 %10563, %v7426
  %v10565 = vpop.permute.xlu0 %10564
  %10568 = vset.pattern.permute.xlu0 0
  %10569 = vperm.xlu0 %10568, %v7427
  %v10570 = vpop.permute.xlu0 %10569
  %10573 = vset.pattern.permute.xlu0 0
  %10574 = vperm.xlu0 %10573, %v7428
  %v10575 = vpop.permute.xlu0 %10574
  %10578 = vset.pattern.permute.xlu0 0
  %10579 = vperm.xlu0 %10578, %v7429
  %v10580 = vpop.permute.xlu0 %10579
  %10583 = vset.pattern.permute.xlu0 0
  %10584 = vperm.xlu0 %10583, %v7430
  %v10585 = vpop.permute.xlu0 %10584
  %10588 = vset.pattern.permute.xlu0 0
  %10589 = vperm.xlu0 %10588, %v7431
  %v10590 = vpop.permute.xlu0 %10589
  %10593 = vset.pattern.permute.xlu0 0
  %10594 = vperm.xlu0 %10593, %v7432
  %v10595 = vpop.permute.xlu0 %10594
  %10598 = vset.pattern.permute.xlu0 0
  %10599 = vperm.xlu0 %10598, %v7433
  %v10600 = vpop.permute.xlu0 %10599
  %10603 = vset.pattern.permute.xlu0 0
  %10604 = vperm.xlu0 %10603, %v7434
  %v10605 = vpop.permute.xlu0 %10604
  %10608 = vset.pattern.permute.xlu0 0
  %10609 = vperm.xlu0 %10608, %v7435
  %v10610 = vpop.permute.xlu0 %10609
  %10613 = vset.pattern.permute.xlu0 0
  %10614 = vperm.xlu0 %10613, %v7436
  %v10615 = vpop.permute.xlu0 %10614
  %10618 = vset.pattern.permute.xlu0 0
  %10619 = vperm.xlu0 %10618, %v7437
  %v10620 = vpop.permute.xlu0 %10619
  %10623 = vset.pattern.permute.xlu0 0
  %10624 = vperm.xlu0 %10623, %v7438
  %v10625 = vpop.permute.xlu0 %10624
  %10628 = vset.pattern.permute.xlu0 0
  %10629 = vperm.xlu0 %10628, %v7439
  %v10630 = vpop.permute.xlu0 %10629
  %10633 = vset.pattern.permute.xlu0 0
  %10634 = vperm.xlu0 %10633, %v7440
  %v10635 = vpop.permute.xlu0 %10634
  %10638 = vset.pattern.permute.xlu0 0
  %10639 = vperm.xlu0 %10638, %v7441
  %v10640 = vpop.permute.xlu0 %10639
  %10643 = vset.pattern.permute.xlu0 0
  %10644 = vperm.xlu0 %10643, %v7442
  %v10645 = vpop.permute.xlu0 %10644
  %10648 = vset.pattern.permute.xlu0 0
  %10649 = vperm.xlu0 %10648, %v7443
  %v10650 = vpop.permute.xlu0 %10649
  %10653 = vset.pattern.permute.xlu0 0
  %10654 = vperm.xlu0 %10653, %v7444
  %v10655 = vpop.permute.xlu0 %10654
  %10658 = vset.pattern.permute.xlu0 0
  %10659 = vperm.xlu0 %10658, %v7445
  %v10660 = vpop.permute.xlu0 %10659
  %10663 = vset.pattern.permute.xlu0 0
  %10664 = vperm.xlu0 %10663, %v7446
  %v10665 = vpop.permute.xlu0 %10664
  %10668 = vset.pattern.permute.xlu0 0
  %10669 = vperm.xlu0 %10668, %v7447
  %v10670 = vpop.permute.xlu0 %10669
  %10673 = vset.pattern.permute.xlu0 0
  %10674 = vperm.xlu0 %10673, %v7448
  %v10675 = vpop.permute.xlu0 %10674
  %10678 = vset.pattern.permute.xlu0 0
  %10679 = vperm.xlu0 %10678, %v7449
  %v10680 = vpop.permute.xlu0 %10679
  %10683 = vset.pattern.permute.xlu0 0
  %10684 = vperm.xlu0 %10683, %v7450
  %v10685 = vpop.permute.xlu0 %10684
  %10688 = vset.pattern.permute.xlu0 0
  %10689 = vperm.xlu0 %10688, %v7451
  %v10690 = vpop.permute.xlu0 %10689
  %10693 = vset.pattern.permute.xlu0 0
  %10694 = vperm.xlu0 %10693, %v7452
  %v10695 = vpop.permute.xlu0 %10694
  %10698 = vset.pattern.permute.xlu0 0
  %10699 = vperm.xlu0 %10698, %v7453
  %v10700 = vpop.permute.xlu0 %10699
  %10703 = vset.pattern.permute.xlu0 0
  %10704 = vperm.xlu0 %10703, %v7454
  %v10705 = vpop.permute.xlu0 %10704
  %10708 = vset.pattern.permute.xlu0 0
  %10709 = vperm.xlu0 %10708, %v7455
  %v10710 = vpop.permute.xlu0 %10709
  %10713 = vset.pattern.permute.xlu0 0
  %10714 = vperm.xlu0 %10713, %v7456
  %v10715 = vpop.permute.xlu0 %10714
  %10718 = vset.pattern.permute.xlu0 0
  %10719 = vperm.xlu0 %10718, %v7457
  %v10720 = vpop.permute.xlu0 %10719
  %10723 = vset.pattern.permute.xlu0 0
  %10724 = vperm.xlu0 %10723, %v7458
  %v10725 = vpop.permute.xlu0 %10724
  %10728 = vset.pattern.permute.xlu0 0
  %10729 = vperm.xlu0 %10728, %v7459
  %v10730 = vpop.permute.xlu0 %10729
  %10733 = vset.pattern.permute.xlu0 0
  %10734 = vperm.xlu0 %10733, %v7460
  %v10735 = vpop.permute.xlu0 %10734
  %10738 = vset.pattern.permute.xlu0 0
  %10739 = vperm.xlu0 %10738, %v7461
  %v10740 = vpop.permute.xlu0 %10739
  %10743 = vset.pattern.permute.xlu0 0
  %10744 = vperm.xlu0 %10743, %v7462
  %v10745 = vpop.permute.xlu0 %10744
  %10748 = vset.pattern.permute.xlu0 0
  %10749 = vperm.xlu0 %10748, %v7463
  %v10750 = vpop.permute.xlu0 %10749
  %10753 = vset.pattern.permute.xlu0 0
  %10754 = vperm.xlu0 %10753, %v7464
  %v10755 = vpop.permute.xlu0 %10754
  %10758 = vset.pattern.permute.xlu0 0
  %10759 = vperm.xlu0 %10758, %v7465
  %v10760 = vpop.permute.xlu0 %10759
  %10763 = vset.pattern.permute.xlu0 0
  %10764 = vperm.xlu0 %10763, %v7466
  %v10765 = vpop.permute.xlu0 %10764
  %10768 = vset.pattern.permute.xlu0 0
  %10769 = vperm.xlu0 %10768, %v7467
  %v10770 = vpop.permute.xlu0 %10769
  %10773 = vset.pattern.permute.xlu0 0
  %10774 = vperm.xlu0 %10773, %v7468
  %v10775 = vpop.permute.xlu0 %10774
  %10778 = vset.pattern.permute.xlu0 0
  %10779 = vperm.xlu0 %10778, %v7469
  %v10780 = vpop.permute.xlu0 %10779
  %10783 = vset.pattern.permute.xlu0 0
  %10784 = vperm.xlu0 %10783, %v7470
  %v10785 = vpop.permute.xlu0 %10784
  %10788 = vset.pattern.permute.xlu0 0
  %10789 = vperm.xlu0 %10788, %v7471
  %v10790 = vpop.permute.xlu0 %10789
  %10793 = vset.pattern.permute.xlu0 0
  %10794 = vperm.xlu0 %10793, %v7472
  %v10795 = vpop.permute.xlu0 %10794
  %10798 = vset.pattern.permute.xlu0 0
  %10799 = vperm.xlu0 %10798, %v7473
  %v10800 = vpop.permute.xlu0 %10799
  %10803 = vset.pattern.permute.xlu0 0
  %10804 = vperm.xlu0 %10803, %v7474
  %v10805 = vpop.permute.xlu0 %10804
  %10808 = vset.pattern.permute.xlu0 0
  %10809 = vperm.xlu0 %10808, %v7475
  %v10810 = vpop.permute.xlu0 %10809
  %10813 = vset.pattern.permute.xlu0 0
  %10814 = vperm.xlu0 %10813, %v7476
  %v10815 = vpop.permute.xlu0 %10814
  %10818 = vset.pattern.permute.xlu0 0
  %10819 = vperm.xlu0 %10818, %v7477
  %v10820 = vpop.permute.xlu0 %10819
  %10823 = vset.pattern.permute.xlu0 0
  %10824 = vperm.xlu0 %10823, %v7478
  %v10825 = vpop.permute.xlu0 %10824
  %10828 = vset.pattern.permute.xlu0 0
  %10829 = vperm.xlu0 %10828, %v7479
  %v10830 = vpop.permute.xlu0 %10829
  %10833 = vset.pattern.permute.xlu0 0
  %10834 = vperm.xlu0 %10833, %v7480
  %v10835 = vpop.permute.xlu0 %10834
  %10838 = vset.pattern.permute.xlu0 0
  %10839 = vperm.xlu0 %10838, %v7481
  %v10840 = vpop.permute.xlu0 %10839
  %10843 = vset.pattern.permute.xlu0 0
  %10844 = vperm.xlu0 %10843, %v7482
  %v10845 = vpop.permute.xlu0 %10844
  %10848 = vset.pattern.permute.xlu0 0
  %10849 = vperm.xlu0 %10848, %v7483
  %v10850 = vpop.permute.xlu0 %10849
  %10853 = vset.pattern.permute.xlu0 0
  %10854 = vperm.xlu0 %10853, %v7484
  %v10855 = vpop.permute.xlu0 %10854
  %10858 = vset.pattern.permute.xlu0 0
  %10859 = vperm.xlu0 %10858, %v7485
  %v10860 = vpop.permute.xlu0 %10859
  %10863 = vset.pattern.permute.xlu0 0
  %10864 = vperm.xlu0 %10863, %v7486
  %v10865 = vpop.permute.xlu0 %10864
  %10868 = vset.pattern.permute.xlu0 0
  %10869 = vperm.xlu0 %10868, %v7487
  %v10870 = vpop.permute.xlu0 %10869
  %10873 = vset.pattern.permute.xlu0 0
  %10874 = vperm.xlu0 %10873, %v7488
  %v10875 = vpop.permute.xlu0 %10874
  %10878 = vset.pattern.permute.xlu0 0
  %10879 = vperm.xlu0 %10878, %v7489
  %v10880 = vpop.permute.xlu0 %10879
  %10883 = vset.pattern.permute.xlu0 0
  %10884 = vperm.xlu0 %10883, %v7490
  %v10885 = vpop.permute.xlu0 %10884
  %10888 = vset.pattern.permute.xlu0 0
  %10889 = vperm.xlu0 %10888, %v7491
  %v10890 = vpop.permute.xlu0 %10889
  %10893 = vset.pattern.permute.xlu0 0
  %10894 = vperm.xlu0 %10893, %v7492
  %v10895 = vpop.permute.xlu0 %10894
  %10898 = vset.pattern.permute.xlu0 0
  %10899 = vperm.xlu0 %10898, %v7493
  %v10900 = vpop.permute.xlu0 %10899
  %10903 = vset.pattern.permute.xlu0 0
  %10904 = vperm.xlu0 %10903, %v7494
  %v10905 = vpop.permute.xlu0 %10904
  %10908 = vset.pattern.permute.xlu0 0
  %10909 = vperm.xlu0 %10908, %v7495
  %v10910 = vpop.permute.xlu0 %10909
  %10913 = vset.pattern.permute.xlu0 0
  %10914 = vperm.xlu0 %10913, %v7496
  %v10915 = vpop.permute.xlu0 %10914
  %10918 = vset.pattern.permute.xlu0 0
  %10919 = vperm.xlu0 %10918, %v7497
  %v10920 = vpop.permute.xlu0 %10919
  %10923 = vset.pattern.permute.xlu0 0
  %10924 = vperm.xlu0 %10923, %v7498
  %v10925 = vpop.permute.xlu0 %10924
  %10928 = vset.pattern.permute.xlu0 0
  %10929 = vperm.xlu0 %10928, %v7499
  %v10930 = vpop.permute.xlu0 %10929
  %10933 = vset.pattern.permute.xlu0 0
  %10934 = vperm.xlu0 %10933, %v7500
  %v10935 = vpop.permute.xlu0 %10934
  %10938 = vset.pattern.permute.xlu0 0
  %10939 = vperm.xlu0 %10938, %v7501
  %v10940 = vpop.permute.xlu0 %10939
  %10943 = vset.pattern.permute.xlu0 0
  %10944 = vperm.xlu0 %10943, %v7502
  %v10945 = vpop.permute.xlu0 %10944
  %10948 = vset.pattern.permute.xlu0 0
  %10949 = vperm.xlu0 %10948, %v7503
  %v10950 = vpop.permute.xlu0 %10949
  %10953 = vset.pattern.permute.xlu0 0
  %10954 = vperm.xlu0 %10953, %v7504
  %v10955 = vpop.permute.xlu0 %10954
  %10958 = vset.pattern.permute.xlu0 0
  %10959 = vperm.xlu0 %10958, %v7505
  %v10960 = vpop.permute.xlu0 %10959
  %10963 = vset.pattern.permute.xlu0 0
  %10964 = vperm.xlu0 %10963, %v7506
  %v10965 = vpop.permute.xlu0 %10964
  %10968 = vset.pattern.permute.xlu0 0
  %10969 = vperm.xlu0 %10968, %v7507
  %v10970 = vpop.permute.xlu0 %10969
  %10973 = vset.pattern.permute.xlu0 0
  %10974 = vperm.xlu0 %10973, %v7508
  %v10975 = vpop.permute.xlu0 %10974
  %10978 = vset.pattern.permute.xlu0 0
  %10979 = vperm.xlu0 %10978, %v7509
  %v10980 = vpop.permute.xlu0 %10979
  %10983 = vset.pattern.permute.xlu0 0
  %10984 = vperm.xlu0 %10983, %v7510
  %v10985 = vpop.permute.xlu0 %10984
  %10988 = vset.pattern.permute.xlu0 0
  %10989 = vperm.xlu0 %10988, %v7511
  %v10990 = vpop.permute.xlu0 %10989
  %10993 = vset.pattern.permute.xlu0 0
  %10994 = vperm.xlu0 %10993, %v7512
  %v10995 = vpop.permute.xlu0 %10994
  %10998 = vset.pattern.permute.xlu0 0
  %10999 = vperm.xlu0 %10998, %v7513
  %v11000 = vpop.permute.xlu0 %10999
  %11003 = vset.pattern.permute.xlu0 0
  %11004 = vperm.xlu0 %11003, %v7514
  %v11005 = vpop.permute.xlu0 %11004
  %11008 = vset.pattern.permute.xlu0 0
  %11009 = vperm.xlu0 %11008, %v7515
  %v11010 = vpop.permute.xlu0 %11009
  %11013 = vset.pattern.permute.xlu0 0
  %11014 = vperm.xlu0 %11013, %v7516
  %v11015 = vpop.permute.xlu0 %11014
  %11018 = vset.pattern.permute.xlu0 0
  %11019 = vperm.xlu0 %11018, %v7517
  %v11020 = vpop.permute.xlu0 %11019
  %11023 = vset.pattern.permute.xlu0 0
  %11024 = vperm.xlu0 %11023, %v7518
  %v11025 = vpop.permute.xlu0 %11024
  %11028 = vset.pattern.permute.xlu0 0
  %11029 = vperm.xlu0 %11028, %v7519
  %v11030 = vpop.permute.xlu0 %11029
  %11033 = vset.pattern.permute.xlu0 0
  %11034 = vperm.xlu0 %11033, %v7520
  %v11035 = vpop.permute.xlu0 %11034
  %11038 = vset.pattern.permute.xlu0 0
  %11039 = vperm.xlu0 %11038, %v7521
  %v11040 = vpop.permute.xlu0 %11039
  %11043 = vset.pattern.permute.xlu0 0
  %11044 = vperm.xlu0 %11043, %v7522
  %v11045 = vpop.permute.xlu0 %11044
  %11048 = vset.pattern.permute.xlu0 0
  %11049 = vperm.xlu0 %11048, %v7523
  %v11050 = vpop.permute.xlu0 %11049
  %11053 = vset.pattern.permute.xlu0 0
  %11054 = vperm.xlu0 %11053, %v7524
  %v11055 = vpop.permute.xlu0 %11054
  %11058 = vset.pattern.permute.xlu0 0
  %11059 = vperm.xlu0 %11058, %v7525
  %v11060 = vpop.permute.xlu0 %11059
  %11063 = vset.pattern.permute.xlu0 0
  %11064 = vperm.xlu0 %11063, %v7526
  %v11065 = vpop.permute.xlu0 %11064
  %11068 = vset.pattern.permute.xlu0 0
  %11069 = vperm.xlu0 %11068, %v7527
  %v11070 = vpop.permute.xlu0 %11069
  %11073 = vset.pattern.permute.xlu0 0
  %11074 = vperm.xlu0 %11073, %v7528
  %v11075 = vpop.permute.xlu0 %11074
  %11078 = vset.pattern.permute.xlu0 0
  %11079 = vperm.xlu0 %11078, %v7529
  %v11080 = vpop.permute.xlu0 %11079
  %11083 = vset.pattern.permute.xlu0 0
  %11084 = vperm.xlu0 %11083, %v7530
  %v11085 = vpop.permute.xlu0 %11084
  %11088 = vset.pattern.permute.xlu0 0
  %11089 = vperm.xlu0 %11088, %v7531
  %v11090 = vpop.permute.xlu0 %11089
  %11093 = vset.pattern.permute.xlu0 0
  %11094 = vperm.xlu0 %11093, %v7532
  %v11095 = vpop.permute.xlu0 %11094
  %11098 = vset.pattern.permute.xlu0 0
  %11099 = vperm.xlu0 %11098, %v7533
  %v11100 = vpop.permute.xlu0 %11099
  %11103 = vset.pattern.permute.xlu0 0
  %11104 = vperm.xlu0 %11103, %v7534
  %v11105 = vpop.permute.xlu0 %11104
  %11108 = vset.pattern.permute.xlu0 0
  %11109 = vperm.xlu0 %11108, %v7535
  %v11110 = vpop.permute.xlu0 %11109
  %11113 = vset.pattern.permute.xlu0 0
  %11114 = vperm.xlu0 %11113, %v7536
  %v11115 = vpop.permute.xlu0 %11114
  %11118 = vset.pattern.permute.xlu0 0
  %11119 = vperm.xlu0 %11118, %v7537
  %v11120 = vpop.permute.xlu0 %11119
  %11123 = vset.pattern.permute.xlu0 0
  %11124 = vperm.xlu0 %11123, %v7538
  %v11125 = vpop.permute.xlu0 %11124
  %11128 = vset.pattern.permute.xlu0 0
  %11129 = vperm.xlu0 %11128, %v7539
  %v11130 = vpop.permute.xlu0 %11129
  %11133 = vset.pattern.permute.xlu0 0
  %11134 = vperm.xlu0 %11133, %v7540
  %v11135 = vpop.permute.xlu0 %11134
  %11138 = vset.pattern.permute.xlu0 0
  %11139 = vperm.xlu0 %11138, %v7541
  %v11140 = vpop.permute.xlu0 %11139
  %11143 = vset.pattern.permute.xlu0 0
  %11144 = vperm.xlu0 %11143, %v7542
  %v11145 = vpop.permute.xlu0 %11144
  %11148 = vset.pattern.permute.xlu0 0
  %11149 = vperm.xlu0 %11148, %v7543
  %v11150 = vpop.permute.xlu0 %11149
  %11153 = vset.pattern.permute.xlu0 0
  %11154 = vperm.xlu0 %11153, %v7544
  %v11155 = vpop.permute.xlu0 %11154
  %11158 = vset.pattern.permute.xlu0 0
  %11159 = vperm.xlu0 %11158, %v7545
  %v11160 = vpop.permute.xlu0 %11159
  %11163 = vset.pattern.permute.xlu0 0
  %11164 = vperm.xlu0 %11163, %v7546
  %v11165 = vpop.permute.xlu0 %11164
  %11168 = vset.pattern.permute.xlu0 0
  %11169 = vperm.xlu0 %11168, %v7547
  %v11170 = vpop.permute.xlu0 %11169
  %11173 = vset.pattern.permute.xlu0 0
  %11174 = vperm.xlu0 %11173, %v7548
  %v11175 = vpop.permute.xlu0 %11174
  %11178 = vset.pattern.permute.xlu0 0
  %11179 = vperm.xlu0 %11178, %v7549
  %v11180 = vpop.permute.xlu0 %11179
  %11183 = vset.pattern.permute.xlu0 0
  %11184 = vperm.xlu0 %11183, %v7550
  %v11185 = vpop.permute.xlu0 %11184
  %11188 = vset.pattern.permute.xlu0 0
  %11189 = vperm.xlu0 %11188, %v7551
  %v11190 = vpop.permute.xlu0 %11189
  %11193 = vset.pattern.permute.xlu0 0
  %11194 = vperm.xlu0 %11193, %v7552
  %v11195 = vpop.permute.xlu0 %11194
  %11198 = vset.pattern.permute.xlu0 0
  %11199 = vperm.xlu0 %11198, %v7553
  %v11200 = vpop.permute.xlu0 %11199
  %11203 = vset.pattern.permute.xlu0 0
  %11204 = vperm.xlu0 %11203, %v7554
  %v11205 = vpop.permute.xlu0 %11204
  %11208 = vset.pattern.permute.xlu0 0
  %11209 = vperm.xlu0 %11208, %v7555
  %v11210 = vpop.permute.xlu0 %11209
  %11213 = vset.pattern.permute.xlu0 0
  %11214 = vperm.xlu0 %11213, %v7556
  %v11215 = vpop.permute.xlu0 %11214
  %11218 = vset.pattern.permute.xlu0 0
  %11219 = vperm.xlu0 %11218, %v7557
  %v11220 = vpop.permute.xlu0 %11219
  %11223 = vset.pattern.permute.xlu0 0
  %11224 = vperm.xlu0 %11223, %v7558
  %v11225 = vpop.permute.xlu0 %11224
  %11228 = vset.pattern.permute.xlu0 0
  %11229 = vperm.xlu0 %11228, %v7559
  %v11230 = vpop.permute.xlu0 %11229
  %11233 = vset.pattern.permute.xlu0 0
  %11234 = vperm.xlu0 %11233, %v7560
  %v11235 = vpop.permute.xlu0 %11234
  %11238 = vset.pattern.permute.xlu0 0
  %11239 = vperm.xlu0 %11238, %v7561
  %v11240 = vpop.permute.xlu0 %11239
  %11243 = vset.pattern.permute.xlu0 0
  %11244 = vperm.xlu0 %11243, %v7562
  %v11245 = vpop.permute.xlu0 %11244
  %11248 = vset.pattern.permute.xlu0 0
  %11249 = vperm.xlu0 %11248, %v7563
  %v11250 = vpop.permute.xlu0 %11249
  %11253 = vset.pattern.permute.xlu0 0
  %11254 = vperm.xlu0 %11253, %v7564
  %v11255 = vpop.permute.xlu0 %11254
  %11258 = vset.pattern.permute.xlu0 0
  %11259 = vperm.xlu0 %11258, %v7565
  %v11260 = vpop.permute.xlu0 %11259
  %11263 = vset.pattern.permute.xlu0 0
  %11264 = vperm.xlu0 %11263, %v7566
  %v11265 = vpop.permute.xlu0 %11264
  %11268 = vset.pattern.permute.xlu0 0
  %11269 = vperm.xlu0 %11268, %v7567
  %v11270 = vpop.permute.xlu0 %11269
  %11273 = vset.pattern.permute.xlu0 0
  %11274 = vperm.xlu0 %11273, %v7568
  %v11275 = vpop.permute.xlu0 %11274
  %11278 = vset.pattern.permute.xlu0 0
  %11279 = vperm.xlu0 %11278, %v7569
  %v11280 = vpop.permute.xlu0 %11279
  %11283 = vset.pattern.permute.xlu0 0
  %11284 = vperm.xlu0 %11283, %v7570
  %v11285 = vpop.permute.xlu0 %11284
  %11288 = vset.pattern.permute.xlu0 0
  %11289 = vperm.xlu0 %11288, %v7571
  %v11290 = vpop.permute.xlu0 %11289
  %11293 = vset.pattern.permute.xlu0 0
  %11294 = vperm.xlu0 %11293, %v7572
  %v11295 = vpop.permute.xlu0 %11294
  %11298 = vset.pattern.permute.xlu0 0
  %11299 = vperm.xlu0 %11298, %v7573
  %v11300 = vpop.permute.xlu0 %11299
  %11303 = vset.pattern.permute.xlu0 0
  %11304 = vperm.xlu0 %11303, %v7574
  %v11305 = vpop.permute.xlu0 %11304
  %11308 = vset.pattern.permute.xlu0 0
  %11309 = vperm.xlu0 %11308, %v7575
  %v11310 = vpop.permute.xlu0 %11309
  %11313 = vset.pattern.permute.xlu0 0
  %11314 = vperm.xlu0 %11313, %v7576
  %v11315 = vpop.permute.xlu0 %11314
  %11318 = vset.pattern.permute.xlu0 0
  %11319 = vperm.xlu0 %11318, %v7577
  %v11320 = vpop.permute.xlu0 %11319
  %11323 = vset.pattern.permute.xlu0 0
  %11324 = vperm.xlu0 %11323, %v7578
  %v11325 = vpop.permute.xlu0 %11324
  %11328 = vset.pattern.permute.xlu0 0
  %11329 = vperm.xlu0 %11328, %v7579
  %v11330 = vpop.permute.xlu0 %11329
  %11333 = vset.pattern.permute.xlu0 0
  %11334 = vperm.xlu0 %11333, %v7580
  %v11335 = vpop.permute.xlu0 %11334
  %11338 = vset.pattern.permute.xlu0 0
  %11339 = vperm.xlu0 %11338, %v7581
  %v11340 = vpop.permute.xlu0 %11339
  %11343 = vset.pattern.permute.xlu0 0
  %11344 = vperm.xlu0 %11343, %v7582
  %v11345 = vpop.permute.xlu0 %11344
  %11348 = vset.pattern.permute.xlu0 0
  %11349 = vperm.xlu0 %11348, %v7583
  %v11350 = vpop.permute.xlu0 %11349
  %11353 = vset.pattern.permute.xlu0 0
  %11354 = vperm.xlu0 %11353, %v7584
  %v11355 = vpop.permute.xlu0 %11354
  %11358 = vset.pattern.permute.xlu0 0
  %11359 = vperm.xlu0 %11358, %v7585
  %v11360 = vpop.permute.xlu0 %11359
  %11363 = vset.pattern.permute.xlu0 0
  %11364 = vperm.xlu0 %11363, %v7586
  %v11365 = vpop.permute.xlu0 %11364
  %11368 = vset.pattern.permute.xlu0 0
  %11369 = vperm.xlu0 %11368, %v7587
  %v11370 = vpop.permute.xlu0 %11369
  %11373 = vset.pattern.permute.xlu0 0
  %11374 = vperm.xlu0 %11373, %v7588
  %v11375 = vpop.permute.xlu0 %11374
  %11378 = vset.pattern.permute.xlu0 0
  %11379 = vperm.xlu0 %11378, %v7589
  %v11380 = vpop.permute.xlu0 %11379
  %11383 = vset.pattern.permute.xlu0 0
  %11384 = vperm.xlu0 %11383, %v7590
  %v11385 = vpop.permute.xlu0 %11384
  %11388 = vset.pattern.permute.xlu0 0
  %11389 = vperm.xlu0 %11388, %v7591
  %v11390 = vpop.permute.xlu0 %11389
  %11393 = vset.pattern.permute.xlu0 0
  %11394 = vperm.xlu0 %11393, %v7592
  %v11395 = vpop.permute.xlu0 %11394
  %11398 = vset.pattern.permute.xlu0 0
  %11399 = vperm.xlu0 %11398, %v7593
  %v11400 = vpop.permute.xlu0 %11399
  %11403 = vset.pattern.permute.xlu0 0
  %11404 = vperm.xlu0 %11403, %v7594
  %v11405 = vpop.permute.xlu0 %11404
  %11408 = vset.pattern.permute.xlu0 0
  %11409 = vperm.xlu0 %11408, %v7595
  %v11410 = vpop.permute.xlu0 %11409
  %11413 = vset.pattern.permute.xlu0 0
  %11414 = vperm.xlu0 %11413, %v7596
  %v11415 = vpop.permute.xlu0 %11414
  %11418 = vset.pattern.permute.xlu0 0
  %11419 = vperm.xlu0 %11418, %v7597
  %v11420 = vpop.permute.xlu0 %11419
  %11423 = vset.pattern.permute.xlu0 0
  %11424 = vperm.xlu0 %11423, %v7598
  %v11425 = vpop.permute.xlu0 %11424
  %11428 = vset.pattern.permute.xlu0 0
  %11429 = vperm.xlu0 %11428, %v7599
  %v11430 = vpop.permute.xlu0 %11429
  %11433 = vset.pattern.permute.xlu0 0
  %11434 = vperm.xlu0 %11433, %v7600
  %v11435 = vpop.permute.xlu0 %11434
  %11438 = vset.pattern.permute.xlu0 0
  %11439 = vperm.xlu0 %11438, %v7601
  %v11440 = vpop.permute.xlu0 %11439
  %11443 = vset.pattern.permute.xlu0 0
  %11444 = vperm.xlu0 %11443, %v7602
  %v11445 = vpop.permute.xlu0 %11444
  %11448 = vset.pattern.permute.xlu0 0
  %11449 = vperm.xlu0 %11448, %v7603
  %v11450 = vpop.permute.xlu0 %11449
  %11453 = vset.pattern.permute.xlu0 0
  %11454 = vperm.xlu0 %11453, %v7604
  %v11455 = vpop.permute.xlu0 %11454
  %11458 = vset.pattern.permute.xlu0 0
  %11459 = vperm.xlu0 %11458, %v7605
  %v11460 = vpop.permute.xlu0 %11459
  %11463 = vset.pattern.permute.xlu0 0
  %11464 = vperm.xlu0 %11463, %v7606
  %v11465 = vpop.permute.xlu0 %11464
  %11468 = vset.pattern.permute.xlu0 0
  %11469 = vperm.xlu0 %11468, %v7607
  %v11470 = vpop.permute.xlu0 %11469
  %11473 = vset.pattern.permute.xlu0 0
  %11474 = vperm.xlu0 %11473, %v7608
  %v11475 = vpop.permute.xlu0 %11474
  %11478 = vset.pattern.permute.xlu0 0
  %11479 = vperm.xlu0 %11478, %v7609
  %v11480 = vpop.permute.xlu0 %11479
  %11483 = vset.pattern.permute.xlu0 0
  %11484 = vperm.xlu0 %11483, %v7610
  %v11485 = vpop.permute.xlu0 %11484
  %11488 = vset.pattern.permute.xlu0 0
  %11489 = vperm.xlu0 %11488, %v7611
  %v11490 = vpop.permute.xlu0 %11489
  %11493 = vset.pattern.permute.xlu0 0
  %11494 = vperm.xlu0 %11493, %v7612
  %v11495 = vpop.permute.xlu0 %11494
  %11498 = vset.pattern.permute.xlu0 0
  %11499 = vperm.xlu0 %11498, %v7613
  %v11500 = vpop.permute.xlu0 %11499
  %11503 = vset.pattern.permute.xlu0 0
  %11504 = vperm.xlu0 %11503, %v7614
  %v11505 = vpop.permute.xlu0 %11504
  %11508 = vset.pattern.permute.xlu0 0
  %11509 = vperm.xlu0 %11508, %v7615
  %v11510 = vpop.permute.xlu0 %11509
  %11513 = vset.pattern.permute.xlu0 0
  %11514 = vperm.xlu0 %11513, %v7616
  %v11515 = vpop.permute.xlu0 %11514
  %11518 = vset.pattern.permute.xlu0 0
  %11519 = vperm.xlu0 %11518, %v7617
  %v11520 = vpop.permute.xlu0 %11519
  %11523 = vset.pattern.permute.xlu0 0
  %11524 = vperm.xlu0 %11523, %v7618
  %v11525 = vpop.permute.xlu0 %11524
  %11528 = vset.pattern.permute.xlu0 0
  %11529 = vperm.xlu0 %11528, %v7619
  %v11530 = vpop.permute.xlu0 %11529
  %11533 = vset.pattern.permute.xlu0 0
  %11534 = vperm.xlu0 %11533, %v7620
  %v11535 = vpop.permute.xlu0 %11534
  %11538 = vset.pattern.permute.xlu0 0
  %11539 = vperm.xlu0 %11538, %v7621
  %v11540 = vpop.permute.xlu0 %11539
  %11543 = vset.pattern.permute.xlu0 0
  %11544 = vperm.xlu0 %11543, %v7622
  %v11545 = vpop.permute.xlu0 %11544
  %11548 = vset.pattern.permute.xlu0 0
  %11549 = vperm.xlu0 %11548, %v7623
  %v11550 = vpop.permute.xlu0 %11549
  %11553 = vset.pattern.permute.xlu0 0
  %11554 = vperm.xlu0 %11553, %v7624
  %v11555 = vpop.permute.xlu0 %11554
  %11558 = vset.pattern.permute.xlu0 0
  %11559 = vperm.xlu0 %11558, %v7625
  %v11560 = vpop.permute.xlu0 %11559
  %11563 = vset.pattern.permute.xlu0 0
  %11564 = vperm.xlu0 %11563, %v7626
  %v11565 = vpop.permute.xlu0 %11564
  %11568 = vset.pattern.permute.xlu0 0
  %11569 = vperm.xlu0 %11568, %v7627
  %v11570 = vpop.permute.xlu0 %11569
  %11573 = vset.pattern.permute.xlu0 0
  %11574 = vperm.xlu0 %11573, %v7628
  %v11575 = vpop.permute.xlu0 %11574
  %11578 = vset.pattern.permute.xlu0 0
  %11579 = vperm.xlu0 %11578, %v7629
  %v11580 = vpop.permute.xlu0 %11579
  %11583 = vset.pattern.permute.xlu0 0
  %11584 = vperm.xlu0 %11583, %v7630
  %v11585 = vpop.permute.xlu0 %11584
  %11588 = vset.pattern.permute.xlu0 0
  %11589 = vperm.xlu0 %11588, %v7631
  %v11590 = vpop.permute.xlu0 %11589
  %11593 = vset.pattern.permute.xlu0 0
  %11594 = vperm.xlu0 %11593, %v7632
  %v11595 = vpop.permute.xlu0 %11594
  %11598 = vset.pattern.permute.xlu0 0
  %11599 = vperm.xlu0 %11598, %v7633
  %v11600 = vpop.permute.xlu0 %11599
  %11603 = vset.pattern.permute.xlu0 0
  %11604 = vperm.xlu0 %11603, %v7634
  %v11605 = vpop.permute.xlu0 %11604
  %11608 = vset.pattern.permute.xlu0 0
  %11609 = vperm.xlu0 %11608, %v7635
  %v11610 = vpop.permute.xlu0 %11609
  %11613 = vset.pattern.permute.xlu0 0
  %11614 = vperm.xlu0 %11613, %v7636
  %v11615 = vpop.permute.xlu0 %11614
  %11618 = vset.pattern.permute.xlu0 0
  %11619 = vperm.xlu0 %11618, %v7637
  %v11620 = vpop.permute.xlu0 %11619
  %11623 = vset.pattern.permute.xlu0 0
  %11624 = vperm.xlu0 %11623, %v7638
  %v11625 = vpop.permute.xlu0 %11624
  %11628 = vset.pattern.permute.xlu0 0
  %11629 = vperm.xlu0 %11628, %v7639
  %v11630 = vpop.permute.xlu0 %11629
  %11633 = vset.pattern.permute.xlu0 0
  %11634 = vperm.xlu0 %11633, %v7640
  %v11635 = vpop.permute.xlu0 %11634
  %11638 = vset.pattern.permute.xlu0 0
  %11639 = vperm.xlu0 %11638, %v7641
  %v11640 = vpop.permute.xlu0 %11639
  %11643 = vset.pattern.permute.xlu0 0
  %11644 = vperm.xlu0 %11643, %v7642
  %v11645 = vpop.permute.xlu0 %11644
  %11648 = vset.pattern.permute.xlu0 0
  %11649 = vperm.xlu0 %11648, %v7643
  %v11650 = vpop.permute.xlu0 %11649
  %11653 = vset.pattern.permute.xlu0 0
  %11654 = vperm.xlu0 %11653, %v7644
  %v11655 = vpop.permute.xlu0 %11654
  %11658 = vset.pattern.permute.xlu0 0
  %11659 = vperm.xlu0 %11658, %v7645
  %v11660 = vpop.permute.xlu0 %11659
  %11663 = vset.pattern.permute.xlu0 0
  %11664 = vperm.xlu0 %11663, %v7646
  %v11665 = vpop.permute.xlu0 %11664
  %11668 = vset.pattern.permute.xlu0 0
  %11669 = vperm.xlu0 %11668, %v7647
  %v11670 = vpop.permute.xlu0 %11669
  %11673 = vset.pattern.permute.xlu0 0
  %11674 = vperm.xlu0 %11673, %v7648
  %v11675 = vpop.permute.xlu0 %11674
  %11678 = vset.pattern.permute.xlu0 0
  %11679 = vperm.xlu0 %11678, %v7649
  %v11680 = vpop.permute.xlu0 %11679
  %11683 = vset.pattern.permute.xlu0 0
  %11684 = vperm.xlu0 %11683, %v7650
  %v11685 = vpop.permute.xlu0 %11684
  %11688 = vset.pattern.permute.xlu0 0
  %11689 = vperm.xlu0 %11688, %v7651
  %v11690 = vpop.permute.xlu0 %11689
  %11693 = vset.pattern.permute.xlu0 0
  %11694 = vperm.xlu0 %11693, %v7652
  %v11695 = vpop.permute.xlu0 %11694
  %11698 = vset.pattern.permute.xlu0 0
  %11699 = vperm.xlu0 %11698, %v7653
  %v11700 = vpop.permute.xlu0 %11699
  %11703 = vset.pattern.permute.xlu0 0
  %11704 = vperm.xlu0 %11703, %v7654
  %v11705 = vpop.permute.xlu0 %11704
  %11708 = vset.pattern.permute.xlu0 0
  %11709 = vperm.xlu0 %11708, %v7655
  %v11710 = vpop.permute.xlu0 %11709
  %11713 = vset.pattern.permute.xlu0 0
  %11714 = vperm.xlu0 %11713, %v7656
  %v11715 = vpop.permute.xlu0 %11714
  %11718 = vset.pattern.permute.xlu0 0
  %11719 = vperm.xlu0 %11718, %v7657
  %v11720 = vpop.permute.xlu0 %11719
  %11723 = vset.pattern.permute.xlu0 0
  %11724 = vperm.xlu0 %11723, %v7658
  %v11725 = vpop.permute.xlu0 %11724
  %11728 = vset.pattern.permute.xlu0 0
  %11729 = vperm.xlu0 %11728, %v7659
  %v11730 = vpop.permute.xlu0 %11729
  %11733 = vset.pattern.permute.xlu0 0
  %11734 = vperm.xlu0 %11733, %v7660
  %v11735 = vpop.permute.xlu0 %11734
  %11738 = vset.pattern.permute.xlu0 0
  %11739 = vperm.xlu0 %11738, %v7661
  %v11740 = vpop.permute.xlu0 %11739
  %11743 = vset.pattern.permute.xlu0 0
  %11744 = vperm.xlu0 %11743, %v7662
  %v11745 = vpop.permute.xlu0 %11744
  %11748 = vset.pattern.permute.xlu0 0
  %11749 = vperm.xlu0 %11748, %v7663
  %v11750 = vpop.permute.xlu0 %11749
  %11753 = vset.pattern.permute.xlu0 0
  %11754 = vperm.xlu0 %11753, %v7664
  %v11755 = vpop.permute.xlu0 %11754
  %11758 = vset.pattern.permute.xlu0 0
  %11759 = vperm.xlu0 %11758, %v7665
  %v11760 = vpop.permute.xlu0 %11759
  %11763 = vset.pattern.permute.xlu0 0
  %11764 = vperm.xlu0 %11763, %v7666
  %v11765 = vpop.permute.xlu0 %11764
  %11768 = vset.pattern.permute.xlu0 0
  %11769 = vperm.xlu0 %11768, %v7667
  %v11770 = vpop.permute.xlu0 %11769
  %11773 = vset.pattern.permute.xlu0 0
  %11774 = vperm.xlu0 %11773, %v7668
  %v11775 = vpop.permute.xlu0 %11774
  %11778 = vset.pattern.permute.xlu0 0
  %11779 = vperm.xlu0 %11778, %v7669
  %v11780 = vpop.permute.xlu0 %11779
  %11783 = vset.pattern.permute.xlu0 0
  %11784 = vperm.xlu0 %11783, %v7670
  %v11785 = vpop.permute.xlu0 %11784
  %11788 = vset.pattern.permute.xlu0 0
  %11789 = vperm.xlu0 %11788, %v7671
  %v11790 = vpop.permute.xlu0 %11789
  %11793 = vset.pattern.permute.xlu0 0
  %11794 = vperm.xlu0 %11793, %v7672
  %v11795 = vpop.permute.xlu0 %11794
  %11798 = vset.pattern.permute.xlu0 0
  %11799 = vperm.xlu0 %11798, %v7673
  %v11800 = vpop.permute.xlu0 %11799
  %11803 = vset.pattern.permute.xlu0 0
  %11804 = vperm.xlu0 %11803, %v7674
  %v11805 = vpop.permute.xlu0 %11804
  %11808 = vset.pattern.permute.xlu0 0
  %11809 = vperm.xlu0 %11808, %v7675
  %v11810 = vpop.permute.xlu0 %11809
  %11813 = vset.pattern.permute.xlu0 0
  %11814 = vperm.xlu0 %11813, %v7676
  %v11815 = vpop.permute.xlu0 %11814
  %11818 = vset.pattern.permute.xlu0 0
  %11819 = vperm.xlu0 %11818, %v7677
  %v11820 = vpop.permute.xlu0 %11819
  %11823 = vset.pattern.permute.xlu0 0
  %11824 = vperm.xlu0 %11823, %v7678
  %v11825 = vpop.permute.xlu0 %11824
  %11828 = vset.pattern.permute.xlu0 0
  %11829 = vperm.xlu0 %11828, %v7679
  %v11830 = vpop.permute.xlu0 %11829
  %11833 = vset.pattern.permute.xlu0 0
  %11834 = vperm.xlu0 %11833, %v7680
  %v11835 = vpop.permute.xlu0 %11834
  %11838 = vset.pattern.permute.xlu0 0
  %11839 = vperm.xlu0 %11838, %v7681
  %v11840 = vpop.permute.xlu0 %11839
  %11843 = vset.pattern.permute.xlu0 0
  %11844 = vperm.xlu0 %11843, %v7682
  %v11845 = vpop.permute.xlu0 %11844
  %11848 = vset.pattern.permute.xlu0 0
  %11849 = vperm.xlu0 %11848, %v7683
  %v11850 = vpop.permute.xlu0 %11849
  %11853 = vset.pattern.permute.xlu0 0
  %11854 = vperm.xlu0 %11853, %v7684
  %v11855 = vpop.permute.xlu0 %11854
  %11858 = vset.pattern.permute.xlu0 0
  %11859 = vperm.xlu0 %11858, %v7685
  %v11860 = vpop.permute.xlu0 %11859
  %11863 = vset.pattern.permute.xlu0 0
  %11864 = vperm.xlu0 %11863, %v7686
  %v11865 = vpop.permute.xlu0 %11864
  %11868 = vset.pattern.permute.xlu0 0
  %11869 = vperm.xlu0 %11868, %v7687
  %v11870 = vpop.permute.xlu0 %11869
  %11873 = vset.pattern.permute.xlu0 0
  %11874 = vperm.xlu0 %11873, %v7688
  %v11875 = vpop.permute.xlu0 %11874
  %11878 = vset.pattern.permute.xlu0 0
  %11879 = vperm.xlu0 %11878, %v7689
  %v11880 = vpop.permute.xlu0 %11879
  %11883 = vset.pattern.permute.xlu0 0
  %11884 = vperm.xlu0 %11883, %v7690
  %v11885 = vpop.permute.xlu0 %11884
  %11888 = vset.pattern.permute.xlu0 0
  %11889 = vperm.xlu0 %11888, %v7691
  %v11890 = vpop.permute.xlu0 %11889
  %11893 = vset.pattern.permute.xlu0 0
  %11894 = vperm.xlu0 %11893, %v7692
  %v11895 = vpop.permute.xlu0 %11894
  %11898 = vset.pattern.permute.xlu0 0
  %11899 = vperm.xlu0 %11898, %v7693
  %v11900 = vpop.permute.xlu0 %11899
  %11903 = vset.pattern.permute.xlu0 0
  %11904 = vperm.xlu0 %11903, %v7694
  %v11905 = vpop.permute.xlu0 %11904
  %11908 = vset.pattern.permute.xlu0 0
  %11909 = vperm.xlu0 %11908, %v7695
  %v11910 = vpop.permute.xlu0 %11909
  %11913 = vset.pattern.permute.xlu0 0
  %11914 = vperm.xlu0 %11913, %v7696
  %v11915 = vpop.permute.xlu0 %11914
  %11918 = vset.pattern.permute.xlu0 0
  %11919 = vperm.xlu0 %11918, %v7697
  %v11920 = vpop.permute.xlu0 %11919
  %v11922 = vadd.f32 %v9618, %v10005
  %v11923 = vadd.f32 %v9619, %v10010
  %v11924 = vadd.f32 %v9620, %v10015
  %v11925 = vadd.f32 %v9621, %v10020
  %v11926 = vadd.f32 %v9622, %v10025
  %v11927 = vadd.f32 %v9623, %v10030
  %v11928 = vadd.f32 %v9624, %v10035
  %v11929 = vadd.f32 %v9625, %v10040
  %v11930 = vadd.f32 %v9626, %v10045
  %v11931 = vadd.f32 %v9627, %v10050
  %v11932 = vadd.f32 %v9628, %v10055
  %v11933 = vadd.f32 %v9629, %v10060
  %v11934 = vadd.f32 %v9630, %v10065
  %v11935 = vadd.f32 %v9631, %v10070
  %v11936 = vadd.f32 %v9632, %v10075
  %v11937 = vadd.f32 %v9633, %v10080
  %v11938 = vadd.f32 %v9634, %v10085
  %v11939 = vadd.f32 %v9635, %v10090
  %v11940 = vadd.f32 %v9636, %v10095
  %v11941 = vadd.f32 %v9637, %v10100
  %v11942 = vadd.f32 %v9638, %v10105
  %v11943 = vadd.f32 %v9639, %v10110
  %v11944 = vadd.f32 %v9640, %v10115
  %v11945 = vadd.f32 %v9641, %v10120
  %v11946 = vadd.f32 %v9642, %v10125
  %v11947 = vadd.f32 %v9643, %v10130
  %v11948 = vadd.f32 %v9644, %v10135
  %v11949 = vadd.f32 %v9645, %v10140
  %v11950 = vadd.f32 %v9646, %v10145
  %v11951 = vadd.f32 %v9647, %v10150
  %v11952 = vadd.f32 %v9648, %v10155
  %v11953 = vadd.f32 %v9649, %v10160
  %v11954 = vadd.f32 %v9650, %v10165
  %v11955 = vadd.f32 %v9651, %v10170
  %v11956 = vadd.f32 %v9652, %v10175
  %v11957 = vadd.f32 %v9653, %v10180
  %v11958 = vadd.f32 %v9654, %v10185
  %v11959 = vadd.f32 %v9655, %v10190
  %v11960 = vadd.f32 %v9656, %v10195
  %v11961 = vadd.f32 %v9657, %v10200
  %v11962 = vadd.f32 %v9658, %v10205
  %v11963 = vadd.f32 %v9659, %v10210
  %v11964 = vadd.f32 %v9660, %v10215
  %v11965 = vadd.f32 %v9661, %v10220
  %v11966 = vadd.f32 %v9662, %v10225
  %v11967 = vadd.f32 %v9663, %v10230
  %v11968 = vadd.f32 %v9664, %v10235
  %v11969 = vadd.f32 %v9665, %v10240
  %v11970 = vadd.f32 %v9666, %v10245
  %v11971 = vadd.f32 %v9667, %v10250
  %v11972 = vadd.f32 %v9668, %v10255
  %v11973 = vadd.f32 %v9669, %v10260
  %v11974 = vadd.f32 %v9670, %v10265
  %v11975 = vadd.f32 %v9671, %v10270
  %v11976 = vadd.f32 %v9672, %v10275
  %v11977 = vadd.f32 %v9673, %v10280
  %v11978 = vadd.f32 %v9674, %v10285
  %v11979 = vadd.f32 %v9675, %v10290
  %v11980 = vadd.f32 %v9676, %v10295
  %v11981 = vadd.f32 %v9677, %v10300
  %v11982 = vadd.f32 %v9678, %v10305
  %v11983 = vadd.f32 %v9679, %v10310
  %v11984 = vadd.f32 %v9680, %v10315
  %v11985 = vadd.f32 %v9681, %v10320
  %v11986 = vadd.f32 %v9682, %v10325
  %v11987 = vadd.f32 %v9683, %v10330
  %v11988 = vadd.f32 %v9684, %v10335
  %v11989 = vadd.f32 %v9685, %v10340
  %v11990 = vadd.f32 %v9686, %v10345
  %v11991 = vadd.f32 %v9687, %v10350
  %v11992 = vadd.f32 %v9688, %v10355
  %v11993 = vadd.f32 %v9689, %v10360
  %v11994 = vadd.f32 %v9690, %v10365
  %v11995 = vadd.f32 %v9691, %v10370
  %v11996 = vadd.f32 %v9692, %v10375
  %v11997 = vadd.f32 %v9693, %v10380
  %v11998 = vadd.f32 %v9694, %v10385
  %v11999 = vadd.f32 %v9695, %v10390
  %v12000 = vadd.f32 %v9696, %v10395
  %v12001 = vadd.f32 %v9697, %v10400
  %v12002 = vadd.f32 %v9698, %v10405
  %v12003 = vadd.f32 %v9699, %v10410
  %v12004 = vadd.f32 %v9700, %v10415
  %v12005 = vadd.f32 %v9701, %v10420
  %v12006 = vadd.f32 %v9702, %v10425
  %v12007 = vadd.f32 %v9703, %v10430
  %v12008 = vadd.f32 %v9704, %v10435
  %v12009 = vadd.f32 %v9705, %v10440
  %v12010 = vadd.f32 %v9706, %v10445
  %v12011 = vadd.f32 %v9707, %v10450
  %v12012 = vadd.f32 %v9708, %v10455
  %v12013 = vadd.f32 %v9709, %v10460
  %v12014 = vadd.f32 %v9710, %v10465
  %v12015 = vadd.f32 %v9711, %v10470
  %v12016 = vadd.f32 %v9712, %v10475
  %v12017 = vadd.f32 %v9713, %v10480
  %v12018 = vadd.f32 %v9714, %v10485
  %v12019 = vadd.f32 %v9715, %v10490
  %v12020 = vadd.f32 %v9716, %v10495
  %v12021 = vadd.f32 %v9717, %v10500
  %v12022 = vadd.f32 %v9718, %v10505
  %v12023 = vadd.f32 %v9719, %v10510
  %v12024 = vadd.f32 %v9720, %v10515
  %v12025 = vadd.f32 %v9721, %v10520
  %v12026 = vadd.f32 %v9722, %v10525
  %v12027 = vadd.f32 %v9723, %v10530
  %v12028 = vadd.f32 %v9724, %v10535
  %v12029 = vadd.f32 %v9725, %v10540
  %v12030 = vadd.f32 %v9726, %v10545
  %v12031 = vadd.f32 %v9727, %v10550
  %v12032 = vadd.f32 %v9728, %v10555
  %v12033 = vadd.f32 %v9729, %v10560
  %v12034 = vadd.f32 %v9730, %v10565
  %v12035 = vadd.f32 %v9731, %v10570
  %v12036 = vadd.f32 %v9732, %v10575
  %v12037 = vadd.f32 %v9733, %v10580
  %v12038 = vadd.f32 %v9734, %v10585
  %v12039 = vadd.f32 %v9735, %v10590
  %v12040 = vadd.f32 %v9736, %v10595
  %v12041 = vadd.f32 %v9737, %v10600
  %v12042 = vadd.f32 %v9738, %v10605
  %v12043 = vadd.f32 %v9739, %v10610
  %v12044 = vadd.f32 %v9740, %v10615
  %v12045 = vadd.f32 %v9741, %v10620
  %v12046 = vadd.f32 %v9742, %v10625
  %v12047 = vadd.f32 %v9743, %v10630
  %v12048 = vadd.f32 %v9744, %v10635
  %v12049 = vadd.f32 %v9745, %v10640
  %v12050 = vadd.f32 %v9746, %v10645
  %v12051 = vadd.f32 %v9747, %v10650
  %v12052 = vadd.f32 %v9748, %v10655
  %v12053 = vadd.f32 %v9749, %v10660
  %v12054 = vadd.f32 %v9750, %v10665
  %v12055 = vadd.f32 %v9751, %v10670
  %v12056 = vadd.f32 %v9752, %v10675
  %v12057 = vadd.f32 %v9753, %v10680
  %v12058 = vadd.f32 %v9754, %v10685
  %v12059 = vadd.f32 %v9755, %v10690
  %v12060 = vadd.f32 %v9756, %v10695
  %v12061 = vadd.f32 %v9757, %v10700
  %v12062 = vadd.f32 %v9758, %v10705
  %v12063 = vadd.f32 %v9759, %v10710
  %v12064 = vadd.f32 %v9760, %v10715
  %v12065 = vadd.f32 %v9761, %v10720
  %v12066 = vadd.f32 %v9762, %v10725
  %v12067 = vadd.f32 %v9763, %v10730
  %v12068 = vadd.f32 %v9764, %v10735
  %v12069 = vadd.f32 %v9765, %v10740
  %v12070 = vadd.f32 %v9766, %v10745
  %v12071 = vadd.f32 %v9767, %v10750
  %v12072 = vadd.f32 %v9768, %v10755
  %v12073 = vadd.f32 %v9769, %v10760
  %v12074 = vadd.f32 %v9770, %v10765
  %v12075 = vadd.f32 %v9771, %v10770
  %v12076 = vadd.f32 %v9772, %v10775
  %v12077 = vadd.f32 %v9773, %v10780
  %v12078 = vadd.f32 %v9774, %v10785
  %v12079 = vadd.f32 %v9775, %v10790
  %v12080 = vadd.f32 %v9776, %v10795
  %v12081 = vadd.f32 %v9777, %v10800
  %v12082 = vadd.f32 %v9778, %v10805
  %v12083 = vadd.f32 %v9779, %v10810
  %v12084 = vadd.f32 %v9780, %v10815
  %v12085 = vadd.f32 %v9781, %v10820
  %v12086 = vadd.f32 %v9782, %v10825
  %v12087 = vadd.f32 %v9783, %v10830
  %v12088 = vadd.f32 %v9784, %v10835
  %v12089 = vadd.f32 %v9785, %v10840
  %v12090 = vadd.f32 %v9786, %v10845
  %v12091 = vadd.f32 %v9787, %v10850
  %v12092 = vadd.f32 %v9788, %v10855
  %v12093 = vadd.f32 %v9789, %v10860
  %v12094 = vadd.f32 %v9790, %v10865
  %v12095 = vadd.f32 %v9791, %v10870
  %v12096 = vadd.f32 %v9792, %v10875
  %v12097 = vadd.f32 %v9793, %v10880
  %v12098 = vadd.f32 %v9794, %v10885
  %v12099 = vadd.f32 %v9795, %v10890
  %v12100 = vadd.f32 %v9796, %v10895
  %v12101 = vadd.f32 %v9797, %v10900
  %v12102 = vadd.f32 %v9798, %v10905
  %v12103 = vadd.f32 %v9799, %v10910
  %v12104 = vadd.f32 %v9800, %v10915
  %v12105 = vadd.f32 %v9801, %v10920
  %v12106 = vadd.f32 %v9802, %v10925
  %v12107 = vadd.f32 %v9803, %v10930
  %v12108 = vadd.f32 %v9804, %v10935
  %v12109 = vadd.f32 %v9805, %v10940
  %v12110 = vadd.f32 %v9806, %v10945
  %v12111 = vadd.f32 %v9807, %v10950
  %v12112 = vadd.f32 %v9808, %v10955
  %v12113 = vadd.f32 %v9809, %v10960
  %v12114 = vadd.f32 %v9810, %v10965
  %v12115 = vadd.f32 %v9811, %v10970
  %v12116 = vadd.f32 %v9812, %v10975
  %v12117 = vadd.f32 %v9813, %v10980
  %v12118 = vadd.f32 %v9814, %v10985
  %v12119 = vadd.f32 %v9815, %v10990
  %v12120 = vadd.f32 %v9816, %v10995
  %v12121 = vadd.f32 %v9817, %v11000
  %v12122 = vadd.f32 %v9818, %v11005
  %v12123 = vadd.f32 %v9819, %v11010
  %v12124 = vadd.f32 %v9820, %v11015
  %v12125 = vadd.f32 %v9821, %v11020
  %v12126 = vadd.f32 %v9822, %v11025
  %v12127 = vadd.f32 %v9823, %v11030
  %v12128 = vadd.f32 %v9824, %v11035
  %v12129 = vadd.f32 %v9825, %v11040
  %v12130 = vadd.f32 %v9826, %v11045
  %v12131 = vadd.f32 %v9827, %v11050
  %v12132 = vadd.f32 %v9828, %v11055
  %v12133 = vadd.f32 %v9829, %v11060
  %v12134 = vadd.f32 %v9830, %v11065
  %v12135 = vadd.f32 %v9831, %v11070
  %v12136 = vadd.f32 %v9832, %v11075
  %v12137 = vadd.f32 %v9833, %v11080
  %v12138 = vadd.f32 %v9834, %v11085
  %v12139 = vadd.f32 %v9835, %v11090
  %v12140 = vadd.f32 %v9836, %v11095
  %v12141 = vadd.f32 %v9837, %v11100
  %v12142 = vadd.f32 %v9838, %v11105
  %v12143 = vadd.f32 %v9839, %v11110
  %v12144 = vadd.f32 %v9840, %v11115
  %v12145 = vadd.f32 %v9841, %v11120
  %v12146 = vadd.f32 %v9842, %v11125
  %v12147 = vadd.f32 %v9843, %v11130
  %v12148 = vadd.f32 %v9844, %v11135
  %v12149 = vadd.f32 %v9845, %v11140
  %v12150 = vadd.f32 %v9846, %v11145
  %v12151 = vadd.f32 %v9847, %v11150
  %v12152 = vadd.f32 %v9848, %v11155
  %v12153 = vadd.f32 %v9849, %v11160
  %v12154 = vadd.f32 %v9850, %v11165
  %v12155 = vadd.f32 %v9851, %v11170
  %v12156 = vadd.f32 %v9852, %v11175
  %v12157 = vadd.f32 %v9853, %v11180
  %v12158 = vadd.f32 %v9854, %v11185
  %v12159 = vadd.f32 %v9855, %v11190
  %v12160 = vadd.f32 %v9856, %v11195
  %v12161 = vadd.f32 %v9857, %v11200
  %v12162 = vadd.f32 %v9858, %v11205
  %v12163 = vadd.f32 %v9859, %v11210
  %v12164 = vadd.f32 %v9860, %v11215
  %v12165 = vadd.f32 %v9861, %v11220
  %v12166 = vadd.f32 %v9862, %v11225
  %v12167 = vadd.f32 %v9863, %v11230
  %v12168 = vadd.f32 %v9864, %v11235
  %v12169 = vadd.f32 %v9865, %v11240
  %v12170 = vadd.f32 %v9866, %v11245
  %v12171 = vadd.f32 %v9867, %v11250
  %v12172 = vadd.f32 %v9868, %v11255
  %v12173 = vadd.f32 %v9869, %v11260
  %v12174 = vadd.f32 %v9870, %v11265
  %v12175 = vadd.f32 %v9871, %v11270
  %v12176 = vadd.f32 %v9872, %v11275
  %v12177 = vadd.f32 %v9873, %v11280
  %v12178 = vadd.f32 %v9874, %v11285
  %v12179 = vadd.f32 %v9875, %v11290
  %v12180 = vadd.f32 %v9876, %v11295
  %v12181 = vadd.f32 %v9877, %v11300
  %v12182 = vadd.f32 %v9878, %v11305
  %v12183 = vadd.f32 %v9879, %v11310
  %v12184 = vadd.f32 %v9880, %v11315
  %v12185 = vadd.f32 %v9881, %v11320
  %v12186 = vadd.f32 %v9882, %v11325
  %v12187 = vadd.f32 %v9883, %v11330
  %v12188 = vadd.f32 %v9884, %v11335
  %v12189 = vadd.f32 %v9885, %v11340
  %v12190 = vadd.f32 %v9886, %v11345
  %v12191 = vadd.f32 %v9887, %v11350
  %v12192 = vadd.f32 %v9888, %v11355
  %v12193 = vadd.f32 %v9889, %v11360
  %v12194 = vadd.f32 %v9890, %v11365
  %v12195 = vadd.f32 %v9891, %v11370
  %v12196 = vadd.f32 %v9892, %v11375
  %v12197 = vadd.f32 %v9893, %v11380
  %v12198 = vadd.f32 %v9894, %v11385
  %v12199 = vadd.f32 %v9895, %v11390
  %v12200 = vadd.f32 %v9896, %v11395
  %v12201 = vadd.f32 %v9897, %v11400
  %v12202 = vadd.f32 %v9898, %v11405
  %v12203 = vadd.f32 %v9899, %v11410
  %v12204 = vadd.f32 %v9900, %v11415
  %v12205 = vadd.f32 %v9901, %v11420
  %v12206 = vadd.f32 %v9902, %v11425
  %v12207 = vadd.f32 %v9903, %v11430
  %v12208 = vadd.f32 %v9904, %v11435
  %v12209 = vadd.f32 %v9905, %v11440
  %v12210 = vadd.f32 %v9906, %v11445
  %v12211 = vadd.f32 %v9907, %v11450
  %v12212 = vadd.f32 %v9908, %v11455
  %v12213 = vadd.f32 %v9909, %v11460
  %v12214 = vadd.f32 %v9910, %v11465
  %v12215 = vadd.f32 %v9911, %v11470
  %v12216 = vadd.f32 %v9912, %v11475
  %v12217 = vadd.f32 %v9913, %v11480
  %v12218 = vadd.f32 %v9914, %v11485
  %v12219 = vadd.f32 %v9915, %v11490
  %v12220 = vadd.f32 %v9916, %v11495
  %v12221 = vadd.f32 %v9917, %v11500
  %v12222 = vadd.f32 %v9918, %v11505
  %v12223 = vadd.f32 %v9919, %v11510
  %v12224 = vadd.f32 %v9920, %v11515
  %v12225 = vadd.f32 %v9921, %v11520
  %v12226 = vadd.f32 %v9922, %v11525
  %v12227 = vadd.f32 %v9923, %v11530
  %v12228 = vadd.f32 %v9924, %v11535
  %v12229 = vadd.f32 %v9925, %v11540
  %v12230 = vadd.f32 %v9926, %v11545
  %v12231 = vadd.f32 %v9927, %v11550
  %v12232 = vadd.f32 %v9928, %v11555
  %v12233 = vadd.f32 %v9929, %v11560
  %v12234 = vadd.f32 %v9930, %v11565
  %v12235 = vadd.f32 %v9931, %v11570
  %v12236 = vadd.f32 %v9932, %v11575
  %v12237 = vadd.f32 %v9933, %v11580
  %v12238 = vadd.f32 %v9934, %v11585
  %v12239 = vadd.f32 %v9935, %v11590
  %v12240 = vadd.f32 %v9936, %v11595
  %v12241 = vadd.f32 %v9937, %v11600
  %v12242 = vadd.f32 %v9938, %v11605
  %v12243 = vadd.f32 %v9939, %v11610
  %v12244 = vadd.f32 %v9940, %v11615
  %v12245 = vadd.f32 %v9941, %v11620
  %v12246 = vadd.f32 %v9942, %v11625
  %v12247 = vadd.f32 %v9943, %v11630
  %v12248 = vadd.f32 %v9944, %v11635
  %v12249 = vadd.f32 %v9945, %v11640
  %v12250 = vadd.f32 %v9946, %v11645
  %v12251 = vadd.f32 %v9947, %v11650
  %v12252 = vadd.f32 %v9948, %v11655
  %v12253 = vadd.f32 %v9949, %v11660
  %v12254 = vadd.f32 %v9950, %v11665
  %v12255 = vadd.f32 %v9951, %v11670
  %v12256 = vadd.f32 %v9952, %v11675
  %v12257 = vadd.f32 %v9953, %v11680
  %v12258 = vadd.f32 %v9954, %v11685
  %v12259 = vadd.f32 %v9955, %v11690
  %v12260 = vadd.f32 %v9956, %v11695
  %v12261 = vadd.f32 %v9957, %v11700
  %v12262 = vadd.f32 %v9958, %v11705
  %v12263 = vadd.f32 %v9959, %v11710
  %v12264 = vadd.f32 %v9960, %v11715
  %v12265 = vadd.f32 %v9961, %v11720
  %v12266 = vadd.f32 %v9962, %v11725
  %v12267 = vadd.f32 %v9963, %v11730
  %v12268 = vadd.f32 %v9964, %v11735
  %v12269 = vadd.f32 %v9965, %v11740
  %v12270 = vadd.f32 %v9966, %v11745
  %v12271 = vadd.f32 %v9967, %v11750
  %v12272 = vadd.f32 %v9968, %v11755
  %v12273 = vadd.f32 %v9969, %v11760
  %v12274 = vadd.f32 %v9970, %v11765
  %v12275 = vadd.f32 %v9971, %v11770
  %v12276 = vadd.f32 %v9972, %v11775
  %v12277 = vadd.f32 %v9973, %v11780
  %v12278 = vadd.f32 %v9974, %v11785
  %v12279 = vadd.f32 %v9975, %v11790
  %v12280 = vadd.f32 %v9976, %v11795
  %v12281 = vadd.f32 %v9977, %v11800
  %v12282 = vadd.f32 %v9978, %v11805
  %v12283 = vadd.f32 %v9979, %v11810
  %v12284 = vadd.f32 %v9980, %v11815
  %v12285 = vadd.f32 %v9981, %v11820
  %v12286 = vadd.f32 %v9982, %v11825
  %v12287 = vadd.f32 %v9983, %v11830
  %v12288 = vadd.f32 %v9984, %v11835
  %v12289 = vadd.f32 %v9985, %v11840
  %v12290 = vadd.f32 %v9986, %v11845
  %v12291 = vadd.f32 %v9987, %v11850
  %v12292 = vadd.f32 %v9988, %v11855
  %v12293 = vadd.f32 %v9989, %v11860
  %v12294 = vadd.f32 %v9990, %v11865
  %v12295 = vadd.f32 %v9991, %v11870
  %v12296 = vadd.f32 %v9992, %v11875
  %v12297 = vadd.f32 %v9993, %v11880
  %v12298 = vadd.f32 %v9994, %v11885
  %v12299 = vadd.f32 %v9995, %v11890
  %v12300 = vadd.f32 %v9996, %v11895
  %v12301 = vadd.f32 %v9997, %v11900
  %v12302 = vadd.f32 %v9998, %v11905
  %v12303 = vadd.f32 %v9999, %v11910
  %v12304 = vadd.f32 %v10000, %v11915
  %v12305 = vadd.f32 %v10001, %v11920
  %12306 = vst.msk [vmem:[%s3] sm:$0xff] %vm785, %v11922
  %12307 = vst.msk [vmem:[%s3 + $0x8] sm:$0xff] %vm785, %v11923
  %12308 = vst.msk [vmem:[%s3 + $0x10] sm:$0xff] %vm785, %v11924
  %12309 = vst.msk [vmem:[%s3 + $0x18] sm:$0xff] %vm785, %v11925
  %12310 = vst.msk [vmem:[%s3 + $0x20] sm:$0xff] %vm785, %v11926
  %12311 = vst.msk [vmem:[%s3 + $0x28] sm:$0xff] %vm785, %v11927
  %12312 = vst.msk [vmem:[%s3 + $0x30] sm:$0xff] %vm785, %v11928
  %12313 = vst.msk [vmem:[%s3 + $0x38] sm:$0xff] %vm785, %v11929
  %12314 = vst.msk [vmem:[%s3 + $0x40] sm:$0xff] %vm785, %v11930
  %12315 = vst.msk [vmem:[%s3 + $0x48] sm:$0xff] %vm785, %v11931
  %12316 = vst.msk [vmem:[%s3 + $0x50] sm:$0xff] %vm785, %v11932
  %12317 = vst.msk [vmem:[%s3 + $0x58] sm:$0xff] %vm785, %v11933
  %12318 = vst.msk [vmem:[%s3 + $0x60] sm:$0xff] %vm785, %v11934
  %12319 = vst.msk [vmem:[%s3 + $0x68] sm:$0xff] %vm785, %v11935
  %12320 = vst.msk [vmem:[%s3 + $0x70] sm:$0xff] %vm785, %v11936
  %12321 = vst.msk [vmem:[%s3 + $0x78] sm:$0xff] %vm785, %v11937
  %12322 = vst.msk [vmem:[%s3 + $0x80] sm:$0xff] %vm785, %v11938
  %12323 = vst.msk [vmem:[%s3 + $0x88] sm:$0xff] %vm785, %v11939
  %12324 = vst.msk [vmem:[%s3 + $0x90] sm:$0xff] %vm785, %v11940
  %12325 = vst.msk [vmem:[%s3 + $0x98] sm:$0xff] %vm785, %v11941
  %12326 = vst.msk [vmem:[%s3 + $0xa0] sm:$0xff] %vm785, %v11942
  %12327 = vst.msk [vmem:[%s3 + $0xa8] sm:$0xff] %vm785, %v11943
  %12328 = vst.msk [vmem:[%s3 + $0xb0] sm:$0xff] %vm785, %v11944
  %12329 = vst.msk [vmem:[%s3 + $0xb8] sm:$0xff] %vm785, %v11945
  %12330 = vst.msk [vmem:[%s3 + $0xc0] sm:$0xff] %vm785, %v11946
  %12331 = vst.msk [vmem:[%s3 + $0xc8] sm:$0xff] %vm785, %v11947
  %12332 = vst.msk [vmem:[%s3 + $0xd0] sm:$0xff] %vm785, %v11948
  %12333 = vst.msk [vmem:[%s3 + $0xd8] sm:$0xff] %vm785, %v11949
  %12334 = vst.msk [vmem:[%s3 + $0xe0] sm:$0xff] %vm785, %v11950
  %12335 = vst.msk [vmem:[%s3 + $0xe8] sm:$0xff] %vm785, %v11951
  %12336 = vst.msk [vmem:[%s3 + $0xf0] sm:$0xff] %vm785, %v11952
  %12337 = vst.msk [vmem:[%s3 + $0xf8] sm:$0xff] %vm785, %v11953
  %12338 = vst.msk [vmem:[%s3 + $0x100] sm:$0xff] %vm785, %v11954
  %12339 = vst.msk [vmem:[%s3 + $0x108] sm:$0xff] %vm785, %v11955
  %12340 = vst.msk [vmem:[%s3 + $0x110] sm:$0xff] %vm785, %v11956
  %12341 = vst.msk [vmem:[%s3 + $0x118] sm:$0xff] %vm785, %v11957
  %12342 = vst.msk [vmem:[%s3 + $0x120] sm:$0xff] %vm785, %v11958
  %12343 = vst.msk [vmem:[%s3 + $0x128] sm:$0xff] %vm785, %v11959
  %12344 = vst.msk [vmem:[%s3 + $0x130] sm:$0xff] %vm785, %v11960
  %12345 = vst.msk [vmem:[%s3 + $0x138] sm:$0xff] %vm785, %v11961
  %12346 = vst.msk [vmem:[%s3 + $0x140] sm:$0xff] %vm785, %v11962
  %12347 = vst.msk [vmem:[%s3 + $0x148] sm:$0xff] %vm785, %v11963
  %12348 = vst.msk [vmem:[%s3 + $0x150] sm:$0xff] %vm785, %v11964
  %12349 = vst.msk [vmem:[%s3 + $0x158] sm:$0xff] %vm785, %v11965
  %12350 = vst.msk [vmem:[%s3 + $0x160] sm:$0xff] %vm785, %v11966
  %12351 = vst.msk [vmem:[%s3 + $0x168] sm:$0xff] %vm785, %v11967
  %12352 = vst.msk [vmem:[%s3 + $0x170] sm:$0xff] %vm785, %v11968
  %12353 = vst.msk [vmem:[%s3 + $0x178] sm:$0xff] %vm785, %v11969
  %12354 = vst.msk [vmem:[%s3 + $0x180] sm:$0xff] %vm785, %v11970
  %12355 = vst.msk [vmem:[%s3 + $0x188] sm:$0xff] %vm785, %v11971
  %12356 = vst.msk [vmem:[%s3 + $0x190] sm:$0xff] %vm785, %v11972
  %12357 = vst.msk [vmem:[%s3 + $0x198] sm:$0xff] %vm785, %v11973
  %12358 = vst.msk [vmem:[%s3 + $0x1a0] sm:$0xff] %vm785, %v11974
  %12359 = vst.msk [vmem:[%s3 + $0x1a8] sm:$0xff] %vm785, %v11975
  %12360 = vst.msk [vmem:[%s3 + $0x1b0] sm:$0xff] %vm785, %v11976
  %12361 = vst.msk [vmem:[%s3 + $0x1b8] sm:$0xff] %vm785, %v11977
  %12362 = vst.msk [vmem:[%s3 + $0x1c0] sm:$0xff] %vm785, %v11978
  %12363 = vst.msk [vmem:[%s3 + $0x1c8] sm:$0xff] %vm785, %v11979
  %12364 = vst.msk [vmem:[%s3 + $0x1d0] sm:$0xff] %vm785, %v11980
  %12365 = vst.msk [vmem:[%s3 + $0x1d8] sm:$0xff] %vm785, %v11981
  %12366 = vst.msk [vmem:[%s3 + $0x1e0] sm:$0xff] %vm785, %v11982
  %12367 = vst.msk [vmem:[%s3 + $0x1e8] sm:$0xff] %vm785, %v11983
  %12368 = vst.msk [vmem:[%s3 + $0x1f0] sm:$0xff] %vm785, %v11984
  %12369 = vst.msk [vmem:[%s3 + $0x1f8] sm:$0xff] %vm785, %v11985
  %12370 = vst.msk [vmem:[%s3 + $0x200] sm:$0xff] %vm785, %v11986
  %12371 = vst.msk [vmem:[%s3 + $0x208] sm:$0xff] %vm785, %v11987
  %12372 = vst.msk [vmem:[%s3 + $0x210] sm:$0xff] %vm785, %v11988
  %12373 = vst.msk [vmem:[%s3 + $0x218] sm:$0xff] %vm785, %v11989
  %12374 = vst.msk [vmem:[%s3 + $0x220] sm:$0xff] %vm785, %v11990
  %12375 = vst.msk [vmem:[%s3 + $0x228] sm:$0xff] %vm785, %v11991
  %12376 = vst.msk [vmem:[%s3 + $0x230] sm:$0xff] %vm785, %v11992
  %12377 = vst.msk [vmem:[%s3 + $0x238] sm:$0xff] %vm785, %v11993
  %12378 = vst.msk [vmem:[%s3 + $0x240] sm:$0xff] %vm785, %v11994
  %12379 = vst.msk [vmem:[%s3 + $0x248] sm:$0xff] %vm785, %v11995
  %12380 = vst.msk [vmem:[%s3 + $0x250] sm:$0xff] %vm785, %v11996
  %12381 = vst.msk [vmem:[%s3 + $0x258] sm:$0xff] %vm785, %v11997
  %12382 = vst.msk [vmem:[%s3 + $0x260] sm:$0xff] %vm785, %v11998
  %12383 = vst.msk [vmem:[%s3 + $0x268] sm:$0xff] %vm785, %v11999
  %12384 = vst.msk [vmem:[%s3 + $0x270] sm:$0xff] %vm785, %v12000
  %12385 = vst.msk [vmem:[%s3 + $0x278] sm:$0xff] %vm785, %v12001
  %12386 = vst.msk [vmem:[%s3 + $0x280] sm:$0xff] %vm785, %v12002
  %12387 = vst.msk [vmem:[%s3 + $0x288] sm:$0xff] %vm785, %v12003
  %12388 = vst.msk [vmem:[%s3 + $0x290] sm:$0xff] %vm785, %v12004
  %12389 = vst.msk [vmem:[%s3 + $0x298] sm:$0xff] %vm785, %v12005
  %12390 = vst.msk [vmem:[%s3 + $0x2a0] sm:$0xff] %vm785, %v12006
  %12391 = vst.msk [vmem:[%s3 + $0x2a8] sm:$0xff] %vm785, %v12007
  %12392 = vst.msk [vmem:[%s3 + $0x2b0] sm:$0xff] %vm785, %v12008
  %12393 = vst.msk [vmem:[%s3 + $0x2b8] sm:$0xff] %vm785, %v12009
  %12394 = vst.msk [vmem:[%s3 + $0x2c0] sm:$0xff] %vm785, %v12010
  %12395 = vst.msk [vmem:[%s3 + $0x2c8] sm:$0xff] %vm785, %v12011
  %12396 = vst.msk [vmem:[%s3 + $0x2d0] sm:$0xff] %vm785, %v12012
  %12397 = vst.msk [vmem:[%s3 + $0x2d8] sm:$0xff] %vm785, %v12013
  %12398 = vst.msk [vmem:[%s3 + $0x2e0] sm:$0xff] %vm785, %v12014
  %12399 = vst.msk [vmem:[%s3 + $0x2e8] sm:$0xff] %vm785, %v12015
  %12400 = vst.msk [vmem:[%s3 + $0x2f0] sm:$0xff] %vm785, %v12016
  %12401 = vst.msk [vmem:[%s3 + $0x2f8] sm:$0xff] %vm785, %v12017
  %12402 = vst.msk [vmem:[%s3 + $0x300] sm:$0xff] %vm785, %v12018
  %12403 = vst.msk [vmem:[%s3 + $0x308] sm:$0xff] %vm785, %v12019
  %12404 = vst.msk [vmem:[%s3 + $0x310] sm:$0xff] %vm785, %v12020
  %12405 = vst.msk [vmem:[%s3 + $0x318] sm:$0xff] %vm785, %v12021
  %12406 = vst.msk [vmem:[%s3 + $0x320] sm:$0xff] %vm785, %v12022
  %12407 = vst.msk [vmem:[%s3 + $0x328] sm:$0xff] %vm785, %v12023
  %12408 = vst.msk [vmem:[%s3 + $0x330] sm:$0xff] %vm785, %v12024
  %12409 = vst.msk [vmem:[%s3 + $0x338] sm:$0xff] %vm785, %v12025
  %12410 = vst.msk [vmem:[%s3 + $0x340] sm:$0xff] %vm785, %v12026
  %12411 = vst.msk [vmem:[%s3 + $0x348] sm:$0xff] %vm785, %v12027
  %12412 = vst.msk [vmem:[%s3 + $0x350] sm:$0xff] %vm785, %v12028
  %12413 = vst.msk [vmem:[%s3 + $0x358] sm:$0xff] %vm785, %v12029
  %12414 = vst.msk [vmem:[%s3 + $0x360] sm:$0xff] %vm785, %v12030
  %12415 = vst.msk [vmem:[%s3 + $0x368] sm:$0xff] %vm785, %v12031
  %12416 = vst.msk [vmem:[%s3 + $0x370] sm:$0xff] %vm785, %v12032
  %12417 = vst.msk [vmem:[%s3 + $0x378] sm:$0xff] %vm785, %v12033
  %12418 = vst.msk [vmem:[%s3 + $0x380] sm:$0xff] %vm785, %v12034
  %12419 = vst.msk [vmem:[%s3 + $0x388] sm:$0xff] %vm785, %v12035
  %12420 = vst.msk [vmem:[%s3 + $0x390] sm:$0xff] %vm785, %v12036
  %12421 = vst.msk [vmem:[%s3 + $0x398] sm:$0xff] %vm785, %v12037
  %12422 = vst.msk [vmem:[%s3 + $0x3a0] sm:$0xff] %vm785, %v12038
  %12423 = vst.msk [vmem:[%s3 + $0x3a8] sm:$0xff] %vm785, %v12039
  %12424 = vst.msk [vmem:[%s3 + $0x3b0] sm:$0xff] %vm785, %v12040
  %12425 = vst.msk [vmem:[%s3 + $0x3b8] sm:$0xff] %vm785, %v12041
  %12426 = vst.msk [vmem:[%s3 + $0x3c0] sm:$0xff] %vm785, %v12042
  %12427 = vst.msk [vmem:[%s3 + $0x3c8] sm:$0xff] %vm785, %v12043
  %12428 = vst.msk [vmem:[%s3 + $0x3d0] sm:$0xff] %vm785, %v12044
  %12429 = vst.msk [vmem:[%s3 + $0x3d8] sm:$0xff] %vm785, %v12045
  %12430 = vst.msk [vmem:[%s3 + $0x3e0] sm:$0xff] %vm785, %v12046
  %12431 = vst.msk [vmem:[%s3 + $0x3e8] sm:$0xff] %vm785, %v12047
  %12432 = vst.msk [vmem:[%s3 + $0x3f0] sm:$0xff] %vm785, %v12048
  %12433 = vst.msk [vmem:[%s3 + $0x3f8] sm:$0xff] %vm785, %v12049
  %12434 = vst.msk [vmem:[%s3 + $0x400] sm:$0xff] %vm785, %v12050
  %12435 = vst.msk [vmem:[%s3 + $0x408] sm:$0xff] %vm785, %v12051
  %12436 = vst.msk [vmem:[%s3 + $0x410] sm:$0xff] %vm785, %v12052
  %12437 = vst.msk [vmem:[%s3 + $0x418] sm:$0xff] %vm785, %v12053
  %12438 = vst.msk [vmem:[%s3 + $0x420] sm:$0xff] %vm785, %v12054
  %12439 = vst.msk [vmem:[%s3 + $0x428] sm:$0xff] %vm785, %v12055
  %12440 = vst.msk [vmem:[%s3 + $0x430] sm:$0xff] %vm785, %v12056
  %12441 = vst.msk [vmem:[%s3 + $0x438] sm:$0xff] %vm785, %v12057
  %12442 = vst.msk [vmem:[%s3 + $0x440] sm:$0xff] %vm785, %v12058
  %12443 = vst.msk [vmem:[%s3 + $0x448] sm:$0xff] %vm785, %v12059
  %12444 = vst.msk [vmem:[%s3 + $0x450] sm:$0xff] %vm785, %v12060
  %12445 = vst.msk [vmem:[%s3 + $0x458] sm:$0xff] %vm785, %v12061
  %12446 = vst.msk [vmem:[%s3 + $0x460] sm:$0xff] %vm785, %v12062
  %12447 = vst.msk [vmem:[%s3 + $0x468] sm:$0xff] %vm785, %v12063
  %12448 = vst.msk [vmem:[%s3 + $0x470] sm:$0xff] %vm785, %v12064
  %12449 = vst.msk [vmem:[%s3 + $0x478] sm:$0xff] %vm785, %v12065
  %12450 = vst.msk [vmem:[%s3 + $0x480] sm:$0xff] %vm785, %v12066
  %12451 = vst.msk [vmem:[%s3 + $0x488] sm:$0xff] %vm785, %v12067
  %12452 = vst.msk [vmem:[%s3 + $0x490] sm:$0xff] %vm785, %v12068
  %12453 = vst.msk [vmem:[%s3 + $0x498] sm:$0xff] %vm785, %v12069
  %12454 = vst.msk [vmem:[%s3 + $0x4a0] sm:$0xff] %vm785, %v12070
  %12455 = vst.msk [vmem:[%s3 + $0x4a8] sm:$0xff] %vm785, %v12071
  %12456 = vst.msk [vmem:[%s3 + $0x4b0] sm:$0xff] %vm785, %v12072
  %12457 = vst.msk [vmem:[%s3 + $0x4b8] sm:$0xff] %vm785, %v12073
  %12458 = vst.msk [vmem:[%s3 + $0x4c0] sm:$0xff] %vm785, %v12074
  %12459 = vst.msk [vmem:[%s3 + $0x4c8] sm:$0xff] %vm785, %v12075
  %12460 = vst.msk [vmem:[%s3 + $0x4d0] sm:$0xff] %vm785, %v12076
  %12461 = vst.msk [vmem:[%s3 + $0x4d8] sm:$0xff] %vm785, %v12077
  %12462 = vst.msk [vmem:[%s3 + $0x4e0] sm:$0xff] %vm785, %v12078
  %12463 = vst.msk [vmem:[%s3 + $0x4e8] sm:$0xff] %vm785, %v12079
  %12464 = vst.msk [vmem:[%s3 + $0x4f0] sm:$0xff] %vm785, %v12080
  %12465 = vst.msk [vmem:[%s3 + $0x4f8] sm:$0xff] %vm785, %v12081
  %12466 = vst.msk [vmem:[%s3 + $0x500] sm:$0xff] %vm785, %v12082
  %12467 = vst.msk [vmem:[%s3 + $0x508] sm:$0xff] %vm785, %v12083
  %12468 = vst.msk [vmem:[%s3 + $0x510] sm:$0xff] %vm785, %v12084
  %12469 = vst.msk [vmem:[%s3 + $0x518] sm:$0xff] %vm785, %v12085
  %12470 = vst.msk [vmem:[%s3 + $0x520] sm:$0xff] %vm785, %v12086
  %12471 = vst.msk [vmem:[%s3 + $0x528] sm:$0xff] %vm785, %v12087
  %12472 = vst.msk [vmem:[%s3 + $0x530] sm:$0xff] %vm785, %v12088
  %12473 = vst.msk [vmem:[%s3 + $0x538] sm:$0xff] %vm785, %v12089
  %12474 = vst.msk [vmem:[%s3 + $0x540] sm:$0xff] %vm785, %v12090
  %12475 = vst.msk [vmem:[%s3 + $0x548] sm:$0xff] %vm785, %v12091
  %12476 = vst.msk [vmem:[%s3 + $0x550] sm:$0xff] %vm785, %v12092
  %12477 = vst.msk [vmem:[%s3 + $0x558] sm:$0xff] %vm785, %v12093
  %12478 = vst.msk [vmem:[%s3 + $0x560] sm:$0xff] %vm785, %v12094
  %12479 = vst.msk [vmem:[%s3 + $0x568] sm:$0xff] %vm785, %v12095
  %12480 = vst.msk [vmem:[%s3 + $0x570] sm:$0xff] %vm785, %v12096
  %12481 = vst.msk [vmem:[%s3 + $0x578] sm:$0xff] %vm785, %v12097
  %12482 = vst.msk [vmem:[%s3 + $0x580] sm:$0xff] %vm785, %v12098
  %12483 = vst.msk [vmem:[%s3 + $0x588] sm:$0xff] %vm785, %v12099
  %12484 = vst.msk [vmem:[%s3 + $0x590] sm:$0xff] %vm785, %v12100
  %12485 = vst.msk [vmem:[%s3 + $0x598] sm:$0xff] %vm785, %v12101
  %12486 = vst.msk [vmem:[%s3 + $0x5a0] sm:$0xff] %vm785, %v12102
  %12487 = vst.msk [vmem:[%s3 + $0x5a8] sm:$0xff] %vm785, %v12103
  %12488 = vst.msk [vmem:[%s3 + $0x5b0] sm:$0xff] %vm785, %v12104
  %12489 = vst.msk [vmem:[%s3 + $0x5b8] sm:$0xff] %vm785, %v12105
  %12490 = vst.msk [vmem:[%s3 + $0x5c0] sm:$0xff] %vm785, %v12106
  %12491 = vst.msk [vmem:[%s3 + $0x5c8] sm:$0xff] %vm785, %v12107
  %12492 = vst.msk [vmem:[%s3 + $0x5d0] sm:$0xff] %vm785, %v12108
  %12493 = vst.msk [vmem:[%s3 + $0x5d8] sm:$0xff] %vm785, %v12109
  %12494 = vst.msk [vmem:[%s3 + $0x5e0] sm:$0xff] %vm785, %v12110
  %12495 = vst.msk [vmem:[%s3 + $0x5e8] sm:$0xff] %vm785, %v12111
  %12496 = vst.msk [vmem:[%s3 + $0x5f0] sm:$0xff] %vm785, %v12112
  %12497 = vst.msk [vmem:[%s3 + $0x5f8] sm:$0xff] %vm785, %v12113
  %12498 = vst.msk [vmem:[%s3 + $0x600] sm:$0xff] %vm785, %v12114
  %12499 = vst.msk [vmem:[%s3 + $0x608] sm:$0xff] %vm785, %v12115
  %12500 = vst.msk [vmem:[%s3 + $0x610] sm:$0xff] %vm785, %v12116
  %12501 = vst.msk [vmem:[%s3 + $0x618] sm:$0xff] %vm785, %v12117
  %12502 = vst.msk [vmem:[%s3 + $0x620] sm:$0xff] %vm785, %v12118
  %12503 = vst.msk [vmem:[%s3 + $0x628] sm:$0xff] %vm785, %v12119
  %12504 = vst.msk [vmem:[%s3 + $0x630] sm:$0xff] %vm785, %v12120
  %12505 = vst.msk [vmem:[%s3 + $0x638] sm:$0xff] %vm785, %v12121
  %12506 = vst.msk [vmem:[%s3 + $0x640] sm:$0xff] %vm785, %v12122
  %12507 = vst.msk [vmem:[%s3 + $0x648] sm:$0xff] %vm785, %v12123
  %12508 = vst.msk [vmem:[%s3 + $0x650] sm:$0xff] %vm785, %v12124
  %12509 = vst.msk [vmem:[%s3 + $0x658] sm:$0xff] %vm785, %v12125
  %12510 = vst.msk [vmem:[%s3 + $0x660] sm:$0xff] %vm785, %v12126
  %12511 = vst.msk [vmem:[%s3 + $0x668] sm:$0xff] %vm785, %v12127
  %12512 = vst.msk [vmem:[%s3 + $0x670] sm:$0xff] %vm785, %v12128
  %12513 = vst.msk [vmem:[%s3 + $0x678] sm:$0xff] %vm785, %v12129
  %12514 = vst.msk [vmem:[%s3 + $0x680] sm:$0xff] %vm785, %v12130
  %12515 = vst.msk [vmem:[%s3 + $0x688] sm:$0xff] %vm785, %v12131
  %12516 = vst.msk [vmem:[%s3 + $0x690] sm:$0xff] %vm785, %v12132
  %12517 = vst.msk [vmem:[%s3 + $0x698] sm:$0xff] %vm785, %v12133
  %12518 = vst.msk [vmem:[%s3 + $0x6a0] sm:$0xff] %vm785, %v12134
  %12519 = vst.msk [vmem:[%s3 + $0x6a8] sm:$0xff] %vm785, %v12135
  %12520 = vst.msk [vmem:[%s3 + $0x6b0] sm:$0xff] %vm785, %v12136
  %12521 = vst.msk [vmem:[%s3 + $0x6b8] sm:$0xff] %vm785, %v12137
  %12522 = vst.msk [vmem:[%s3 + $0x6c0] sm:$0xff] %vm785, %v12138
  %12523 = vst.msk [vmem:[%s3 + $0x6c8] sm:$0xff] %vm785, %v12139
  %12524 = vst.msk [vmem:[%s3 + $0x6d0] sm:$0xff] %vm785, %v12140
  %12525 = vst.msk [vmem:[%s3 + $0x6d8] sm:$0xff] %vm785, %v12141
  %12526 = vst.msk [vmem:[%s3 + $0x6e0] sm:$0xff] %vm785, %v12142
  %12527 = vst.msk [vmem:[%s3 + $0x6e8] sm:$0xff] %vm785, %v12143
  %12528 = vst.msk [vmem:[%s3 + $0x6f0] sm:$0xff] %vm785, %v12144
  %12529 = vst.msk [vmem:[%s3 + $0x6f8] sm:$0xff] %vm785, %v12145
  %12530 = vst.msk [vmem:[%s3 + $0x700] sm:$0xff] %vm785, %v12146
  %12531 = vst.msk [vmem:[%s3 + $0x708] sm:$0xff] %vm785, %v12147
  %12532 = vst.msk [vmem:[%s3 + $0x710] sm:$0xff] %vm785, %v12148
  %12533 = vst.msk [vmem:[%s3 + $0x718] sm:$0xff] %vm785, %v12149
  %12534 = vst.msk [vmem:[%s3 + $0x720] sm:$0xff] %vm785, %v12150
  %12535 = vst.msk [vmem:[%s3 + $0x728] sm:$0xff] %vm785, %v12151
  %12536 = vst.msk [vmem:[%s3 + $0x730] sm:$0xff] %vm785, %v12152
  %12537 = vst.msk [vmem:[%s3 + $0x738] sm:$0xff] %vm785, %v12153
  %12538 = vst.msk [vmem:[%s3 + $0x740] sm:$0xff] %vm785, %v12154
  %12539 = vst.msk [vmem:[%s3 + $0x748] sm:$0xff] %vm785, %v12155
  %12540 = vst.msk [vmem:[%s3 + $0x750] sm:$0xff] %vm785, %v12156
  %12541 = vst.msk [vmem:[%s3 + $0x758] sm:$0xff] %vm785, %v12157
  %12542 = vst.msk [vmem:[%s3 + $0x760] sm:$0xff] %vm785, %v12158
  %12543 = vst.msk [vmem:[%s3 + $0x768] sm:$0xff] %vm785, %v12159
  %12544 = vst.msk [vmem:[%s3 + $0x770] sm:$0xff] %vm785, %v12160
  %12545 = vst.msk [vmem:[%s3 + $0x778] sm:$0xff] %vm785, %v12161
  %12546 = vst.msk [vmem:[%s3 + $0x780] sm:$0xff] %vm785, %v12162
  %12547 = vst.msk [vmem:[%s3 + $0x788] sm:$0xff] %vm785, %v12163
  %12548 = vst.msk [vmem:[%s3 + $0x790] sm:$0xff] %vm785, %v12164
  %12549 = vst.msk [vmem:[%s3 + $0x798] sm:$0xff] %vm785, %v12165
  %12550 = vst.msk [vmem:[%s3 + $0x7a0] sm:$0xff] %vm785, %v12166
  %12551 = vst.msk [vmem:[%s3 + $0x7a8] sm:$0xff] %vm785, %v12167
  %12552 = vst.msk [vmem:[%s3 + $0x7b0] sm:$0xff] %vm785, %v12168
  %12553 = vst.msk [vmem:[%s3 + $0x7b8] sm:$0xff] %vm785, %v12169
  %12554 = vst.msk [vmem:[%s3 + $0x7c0] sm:$0xff] %vm785, %v12170
  %12555 = vst.msk [vmem:[%s3 + $0x7c8] sm:$0xff] %vm785, %v12171
  %12556 = vst.msk [vmem:[%s3 + $0x7d0] sm:$0xff] %vm785, %v12172
  %12557 = vst.msk [vmem:[%s3 + $0x7d8] sm:$0xff] %vm785, %v12173
  %12558 = vst.msk [vmem:[%s3 + $0x7e0] sm:$0xff] %vm785, %v12174
  %12559 = vst.msk [vmem:[%s3 + $0x7e8] sm:$0xff] %vm785, %v12175
  %12560 = vst.msk [vmem:[%s3 + $0x7f0] sm:$0xff] %vm785, %v12176
  %12561 = vst.msk [vmem:[%s3 + $0x7f8] sm:$0xff] %vm785, %v12177
  %12562 = vst.msk [vmem:[%s3 + $0x800] sm:$0xff] %vm785, %v12178
  %12563 = vst.msk [vmem:[%s3 + $0x808] sm:$0xff] %vm785, %v12179
  %12564 = vst.msk [vmem:[%s3 + $0x810] sm:$0xff] %vm785, %v12180
  %12565 = vst.msk [vmem:[%s3 + $0x818] sm:$0xff] %vm785, %v12181
  %12566 = vst.msk [vmem:[%s3 + $0x820] sm:$0xff] %vm785, %v12182
  %12567 = vst.msk [vmem:[%s3 + $0x828] sm:$0xff] %vm785, %v12183
  %12568 = vst.msk [vmem:[%s3 + $0x830] sm:$0xff] %vm785, %v12184
  %12569 = vst.msk [vmem:[%s3 + $0x838] sm:$0xff] %vm785, %v12185
  %12570 = vst.msk [vmem:[%s3 + $0x840] sm:$0xff] %vm785, %v12186
  %12571 = vst.msk [vmem:[%s3 + $0x848] sm:$0xff] %vm785, %v12187
  %12572 = vst.msk [vmem:[%s3 + $0x850] sm:$0xff] %vm785, %v12188
  %12573 = vst.msk [vmem:[%s3 + $0x858] sm:$0xff] %vm785, %v12189
  %12574 = vst.msk [vmem:[%s3 + $0x860] sm:$0xff] %vm785, %v12190
  %12575 = vst.msk [vmem:[%s3 + $0x868] sm:$0xff] %vm785, %v12191
  %12576 = vst.msk [vmem:[%s3 + $0x870] sm:$0xff] %vm785, %v12192
  %12577 = vst.msk [vmem:[%s3 + $0x878] sm:$0xff] %vm785, %v12193
  %12578 = vst.msk [vmem:[%s3 + $0x880] sm:$0xff] %vm785, %v12194
  %12579 = vst.msk [vmem:[%s3 + $0x888] sm:$0xff] %vm785, %v12195
  %12580 = vst.msk [vmem:[%s3 + $0x890] sm:$0xff] %vm785, %v12196
  %12581 = vst.msk [vmem:[%s3 + $0x898] sm:$0xff] %vm785, %v12197
  %12582 = vst.msk [vmem:[%s3 + $0x8a0] sm:$0xff] %vm785, %v12198
  %12583 = vst.msk [vmem:[%s3 + $0x8a8] sm:$0xff] %vm785, %v12199
  %12584 = vst.msk [vmem:[%s3 + $0x8b0] sm:$0xff] %vm785, %v12200
  %12585 = vst.msk [vmem:[%s3 + $0x8b8] sm:$0xff] %vm785, %v12201
  %12586 = vst.msk [vmem:[%s3 + $0x8c0] sm:$0xff] %vm785, %v12202
  %12587 = vst.msk [vmem:[%s3 + $0x8c8] sm:$0xff] %vm785, %v12203
  %12588 = vst.msk [vmem:[%s3 + $0x8d0] sm:$0xff] %vm785, %v12204
  %12589 = vst.msk [vmem:[%s3 + $0x8d8] sm:$0xff] %vm785, %v12205
  %12590 = vst.msk [vmem:[%s3 + $0x8e0] sm:$0xff] %vm785, %v12206
  %12591 = vst.msk [vmem:[%s3 + $0x8e8] sm:$0xff] %vm785, %v12207
  %12592 = vst.msk [vmem:[%s3 + $0x8f0] sm:$0xff] %vm785, %v12208
  %12593 = vst.msk [vmem:[%s3 + $0x8f8] sm:$0xff] %vm785, %v12209
  %12594 = vst.msk [vmem:[%s3 + $0x900] sm:$0xff] %vm785, %v12210
  %12595 = vst.msk [vmem:[%s3 + $0x908] sm:$0xff] %vm785, %v12211
  %12596 = vst.msk [vmem:[%s3 + $0x910] sm:$0xff] %vm785, %v12212
  %12597 = vst.msk [vmem:[%s3 + $0x918] sm:$0xff] %vm785, %v12213
  %12598 = vst.msk [vmem:[%s3 + $0x920] sm:$0xff] %vm785, %v12214
  %12599 = vst.msk [vmem:[%s3 + $0x928] sm:$0xff] %vm785, %v12215
  %12600 = vst.msk [vmem:[%s3 + $0x930] sm:$0xff] %vm785, %v12216
  %12601 = vst.msk [vmem:[%s3 + $0x938] sm:$0xff] %vm785, %v12217
  %12602 = vst.msk [vmem:[%s3 + $0x940] sm:$0xff] %vm785, %v12218
  %12603 = vst.msk [vmem:[%s3 + $0x948] sm:$0xff] %vm785, %v12219
  %12604 = vst.msk [vmem:[%s3 + $0x950] sm:$0xff] %vm785, %v12220
  %12605 = vst.msk [vmem:[%s3 + $0x958] sm:$0xff] %vm785, %v12221
  %12606 = vst.msk [vmem:[%s3 + $0x960] sm:$0xff] %vm785, %v12222
  %12607 = vst.msk [vmem:[%s3 + $0x968] sm:$0xff] %vm785, %v12223
  %12608 = vst.msk [vmem:[%s3 + $0x970] sm:$0xff] %vm785, %v12224
  %12609 = vst.msk [vmem:[%s3 + $0x978] sm:$0xff] %vm785, %v12225
  %12610 = vst.msk [vmem:[%s3 + $0x980] sm:$0xff] %vm785, %v12226
  %12611 = vst.msk [vmem:[%s3 + $0x988] sm:$0xff] %vm785, %v12227
  %12612 = vst.msk [vmem:[%s3 + $0x990] sm:$0xff] %vm785, %v12228
  %12613 = vst.msk [vmem:[%s3 + $0x998] sm:$0xff] %vm785, %v12229
  %12614 = vst.msk [vmem:[%s3 + $0x9a0] sm:$0xff] %vm785, %v12230
  %12615 = vst.msk [vmem:[%s3 + $0x9a8] sm:$0xff] %vm785, %v12231
  %12616 = vst.msk [vmem:[%s3 + $0x9b0] sm:$0xff] %vm785, %v12232
  %12617 = vst.msk [vmem:[%s3 + $0x9b8] sm:$0xff] %vm785, %v12233
  %12618 = vst.msk [vmem:[%s3 + $0x9c0] sm:$0xff] %vm785, %v12234
  %12619 = vst.msk [vmem:[%s3 + $0x9c8] sm:$0xff] %vm785, %v12235
  %12620 = vst.msk [vmem:[%s3 + $0x9d0] sm:$0xff] %vm785, %v12236
  %12621 = vst.msk [vmem:[%s3 + $0x9d8] sm:$0xff] %vm785, %v12237
  %12622 = vst.msk [vmem:[%s3 + $0x9e0] sm:$0xff] %vm785, %v12238
  %12623 = vst.msk [vmem:[%s3 + $0x9e8] sm:$0xff] %vm785, %v12239
  %12624 = vst.msk [vmem:[%s3 + $0x9f0] sm:$0xff] %vm785, %v12240
  %12625 = vst.msk [vmem:[%s3 + $0x9f8] sm:$0xff] %vm785, %v12241
  %12626 = vst.msk [vmem:[%s3 + $0xa00] sm:$0xff] %vm785, %v12242
  %12627 = vst.msk [vmem:[%s3 + $0xa08] sm:$0xff] %vm785, %v12243
  %12628 = vst.msk [vmem:[%s3 + $0xa10] sm:$0xff] %vm785, %v12244
  %12629 = vst.msk [vmem:[%s3 + $0xa18] sm:$0xff] %vm785, %v12245
  %12630 = vst.msk [vmem:[%s3 + $0xa20] sm:$0xff] %vm785, %v12246
  %12631 = vst.msk [vmem:[%s3 + $0xa28] sm:$0xff] %vm785, %v12247
  %12632 = vst.msk [vmem:[%s3 + $0xa30] sm:$0xff] %vm785, %v12248
  %12633 = vst.msk [vmem:[%s3 + $0xa38] sm:$0xff] %vm785, %v12249
  %12634 = vst.msk [vmem:[%s3 + $0xa40] sm:$0xff] %vm785, %v12250
  %12635 = vst.msk [vmem:[%s3 + $0xa48] sm:$0xff] %vm785, %v12251
  %12636 = vst.msk [vmem:[%s3 + $0xa50] sm:$0xff] %vm785, %v12252
  %12637 = vst.msk [vmem:[%s3 + $0xa58] sm:$0xff] %vm785, %v12253
  %12638 = vst.msk [vmem:[%s3 + $0xa60] sm:$0xff] %vm785, %v12254
  %12639 = vst.msk [vmem:[%s3 + $0xa68] sm:$0xff] %vm785, %v12255
  %12640 = vst.msk [vmem:[%s3 + $0xa70] sm:$0xff] %vm785, %v12256
  %12641 = vst.msk [vmem:[%s3 + $0xa78] sm:$0xff] %vm785, %v12257
  %12642 = vst.msk [vmem:[%s3 + $0xa80] sm:$0xff] %vm785, %v12258
  %12643 = vst.msk [vmem:[%s3 + $0xa88] sm:$0xff] %vm785, %v12259
  %12644 = vst.msk [vmem:[%s3 + $0xa90] sm:$0xff] %vm785, %v12260
  %12645 = vst.msk [vmem:[%s3 + $0xa98] sm:$0xff] %vm785, %v12261
  %12646 = vst.msk [vmem:[%s3 + $0xaa0] sm:$0xff] %vm785, %v12262
  %12647 = vst.msk [vmem:[%s3 + $0xaa8] sm:$0xff] %vm785, %v12263
  %12648 = vst.msk [vmem:[%s3 + $0xab0] sm:$0xff] %vm785, %v12264
  %12649 = vst.msk [vmem:[%s3 + $0xab8] sm:$0xff] %vm785, %v12265
  %12650 = vst.msk [vmem:[%s3 + $0xac0] sm:$0xff] %vm785, %v12266
  %12651 = vst.msk [vmem:[%s3 + $0xac8] sm:$0xff] %vm785, %v12267
  %12652 = vst.msk [vmem:[%s3 + $0xad0] sm:$0xff] %vm785, %v12268
  %12653 = vst.msk [vmem:[%s3 + $0xad8] sm:$0xff] %vm785, %v12269
  %12654 = vst.msk [vmem:[%s3 + $0xae0] sm:$0xff] %vm785, %v12270
  %12655 = vst.msk [vmem:[%s3 + $0xae8] sm:$0xff] %vm785, %v12271
  %12656 = vst.msk [vmem:[%s3 + $0xaf0] sm:$0xff] %vm785, %v12272
  %12657 = vst.msk [vmem:[%s3 + $0xaf8] sm:$0xff] %vm785, %v12273
  %12658 = vst.msk [vmem:[%s3 + $0xb00] sm:$0xff] %vm785, %v12274
  %12659 = vst.msk [vmem:[%s3 + $0xb08] sm:$0xff] %vm785, %v12275
  %12660 = vst.msk [vmem:[%s3 + $0xb10] sm:$0xff] %vm785, %v12276
  %12661 = vst.msk [vmem:[%s3 + $0xb18] sm:$0xff] %vm785, %v12277
  %12662 = vst.msk [vmem:[%s3 + $0xb20] sm:$0xff] %vm785, %v12278
  %12663 = vst.msk [vmem:[%s3 + $0xb28] sm:$0xff] %vm785, %v12279
  %12664 = vst.msk [vmem:[%s3 + $0xb30] sm:$0xff] %vm785, %v12280
  %12665 = vst.msk [vmem:[%s3 + $0xb38] sm:$0xff] %vm785, %v12281
  %12666 = vst.msk [vmem:[%s3 + $0xb40] sm:$0xff] %vm785, %v12282
  %12667 = vst.msk [vmem:[%s3 + $0xb48] sm:$0xff] %vm785, %v12283
  %12668 = vst.msk [vmem:[%s3 + $0xb50] sm:$0xff] %vm785, %v12284
  %12669 = vst.msk [vmem:[%s3 + $0xb58] sm:$0xff] %vm785, %v12285
  %12670 = vst.msk [vmem:[%s3 + $0xb60] sm:$0xff] %vm785, %v12286
  %12671 = vst.msk [vmem:[%s3 + $0xb68] sm:$0xff] %vm785, %v12287
  %12672 = vst.msk [vmem:[%s3 + $0xb70] sm:$0xff] %vm785, %v12288
  %12673 = vst.msk [vmem:[%s3 + $0xb78] sm:$0xff] %vm785, %v12289
  %12674 = vst.msk [vmem:[%s3 + $0xb80] sm:$0xff] %vm785, %v12290
  %12675 = vst.msk [vmem:[%s3 + $0xb88] sm:$0xff] %vm785, %v12291
  %12676 = vst.msk [vmem:[%s3 + $0xb90] sm:$0xff] %vm785, %v12292
  %12677 = vst.msk [vmem:[%s3 + $0xb98] sm:$0xff] %vm785, %v12293
  %12678 = vst.msk [vmem:[%s3 + $0xba0] sm:$0xff] %vm785, %v12294
  %12679 = vst.msk [vmem:[%s3 + $0xba8] sm:$0xff] %vm785, %v12295
  %12680 = vst.msk [vmem:[%s3 + $0xbb0] sm:$0xff] %vm785, %v12296
  %12681 = vst.msk [vmem:[%s3 + $0xbb8] sm:$0xff] %vm785, %v12297
  %12682 = vst.msk [vmem:[%s3 + $0xbc0] sm:$0xff] %vm785, %v12298
  %12683 = vst.msk [vmem:[%s3 + $0xbc8] sm:$0xff] %vm785, %v12299
  %12684 = vst.msk [vmem:[%s3 + $0xbd0] sm:$0xff] %vm785, %v12300
  %12685 = vst.msk [vmem:[%s3 + $0xbd8] sm:$0xff] %vm785, %v12301
  %12686 = vst.msk [vmem:[%s3 + $0xbe0] sm:$0xff] %vm785, %v12302
  %12687 = vst.msk [vmem:[%s3 + $0xbe8] sm:$0xff] %vm785, %v12303
  %12688 = vst.msk [vmem:[%s3 + $0xbf0] sm:$0xff] %vm785, %v12304
  %12689 = vst.msk [vmem:[%s3 + $0xbf8] sm:$0xff] %vm785, %v12305
  // Predicated region
  $region14: #{tpu_custom_call.1} parent=0 // pred_check
    _
  $region15: #{tpu_custom_call.1} parent=0 // pred_check_branch
    %12691 = sbr.rel (0) target = $region17
  $region16: #{tpu_custom_call.1} parent=0 // pred_region
    _
  $region17: #{tpu_custom_call.1} parent=0 // pred_fallthru
    _
  // Predicated region
  $region18: #{tpu_custom_call.1} parent=0 // pred_check
    _
  $region19: #{tpu_custom_call.1} parent=0 // pred_check_branch
    %12693 = sbr.rel (0) target = $region21
  $region20: #{tpu_custom_call.1} parent=0 // pred_region
    _
  $region21: #{tpu_custom_call.1} parent=0 // pred_fallthru
    _

</llo_original>
